<compile_context>
chip_gen: v6e
topology: v6e:2x2x1
jax: 0.10.0
libtpu: 0.0.40
codegen_flags: <defaults>
</compile_context>

<pallas_src>
import jax
import jax.numpy as jnp
from jax.experimental import pallas as pl
from jax.experimental.pallas import tpu as pltpu

_COMPUTE_DTYPE = jnp.bfloat16   # MXU operand dtype; accumulation stays f32.


def _coupled_head_kernel(x_ref, w_ref, b_ref, o_ref, xpad_ref):
    """One batch element per grid step, all conv layers fused.

    x_ref:    (1, H, W, C)        input tile (compute dtype)
    w_ref:    (L, 9*C, C)         per-layer im2col weights (compute dtype)
    b_ref:    (L, 1, C)           per-layer bias (f32)
    o_ref:    (1, H, W, C)        output tile (f32)
    xpad_ref: (H+2, W+2, C) VMEM  zero-padded activation carried across layers
    """
    _, H, W, C = x_ref.shape
    L = w_ref.shape[0]

    # In-VMEM halo padding: zero once, then keep the live activation in the
    # interior (the border stays zero because only the interior is rewritten).
    xpad_ref[...] = jnp.zeros_like(xpad_ref)
    xpad_ref[1:H + 1, 1:W + 1, :] = x_ref[0].astype(xpad_ref.dtype)

    for l in range(L):
        # im2col: 9 shifted (H, W, C) views concatenated on the channel axis
        # -> (H, W, 9*C). Channel order (ky, kx, cin) matches the
        # (L, 3, 3, Cin, Cout) -> (L, 9*Cin, Cout) weight reshape in the
        # wrapper.
        cols = jnp.concatenate(
            [xpad_ref[ky:ky + H, kx:kx + W, :]
             for ky in range(3) for kx in range(3)],
            axis=-1)
        # Single MXU contraction per layer with K = 9*C; f32 accumulation.
        acc = jax.lax.dot_general(
            cols, w_ref[l],
            dimension_numbers=(((2,), (0,)), ((), ())),
            preferred_element_type=jnp.float32)            # (H, W, C) f32
        y = jnp.maximum(acc + b_ref[l], 0.0)               # bias + ReLU (f32)
        if l < L - 1:
            xpad_ref[1:H + 1, 1:W + 1, :] = y.astype(xpad_ref.dtype)
        else:
            o_ref[...] = y[None].astype(o_ref.dtype)


@jax.jit
def coupled_head_forward(x_nchw, ws, bs):
    """x_nchw: (B, C, H, W); ws: (L, 3, 3, Cin, Cout) HWIO; bs: (L, C).

    Returns (cls_feats, reg_feats), both (B, C, H, W), like the PyTorch module
    (cls_feats is reg_feats is self.feats(x)).
    """
    B, C, H, W = x_nchw.shape
    L = ws.shape[0]

    x = jnp.transpose(x_nchw, (0, 2, 3, 1)).astype(_COMPUTE_DTYPE)   # NHWC
    w2 = ws.reshape(L, 9 * C, C).astype(_COMPUTE_DTYPE)              # im2col
    b2 = bs.reshape(L, 1, C).astype(jnp.float32)

    bytes_accessed = (B * H * W * C * 2        # x (bf16)
                      + L * 9 * C * C * 2      # weights (bf16)
                      + L * C * 4              # bias (f32)
                      + B * H * W * C * 4)     # output (f32)

    out = pl.pallas_call(
        _coupled_head_kernel,
        out_shape=jax.ShapeDtypeStruct((B, H, W, C), jnp.float32),
        grid=(B,),
        in_specs=[
            pl.BlockSpec((1, H, W, C), lambda b: (b, 0, 0, 0)),
            pl.BlockSpec((L, 9 * C, C), lambda b: (0, 0, 0)),   # constant: no re-DMA
            pl.BlockSpec((L, 1, C), lambda b: (0, 0, 0)),       # constant: no re-DMA
        ],
        out_specs=pl.BlockSpec((1, H, W, C), lambda b: (b, 0, 0, 0)),
        scratch_shapes=[pltpu.VMEM((H + 2, W + 2, C), _COMPUTE_DTYPE)],
        compiler_params=pltpu.CompilerParams(
            dimension_semantics=("parallel",)),
        cost_estimate=pl.CostEstimate(
            flops=2 * B * L * H * W * 9 * C * C,
            transcendentals=0,
            bytes_accessed=bytes_accessed),
    )(x, w2, b2)

    feats = jnp.transpose(out, (0, 3, 1, 2)).astype(x_nchw.dtype)    # NCHW
    return feats, feats


def init_coupled_head_params(key, head_dim, num_head):
    """Matches CoupledHead._init_weight: conv weight ~ N(0, 0.01), bias = 0.

    Weights are stored HWIO (kH, kW, Cin, Cout). Use `torch_oihw_to_hwio` to
    load real PyTorch (OIHW) checkpoints.
    """
    ws, bs = [], []
    for _ in range(num_head):
        key, sub = jax.random.split(key)
        ws.append(0.01 * jax.random.normal(
            sub, (3, 3, head_dim, head_dim), dtype=jnp.float32))
        bs.append(jnp.zeros((head_dim,), dtype=jnp.float32))
    return jnp.stack(ws), jnp.stack(bs)


def torch_oihw_to_hwio(w_oihw):
    """PyTorch Conv2d weight (Cout, Cin, kH, kW) -> HWIO (kH, kW, Cin, Cout)."""
    return jnp.transpose(w_oihw, (2, 3, 1, 0))


def coupled_head_reference(x_nchw, ws, bs):
    """Pure-JAX f32 reference (lax conv == cross-correlation, like PyTorch)."""
    x = x_nchw
    for l in range(ws.shape[0]):
        x = jax.lax.conv_general_dilated(
            x, ws[l], window_strides=(1, 1), padding="SAME",
            dimension_numbers=("NCHW", "HWIO", "NCHW"))
        x = jnp.maximum(x + bs[l].reshape(1, -1, 1, 1), 0.0)
    return x, x


if __name__ == "__main__":
    B, HEAD_DIM, H, W = 2, 32, 16, 16
    NUM_HEAD = 4

    key = jax.random.PRNGKey(0)
    key, xkey, bkey = jax.random.split(key, 3)
    x = jax.random.normal(xkey, (B, HEAD_DIM, H, W), dtype=jnp.float32)

    ws, bs = init_coupled_head_params(key, HEAD_DIM, NUM_HEAD)
    # The module inits biases to 0; use non-zero biases here so the bias path
    # is actually exercised by the numerical check (forward semantics hold for
    # any parameter values).
    bs = 0.1 * jax.random.normal(bkey, bs.shape, dtype=jnp.float32)

    cls_feats, reg_feats = coupled_head_forward(x, ws, bs)
    jax.block_until_ready((cls_feats, reg_feats))

    assert cls_feats.shape == (B, HEAD_DIM, H, W)
    assert reg_feats.shape == (B, HEAD_DIM, H, W)
    assert cls_feats.dtype == jnp.float32

    # Correctness vs. pure-JAX f32 reference (loose tolerance: bf16 operands).
    ref_cls, _ = coupled_head_reference(x, ws, bs)
    err = float(jnp.max(jnp.abs(cls_feats - ref_cls))
                / (jnp.max(jnp.abs(ref_cls)) + 1e-8))
    assert err < 1e-1, f"max-normalized error too large: {err}"

    print("KERNEL_OK")
</pallas_src>

<mosaic_0001>
module attributes {stable_mosaic.version = 11 : i64} {
  func.func @_coupled_head_kernel(%arg0: i32, %arg1: memref<1x16x16x32xbf16, #tpu.memory_space<vmem>>, %arg2: memref<4x288x32xbf16, #tpu.memory_space<vmem>>, %arg3: memref<4x1x32xf32, #tpu.memory_space<vmem>>, %arg4: memref<1x16x16x32xf32, #tpu.memory_space<vmem>>, %arg5: memref<18x18x32xbf16, #tpu.memory_space<vmem>>) attributes {dimension_semantics = [#tpu.dimension_semantics<parallel>], iteration_bounds = array<i64: 2>, scalar_prefetch = 0 : i64, scratch_operands = 1 : i64, tpu.core_type = #tpu.core_type<tc>, window_params = [{transform_indices = @transform_0, window_bounds = array<i64: 1, 16, 16, 32>}, {pipeline_mode = #tpu.pipeline_mode<synchronous>, transform_indices = @transform_1, window_bounds = array<i64: 4, 288, 32>}, {pipeline_mode = #tpu.pipeline_mode<synchronous>, transform_indices = @transform_2, window_bounds = array<i64: 4, 1, 32>}, {transform_indices = @transform_3, window_bounds = array<i64: 1, 16, 16, 32>}]} {
    %cst = arith.constant 0.000000e+00 : bf16
    %0 = vector.broadcast %cst : bf16 to vector<18x18x32xbf16>
    %c0 = arith.constant 0 : index
    %c0_0 = arith.constant 0 : index
    %c0_1 = arith.constant 0 : index
    %1 = vector.load %arg5[%c0, %c0_0, %c0_1] : memref<18x18x32xbf16, #tpu.memory_space<vmem>>, vector<18x18x32xbf16>
    tpu.vector_store %arg5[%c0, %c0_0, %c0_1], %0 {strides = array<i32>} : memref<18x18x32xbf16, #tpu.memory_space<vmem>>, vector<18x18x32xbf16>,
    %c0_2 = arith.constant 0 : index
    %c0_3 = arith.constant 0 : index
    %c0_4 = arith.constant 0 : index
    %c0_5 = arith.constant 0 : index
    %2 = vector.load %arg1[%c0_2, %c0_3, %c0_4, %c0_5] : memref<1x16x16x32xbf16, #tpu.memory_space<vmem>>, vector<1x16x16x32xbf16>
    %3 = vector.shape_cast %2 : vector<1x16x16x32xbf16> to vector<16x16x32xbf16>
    %c1 = arith.constant 1 : index
    %c1_6 = arith.constant 1 : index
    %c0_7 = arith.constant 0 : index
    %4 = vector.load %arg5[%c1, %c1_6, %c0_7] : memref<18x18x32xbf16, #tpu.memory_space<vmem>>, vector<16x16x32xbf16>
    tpu.vector_store %arg5[%c1, %c1_6, %c0_7], %3 {strides = array<i32>} : memref<18x18x32xbf16, #tpu.memory_space<vmem>>, vector<16x16x32xbf16>,
    %c0_8 = arith.constant 0 : index
    %c0_9 = arith.constant 0 : index
    %c0_10 = arith.constant 0 : index
    %5 = vector.load %arg5[%c0_8, %c0_9, %c0_10] : memref<18x18x32xbf16, #tpu.memory_space<vmem>>, vector<16x16x32xbf16>
    %c0_11 = arith.constant 0 : index
    %c1_12 = arith.constant 1 : index
    %c0_13 = arith.constant 0 : index
    %6 = vector.load %arg5[%c0_11, %c1_12, %c0_13] : memref<18x18x32xbf16, #tpu.memory_space<vmem>>, vector<16x16x32xbf16>
    %c0_14 = arith.constant 0 : index
    %c2 = arith.constant 2 : index
    %c0_15 = arith.constant 0 : index
    %7 = vector.load %arg5[%c0_14, %c2, %c0_15] : memref<18x18x32xbf16, #tpu.memory_space<vmem>>, vector<16x16x32xbf16>
    %c1_16 = arith.constant 1 : index
    %c0_17 = arith.constant 0 : index
    %c0_18 = arith.constant 0 : index
    %8 = vector.load %arg5[%c1_16, %c0_17, %c0_18] : memref<18x18x32xbf16, #tpu.memory_space<vmem>>, vector<16x16x32xbf16>
    %c1_19 = arith.constant 1 : index
    %c1_20 = arith.constant 1 : index
    %c0_21 = arith.constant 0 : index
    %9 = vector.load %arg5[%c1_19, %c1_20, %c0_21] : memref<18x18x32xbf16, #tpu.memory_space<vmem>>, vector<16x16x32xbf16>
    %c1_22 = arith.constant 1 : index
    %c2_23 = arith.constant 2 : index
    %c0_24 = arith.constant 0 : index
    %10 = vector.load %arg5[%c1_22, %c2_23, %c0_24] : memref<18x18x32xbf16, #tpu.memory_space<vmem>>, vector<16x16x32xbf16>
    %c2_25 = arith.constant 2 : index
    %c0_26 = arith.constant 0 : index
    %c0_27 = arith.constant 0 : index
    %11 = vector.load %arg5[%c2_25, %c0_26, %c0_27] : memref<18x18x32xbf16, #tpu.memory_space<vmem>>, vector<16x16x32xbf16>
    %c2_28 = arith.constant 2 : index
    %c1_29 = arith.constant 1 : index
    %c0_30 = arith.constant 0 : index
    %12 = vector.load %arg5[%c2_28, %c1_29, %c0_30] : memref<18x18x32xbf16, #tpu.memory_space<vmem>>, vector<16x16x32xbf16>
    %c2_31 = arith.constant 2 : index
    %c2_32 = arith.constant 2 : index
    %c0_33 = arith.constant 0 : index
    %13 = vector.load %arg5[%c2_31, %c2_32, %c0_33] : memref<18x18x32xbf16, #tpu.memory_space<vmem>>, vector<16x16x32xbf16>
    %14 = tpu.concatenate %5, %6, %7, %8, %9, %10, %11, %12, %13 in 2 : vector<16x16x32xbf16>, vector<16x16x32xbf16>, vector<16x16x32xbf16>, vector<16x16x32xbf16>, vector<16x16x32xbf16>, vector<16x16x32xbf16>, vector<16x16x32xbf16>, vector<16x16x32xbf16>, vector<16x16x32xbf16> -> vector<16x16x288xbf16>
    %c0_34 = arith.constant 0 : index
    %c0_35 = arith.constant 0 : index
    %c0_36 = arith.constant 0 : index
    %15 = vector.load %arg2[%c0_34, %c0_35, %c0_36] : memref<4x288x32xbf16, #tpu.memory_space<vmem>>, vector<1x288x32xbf16>
    %16 = vector.shape_cast %15 : vector<1x288x32xbf16> to vector<288x32xbf16>
    %cst_37 = arith.constant dense<0.000000e+00> : vector<16x16x32xf32>
    %17 = tpu.matmul %14, %16, %cst_37 {dimension_numbers = #tpu.dot_dimension_numbers<[2], [0], [0, 1], [1], [0, 0, 0, 1, 1, 1], [], []>} : vector<16x16x288xbf16>, vector<288x32xbf16>, vector<16x16x32xf32> -> vector<16x16x32xf32>
    %c0_38 = arith.constant 0 : index
    %c0_39 = arith.constant 0 : index
    %c0_40 = arith.constant 0 : index
    %18 = vector.load %arg3[%c0_38, %c0_39, %c0_40] : memref<4x1x32xf32, #tpu.memory_space<vmem>>, vector<1x1x32xf32>
    %19 = vector.shape_cast %18 : vector<1x1x32xf32> to vector<1x32xf32>
    %20 = vector.shape_cast %19 : vector<1x32xf32> to vector<1x1x32xf32>
    %21 = vector.broadcast %20 : vector<1x1x32xf32> to vector<16x16x32xf32>
    %22 = arith.addf %17, %21 : vector<16x16x32xf32>
    %cst_41 = arith.constant 0.000000e+00 : f32
    %23 = vector.broadcast %cst_41 : f32 to vector<16x16x32xf32>
    %24 = arith.maximumf %22, %23 : vector<16x16x32xf32>
    %25 = arith.truncf %24 : vector<16x16x32xf32> to vector<16x16x32xbf16>
    %c1_42 = arith.constant 1 : index
    %c1_43 = arith.constant 1 : index
    %c0_44 = arith.constant 0 : index
    %26 = vector.load %arg5[%c1_42, %c1_43, %c0_44] : memref<18x18x32xbf16, #tpu.memory_space<vmem>>, vector<16x16x32xbf16>
    tpu.vector_store %arg5[%c1_42, %c1_43, %c0_44], %25 {strides = array<i32>} : memref<18x18x32xbf16, #tpu.memory_space<vmem>>, vector<16x16x32xbf16>,
    %c0_45 = arith.constant 0 : index
    %c0_46 = arith.constant 0 : index
    %c0_47 = arith.constant 0 : index
    %27 = vector.load %arg5[%c0_45, %c0_46, %c0_47] : memref<18x18x32xbf16, #tpu.memory_space<vmem>>, vector<16x16x32xbf16>
    %c0_48 = arith.constant 0 : index
    %c1_49 = arith.constant 1 : index
    %c0_50 = arith.constant 0 : index
    %28 = vector.load %arg5[%c0_48, %c1_49, %c0_50] : memref<18x18x32xbf16, #tpu.memory_space<vmem>>, vector<16x16x32xbf16>
    %c0_51 = arith.constant 0 : index
    %c2_52 = arith.constant 2 : index
    %c0_53 = arith.constant 0 : index
    %29 = vector.load %arg5[%c0_51, %c2_52, %c0_53] : memref<18x18x32xbf16, #tpu.memory_space<vmem>>, vector<16x16x32xbf16>
    %c1_54 = arith.constant 1 : index
    %c0_55 = arith.constant 0 : index
    %c0_56 = arith.constant 0 : index
    %30 = vector.load %arg5[%c1_54, %c0_55, %c0_56] : memref<18x18x32xbf16, #tpu.memory_space<vmem>>, vector<16x16x32xbf16>
    %c1_57 = arith.constant 1 : index
    %c1_58 = arith.constant 1 : index
    %c0_59 = arith.constant 0 : index
    %31 = vector.load %arg5[%c1_57, %c1_58, %c0_59] : memref<18x18x32xbf16, #tpu.memory_space<vmem>>, vector<16x16x32xbf16>
    %c1_60 = arith.constant 1 : index
    %c2_61 = arith.constant 2 : index
    %c0_62 = arith.constant 0 : index
    %32 = vector.load %arg5[%c1_60, %c2_61, %c0_62] : memref<18x18x32xbf16, #tpu.memory_space<vmem>>, vector<16x16x32xbf16>
    %c2_63 = arith.constant 2 : index
    %c0_64 = arith.constant 0 : index
    %c0_65 = arith.constant 0 : index
    %33 = vector.load %arg5[%c2_63, %c0_64, %c0_65] : memref<18x18x32xbf16, #tpu.memory_space<vmem>>, vector<16x16x32xbf16>
    %c2_66 = arith.constant 2 : index
    %c1_67 = arith.constant 1 : index
    %c0_68 = arith.constant 0 : index
    %34 = vector.load %arg5[%c2_66, %c1_67, %c0_68] : memref<18x18x32xbf16, #tpu.memory_space<vmem>>, vector<16x16x32xbf16>
    %c2_69 = arith.constant 2 : index
    %c2_70 = arith.constant 2 : index
    %c0_71 = arith.constant 0 : index
    %35 = vector.load %arg5[%c2_69, %c2_70, %c0_71] : memref<18x18x32xbf16, #tpu.memory_space<vmem>>, vector<16x16x32xbf16>
    %36 = tpu.concatenate %27, %28, %29, %30, %31, %32, %33, %34, %35 in 2 : vector<16x16x32xbf16>, vector<16x16x32xbf16>, vector<16x16x32xbf16>, vector<16x16x32xbf16>, vector<16x16x32xbf16>, vector<16x16x32xbf16>, vector<16x16x32xbf16>, vector<16x16x32xbf16>, vector<16x16x32xbf16> -> vector<16x16x288xbf16>
    %c1_72 = arith.constant 1 : index
    %c0_73 = arith.constant 0 : index
    %c0_74 = arith.constant 0 : index
    %37 = vector.load %arg2[%c1_72, %c0_73, %c0_74] : memref<4x288x32xbf16, #tpu.memory_space<vmem>>, vector<1x288x32xbf16>
    %38 = vector.shape_cast %37 : vector<1x288x32xbf16> to vector<288x32xbf16>
    %cst_75 = arith.constant dense<0.000000e+00> : vector<16x16x32xf32>
    %39 = tpu.matmul %36, %38, %cst_75 {dimension_numbers = #tpu.dot_dimension_numbers<[2], [0], [0, 1], [1], [0, 0, 0, 1, 1, 1], [], []>} : vector<16x16x288xbf16>, vector<288x32xbf16>, vector<16x16x32xf32> -> vector<16x16x32xf32>
    %c1_76 = arith.constant 1 : index
    %c0_77 = arith.constant 0 : index
    %c0_78 = arith.constant 0 : index
    %40 = vector.load %arg3[%c1_76, %c0_77, %c0_78] : memref<4x1x32xf32, #tpu.memory_space<vmem>>, vector<1x1x32xf32>
    %41 = vector.shape_cast %40 : vector<1x1x32xf32> to vector<1x32xf32>
    %42 = vector.shape_cast %41 : vector<1x32xf32> to vector<1x1x32xf32>
    %43 = vector.broadcast %42 : vector<1x1x32xf32> to vector<16x16x32xf32>
    %44 = arith.addf %39, %43 : vector<16x16x32xf32>
    %cst_79 = arith.constant 0.000000e+00 : f32
    %45 = vector.broadcast %cst_79 : f32 to vector<16x16x32xf32>
    %46 = arith.maximumf %44, %45 : vector<16x16x32xf32>
    %47 = arith.truncf %46 : vector<16x16x32xf32> to vector<16x16x32xbf16>
    %c1_80 = arith.constant 1 : index
    %c1_81 = arith.constant 1 : index
    %c0_82 = arith.constant 0 : index
    %48 = vector.load %arg5[%c1_80, %c1_81, %c0_82] : memref<18x18x32xbf16, #tpu.memory_space<vmem>>, vector<16x16x32xbf16>
    tpu.vector_store %arg5[%c1_80, %c1_81, %c0_82], %47 {strides = array<i32>} : memref<18x18x32xbf16, #tpu.memory_space<vmem>>, vector<16x16x32xbf16>,
    %c0_83 = arith.constant 0 : index
    %c0_84 = arith.constant 0 : index
    %c0_85 = arith.constant 0 : index
    %49 = vector.load %arg5[%c0_83, %c0_84, %c0_85] : memref<18x18x32xbf16, #tpu.memory_space<vmem>>, vector<16x16x32xbf16>
    %c0_86 = arith.constant 0 : index
    %c1_87 = arith.constant 1 : index
    %c0_88 = arith.constant 0 : index
    %50 = vector.load %arg5[%c0_86, %c1_87, %c0_88] : memref<18x18x32xbf16, #tpu.memory_space<vmem>>, vector<16x16x32xbf16>
    %c0_89 = arith.constant 0 : index
    %c2_90 = arith.constant 2 : index
    %c0_91 = arith.constant 0 : index
    %51 = vector.load %arg5[%c0_89, %c2_90, %c0_91] : memref<18x18x32xbf16, #tpu.memory_space<vmem>>, vector<16x16x32xbf16>
    %c1_92 = arith.constant 1 : index
    %c0_93 = arith.constant 0 : index
    %c0_94 = arith.constant 0 : index
    %52 = vector.load %arg5[%c1_92, %c0_93, %c0_94] : memref<18x18x32xbf16, #tpu.memory_space<vmem>>, vector<16x16x32xbf16>
    %c1_95 = arith.constant 1 : index
    %c1_96 = arith.constant 1 : index
    %c0_97 = arith.constant 0 : index
    %53 = vector.load %arg5[%c1_95, %c1_96, %c0_97] : memref<18x18x32xbf16, #tpu.memory_space<vmem>>, vector<16x16x32xbf16>
    %c1_98 = arith.constant 1 : index
    %c2_99 = arith.constant 2 : index
    %c0_100 = arith.constant 0 : index
    %54 = vector.load %arg5[%c1_98, %c2_99, %c0_100] : memref<18x18x32xbf16, #tpu.memory_space<vmem>>, vector<16x16x32xbf16>
    %c2_101 = arith.constant 2 : index
    %c0_102 = arith.constant 0 : index
    %c0_103 = arith.constant 0 : index
    %55 = vector.load %arg5[%c2_101, %c0_102, %c0_103] : memref<18x18x32xbf16, #tpu.memory_space<vmem>>, vector<16x16x32xbf16>
    %c2_104 = arith.constant 2 : index
    %c1_105 = arith.constant 1 : index
    %c0_106 = arith.constant 0 : index
    %56 = vector.load %arg5[%c2_104, %c1_105, %c0_106] : memref<18x18x32xbf16, #tpu.memory_space<vmem>>, vector<16x16x32xbf16>
    %c2_107 = arith.constant 2 : index
    %c2_108 = arith.constant 2 : index
    %c0_109 = arith.constant 0 : index
    %57 = vector.load %arg5[%c2_107, %c2_108, %c0_109] : memref<18x18x32xbf16, #tpu.memory_space<vmem>>, vector<16x16x32xbf16>
    %58 = tpu.concatenate %49, %50, %51, %52, %53, %54, %55, %56, %57 in 2 : vector<16x16x32xbf16>, vector<16x16x32xbf16>, vector<16x16x32xbf16>, vector<16x16x32xbf16>, vector<16x16x32xbf16>, vector<16x16x32xbf16>, vector<16x16x32xbf16>, vector<16x16x32xbf16>, vector<16x16x32xbf16> -> vector<16x16x288xbf16>
    %c2_110 = arith.constant 2 : index
    %c0_111 = arith.constant 0 : index
    %c0_112 = arith.constant 0 : index
    %59 = vector.load %arg2[%c2_110, %c0_111, %c0_112] : memref<4x288x32xbf16, #tpu.memory_space<vmem>>, vector<1x288x32xbf16>
    %60 = vector.shape_cast %59 : vector<1x288x32xbf16> to vector<288x32xbf16>
    %cst_113 = arith.constant dense<0.000000e+00> : vector<16x16x32xf32>
    %61 = tpu.matmul %58, %60, %cst_113 {dimension_numbers = #tpu.dot_dimension_numbers<[2], [0], [0, 1], [1], [0, 0, 0, 1, 1, 1], [], []>} : vector<16x16x288xbf16>, vector<288x32xbf16>, vector<16x16x32xf32> -> vector<16x16x32xf32>
    %c2_114 = arith.constant 2 : index
    %c0_115 = arith.constant 0 : index
    %c0_116 = arith.constant 0 : index
    %62 = vector.load %arg3[%c2_114, %c0_115, %c0_116] : memref<4x1x32xf32, #tpu.memory_space<vmem>>, vector<1x1x32xf32>
    %63 = vector.shape_cast %62 : vector<1x1x32xf32> to vector<1x32xf32>
    %64 = vector.shape_cast %63 : vector<1x32xf32> to vector<1x1x32xf32>
    %65 = vector.broadcast %64 : vector<1x1x32xf32> to vector<16x16x32xf32>
    %66 = arith.addf %61, %65 : vector<16x16x32xf32>
    %cst_117 = arith.constant 0.000000e+00 : f32
    %67 = vector.broadcast %cst_117 : f32 to vector<16x16x32xf32>
    %68 = arith.maximumf %66, %67 : vector<16x16x32xf32>
    %69 = arith.truncf %68 : vector<16x16x32xf32> to vector<16x16x32xbf16>
    %c1_118 = arith.constant 1 : index
    %c1_119 = arith.constant 1 : index
    %c0_120 = arith.constant 0 : index
    %70 = vector.load %arg5[%c1_118, %c1_119, %c0_120] : memref<18x18x32xbf16, #tpu.memory_space<vmem>>, vector<16x16x32xbf16>
    tpu.vector_store %arg5[%c1_118, %c1_119, %c0_120], %69 {strides = array<i32>} : memref<18x18x32xbf16, #tpu.memory_space<vmem>>, vector<16x16x32xbf16>,
    %c0_121 = arith.constant 0 : index
    %c0_122 = arith.constant 0 : index
    %c0_123 = arith.constant 0 : index
    %71 = vector.load %arg5[%c0_121, %c0_122, %c0_123] : memref<18x18x32xbf16, #tpu.memory_space<vmem>>, vector<16x16x32xbf16>
    %c0_124 = arith.constant 0 : index
    %c1_125 = arith.constant 1 : index
    %c0_126 = arith.constant 0 : index
    %72 = vector.load %arg5[%c0_124, %c1_125, %c0_126] : memref<18x18x32xbf16, #tpu.memory_space<vmem>>, vector<16x16x32xbf16>
    %c0_127 = arith.constant 0 : index
    %c2_128 = arith.constant 2 : index
    %c0_129 = arith.constant 0 : index
    %73 = vector.load %arg5[%c0_127, %c2_128, %c0_129] : memref<18x18x32xbf16, #tpu.memory_space<vmem>>, vector<16x16x32xbf16>
    %c1_130 = arith.constant 1 : index
    %c0_131 = arith.constant 0 : index
    %c0_132 = arith.constant 0 : index
    %74 = vector.load %arg5[%c1_130, %c0_131, %c0_132] : memref<18x18x32xbf16, #tpu.memory_space<vmem>>, vector<16x16x32xbf16>
    %c1_133 = arith.constant 1 : index
    %c1_134 = arith.constant 1 : index
    %c0_135 = arith.constant 0 : index
    %75 = vector.load %arg5[%c1_133, %c1_134, %c0_135] : memref<18x18x32xbf16, #tpu.memory_space<vmem>>, vector<16x16x32xbf16>
    %c1_136 = arith.constant 1 : index
    %c2_137 = arith.constant 2 : index
    %c0_138 = arith.constant 0 : index
    %76 = vector.load %arg5[%c1_136, %c2_137, %c0_138] : memref<18x18x32xbf16, #tpu.memory_space<vmem>>, vector<16x16x32xbf16>
    %c2_139 = arith.constant 2 : index
    %c0_140 = arith.constant 0 : index
    %c0_141 = arith.constant 0 : index
    %77 = vector.load %arg5[%c2_139, %c0_140, %c0_141] : memref<18x18x32xbf16, #tpu.memory_space<vmem>>, vector<16x16x32xbf16>
    %c2_142 = arith.constant 2 : index
    %c1_143 = arith.constant 1 : index
    %c0_144 = arith.constant 0 : index
    %78 = vector.load %arg5[%c2_142, %c1_143, %c0_144] : memref<18x18x32xbf16, #tpu.memory_space<vmem>>, vector<16x16x32xbf16>
    %c2_145 = arith.constant 2 : index
    %c2_146 = arith.constant 2 : index
    %c0_147 = arith.constant 0 : index
    %79 = vector.load %arg5[%c2_145, %c2_146, %c0_147] : memref<18x18x32xbf16, #tpu.memory_space<vmem>>, vector<16x16x32xbf16>
    %80 = tpu.concatenate %71, %72, %73, %74, %75, %76, %77, %78, %79 in 2 : vector<16x16x32xbf16>, vector<16x16x32xbf16>, vector<16x16x32xbf16>, vector<16x16x32xbf16>, vector<16x16x32xbf16>, vector<16x16x32xbf16>, vector<16x16x32xbf16>, vector<16x16x32xbf16>, vector<16x16x32xbf16> -> vector<16x16x288xbf16>
    %c3 = arith.constant 3 : index
    %c0_148 = arith.constant 0 : index
    %c0_149 = arith.constant 0 : index
    %81 = vector.load %arg2[%c3, %c0_148, %c0_149] : memref<4x288x32xbf16, #tpu.memory_space<vmem>>, vector<1x288x32xbf16>
    %82 = vector.shape_cast %81 : vector<1x288x32xbf16> to vector<288x32xbf16>
    %cst_150 = arith.constant dense<0.000000e+00> : vector<16x16x32xf32>
    %83 = tpu.matmul %80, %82, %cst_150 {dimension_numbers = #tpu.dot_dimension_numbers<[2], [0], [0, 1], [1], [0, 0, 0, 1, 1, 1], [], []>} : vector<16x16x288xbf16>, vector<288x32xbf16>, vector<16x16x32xf32> -> vector<16x16x32xf32>
    %c3_151 = arith.constant 3 : index
    %c0_152 = arith.constant 0 : index
    %c0_153 = arith.constant 0 : index
    %84 = vector.load %arg3[%c3_151, %c0_152, %c0_153] : memref<4x1x32xf32, #tpu.memory_space<vmem>>, vector<1x1x32xf32>
    %85 = vector.shape_cast %84 : vector<1x1x32xf32> to vector<1x32xf32>
    %86 = vector.shape_cast %85 : vector<1x32xf32> to vector<1x1x32xf32>
    %87 = vector.broadcast %86 : vector<1x1x32xf32> to vector<16x16x32xf32>
    %88 = arith.addf %83, %87 : vector<16x16x32xf32>
    %cst_154 = arith.constant 0.000000e+00 : f32
    %89 = vector.broadcast %cst_154 : f32 to vector<16x16x32xf32>
    %90 = arith.maximumf %88, %89 : vector<16x16x32xf32>
    %91 = vector.shape_cast %90 : vector<16x16x32xf32> to vector<1x16x16x32xf32>
    %c0_155 = arith.constant 0 : index
    %c0_156 = arith.constant 0 : index
    %c0_157 = arith.constant 0 : index
    %c0_158 = arith.constant 0 : index
    %92 = vector.load %arg4[%c0_155, %c0_156, %c0_157, %c0_158] : memref<1x16x16x32xf32, #tpu.memory_space<vmem>>, vector<1x16x16x32xf32>
    tpu.vector_store %arg4[%c0_155, %c0_156, %c0_157, %c0_158], %91 {strides = array<i32>} : memref<1x16x16x32xf32, #tpu.memory_space<vmem>>, vector<1x16x16x32xf32>,
    return
  }
  func.func @transform_0(%arg0: i32) -> (i32, i32, i32, i32) {
    %c0_i32 = arith.constant 0 : i32
    %c0_i32_0 = arith.constant 0 : i32
    %c0_i32_1 = arith.constant 0 : i32
    %c0_i32_2 = arith.constant 0 : i32
    return %arg0, %c0_i32, %c0_i32_0, %c0_i32_1 : i32, i32, i32, i32
  }
  func.func @transform_1(%arg0: i32) -> (i32, i32, i32) {
    %c0_i32 = arith.constant 0 : i32
    %c0_i32_0 = arith.constant 0 : i32
    %c0_i32_1 = arith.constant 0 : i32
    %c0_i32_2 = arith.constant 0 : i32
    return %c0_i32, %c0_i32_0, %c0_i32_1 : i32, i32, i32
  }
  func.func @transform_2(%arg0: i32) -> (i32, i32, i32) {
    %c0_i32 = arith.constant 0 : i32
    %c0_i32_0 = arith.constant 0 : i32
    %c0_i32_1 = arith.constant 0 : i32
    %c0_i32_2 = arith.constant 0 : i32
    return %c0_i32, %c0_i32_0, %c0_i32_1 : i32, i32, i32
  }
  func.func @transform_3(%arg0: i32) -> (i32, i32, i32, i32) {
    %c0_i32 = arith.constant 0 : i32
    %c0_i32_0 = arith.constant 0 : i32
    %c0_i32_1 = arith.constant 0 : i32
    %c0_i32_2 = arith.constant 0 : i32
    return %arg0, %c0_i32, %c0_i32_0, %c0_i32_1 : i32, i32, i32, i32
  }
}

</mosaic_0001>

<llo_original>
// kernel: coupled_head_forward.1
$region0: #{coupled_head_forward.1}
  #allocation0 [shape = 'u32[]', space=smem, size = 0x4, offset = 0x4, fixed_abs, tag = 'smem constant byte address 0x4 - core index']
  #allocation1 [shape = 'u32[144,128]{1,0:T(1,128)}', space=vmem, size = 0x12000, scoped, tag = 'internal scratch']
  #allocation2 [shape = 'bf16[18,18,32]{2,1,0:T(8,128)(2,1)}', space=vmem, size = 0x1b000, scoped, tag = 'scratch operand']
  %s0 = inlined_call_operand.vmem [shape: bf16[2,16,16,32], index: 0, kind: input, shape index: {}]
  %s1 = inlined_call_operand.vmem [shape: bf16[4,288,32], index: 1, kind: input, shape index: {}]
  %s2 = inlined_call_operand.vmem [shape: f32[4,1,32], index: 2, kind: input, shape index: {}]
  %s3 = inlined_call_operand.vmem [shape: f32[2,16,16,32], index: 3, kind: output, shape index: {}]
  %s4 = sld [smem:[#allocation0]]
  $region45: #{coupled_head_forward.1} parent=0
    _
  %s6 = ssub.s32 1, %s4
  %s7 = scalar_select 0, %s6, %s4
  loop: start=0, step=1, limit=4
  $region2: #{coupled_head_forward.1} parent=0 // loop_pre_header
    _
  $region3: #{coupled_head_forward.1} parent=0 // loop_header
    %s9 = sphi 0, %s13
    %p10 = scmp.ge.s32.totalorder %s9, 4
    %s19 = sphi 0, %s21
    %s22 = sphi 0, %s19
    %s23 = sphi 0, %s22
    %s39 = sphi 0, %s23
    %s43 = sphi 0, %s43
    %s45 = sphi 0, %s43
    %s46 = sphi 0, %s45
    %s60 = sphi 0, %s46
    %s64 = sphi 0, %s64
    %s66 = sphi 0, %s64
    %s67 = sphi 0, %s66
    %s81 = sphi 0, %s67
    %s87 = sphi 0, %s89
    %s90 = sphi 0, %s87
    %s91 = sphi 0, %s90
    %s107 = sphi 0, %s91
  $region4: #{coupled_head_forward.1} parent=0 // loop_header_branch
    %12 = sbr.rel (%p10) target = $region8
  $region5: #{coupled_head_forward.1} parent=0 // loop_body
    %s14 = ssub.s32 %s9, 1
    %s15 = ssub.s32 %s9, 2
    %s16 = sadd.s32 %s9, 1
    %s17 = ssub.s32 %s9, %s16
    %p18 = scmp.eq.s32.totalorder %s17, 0
    %s20 = sadd.s32 %s19, 1
    %s21 = scalar_select %p18, %s19, %s20
    %p24 = pneg %p18
    %p25 = scmp.eq.s32.totalorder %s9, 1
    %p26 = por %p24, %p25
    %p27 = scmp.ne.s32.totalorder %s19, %s22
    %p28 = scmp.eq.s32.totalorder %s9, 0
    %p29 = por %p27, %p28
    %p30 = scmp.ne.s32.totalorder %s19, %s22
    %p31 = scmp.eq.s32.totalorder %s14, 1
    %p32 = por %p30, %p31
    %p33 = scmp.ne.s32.totalorder %s22, %s23
    %p34 = scmp.eq.s32.totalorder %s14, 0
    %p35 = por %p33, %p34
    %p36 = scmp.ne.s32.totalorder %s22, %s23
    %p37 = scmp.eq.s32.totalorder %s15, 1
    %p38 = por %p36, %p37
    %p40 = scmp.ne.s32.totalorder %s23, %s39
    %p41 = scmp.eq.s32.totalorder %s15, 0
    %p42 = por %p40, %p41
    %s44 = sadd.s32 %s43, 1
    %p47 = scmp.eq.s32.totalorder %s9, 1
    %p48 = scmp.ne.s32.totalorder %s43, %s45
    %p49 = scmp.eq.s32.totalorder %s9, 0
    %p50 = por %p48, %p49
    %p51 = scmp.ne.s32.totalorder %s43, %s45
    %p52 = scmp.eq.s32.totalorder %s14, 1
    %p53 = por %p51, %p52
    %p54 = scmp.ne.s32.totalorder %s45, %s46
    %p55 = scmp.eq.s32.totalorder %s14, 0
    %p56 = por %p54, %p55
    %p57 = scmp.ne.s32.totalorder %s45, %s46
    %p58 = scmp.eq.s32.totalorder %s15, 1
    %p59 = por %p57, %p58
    %p61 = scmp.ne.s32.totalorder %s46, %s60
    %p62 = scmp.eq.s32.totalorder %s15, 0
    %p63 = por %p61, %p62
    %s65 = sadd.s32 %s64, 1
    %p68 = scmp.eq.s32.totalorder %s9, 1
    %p69 = scmp.ne.s32.totalorder %s64, %s66
    %p70 = scmp.eq.s32.totalorder %s9, 0
    %p71 = por %p69, %p70
    %p72 = scmp.ne.s32.totalorder %s64, %s66
    %p73 = scmp.eq.s32.totalorder %s14, 1
    %p74 = por %p72, %p73
    %p75 = scmp.ne.s32.totalorder %s66, %s67
    %p76 = scmp.eq.s32.totalorder %s14, 0
    %p77 = por %p75, %p76
    %p78 = scmp.ne.s32.totalorder %s66, %s67
    %p79 = scmp.eq.s32.totalorder %s15, 1
    %p80 = por %p78, %p79
    %p82 = scmp.ne.s32.totalorder %s67, %s81
    %p83 = scmp.eq.s32.totalorder %s15, 0
    %p84 = por %p82, %p83
    %s85 = ssub.s32 %s9, %s16
    %p86 = scmp.eq.s32.totalorder %s85, 0
    %s88 = sadd.s32 %s87, 1
    %s89 = scalar_select %p86, %s87, %s88
    %p92 = pneg %p86
    %p93 = scmp.eq.s32.totalorder %s9, 1
    %p94 = por %p92, %p93
    %p95 = scmp.ne.s32.totalorder %s87, %s90
    %p96 = scmp.eq.s32.totalorder %s9, 0
    %p97 = por %p95, %p96
    %p98 = scmp.ne.s32.totalorder %s87, %s90
    %p99 = scmp.eq.s32.totalorder %s14, 1
    %p100 = por %p98, %p99
    %p101 = scmp.ne.s32.totalorder %s90, %s91
    %p102 = scmp.eq.s32.totalorder %s14, 0
    %p103 = por %p101, %p102
    %p104 = scmp.ne.s32.totalorder %s90, %s91
    %p105 = scmp.eq.s32.totalorder %s15, 1
    %p106 = por %p104, %p105
    %p108 = scmp.ne.s32.totalorder %s91, %s107
    %p109 = scmp.eq.s32.totalorder %s15, 0
    %p110 = por %p108, %p109
    %p111 = scmp.le.s32.totalorder 1, %s9
    %p112 = scmp.lt.s32.totalorder %s9, 3
    %p113 = pnand %p111, %p112
    %p114 = pneg %p113
    // Predicated region
    $region9: #{coupled_head_forward.1} parent=5 // pred_check
      _
    $region10: #{coupled_head_forward.1} parent=5 // pred_check_branch
      %116 = sbr.rel (%p113) target = $region12
    $region11: #{coupled_head_forward.1} parent=5 // pred_region
      %s117 = ssub.s32 %s9, 1
      // Predicated region
      $region13: #{coupled_head_forward.1} parent=11 // pred_check
        %p118 = pneg %p56
      $region14: #{coupled_head_forward.1} parent=11 // pred_check_branch
        %120 = sbr.rel (%p118) target = $region16
      $region15: #{coupled_head_forward.1} parent=11 // pred_region
        _
      $region16: #{coupled_head_forward.1} parent=11 // pred_fallthru
        _
      // Predicated region
      $region17: #{coupled_head_forward.1} parent=11 // pred_check
        %p121 = pneg %p77
      $region18: #{coupled_head_forward.1} parent=11 // pred_check_branch
        %123 = sbr.rel (%p121) target = $region20
      $region19: #{coupled_head_forward.1} parent=11 // pred_region
        _
      $region20: #{coupled_head_forward.1} parent=11 // pred_fallthru
        _
    $region12: #{coupled_head_forward.1} parent=5 // pred_fallthru
      _
    %p124 = scmp.lt.s32.totalorder %s9, 2
    // Predicated region
    $region21: #{coupled_head_forward.1} parent=5 // pred_check
      %p125 = pneg %p124
    $region22: #{coupled_head_forward.1} parent=5 // pred_check_branch
      %127 = sbr.rel (%p125) target = $region24
    $region23: #{coupled_head_forward.1} parent=5 // pred_region
      // Predicated region
      $region25: #{coupled_head_forward.1} parent=23 // pred_check
        %p128 = pneg %p29
      $region26: #{coupled_head_forward.1} parent=23 // pred_check_branch
        %130 = sbr.rel (%p128) target = $region28
      $region27: #{coupled_head_forward.1} parent=23 // pred_region
        %p131 = scmp.lt.s32.totalorder %s9, 1
        %s132 = scalar_select %p131, %s9, 1
        %s133 = smul.addr %s132, 32
        %s134 = smul.addr %s133, 4
        %s135 = scalar_lea.vmem %s0, %s134
      $region28: #{coupled_head_forward.1} parent=23 // pred_fallthru
        _
    $region24: #{coupled_head_forward.1} parent=5 // pred_fallthru
      _
    %p136 = scmp.le.s32.totalorder 1, %s9
    %p137 = scmp.lt.s32.totalorder %s9, 3
    %p138 = pnand %p136, %p137
    %p139 = pneg %p138
    // Predicated region
    $region29: #{coupled_head_forward.1} parent=5 // pred_check
      _
    $region30: #{coupled_head_forward.1} parent=5 // pred_check_branch
      %141 = sbr.rel (%p138) target = $region32
    $region31: #{coupled_head_forward.1} parent=5 // pred_region
      %s142 = ssub.s32 %s9, 1
      %p143 = scmp.lt.s32.totalorder %s14, 1
      %s144 = scalar_select %p143, %s14, 1
      %s145 = smul.addr %s144, 32
      %s146 = smul.addr %s145, 4
      %s147 = scalar_lea.vmem %s0, %s146
      %p148 = pneg %p35
      %p149 = pneg %p32
      %p150 = pneg %p56
      %p151 = pneg %p53
      %p152 = pneg %p77
      %p153 = pneg %p74
      %p154 = pneg %p103
      %p155 = pneg %p100
      %p156 = scmp.lt.s32.totalorder %s14, 1
      %s157 = scalar_select %p156, %s14, 1
      %s158 = smul.addr %s157, 32
      %s159 = smul.addr %s158, 8
      %s160 = scalar_lea.vmem %s3, %s159
      %p161 = scmp.lt.s32.totalorder %s14, 1
      %s162 = scalar_select %p161, %s14, 1
      %s163 = smul.addr %s162, 32
      %s164 = smul.addr %s163, 4
      %s165 = scalar_lea.vmem %s0, %s164
      %p166 = scmp.lt.s32.totalorder %s14, 1
      %s167 = scalar_select %p166, %s14, 1
      %s168 = smul.addr %s167, 32
      %s169 = smul.addr %s168, 8
      %s170 = scalar_lea.vmem %s3, %s169
      %vm172 = vcmask 257024
      %173 = vst.msk [vmem:[#allocation2] sm:$0xf] %vm172, 0
      %174 = vst.msk [vmem:[#allocation2 + $0x4] sm:$0xf] %vm172, 0
      %vm175 = vcmask 253952
      %176 = vst.msk [vmem:[#allocation2 + $0x8] sm:$0x1] %vm175, 0
      %177 = vst.msk [vmem:[#allocation2 + $0xc] sm:$0xf] %vm172, 0
      %178 = vst.msk [vmem:[#allocation2 + $0x10] sm:$0xf] %vm172, 0
      %179 = vst.msk [vmem:[#allocation2 + $0x14] sm:$0x1] %vm175, 0
      %180 = vst.msk [vmem:[#allocation2 + $0x18] sm:$0xf] %vm172, 0
      %181 = vst.msk [vmem:[#allocation2 + $0x1c] sm:$0xf] %vm172, 0
      %182 = vst.msk [vmem:[#allocation2 + $0x20] sm:$0x1] %vm175, 0
      %183 = vst.msk [vmem:[#allocation2 + $0x24] sm:$0xf] %vm172, 0
      %184 = vst.msk [vmem:[#allocation2 + $0x28] sm:$0xf] %vm172, 0
      %185 = vst.msk [vmem:[#allocation2 + $0x2c] sm:$0x1] %vm175, 0
      %186 = vst.msk [vmem:[#allocation2 + $0x30] sm:$0xf] %vm172, 0
      %187 = vst.msk [vmem:[#allocation2 + $0x34] sm:$0xf] %vm172, 0
      %188 = vst.msk [vmem:[#allocation2 + $0x38] sm:$0x1] %vm175, 0
      %189 = vst.msk [vmem:[#allocation2 + $0x3c] sm:$0xf] %vm172, 0
      %190 = vst.msk [vmem:[#allocation2 + $0x40] sm:$0xf] %vm172, 0
      %191 = vst.msk [vmem:[#allocation2 + $0x44] sm:$0x1] %vm175, 0
      %192 = vst.msk [vmem:[#allocation2 + $0x48] sm:$0xf] %vm172, 0
      %193 = vst.msk [vmem:[#allocation2 + $0x4c] sm:$0xf] %vm172, 0
      %194 = vst.msk [vmem:[#allocation2 + $0x50] sm:$0x1] %vm175, 0
      %195 = vst.msk [vmem:[#allocation2 + $0x54] sm:$0xf] %vm172, 0
      %196 = vst.msk [vmem:[#allocation2 + $0x58] sm:$0xf] %vm172, 0
      %197 = vst.msk [vmem:[#allocation2 + $0x5c] sm:$0x1] %vm175, 0
      %198 = vst.msk [vmem:[#allocation2 + $0x60] sm:$0xf] %vm172, 0
      %199 = vst.msk [vmem:[#allocation2 + $0x64] sm:$0xf] %vm172, 0
      %200 = vst.msk [vmem:[#allocation2 + $0x68] sm:$0x1] %vm175, 0
      %201 = vst.msk [vmem:[#allocation2 + $0x6c] sm:$0xf] %vm172, 0
      %202 = vst.msk [vmem:[#allocation2 + $0x70] sm:$0xf] %vm172, 0
      %203 = vst.msk [vmem:[#allocation2 + $0x74] sm:$0x1] %vm175, 0
      %204 = vst.msk [vmem:[#allocation2 + $0x78] sm:$0xf] %vm172, 0
      %205 = vst.msk [vmem:[#allocation2 + $0x7c] sm:$0xf] %vm172, 0
      %206 = vst.msk [vmem:[#allocation2 + $0x80] sm:$0x1] %vm175, 0
      %207 = vst.msk [vmem:[#allocation2 + $0x84] sm:$0xf] %vm172, 0
      %208 = vst.msk [vmem:[#allocation2 + $0x88] sm:$0xf] %vm172, 0
      %209 = vst.msk [vmem:[#allocation2 + $0x8c] sm:$0x1] %vm175, 0
      %210 = vst.msk [vmem:[#allocation2 + $0x90] sm:$0xf] %vm172, 0
      %211 = vst.msk [vmem:[#allocation2 + $0x94] sm:$0xf] %vm172, 0
      %212 = vst.msk [vmem:[#allocation2 + $0x98] sm:$0x1] %vm175, 0
      %213 = vst.msk [vmem:[#allocation2 + $0x9c] sm:$0xf] %vm172, 0
      %214 = vst.msk [vmem:[#allocation2 + $0xa0] sm:$0xf] %vm172, 0
      %215 = vst.msk [vmem:[#allocation2 + $0xa4] sm:$0x1] %vm175, 0
      %216 = vst.msk [vmem:[#allocation2 + $0xa8] sm:$0xf] %vm172, 0
      %217 = vst.msk [vmem:[#allocation2 + $0xac] sm:$0xf] %vm172, 0
      %218 = vst.msk [vmem:[#allocation2 + $0xb0] sm:$0x1] %vm175, 0
      %219 = vst.msk [vmem:[#allocation2 + $0xb4] sm:$0xf] %vm172, 0
      %220 = vst.msk [vmem:[#allocation2 + $0xb8] sm:$0xf] %vm172, 0
      %221 = vst.msk [vmem:[#allocation2 + $0xbc] sm:$0x1] %vm175, 0
      %222 = vst.msk [vmem:[#allocation2 + $0xc0] sm:$0xf] %vm172, 0
      %223 = vst.msk [vmem:[#allocation2 + $0xc4] sm:$0xf] %vm172, 0
      %224 = vst.msk [vmem:[#allocation2 + $0xc8] sm:$0x1] %vm175, 0
      %225 = vst.msk [vmem:[#allocation2 + $0xcc] sm:$0xf] %vm172, 0
      %226 = vst.msk [vmem:[#allocation2 + $0xd0] sm:$0xf] %vm172, 0
      %227 = vst.msk [vmem:[#allocation2 + $0xd4] sm:$0x1] %vm175, 0
      %v228 = vld [vmem:[%s165] sm:$0xf]
      %v229 = vld [vmem:[%s165 + $0x4] sm:$0xf]
      %v230 = vld [vmem:[%s165 + $0x8] sm:$0xf]
      %v231 = vld [vmem:[%s165 + $0xc] sm:$0xf]
      %v232 = vld [vmem:[%s165 + $0x10] sm:$0xf]
      %v233 = vld [vmem:[%s165 + $0x14] sm:$0xf]
      %v234 = vld [vmem:[%s165 + $0x18] sm:$0xf]
      %v235 = vld [vmem:[%s165 + $0x1c] sm:$0xf]
      %v236 = vld [vmem:[%s165 + $0x20] sm:$0xf]
      %v237 = vld [vmem:[%s165 + $0x24] sm:$0xf]
      %v238 = vld [vmem:[%s165 + $0x28] sm:$0xf]
      %v239 = vld [vmem:[%s165 + $0x2c] sm:$0xf]
      %v240 = vld [vmem:[%s165 + $0x30] sm:$0xf]
      %v241 = vld [vmem:[%s165 + $0x34] sm:$0xf]
      %v242 = vld [vmem:[%s165 + $0x38] sm:$0xf]
      %v243 = vld [vmem:[%s165 + $0x3c] sm:$0xf]
      %v244 = vld [vmem:[%s165 + $0x40] sm:$0xf]
      %v245 = vld [vmem:[%s165 + $0x44] sm:$0xf]
      %v246 = vld [vmem:[%s165 + $0x48] sm:$0xf]
      %v247 = vld [vmem:[%s165 + $0x4c] sm:$0xf]
      %v248 = vld [vmem:[%s165 + $0x50] sm:$0xf]
      %v249 = vld [vmem:[%s165 + $0x54] sm:$0xf]
      %v250 = vld [vmem:[%s165 + $0x58] sm:$0xf]
      %v251 = vld [vmem:[%s165 + $0x5c] sm:$0xf]
      %v252 = vld [vmem:[%s165 + $0x60] sm:$0xf]
      %v253 = vld [vmem:[%s165 + $0x64] sm:$0xf]
      %v254 = vld [vmem:[%s165 + $0x68] sm:$0xf]
      %v255 = vld [vmem:[%s165 + $0x6c] sm:$0xf]
      %v256 = vld [vmem:[%s165 + $0x70] sm:$0xf]
      %v257 = vld [vmem:[%s165 + $0x74] sm:$0xf]
      %v258 = vld [vmem:[%s165 + $0x78] sm:$0xf]
      %v259 = vld [vmem:[%s165 + $0x7c] sm:$0xf]
      %vm260 = vsmask.f32 256
      %vm261 = vsmask.f32 4368
      %vm262 = vmor %vm260, %vm261
      %v264 = vshrl.u32 %v228, 16
      %v266 = vrot.slane %v264, 7
      %v267 = vshll.u32 %v228, 16
      %v269 = vor.u32 %v266, %v267
      %v270 = vrot.slane %v266, 4
      %v272 = vshrl.u32 %v229, 16
      %v274 = vrot.slane %v272, 7
      %v275 = vshll.u32 %v229, 16
      %v277 = vor.u32 %v274, %v275
      %v278 = vsel %vm262, %v270, %v277
      %v279 = vrot.slane %v274, 4
      %v281 = vshrl.u32 %v230, 16
      %v283 = vrot.slane %v281, 7
      %v284 = vshll.u32 %v230, 16
      %v286 = vor.u32 %v283, %v284
      %v287 = vrot.slane %v283, 4
      %v289 = vshrl.u32 %v231, 16
      %v291 = vrot.slane %v289, 7
      %v292 = vshll.u32 %v231, 16
      %v294 = vor.u32 %v291, %v292
      %v295 = vsel %vm262, %v287, %v294
      %v296 = vrot.slane %v291, 4
      %v298 = vshrl.u32 %v232, 16
      %v300 = vrot.slane %v298, 7
      %v301 = vshll.u32 %v232, 16
      %v303 = vor.u32 %v300, %v301
      %v304 = vrot.slane %v300, 4
      %v306 = vshrl.u32 %v233, 16
      %v308 = vrot.slane %v306, 7
      %v309 = vshll.u32 %v233, 16
      %v311 = vor.u32 %v308, %v309
      %v312 = vsel %vm262, %v304, %v311
      %v313 = vrot.slane %v308, 4
      %v315 = vshrl.u32 %v234, 16
      %v317 = vrot.slane %v315, 7
      %v318 = vshll.u32 %v234, 16
      %v320 = vor.u32 %v317, %v318
      %v321 = vrot.slane %v317, 4
      %v323 = vshrl.u32 %v235, 16
      %v325 = vrot.slane %v323, 7
      %v326 = vshll.u32 %v235, 16
      %v328 = vor.u32 %v325, %v326
      %v329 = vsel %vm262, %v321, %v328
      %v330 = vrot.slane %v325, 4
      %v332 = vshrl.u32 %v236, 16
      %v334 = vrot.slane %v332, 7
      %v335 = vshll.u32 %v236, 16
      %v337 = vor.u32 %v334, %v335
      %v338 = vrot.slane %v334, 4
      %v340 = vshrl.u32 %v237, 16
      %v342 = vrot.slane %v340, 7
      %v343 = vshll.u32 %v237, 16
      %v345 = vor.u32 %v342, %v343
      %v346 = vsel %vm262, %v338, %v345
      %v347 = vrot.slane %v342, 4
      %v349 = vshrl.u32 %v238, 16
      %v351 = vrot.slane %v349, 7
      %v352 = vshll.u32 %v238, 16
      %v354 = vor.u32 %v351, %v352
      %v355 = vrot.slane %v351, 4
      %v357 = vshrl.u32 %v239, 16
      %v359 = vrot.slane %v357, 7
      %v360 = vshll.u32 %v239, 16
      %v362 = vor.u32 %v359, %v360
      %v363 = vsel %vm262, %v355, %v362
      %v364 = vrot.slane %v359, 4
      %v366 = vshrl.u32 %v240, 16
      %v368 = vrot.slane %v366, 7
      %v369 = vshll.u32 %v240, 16
      %v371 = vor.u32 %v368, %v369
      %v372 = vrot.slane %v368, 4
      %v374 = vshrl.u32 %v241, 16
      %v376 = vrot.slane %v374, 7
      %v377 = vshll.u32 %v241, 16
      %v379 = vor.u32 %v376, %v377
      %v380 = vsel %vm262, %v372, %v379
      %v381 = vrot.slane %v376, 4
      %v383 = vshrl.u32 %v242, 16
      %v385 = vrot.slane %v383, 7
      %v386 = vshll.u32 %v242, 16
      %v388 = vor.u32 %v385, %v386
      %v389 = vrot.slane %v385, 4
      %v391 = vshrl.u32 %v243, 16
      %v393 = vrot.slane %v391, 7
      %v394 = vshll.u32 %v243, 16
      %v396 = vor.u32 %v393, %v394
      %v397 = vsel %vm262, %v389, %v396
      %v398 = vrot.slane %v393, 4
      %v400 = vshrl.u32 %v244, 16
      %v402 = vrot.slane %v400, 7
      %v403 = vshll.u32 %v244, 16
      %v405 = vor.u32 %v402, %v403
      %v406 = vrot.slane %v402, 4
      %v408 = vshrl.u32 %v245, 16
      %v410 = vrot.slane %v408, 7
      %v411 = vshll.u32 %v245, 16
      %v413 = vor.u32 %v410, %v411
      %v414 = vsel %vm262, %v406, %v413
      %v415 = vrot.slane %v410, 4
      %v417 = vshrl.u32 %v246, 16
      %v419 = vrot.slane %v417, 7
      %v420 = vshll.u32 %v246, 16
      %v422 = vor.u32 %v419, %v420
      %v423 = vrot.slane %v419, 4
      %v425 = vshrl.u32 %v247, 16
      %v427 = vrot.slane %v425, 7
      %v428 = vshll.u32 %v247, 16
      %v430 = vor.u32 %v427, %v428
      %v431 = vsel %vm262, %v423, %v430
      %v432 = vrot.slane %v427, 4
      %v434 = vshrl.u32 %v248, 16
      %v436 = vrot.slane %v434, 7
      %v437 = vshll.u32 %v248, 16
      %v439 = vor.u32 %v436, %v437
      %v440 = vrot.slane %v436, 4
      %v442 = vshrl.u32 %v249, 16
      %v444 = vrot.slane %v442, 7
      %v445 = vshll.u32 %v249, 16
      %v447 = vor.u32 %v444, %v445
      %v448 = vsel %vm262, %v440, %v447
      %v449 = vrot.slane %v444, 4
      %v451 = vshrl.u32 %v250, 16
      %v453 = vrot.slane %v451, 7
      %v454 = vshll.u32 %v250, 16
      %v456 = vor.u32 %v453, %v454
      %v457 = vrot.slane %v453, 4
      %v459 = vshrl.u32 %v251, 16
      %v461 = vrot.slane %v459, 7
      %v462 = vshll.u32 %v251, 16
      %v464 = vor.u32 %v461, %v462
      %v465 = vsel %vm262, %v457, %v464
      %v466 = vrot.slane %v461, 4
      %v468 = vshrl.u32 %v252, 16
      %v470 = vrot.slane %v468, 7
      %v471 = vshll.u32 %v252, 16
      %v473 = vor.u32 %v470, %v471
      %v474 = vrot.slane %v470, 4
      %v476 = vshrl.u32 %v253, 16
      %v478 = vrot.slane %v476, 7
      %v479 = vshll.u32 %v253, 16
      %v481 = vor.u32 %v478, %v479
      %v482 = vsel %vm262, %v474, %v481
      %v483 = vrot.slane %v478, 4
      %v485 = vshrl.u32 %v254, 16
      %v487 = vrot.slane %v485, 7
      %v488 = vshll.u32 %v254, 16
      %v490 = vor.u32 %v487, %v488
      %v491 = vrot.slane %v487, 4
      %v493 = vshrl.u32 %v255, 16
      %v495 = vrot.slane %v493, 7
      %v496 = vshll.u32 %v255, 16
      %v498 = vor.u32 %v495, %v496
      %v499 = vsel %vm262, %v491, %v498
      %v500 = vrot.slane %v495, 4
      %v502 = vshrl.u32 %v256, 16
      %v504 = vrot.slane %v502, 7
      %v505 = vshll.u32 %v256, 16
      %v507 = vor.u32 %v504, %v505
      %v508 = vrot.slane %v504, 4
      %v510 = vshrl.u32 %v257, 16
      %v512 = vrot.slane %v510, 7
      %v513 = vshll.u32 %v257, 16
      %v515 = vor.u32 %v512, %v513
      %v516 = vsel %vm262, %v508, %v515
      %v517 = vrot.slane %v512, 4
      %v519 = vshrl.u32 %v258, 16
      %v521 = vrot.slane %v519, 7
      %v522 = vshll.u32 %v258, 16
      %v524 = vor.u32 %v521, %v522
      %v525 = vrot.slane %v521, 4
      %v527 = vshrl.u32 %v259, 16
      %v529 = vrot.slane %v527, 7
      %v530 = vshll.u32 %v259, 16
      %v532 = vor.u32 %v529, %v530
      %v533 = vsel %vm262, %v525, %v532
      %v534 = vrot.slane %v529, 4
      %s583 = scalar_lea.vmem [#allocation2], 12
      %vm584 = vcmask 257024
      %vm585 = vsmask.f32 7938
      %vm586 = vmand %vm584, %vm585
      %v587 = vld [vmem:[%s583] sm:$0xf]
      %v588 = vsel %vm586, %v269, %v587
      %589 = vst [vmem:[%s583] sm:$0xf] %v588
      %590 = vst.msk [vmem:[%s583 + $0x4] sm:$0xf] %vm172, %v278
      %vm591 = vcmask 253952
      %vm592 = vmand %vm591, %vm260
      %v593 = vld [vmem:[%s583 + $0x8] sm:$0x1]
      %v594 = vsel %vm592, %v279, %v593
      %595 = vst [vmem:[%s583 + $0x8] sm:$0x1] %v594
      %v596 = vld [vmem:[%s583 + $0xc] sm:$0xf]
      %v597 = vsel %vm586, %v286, %v596
      %598 = vst [vmem:[%s583 + $0xc] sm:$0xf] %v597
      %599 = vst.msk [vmem:[%s583 + $0x10] sm:$0xf] %vm172, %v295
      %v600 = vld [vmem:[%s583 + $0x14] sm:$0x1]
      %v601 = vsel %vm592, %v296, %v600
      %602 = vst [vmem:[%s583 + $0x14] sm:$0x1] %v601
      %v603 = vld [vmem:[%s583 + $0x18] sm:$0xf]
      %v604 = vsel %vm586, %v303, %v603
      %605 = vst [vmem:[%s583 + $0x18] sm:$0xf] %v604
      %606 = vst.msk [vmem:[%s583 + $0x1c] sm:$0xf] %vm172, %v312
      %v607 = vld [vmem:[%s583 + $0x20] sm:$0x1]
      %v608 = vsel %vm592, %v313, %v607
      %609 = vst [vmem:[%s583 + $0x20] sm:$0x1] %v608
      %v610 = vld [vmem:[%s583 + $0x24] sm:$0xf]
      %v611 = vsel %vm586, %v320, %v610
      %612 = vst [vmem:[%s583 + $0x24] sm:$0xf] %v611
      %613 = vst.msk [vmem:[%s583 + $0x28] sm:$0xf] %vm172, %v329
      %v614 = vld [vmem:[%s583 + $0x2c] sm:$0x1]
      %v615 = vsel %vm592, %v330, %v614
      %616 = vst [vmem:[%s583 + $0x2c] sm:$0x1] %v615
      %v617 = vld [vmem:[%s583 + $0x30] sm:$0xf]
      %v618 = vsel %vm586, %v337, %v617
      %619 = vst [vmem:[%s583 + $0x30] sm:$0xf] %v618
      %620 = vst.msk [vmem:[%s583 + $0x34] sm:$0xf] %vm172, %v346
      %v621 = vld [vmem:[%s583 + $0x38] sm:$0x1]
      %v622 = vsel %vm592, %v347, %v621
      %623 = vst [vmem:[%s583 + $0x38] sm:$0x1] %v622
      %v624 = vld [vmem:[%s583 + $0x3c] sm:$0xf]
      %v625 = vsel %vm586, %v354, %v624
      %626 = vst [vmem:[%s583 + $0x3c] sm:$0xf] %v625
      %627 = vst.msk [vmem:[%s583 + $0x40] sm:$0xf] %vm172, %v363
      %v628 = vld [vmem:[%s583 + $0x44] sm:$0x1]
      %v629 = vsel %vm592, %v364, %v628
      %630 = vst [vmem:[%s583 + $0x44] sm:$0x1] %v629
      %v631 = vld [vmem:[%s583 + $0x48] sm:$0xf]
      %v632 = vsel %vm586, %v371, %v631
      %633 = vst [vmem:[%s583 + $0x48] sm:$0xf] %v632
      %634 = vst.msk [vmem:[%s583 + $0x4c] sm:$0xf] %vm172, %v380
      %v635 = vld [vmem:[%s583 + $0x50] sm:$0x1]
      %v636 = vsel %vm592, %v381, %v635
      %637 = vst [vmem:[%s583 + $0x50] sm:$0x1] %v636
      %v638 = vld [vmem:[%s583 + $0x54] sm:$0xf]
      %v639 = vsel %vm586, %v388, %v638
      %640 = vst [vmem:[%s583 + $0x54] sm:$0xf] %v639
      %641 = vst.msk [vmem:[%s583 + $0x58] sm:$0xf] %vm172, %v397
      %v642 = vld [vmem:[%s583 + $0x5c] sm:$0x1]
      %v643 = vsel %vm592, %v398, %v642
      %644 = vst [vmem:[%s583 + $0x5c] sm:$0x1] %v643
      %v645 = vld [vmem:[%s583 + $0x60] sm:$0xf]
      %v646 = vsel %vm586, %v405, %v645
      %647 = vst [vmem:[%s583 + $0x60] sm:$0xf] %v646
      %648 = vst.msk [vmem:[%s583 + $0x64] sm:$0xf] %vm172, %v414
      %v649 = vld [vmem:[%s583 + $0x68] sm:$0x1]
      %v650 = vsel %vm592, %v415, %v649
      %651 = vst [vmem:[%s583 + $0x68] sm:$0x1] %v650
      %v652 = vld [vmem:[%s583 + $0x6c] sm:$0xf]
      %v653 = vsel %vm586, %v422, %v652
      %654 = vst [vmem:[%s583 + $0x6c] sm:$0xf] %v653
      %655 = vst.msk [vmem:[%s583 + $0x70] sm:$0xf] %vm172, %v431
      %v656 = vld [vmem:[%s583 + $0x74] sm:$0x1]
      %v657 = vsel %vm592, %v432, %v656
      %658 = vst [vmem:[%s583 + $0x74] sm:$0x1] %v657
      %v659 = vld [vmem:[%s583 + $0x78] sm:$0xf]
      %v660 = vsel %vm586, %v439, %v659
      %661 = vst [vmem:[%s583 + $0x78] sm:$0xf] %v660
      %662 = vst.msk [vmem:[%s583 + $0x7c] sm:$0xf] %vm172, %v448
      %v663 = vld [vmem:[%s583 + $0x80] sm:$0x1]
      %v664 = vsel %vm592, %v449, %v663
      %665 = vst [vmem:[%s583 + $0x80] sm:$0x1] %v664
      %v666 = vld [vmem:[%s583 + $0x84] sm:$0xf]
      %v667 = vsel %vm586, %v456, %v666
      %668 = vst [vmem:[%s583 + $0x84] sm:$0xf] %v667
      %669 = vst.msk [vmem:[%s583 + $0x88] sm:$0xf] %vm172, %v465
      %v670 = vld [vmem:[%s583 + $0x8c] sm:$0x1]
      %v671 = vsel %vm592, %v466, %v670
      %672 = vst [vmem:[%s583 + $0x8c] sm:$0x1] %v671
      %v673 = vld [vmem:[%s583 + $0x90] sm:$0xf]
      %v674 = vsel %vm586, %v473, %v673
      %675 = vst [vmem:[%s583 + $0x90] sm:$0xf] %v674
      %676 = vst.msk [vmem:[%s583 + $0x94] sm:$0xf] %vm172, %v482
      %v677 = vld [vmem:[%s583 + $0x98] sm:$0x1]
      %v678 = vsel %vm592, %v483, %v677
      %679 = vst [vmem:[%s583 + $0x98] sm:$0x1] %v678
      %v680 = vld [vmem:[%s583 + $0x9c] sm:$0xf]
      %v681 = vsel %vm586, %v490, %v680
      %682 = vst [vmem:[%s583 + $0x9c] sm:$0xf] %v681
      %683 = vst.msk [vmem:[%s583 + $0xa0] sm:$0xf] %vm172, %v499
      %v684 = vld [vmem:[%s583 + $0xa4] sm:$0x1]
      %v685 = vsel %vm592, %v500, %v684
      %686 = vst [vmem:[%s583 + $0xa4] sm:$0x1] %v685
      %v687 = vld [vmem:[%s583 + $0xa8] sm:$0xf]
      %v688 = vsel %vm586, %v507, %v687
      %689 = vst [vmem:[%s583 + $0xa8] sm:$0xf] %v688
      %690 = vst.msk [vmem:[%s583 + $0xac] sm:$0xf] %vm172, %v516
      %v691 = vld [vmem:[%s583 + $0xb0] sm:$0x1]
      %v692 = vsel %vm592, %v517, %v691
      %693 = vst [vmem:[%s583 + $0xb0] sm:$0x1] %v692
      %v694 = vld [vmem:[%s583 + $0xb4] sm:$0xf]
      %v695 = vsel %vm586, %v524, %v694
      %696 = vst [vmem:[%s583 + $0xb4] sm:$0xf] %v695
      %697 = vst.msk [vmem:[%s583 + $0xb8] sm:$0xf] %vm172, %v533
      %v698 = vld [vmem:[%s583 + $0xbc] sm:$0x1]
      %v699 = vsel %vm592, %v534, %v698
      %700 = vst [vmem:[%s583 + $0xbc] sm:$0x1] %v699
      %v701 = vld [vmem:[#allocation2] sm:$0xf]
      %v702 = vld [vmem:[#allocation2 + $0x4] sm:$0xf]
      %v703 = vld [vmem:[#allocation2 + $0xc] sm:$0xf]
      %v704 = vld [vmem:[#allocation2 + $0x10] sm:$0xf]
      %v705 = vld [vmem:[#allocation2 + $0x18] sm:$0xf]
      %v706 = vld [vmem:[#allocation2 + $0x1c] sm:$0xf]
      %v707 = vld [vmem:[#allocation2 + $0x24] sm:$0xf]
      %v708 = vld [vmem:[#allocation2 + $0x28] sm:$0xf]
      %v709 = vld [vmem:[#allocation2 + $0x30] sm:$0xf]
      %v710 = vld [vmem:[#allocation2 + $0x34] sm:$0xf]
      %v711 = vld [vmem:[#allocation2 + $0x3c] sm:$0xf]
      %v712 = vld [vmem:[#allocation2 + $0x40] sm:$0xf]
      %v713 = vld [vmem:[#allocation2 + $0x48] sm:$0xf]
      %v714 = vld [vmem:[#allocation2 + $0x4c] sm:$0xf]
      %v715 = vld [vmem:[#allocation2 + $0x54] sm:$0xf]
      %v716 = vld [vmem:[#allocation2 + $0x58] sm:$0xf]
      %v717 = vld [vmem:[#allocation2 + $0x60] sm:$0xf]
      %v718 = vld [vmem:[#allocation2 + $0x64] sm:$0xf]
      %v719 = vld [vmem:[#allocation2 + $0x6c] sm:$0xf]
      %v720 = vld [vmem:[#allocation2 + $0x70] sm:$0xf]
      %v721 = vld [vmem:[#allocation2 + $0x78] sm:$0xf]
      %v722 = vld [vmem:[#allocation2 + $0x7c] sm:$0xf]
      %v723 = vld [vmem:[#allocation2 + $0x84] sm:$0xf]
      %v724 = vld [vmem:[#allocation2 + $0x88] sm:$0xf]
      %v725 = vld [vmem:[#allocation2 + $0x90] sm:$0xf]
      %v726 = vld [vmem:[#allocation2 + $0x94] sm:$0xf]
      %v727 = vld [vmem:[#allocation2 + $0x9c] sm:$0xf]
      %v728 = vld [vmem:[#allocation2 + $0xa0] sm:$0xf]
      %v729 = vld [vmem:[#allocation2 + $0xa8] sm:$0xf]
      %v730 = vld [vmem:[#allocation2 + $0xac] sm:$0xf]
      %v731 = vld [vmem:[#allocation2 + $0xb4] sm:$0xf]
      %v732 = vld [vmem:[#allocation2 + $0xb8] sm:$0xf]
      %v733 = vld [vmem:[#allocation2 + $0x8] sm:$0x1]
      %v734 = vld [vmem:[#allocation2 + $0x14] sm:$0x1]
      %v735 = vld [vmem:[#allocation2 + $0x20] sm:$0x1]
      %v736 = vld [vmem:[#allocation2 + $0x2c] sm:$0x1]
      %v737 = vld [vmem:[#allocation2 + $0x38] sm:$0x1]
      %v738 = vld [vmem:[#allocation2 + $0x44] sm:$0x1]
      %v739 = vld [vmem:[#allocation2 + $0x50] sm:$0x1]
      %v740 = vld [vmem:[#allocation2 + $0x5c] sm:$0x1]
      %v741 = vld [vmem:[#allocation2 + $0x68] sm:$0x1]
      %v742 = vld [vmem:[#allocation2 + $0x74] sm:$0x1]
      %v743 = vld [vmem:[#allocation2 + $0x80] sm:$0x1]
      %v744 = vld [vmem:[#allocation2 + $0x8c] sm:$0x1]
      %v745 = vld [vmem:[#allocation2 + $0x98] sm:$0x1]
      %v746 = vld [vmem:[#allocation2 + $0xa4] sm:$0x1]
      %v747 = vld [vmem:[#allocation2 + $0xb0] sm:$0x1]
      %v748 = vld [vmem:[#allocation2 + $0xbc] sm:$0x1]
      %v749 = vld [vmem:[#allocation2] sm:$0xe]
      %v750 = vld [vmem:[#allocation2 + $0xc] sm:$0xe]
      %v751 = vld [vmem:[#allocation2 + $0x18] sm:$0xe]
      %v752 = vld [vmem:[#allocation2 + $0x24] sm:$0xe]
      %v753 = vld [vmem:[#allocation2 + $0x30] sm:$0xe]
      %v754 = vld [vmem:[#allocation2 + $0x3c] sm:$0xe]
      %v755 = vld [vmem:[#allocation2 + $0x48] sm:$0xe]
      %v756 = vld [vmem:[#allocation2 + $0x54] sm:$0xe]
      %v757 = vld [vmem:[#allocation2 + $0x60] sm:$0xe]
      %v758 = vld [vmem:[#allocation2 + $0x6c] sm:$0xe]
      %v759 = vld [vmem:[#allocation2 + $0x78] sm:$0xe]
      %v760 = vld [vmem:[#allocation2 + $0x84] sm:$0xe]
      %v761 = vld [vmem:[#allocation2 + $0x90] sm:$0xe]
      %v762 = vld [vmem:[#allocation2 + $0x9c] sm:$0xe]
      %v763 = vld [vmem:[#allocation2 + $0xa8] sm:$0xe]
      %v764 = vld [vmem:[#allocation2 + $0xb4] sm:$0xe]
      %v765 = vld [vmem:[%s583] sm:$0xf]
      %v766 = vld [vmem:[%s583 + $0x4] sm:$0xf]
      %v767 = vld [vmem:[%s583 + $0xc] sm:$0xf]
      %v768 = vld [vmem:[%s583 + $0x10] sm:$0xf]
      %v769 = vld [vmem:[%s583 + $0x18] sm:$0xf]
      %v770 = vld [vmem:[%s583 + $0x1c] sm:$0xf]
      %v771 = vld [vmem:[%s583 + $0x24] sm:$0xf]
      %v772 = vld [vmem:[%s583 + $0x28] sm:$0xf]
      %v773 = vld [vmem:[%s583 + $0x30] sm:$0xf]
      %v774 = vld [vmem:[%s583 + $0x34] sm:$0xf]
      %v775 = vld [vmem:[%s583 + $0x3c] sm:$0xf]
      %v776 = vld [vmem:[%s583 + $0x40] sm:$0xf]
      %v777 = vld [vmem:[%s583 + $0x48] sm:$0xf]
      %v778 = vld [vmem:[%s583 + $0x4c] sm:$0xf]
      %v779 = vld [vmem:[%s583 + $0x54] sm:$0xf]
      %v780 = vld [vmem:[%s583 + $0x58] sm:$0xf]
      %v781 = vld [vmem:[%s583 + $0x60] sm:$0xf]
      %v782 = vld [vmem:[%s583 + $0x64] sm:$0xf]
      %v783 = vld [vmem:[%s583 + $0x6c] sm:$0xf]
      %v784 = vld [vmem:[%s583 + $0x70] sm:$0xf]
      %v785 = vld [vmem:[%s583 + $0x78] sm:$0xf]
      %v786 = vld [vmem:[%s583 + $0x7c] sm:$0xf]
      %v787 = vld [vmem:[%s583 + $0x84] sm:$0xf]
      %v788 = vld [vmem:[%s583 + $0x88] sm:$0xf]
      %v789 = vld [vmem:[%s583 + $0x90] sm:$0xf]
      %v790 = vld [vmem:[%s583 + $0x94] sm:$0xf]
      %v791 = vld [vmem:[%s583 + $0x9c] sm:$0xf]
      %v792 = vld [vmem:[%s583 + $0xa0] sm:$0xf]
      %v793 = vld [vmem:[%s583 + $0xa8] sm:$0xf]
      %v794 = vld [vmem:[%s583 + $0xac] sm:$0xf]
      %v795 = vld [vmem:[%s583 + $0xb4] sm:$0xf]
      %v796 = vld [vmem:[%s583 + $0xb8] sm:$0xf]
      %v797 = vld [vmem:[%s583 + $0x8] sm:$0x1]
      %v798 = vld [vmem:[%s583 + $0x14] sm:$0x1]
      %v799 = vld [vmem:[%s583 + $0x20] sm:$0x1]
      %v800 = vld [vmem:[%s583 + $0x2c] sm:$0x1]
      %v801 = vld [vmem:[%s583 + $0x38] sm:$0x1]
      %v802 = vld [vmem:[%s583 + $0x44] sm:$0x1]
      %v803 = vld [vmem:[%s583 + $0x50] sm:$0x1]
      %v804 = vld [vmem:[%s583 + $0x5c] sm:$0x1]
      %v805 = vld [vmem:[%s583 + $0x68] sm:$0x1]
      %v806 = vld [vmem:[%s583 + $0x74] sm:$0x1]
      %v807 = vld [vmem:[%s583 + $0x80] sm:$0x1]
      %v808 = vld [vmem:[%s583 + $0x8c] sm:$0x1]
      %v809 = vld [vmem:[%s583 + $0x98] sm:$0x1]
      %v810 = vld [vmem:[%s583 + $0xa4] sm:$0x1]
      %v811 = vld [vmem:[%s583 + $0xb0] sm:$0x1]
      %v812 = vld [vmem:[%s583 + $0xbc] sm:$0x1]
      %v813 = vld [vmem:[%s583] sm:$0xe]
      %v814 = vld [vmem:[%s583 + $0xc] sm:$0xe]
      %v815 = vld [vmem:[%s583 + $0x18] sm:$0xe]
      %v816 = vld [vmem:[%s583 + $0x24] sm:$0xe]
      %v817 = vld [vmem:[%s583 + $0x30] sm:$0xe]
      %v818 = vld [vmem:[%s583 + $0x3c] sm:$0xe]
      %v819 = vld [vmem:[%s583 + $0x48] sm:$0xe]
      %v820 = vld [vmem:[%s583 + $0x54] sm:$0xe]
      %v821 = vld [vmem:[%s583 + $0x60] sm:$0xe]
      %v822 = vld [vmem:[%s583 + $0x6c] sm:$0xe]
      %v823 = vld [vmem:[%s583 + $0x78] sm:$0xe]
      %v824 = vld [vmem:[%s583 + $0x84] sm:$0xe]
      %v825 = vld [vmem:[%s583 + $0x90] sm:$0xe]
      %v826 = vld [vmem:[%s583 + $0x9c] sm:$0xe]
      %v827 = vld [vmem:[%s583 + $0xa8] sm:$0xe]
      %v828 = vld [vmem:[%s583 + $0xb4] sm:$0xe]
      %s829 = scalar_lea.vmem [#allocation2], 24
      %v830 = vld [vmem:[%s829] sm:$0xf]
      %v831 = vld [vmem:[%s829 + $0x4] sm:$0xf]
      %v832 = vld [vmem:[%s829 + $0xc] sm:$0xf]
      %v833 = vld [vmem:[%s829 + $0x10] sm:$0xf]
      %v834 = vld [vmem:[%s829 + $0x18] sm:$0xf]
      %v835 = vld [vmem:[%s829 + $0x1c] sm:$0xf]
      %v836 = vld [vmem:[%s829 + $0x24] sm:$0xf]
      %v837 = vld [vmem:[%s829 + $0x28] sm:$0xf]
      %v838 = vld [vmem:[%s829 + $0x30] sm:$0xf]
      %v839 = vld [vmem:[%s829 + $0x34] sm:$0xf]
      %v840 = vld [vmem:[%s829 + $0x3c] sm:$0xf]
      %v841 = vld [vmem:[%s829 + $0x40] sm:$0xf]
      %v842 = vld [vmem:[%s829 + $0x48] sm:$0xf]
      %v843 = vld [vmem:[%s829 + $0x4c] sm:$0xf]
      %v844 = vld [vmem:[%s829 + $0x54] sm:$0xf]
      %v845 = vld [vmem:[%s829 + $0x58] sm:$0xf]
      %v846 = vld [vmem:[%s829 + $0x60] sm:$0xf]
      %v847 = vld [vmem:[%s829 + $0x64] sm:$0xf]
      %v848 = vld [vmem:[%s829 + $0x6c] sm:$0xf]
      %v849 = vld [vmem:[%s829 + $0x70] sm:$0xf]
      %v850 = vld [vmem:[%s829 + $0x78] sm:$0xf]
      %v851 = vld [vmem:[%s829 + $0x7c] sm:$0xf]
      %v852 = vld [vmem:[%s829 + $0x84] sm:$0xf]
      %v853 = vld [vmem:[%s829 + $0x88] sm:$0xf]
      %v854 = vld [vmem:[%s829 + $0x90] sm:$0xf]
      %v855 = vld [vmem:[%s829 + $0x94] sm:$0xf]
      %v856 = vld [vmem:[%s829 + $0x9c] sm:$0xf]
      %v857 = vld [vmem:[%s829 + $0xa0] sm:$0xf]
      %v858 = vld [vmem:[%s829 + $0xa8] sm:$0xf]
      %v859 = vld [vmem:[%s829 + $0xac] sm:$0xf]
      %v860 = vld [vmem:[%s829 + $0xb4] sm:$0xf]
      %v861 = vld [vmem:[%s829 + $0xb8] sm:$0xf]
      %v862 = vld [vmem:[%s829 + $0x8] sm:$0x1]
      %v863 = vld [vmem:[%s829 + $0x14] sm:$0x1]
      %v864 = vld [vmem:[%s829 + $0x20] sm:$0x1]
      %v865 = vld [vmem:[%s829 + $0x2c] sm:$0x1]
      %v866 = vld [vmem:[%s829 + $0x38] sm:$0x1]
      %v867 = vld [vmem:[%s829 + $0x44] sm:$0x1]
      %v868 = vld [vmem:[%s829 + $0x50] sm:$0x1]
      %v869 = vld [vmem:[%s829 + $0x5c] sm:$0x1]
      %v870 = vld [vmem:[%s829 + $0x68] sm:$0x1]
      %v871 = vld [vmem:[%s829 + $0x74] sm:$0x1]
      %v872 = vld [vmem:[%s829 + $0x80] sm:$0x1]
      %v873 = vld [vmem:[%s829 + $0x8c] sm:$0x1]
      %v874 = vld [vmem:[%s829 + $0x98] sm:$0x1]
      %v875 = vld [vmem:[%s829 + $0xa4] sm:$0x1]
      %v876 = vld [vmem:[%s829 + $0xb0] sm:$0x1]
      %v877 = vld [vmem:[%s829 + $0xbc] sm:$0x1]
      %v878 = vld [vmem:[%s829] sm:$0xe]
      %v879 = vld [vmem:[%s829 + $0xc] sm:$0xe]
      %v880 = vld [vmem:[%s829 + $0x18] sm:$0xe]
      %v881 = vld [vmem:[%s829 + $0x24] sm:$0xe]
      %v882 = vld [vmem:[%s829 + $0x30] sm:$0xe]
      %v883 = vld [vmem:[%s829 + $0x3c] sm:$0xe]
      %v884 = vld [vmem:[%s829 + $0x48] sm:$0xe]
      %v885 = vld [vmem:[%s829 + $0x54] sm:$0xe]
      %v886 = vld [vmem:[%s829 + $0x60] sm:$0xe]
      %v887 = vld [vmem:[%s829 + $0x6c] sm:$0xe]
      %v888 = vld [vmem:[%s829 + $0x78] sm:$0xe]
      %v889 = vld [vmem:[%s829 + $0x84] sm:$0xe]
      %v890 = vld [vmem:[%s829 + $0x90] sm:$0xe]
      %v891 = vld [vmem:[%s829 + $0x9c] sm:$0xe]
      %v892 = vld [vmem:[%s829 + $0xa8] sm:$0xe]
      %v893 = vld [vmem:[%s829 + $0xb4] sm:$0xe]
      %v926 = vunpack.c.l.b16 %v701
      %v927 = vunpack.c.l.b16 %v702
      %v928 = vunpack.c.l.b16 %v703
      %v929 = vunpack.c.l.b16 %v704
      %v930 = vunpack.c.l.b16 %v705
      %v931 = vunpack.c.l.b16 %v706
      %v932 = vunpack.c.l.b16 %v707
      %v933 = vunpack.c.l.b16 %v708
      %v934 = vunpack.c.l.b16 %v709
      %v935 = vunpack.c.l.b16 %v710
      %v936 = vunpack.c.l.b16 %v711
      %v937 = vunpack.c.l.b16 %v712
      %v938 = vunpack.c.l.b16 %v713
      %v939 = vunpack.c.l.b16 %v714
      %v940 = vunpack.c.l.b16 %v715
      %v941 = vunpack.c.l.b16 %v716
      %v942 = vunpack.c.l.b16 %v717
      %v943 = vunpack.c.l.b16 %v718
      %v944 = vunpack.c.l.b16 %v719
      %v945 = vunpack.c.l.b16 %v720
      %v946 = vunpack.c.l.b16 %v721
      %v947 = vunpack.c.l.b16 %v722
      %v948 = vunpack.c.l.b16 %v723
      %v949 = vunpack.c.l.b16 %v724
      %v950 = vunpack.c.l.b16 %v725
      %v951 = vunpack.c.l.b16 %v726
      %v952 = vunpack.c.l.b16 %v727
      %v953 = vunpack.c.l.b16 %v728
      %v954 = vunpack.c.l.b16 %v729
      %v955 = vunpack.c.l.b16 %v730
      %v956 = vunpack.c.l.b16 %v731
      %v957 = vunpack.c.l.b16 %v732
      %v958 = vpack.c.b16 %v927, %v926
      %v959 = vpack.c.b16 %v929, %v928
      %v960 = vpack.c.b16 %v931, %v930
      %v961 = vpack.c.b16 %v933, %v932
      %v962 = vpack.c.b16 %v935, %v934
      %v963 = vpack.c.b16 %v937, %v936
      %v964 = vpack.c.b16 %v939, %v938
      %v965 = vpack.c.b16 %v941, %v940
      %v966 = vpack.c.b16 %v943, %v942
      %v967 = vpack.c.b16 %v945, %v944
      %v968 = vpack.c.b16 %v947, %v946
      %v969 = vpack.c.b16 %v949, %v948
      %v970 = vpack.c.b16 %v951, %v950
      %v971 = vpack.c.b16 %v953, %v952
      %v972 = vpack.c.b16 %v955, %v954
      %v973 = vpack.c.b16 %v957, %v956
      %v990 = vunpack.c.l.b16 %v733
      %v991 = vunpack.c.l.b16 %v734
      %v992 = vunpack.c.l.b16 %v735
      %v993 = vunpack.c.l.b16 %v736
      %v994 = vunpack.c.l.b16 %v737
      %v995 = vunpack.c.l.b16 %v738
      %v996 = vunpack.c.l.b16 %v739
      %v997 = vunpack.c.l.b16 %v740
      %v998 = vunpack.c.l.b16 %v741
      %v999 = vunpack.c.l.b16 %v742
      %v1000 = vunpack.c.l.b16 %v743
      %v1001 = vunpack.c.l.b16 %v744
      %v1002 = vunpack.c.l.b16 %v745
      %v1003 = vunpack.c.l.b16 %v746
      %v1004 = vunpack.c.l.b16 %v747
      %v1005 = vunpack.c.l.b16 %v748
      %v1006 = vpack.c.b16 %v990, %v990
      %v1007 = vpack.c.b16 %v991, %v991
      %v1008 = vpack.c.b16 %v992, %v992
      %v1009 = vpack.c.b16 %v993, %v993
      %v1010 = vpack.c.b16 %v994, %v994
      %v1011 = vpack.c.b16 %v995, %v995
      %v1012 = vpack.c.b16 %v996, %v996
      %v1013 = vpack.c.b16 %v997, %v997
      %v1014 = vpack.c.b16 %v998, %v998
      %v1015 = vpack.c.b16 %v999, %v999
      %v1016 = vpack.c.b16 %v1000, %v1000
      %v1017 = vpack.c.b16 %v1001, %v1001
      %v1018 = vpack.c.b16 %v1002, %v1002
      %v1019 = vpack.c.b16 %v1003, %v1003
      %v1020 = vpack.c.b16 %v1004, %v1004
      %v1021 = vpack.c.b16 %v1005, %v1005
      %vm1022 = vsmask.f32 7424
      %v1024 = vshrl.u32 %v958, 16
      %v1026 = vshll.u32 %v958, 16
      %v1028 = vrot.slane %v1026, 1
      %v1029 = vor.u32 %v1024, %v1028
      %v1031 = vshll.u32 %v1006, 16
      %v1033 = vrot.slane %v1031, 1
      %v1034 = vsel %vm1022, %v1029, %v1033
      %v1036 = vshrl.u32 %v959, 16
      %v1038 = vshll.u32 %v959, 16
      %v1040 = vrot.slane %v1038, 1
      %v1041 = vor.u32 %v1036, %v1040
      %v1043 = vshll.u32 %v1007, 16
      %v1045 = vrot.slane %v1043, 1
      %v1046 = vsel %vm1022, %v1041, %v1045
      %v1048 = vshrl.u32 %v960, 16
      %v1050 = vshll.u32 %v960, 16
      %v1052 = vrot.slane %v1050, 1
      %v1053 = vor.u32 %v1048, %v1052
      %v1055 = vshll.u32 %v1008, 16
      %v1057 = vrot.slane %v1055, 1
      %v1058 = vsel %vm1022, %v1053, %v1057
      %v1060 = vshrl.u32 %v961, 16
      %v1062 = vshll.u32 %v961, 16
      %v1064 = vrot.slane %v1062, 1
      %v1065 = vor.u32 %v1060, %v1064
      %v1067 = vshll.u32 %v1009, 16
      %v1069 = vrot.slane %v1067, 1
      %v1070 = vsel %vm1022, %v1065, %v1069
      %v1072 = vshrl.u32 %v962, 16
      %v1074 = vshll.u32 %v962, 16
      %v1076 = vrot.slane %v1074, 1
      %v1077 = vor.u32 %v1072, %v1076
      %v1079 = vshll.u32 %v1010, 16
      %v1081 = vrot.slane %v1079, 1
      %v1082 = vsel %vm1022, %v1077, %v1081
      %v1084 = vshrl.u32 %v963, 16
      %v1086 = vshll.u32 %v963, 16
      %v1088 = vrot.slane %v1086, 1
      %v1089 = vor.u32 %v1084, %v1088
      %v1091 = vshll.u32 %v1011, 16
      %v1093 = vrot.slane %v1091, 1
      %v1094 = vsel %vm1022, %v1089, %v1093
      %v1096 = vshrl.u32 %v964, 16
      %v1098 = vshll.u32 %v964, 16
      %v1100 = vrot.slane %v1098, 1
      %v1101 = vor.u32 %v1096, %v1100
      %v1103 = vshll.u32 %v1012, 16
      %v1105 = vrot.slane %v1103, 1
      %v1106 = vsel %vm1022, %v1101, %v1105
      %v1108 = vshrl.u32 %v965, 16
      %v1110 = vshll.u32 %v965, 16
      %v1112 = vrot.slane %v1110, 1
      %v1113 = vor.u32 %v1108, %v1112
      %v1115 = vshll.u32 %v1013, 16
      %v1117 = vrot.slane %v1115, 1
      %v1118 = vsel %vm1022, %v1113, %v1117
      %v1120 = vshrl.u32 %v966, 16
      %v1122 = vshll.u32 %v966, 16
      %v1124 = vrot.slane %v1122, 1
      %v1125 = vor.u32 %v1120, %v1124
      %v1127 = vshll.u32 %v1014, 16
      %v1129 = vrot.slane %v1127, 1
      %v1130 = vsel %vm1022, %v1125, %v1129
      %v1132 = vshrl.u32 %v967, 16
      %v1134 = vshll.u32 %v967, 16
      %v1136 = vrot.slane %v1134, 1
      %v1137 = vor.u32 %v1132, %v1136
      %v1139 = vshll.u32 %v1015, 16
      %v1141 = vrot.slane %v1139, 1
      %v1142 = vsel %vm1022, %v1137, %v1141
      %v1144 = vshrl.u32 %v968, 16
      %v1146 = vshll.u32 %v968, 16
      %v1148 = vrot.slane %v1146, 1
      %v1149 = vor.u32 %v1144, %v1148
      %v1151 = vshll.u32 %v1016, 16
      %v1153 = vrot.slane %v1151, 1
      %v1154 = vsel %vm1022, %v1149, %v1153
      %v1156 = vshrl.u32 %v969, 16
      %v1158 = vshll.u32 %v969, 16
      %v1160 = vrot.slane %v1158, 1
      %v1161 = vor.u32 %v1156, %v1160
      %v1163 = vshll.u32 %v1017, 16
      %v1165 = vrot.slane %v1163, 1
      %v1166 = vsel %vm1022, %v1161, %v1165
      %v1168 = vshrl.u32 %v970, 16
      %v1170 = vshll.u32 %v970, 16
      %v1172 = vrot.slane %v1170, 1
      %v1173 = vor.u32 %v1168, %v1172
      %v1175 = vshll.u32 %v1018, 16
      %v1177 = vrot.slane %v1175, 1
      %v1178 = vsel %vm1022, %v1173, %v1177
      %v1180 = vshrl.u32 %v971, 16
      %v1182 = vshll.u32 %v971, 16
      %v1184 = vrot.slane %v1182, 1
      %v1185 = vor.u32 %v1180, %v1184
      %v1187 = vshll.u32 %v1019, 16
      %v1189 = vrot.slane %v1187, 1
      %v1190 = vsel %vm1022, %v1185, %v1189
      %v1192 = vshrl.u32 %v972, 16
      %v1194 = vshll.u32 %v972, 16
      %v1196 = vrot.slane %v1194, 1
      %v1197 = vor.u32 %v1192, %v1196
      %v1199 = vshll.u32 %v1020, 16
      %v1201 = vrot.slane %v1199, 1
      %v1202 = vsel %vm1022, %v1197, %v1201
      %v1204 = vshrl.u32 %v973, 16
      %v1206 = vshll.u32 %v973, 16
      %v1208 = vrot.slane %v1206, 1
      %v1209 = vor.u32 %v1204, %v1208
      %v1211 = vshll.u32 %v1021, 16
      %v1213 = vrot.slane %v1211, 1
      %v1214 = vsel %vm1022, %v1209, %v1213
      %1215 = vrot.lane.b32.xlu0 %v1034, 32
      %v1216 = vpop.permute.xlu0 %1215
      %1217 = vrot.lane.b32.xlu0 %v1046, 32
      %v1218 = vpop.permute.xlu0 %1217
      %1219 = vrot.lane.b32.xlu0 %v1058, 32
      %v1220 = vpop.permute.xlu0 %1219
      %1221 = vrot.lane.b32.xlu0 %v1070, 32
      %v1222 = vpop.permute.xlu0 %1221
      %1223 = vrot.lane.b32.xlu0 %v1082, 32
      %v1224 = vpop.permute.xlu0 %1223
      %1225 = vrot.lane.b32.xlu0 %v1094, 32
      %v1226 = vpop.permute.xlu0 %1225
      %1227 = vrot.lane.b32.xlu0 %v1106, 32
      %v1228 = vpop.permute.xlu0 %1227
      %1229 = vrot.lane.b32.xlu0 %v1118, 32
      %v1230 = vpop.permute.xlu0 %1229
      %1231 = vrot.lane.b32.xlu0 %v1130, 32
      %v1232 = vpop.permute.xlu0 %1231
      %1233 = vrot.lane.b32.xlu0 %v1142, 32
      %v1234 = vpop.permute.xlu0 %1233
      %1235 = vrot.lane.b32.xlu0 %v1154, 32
      %v1236 = vpop.permute.xlu0 %1235
      %1237 = vrot.lane.b32.xlu0 %v1166, 32
      %v1238 = vpop.permute.xlu0 %1237
      %1239 = vrot.lane.b32.xlu0 %v1178, 32
      %v1240 = vpop.permute.xlu0 %1239
      %1241 = vrot.lane.b32.xlu0 %v1190, 32
      %v1242 = vpop.permute.xlu0 %1241
      %1243 = vrot.lane.b32.xlu0 %v1202, 32
      %v1244 = vpop.permute.xlu0 %1243
      %1245 = vrot.lane.b32.xlu0 %v1214, 32
      %v1246 = vpop.permute.xlu0 %1245
      %v1263 = vunpack.c.l.b16 %v749
      %v1264 = vunpack.c.l.b16 %v750
      %v1265 = vunpack.c.l.b16 %v751
      %v1266 = vunpack.c.l.b16 %v752
      %v1267 = vunpack.c.l.b16 %v753
      %v1268 = vunpack.c.l.b16 %v754
      %v1269 = vunpack.c.l.b16 %v755
      %v1270 = vunpack.c.l.b16 %v756
      %v1271 = vunpack.c.l.b16 %v757
      %v1272 = vunpack.c.l.b16 %v758
      %v1273 = vunpack.c.l.b16 %v759
      %v1274 = vunpack.c.l.b16 %v760
      %v1275 = vunpack.c.l.b16 %v761
      %v1276 = vunpack.c.l.b16 %v762
      %v1277 = vunpack.c.l.b16 %v763
      %v1278 = vunpack.c.l.b16 %v764
      %v1279 = vpack.c.b16 %v927, %v1263
      %v1280 = vpack.c.b16 %v929, %v1264
      %v1281 = vpack.c.b16 %v931, %v1265
      %v1282 = vpack.c.b16 %v933, %v1266
      %v1283 = vpack.c.b16 %v935, %v1267
      %v1284 = vpack.c.b16 %v937, %v1268
      %v1285 = vpack.c.b16 %v939, %v1269
      %v1286 = vpack.c.b16 %v941, %v1270
      %v1287 = vpack.c.b16 %v943, %v1271
      %v1288 = vpack.c.b16 %v945, %v1272
      %v1289 = vpack.c.b16 %v947, %v1273
      %v1290 = vpack.c.b16 %v949, %v1274
      %v1291 = vpack.c.b16 %v951, %v1275
      %v1292 = vpack.c.b16 %v953, %v1276
      %v1293 = vpack.c.b16 %v955, %v1277
      %v1294 = vpack.c.b16 %v957, %v1278
      %vm1295 = vcmask 1046528
      %v1296 = vrot.slane %v1279, 1
      %v1297 = vrot.slane %v1006, 1
      %v1298 = vsel %vm1295, %v1296, %v1297
      %v1299 = vrot.slane %v1280, 1
      %v1300 = vrot.slane %v1007, 1
      %v1301 = vsel %vm1295, %v1299, %v1300
      %v1302 = vrot.slane %v1281, 1
      %v1303 = vrot.slane %v1008, 1
      %v1304 = vsel %vm1295, %v1302, %v1303
      %v1305 = vrot.slane %v1282, 1
      %v1306 = vrot.slane %v1009, 1
      %v1307 = vsel %vm1295, %v1305, %v1306
      %v1308 = vrot.slane %v1283, 1
      %v1309 = vrot.slane %v1010, 1
      %v1310 = vsel %vm1295, %v1308, %v1309
      %v1311 = vrot.slane %v1284, 1
      %v1312 = vrot.slane %v1011, 1
      %v1313 = vsel %vm1295, %v1311, %v1312
      %v1314 = vrot.slane %v1285, 1
      %v1315 = vrot.slane %v1012, 1
      %v1316 = vsel %vm1295, %v1314, %v1315
      %v1317 = vrot.slane %v1286, 1
      %v1318 = vrot.slane %v1013, 1
      %v1319 = vsel %vm1295, %v1317, %v1318
      %v1320 = vrot.slane %v1287, 1
      %v1321 = vrot.slane %v1014, 1
      %v1322 = vsel %vm1295, %v1320, %v1321
      %v1323 = vrot.slane %v1288, 1
      %v1324 = vrot.slane %v1015, 1
      %v1325 = vsel %vm1295, %v1323, %v1324
      %v1326 = vrot.slane %v1289, 1
      %v1327 = vrot.slane %v1016, 1
      %v1328 = vsel %vm1295, %v1326, %v1327
      %v1329 = vrot.slane %v1290, 1
      %v1330 = vrot.slane %v1017, 1
      %v1331 = vsel %vm1295, %v1329, %v1330
      %v1332 = vrot.slane %v1291, 1
      %v1333 = vrot.slane %v1018, 1
      %v1334 = vsel %vm1295, %v1332, %v1333
      %v1335 = vrot.slane %v1292, 1
      %v1336 = vrot.slane %v1019, 1
      %v1337 = vsel %vm1295, %v1335, %v1336
      %v1338 = vrot.slane %v1293, 1
      %v1339 = vrot.slane %v1020, 1
      %v1340 = vsel %vm1295, %v1338, %v1339
      %v1341 = vrot.slane %v1294, 1
      %v1342 = vrot.slane %v1021, 1
      %v1343 = vsel %vm1295, %v1341, %v1342
      %1344 = vrot.lane.b32.xlu0 %v1298, 64
      %v1345 = vpop.permute.xlu0 %1344
      %1346 = vrot.lane.b32.xlu0 %v1301, 64
      %v1347 = vpop.permute.xlu0 %1346
      %1348 = vrot.lane.b32.xlu0 %v1304, 64
      %v1349 = vpop.permute.xlu0 %1348
      %1350 = vrot.lane.b32.xlu0 %v1307, 64
      %v1351 = vpop.permute.xlu0 %1350
      %1352 = vrot.lane.b32.xlu0 %v1310, 64
      %v1353 = vpop.permute.xlu0 %1352
      %1354 = vrot.lane.b32.xlu0 %v1313, 64
      %v1355 = vpop.permute.xlu0 %1354
      %1356 = vrot.lane.b32.xlu0 %v1316, 64
      %v1357 = vpop.permute.xlu0 %1356
      %1358 = vrot.lane.b32.xlu0 %v1319, 64
      %v1359 = vpop.permute.xlu0 %1358
      %1360 = vrot.lane.b32.xlu0 %v1322, 64
      %v1361 = vpop.permute.xlu0 %1360
      %1362 = vrot.lane.b32.xlu0 %v1325, 64
      %v1363 = vpop.permute.xlu0 %1362
      %1364 = vrot.lane.b32.xlu0 %v1328, 64
      %v1365 = vpop.permute.xlu0 %1364
      %1366 = vrot.lane.b32.xlu0 %v1331, 64
      %v1367 = vpop.permute.xlu0 %1366
      %1368 = vrot.lane.b32.xlu0 %v1334, 64
      %v1369 = vpop.permute.xlu0 %1368
      %1370 = vrot.lane.b32.xlu0 %v1337, 64
      %v1371 = vpop.permute.xlu0 %1370
      %1372 = vrot.lane.b32.xlu0 %v1340, 64
      %v1373 = vpop.permute.xlu0 %1372
      %1374 = vrot.lane.b32.xlu0 %v1343, 64
      %v1375 = vpop.permute.xlu0 %1374
      %v1408 = vunpack.c.l.b16 %v765
      %v1409 = vunpack.c.l.b16 %v766
      %v1410 = vunpack.c.l.b16 %v767
      %v1411 = vunpack.c.l.b16 %v768
      %v1412 = vunpack.c.l.b16 %v769
      %v1413 = vunpack.c.l.b16 %v770
      %v1414 = vunpack.c.l.b16 %v771
      %v1415 = vunpack.c.l.b16 %v772
      %v1416 = vunpack.c.l.b16 %v773
      %v1417 = vunpack.c.l.b16 %v774
      %v1418 = vunpack.c.l.b16 %v775
      %v1419 = vunpack.c.l.b16 %v776
      %v1420 = vunpack.c.l.b16 %v777
      %v1421 = vunpack.c.l.b16 %v778
      %v1422 = vunpack.c.l.b16 %v779
      %v1423 = vunpack.c.l.b16 %v780
      %v1424 = vunpack.c.l.b16 %v781
      %v1425 = vunpack.c.l.b16 %v782
      %v1426 = vunpack.c.l.b16 %v783
      %v1427 = vunpack.c.l.b16 %v784
      %v1428 = vunpack.c.l.b16 %v785
      %v1429 = vunpack.c.l.b16 %v786
      %v1430 = vunpack.c.l.b16 %v787
      %v1431 = vunpack.c.l.b16 %v788
      %v1432 = vunpack.c.l.b16 %v789
      %v1433 = vunpack.c.l.b16 %v790
      %v1434 = vunpack.c.l.b16 %v791
      %v1435 = vunpack.c.l.b16 %v792
      %v1436 = vunpack.c.l.b16 %v793
      %v1437 = vunpack.c.l.b16 %v794
      %v1438 = vunpack.c.l.b16 %v795
      %v1439 = vunpack.c.l.b16 %v796
      %v1440 = vpack.c.b16 %v1409, %v1408
      %v1441 = vpack.c.b16 %v1411, %v1410
      %v1442 = vpack.c.b16 %v1413, %v1412
      %v1443 = vpack.c.b16 %v1415, %v1414
      %v1444 = vpack.c.b16 %v1417, %v1416
      %v1445 = vpack.c.b16 %v1419, %v1418
      %v1446 = vpack.c.b16 %v1421, %v1420
      %v1447 = vpack.c.b16 %v1423, %v1422
      %v1448 = vpack.c.b16 %v1425, %v1424
      %v1449 = vpack.c.b16 %v1427, %v1426
      %v1450 = vpack.c.b16 %v1429, %v1428
      %v1451 = vpack.c.b16 %v1431, %v1430
      %v1452 = vpack.c.b16 %v1433, %v1432
      %v1453 = vpack.c.b16 %v1435, %v1434
      %v1454 = vpack.c.b16 %v1437, %v1436
      %v1455 = vpack.c.b16 %v1439, %v1438
      %1456 = vrot.lane.b32.xlu0 %v1440, 96
      %v1457 = vpop.permute.xlu0 %1456
      %1458 = vrot.lane.b32.xlu0 %v1441, 96
      %v1459 = vpop.permute.xlu0 %1458
      %1460 = vrot.lane.b32.xlu0 %v1442, 96
      %v1461 = vpop.permute.xlu0 %1460
      %1462 = vrot.lane.b32.xlu0 %v1443, 96
      %v1463 = vpop.permute.xlu0 %1462
      %1464 = vrot.lane.b32.xlu0 %v1444, 96
      %v1465 = vpop.permute.xlu0 %1464
      %1466 = vrot.lane.b32.xlu0 %v1445, 96
      %v1467 = vpop.permute.xlu0 %1466
      %1468 = vrot.lane.b32.xlu0 %v1446, 96
      %v1469 = vpop.permute.xlu0 %1468
      %1470 = vrot.lane.b32.xlu0 %v1447, 96
      %v1471 = vpop.permute.xlu0 %1470
      %1472 = vrot.lane.b32.xlu0 %v1448, 96
      %v1473 = vpop.permute.xlu0 %1472
      %1474 = vrot.lane.b32.xlu0 %v1449, 96
      %v1475 = vpop.permute.xlu0 %1474
      %1476 = vrot.lane.b32.xlu0 %v1450, 96
      %v1477 = vpop.permute.xlu0 %1476
      %1478 = vrot.lane.b32.xlu0 %v1451, 96
      %v1479 = vpop.permute.xlu0 %1478
      %1480 = vrot.lane.b32.xlu0 %v1452, 96
      %v1481 = vpop.permute.xlu0 %1480
      %1482 = vrot.lane.b32.xlu0 %v1453, 96
      %v1483 = vpop.permute.xlu0 %1482
      %1484 = vrot.lane.b32.xlu0 %v1454, 96
      %v1485 = vpop.permute.xlu0 %1484
      %1486 = vrot.lane.b32.xlu0 %v1455, 96
      %v1487 = vpop.permute.xlu0 %1486
      %v1504 = vunpack.c.l.b16 %v797
      %v1505 = vunpack.c.l.b16 %v798
      %v1506 = vunpack.c.l.b16 %v799
      %v1507 = vunpack.c.l.b16 %v800
      %v1508 = vunpack.c.l.b16 %v801
      %v1509 = vunpack.c.l.b16 %v802
      %v1510 = vunpack.c.l.b16 %v803
      %v1511 = vunpack.c.l.b16 %v804
      %v1512 = vunpack.c.l.b16 %v805
      %v1513 = vunpack.c.l.b16 %v806
      %v1514 = vunpack.c.l.b16 %v807
      %v1515 = vunpack.c.l.b16 %v808
      %v1516 = vunpack.c.l.b16 %v809
      %v1517 = vunpack.c.l.b16 %v810
      %v1518 = vunpack.c.l.b16 %v811
      %v1519 = vunpack.c.l.b16 %v812
      %v1520 = vpack.c.b16 %v1504, %v1504
      %v1521 = vpack.c.b16 %v1505, %v1505
      %v1522 = vpack.c.b16 %v1506, %v1506
      %v1523 = vpack.c.b16 %v1507, %v1507
      %v1524 = vpack.c.b16 %v1508, %v1508
      %v1525 = vpack.c.b16 %v1509, %v1509
      %v1526 = vpack.c.b16 %v1510, %v1510
      %v1527 = vpack.c.b16 %v1511, %v1511
      %v1528 = vpack.c.b16 %v1512, %v1512
      %v1529 = vpack.c.b16 %v1513, %v1513
      %v1530 = vpack.c.b16 %v1514, %v1514
      %v1531 = vpack.c.b16 %v1515, %v1515
      %v1532 = vpack.c.b16 %v1516, %v1516
      %v1533 = vpack.c.b16 %v1517, %v1517
      %v1534 = vpack.c.b16 %v1518, %v1518
      %v1535 = vpack.c.b16 %v1519, %v1519
      %v1537 = vshrl.u32 %v1440, 16
      %v1539 = vshll.u32 %v1440, 16
      %v1541 = vrot.slane %v1539, 1
      %v1542 = vor.u32 %v1537, %v1541
      %v1544 = vshll.u32 %v1520, 16
      %v1546 = vrot.slane %v1544, 1
      %v1547 = vsel %vm1022, %v1542, %v1546
      %v1549 = vshrl.u32 %v1441, 16
      %v1551 = vshll.u32 %v1441, 16
      %v1553 = vrot.slane %v1551, 1
      %v1554 = vor.u32 %v1549, %v1553
      %v1556 = vshll.u32 %v1521, 16
      %v1558 = vrot.slane %v1556, 1
      %v1559 = vsel %vm1022, %v1554, %v1558
      %v1561 = vshrl.u32 %v1442, 16
      %v1563 = vshll.u32 %v1442, 16
      %v1565 = vrot.slane %v1563, 1
      %v1566 = vor.u32 %v1561, %v1565
      %v1568 = vshll.u32 %v1522, 16
      %v1570 = vrot.slane %v1568, 1
      %v1571 = vsel %vm1022, %v1566, %v1570
      %v1573 = vshrl.u32 %v1443, 16
      %v1575 = vshll.u32 %v1443, 16
      %v1577 = vrot.slane %v1575, 1
      %v1578 = vor.u32 %v1573, %v1577
      %v1580 = vshll.u32 %v1523, 16
      %v1582 = vrot.slane %v1580, 1
      %v1583 = vsel %vm1022, %v1578, %v1582
      %v1585 = vshrl.u32 %v1444, 16
      %v1587 = vshll.u32 %v1444, 16
      %v1589 = vrot.slane %v1587, 1
      %v1590 = vor.u32 %v1585, %v1589
      %v1592 = vshll.u32 %v1524, 16
      %v1594 = vrot.slane %v1592, 1
      %v1595 = vsel %vm1022, %v1590, %v1594
      %v1597 = vshrl.u32 %v1445, 16
      %v1599 = vshll.u32 %v1445, 16
      %v1601 = vrot.slane %v1599, 1
      %v1602 = vor.u32 %v1597, %v1601
      %v1604 = vshll.u32 %v1525, 16
      %v1606 = vrot.slane %v1604, 1
      %v1607 = vsel %vm1022, %v1602, %v1606
      %v1609 = vshrl.u32 %v1446, 16
      %v1611 = vshll.u32 %v1446, 16
      %v1613 = vrot.slane %v1611, 1
      %v1614 = vor.u32 %v1609, %v1613
      %v1616 = vshll.u32 %v1526, 16
      %v1618 = vrot.slane %v1616, 1
      %v1619 = vsel %vm1022, %v1614, %v1618
      %v1621 = vshrl.u32 %v1447, 16
      %v1623 = vshll.u32 %v1447, 16
      %v1625 = vrot.slane %v1623, 1
      %v1626 = vor.u32 %v1621, %v1625
      %v1628 = vshll.u32 %v1527, 16
      %v1630 = vrot.slane %v1628, 1
      %v1631 = vsel %vm1022, %v1626, %v1630
      %v1633 = vshrl.u32 %v1448, 16
      %v1635 = vshll.u32 %v1448, 16
      %v1637 = vrot.slane %v1635, 1
      %v1638 = vor.u32 %v1633, %v1637
      %v1640 = vshll.u32 %v1528, 16
      %v1642 = vrot.slane %v1640, 1
      %v1643 = vsel %vm1022, %v1638, %v1642
      %v1645 = vshrl.u32 %v1449, 16
      %v1647 = vshll.u32 %v1449, 16
      %v1649 = vrot.slane %v1647, 1
      %v1650 = vor.u32 %v1645, %v1649
      %v1652 = vshll.u32 %v1529, 16
      %v1654 = vrot.slane %v1652, 1
      %v1655 = vsel %vm1022, %v1650, %v1654
      %v1657 = vshrl.u32 %v1450, 16
      %v1659 = vshll.u32 %v1450, 16
      %v1661 = vrot.slane %v1659, 1
      %v1662 = vor.u32 %v1657, %v1661
      %v1664 = vshll.u32 %v1530, 16
      %v1666 = vrot.slane %v1664, 1
      %v1667 = vsel %vm1022, %v1662, %v1666
      %v1669 = vshrl.u32 %v1451, 16
      %v1671 = vshll.u32 %v1451, 16
      %v1673 = vrot.slane %v1671, 1
      %v1674 = vor.u32 %v1669, %v1673
      %v1676 = vshll.u32 %v1531, 16
      %v1678 = vrot.slane %v1676, 1
      %v1679 = vsel %vm1022, %v1674, %v1678
      %v1681 = vshrl.u32 %v1452, 16
      %v1683 = vshll.u32 %v1452, 16
      %v1685 = vrot.slane %v1683, 1
      %v1686 = vor.u32 %v1681, %v1685
      %v1688 = vshll.u32 %v1532, 16
      %v1690 = vrot.slane %v1688, 1
      %v1691 = vsel %vm1022, %v1686, %v1690
      %v1693 = vshrl.u32 %v1453, 16
      %v1695 = vshll.u32 %v1453, 16
      %v1697 = vrot.slane %v1695, 1
      %v1698 = vor.u32 %v1693, %v1697
      %v1700 = vshll.u32 %v1533, 16
      %v1702 = vrot.slane %v1700, 1
      %v1703 = vsel %vm1022, %v1698, %v1702
      %v1705 = vshrl.u32 %v1454, 16
      %v1707 = vshll.u32 %v1454, 16
      %v1709 = vrot.slane %v1707, 1
      %v1710 = vor.u32 %v1705, %v1709
      %v1712 = vshll.u32 %v1534, 16
      %v1714 = vrot.slane %v1712, 1
      %v1715 = vsel %vm1022, %v1710, %v1714
      %v1717 = vshrl.u32 %v1455, 16
      %v1719 = vshll.u32 %v1455, 16
      %v1721 = vrot.slane %v1719, 1
      %v1722 = vor.u32 %v1717, %v1721
      %v1724 = vshll.u32 %v1535, 16
      %v1726 = vrot.slane %v1724, 1
      %v1727 = vsel %vm1022, %v1722, %v1726
      %v1744 = vunpack.c.l.b16 %v813
      %v1745 = vunpack.c.l.b16 %v814
      %v1746 = vunpack.c.l.b16 %v815
      %v1747 = vunpack.c.l.b16 %v816
      %v1748 = vunpack.c.l.b16 %v817
      %v1749 = vunpack.c.l.b16 %v818
      %v1750 = vunpack.c.l.b16 %v819
      %v1751 = vunpack.c.l.b16 %v820
      %v1752 = vunpack.c.l.b16 %v821
      %v1753 = vunpack.c.l.b16 %v822
      %v1754 = vunpack.c.l.b16 %v823
      %v1755 = vunpack.c.l.b16 %v824
      %v1756 = vunpack.c.l.b16 %v825
      %v1757 = vunpack.c.l.b16 %v826
      %v1758 = vunpack.c.l.b16 %v827
      %v1759 = vunpack.c.l.b16 %v828
      %v1760 = vpack.c.b16 %v1409, %v1744
      %v1761 = vpack.c.b16 %v1411, %v1745
      %v1762 = vpack.c.b16 %v1413, %v1746
      %v1763 = vpack.c.b16 %v1415, %v1747
      %v1764 = vpack.c.b16 %v1417, %v1748
      %v1765 = vpack.c.b16 %v1419, %v1749
      %v1766 = vpack.c.b16 %v1421, %v1750
      %v1767 = vpack.c.b16 %v1423, %v1751
      %v1768 = vpack.c.b16 %v1425, %v1752
      %v1769 = vpack.c.b16 %v1427, %v1753
      %v1770 = vpack.c.b16 %v1429, %v1754
      %v1771 = vpack.c.b16 %v1431, %v1755
      %v1772 = vpack.c.b16 %v1433, %v1756
      %v1773 = vpack.c.b16 %v1435, %v1757
      %v1774 = vpack.c.b16 %v1437, %v1758
      %v1775 = vpack.c.b16 %v1439, %v1759
      %v1776 = vrot.slane %v1760, 1
      %v1777 = vrot.slane %v1520, 1
      %v1778 = vsel %vm1295, %v1776, %v1777
      %v1779 = vrot.slane %v1761, 1
      %v1780 = vrot.slane %v1521, 1
      %v1781 = vsel %vm1295, %v1779, %v1780
      %v1782 = vrot.slane %v1762, 1
      %v1783 = vrot.slane %v1522, 1
      %v1784 = vsel %vm1295, %v1782, %v1783
      %v1785 = vrot.slane %v1763, 1
      %v1786 = vrot.slane %v1523, 1
      %v1787 = vsel %vm1295, %v1785, %v1786
      %v1788 = vrot.slane %v1764, 1
      %v1789 = vrot.slane %v1524, 1
      %v1790 = vsel %vm1295, %v1788, %v1789
      %v1791 = vrot.slane %v1765, 1
      %v1792 = vrot.slane %v1525, 1
      %v1793 = vsel %vm1295, %v1791, %v1792
      %v1794 = vrot.slane %v1766, 1
      %v1795 = vrot.slane %v1526, 1
      %v1796 = vsel %vm1295, %v1794, %v1795
      %v1797 = vrot.slane %v1767, 1
      %v1798 = vrot.slane %v1527, 1
      %v1799 = vsel %vm1295, %v1797, %v1798
      %v1800 = vrot.slane %v1768, 1
      %v1801 = vrot.slane %v1528, 1
      %v1802 = vsel %vm1295, %v1800, %v1801
      %v1803 = vrot.slane %v1769, 1
      %v1804 = vrot.slane %v1529, 1
      %v1805 = vsel %vm1295, %v1803, %v1804
      %v1806 = vrot.slane %v1770, 1
      %v1807 = vrot.slane %v1530, 1
      %v1808 = vsel %vm1295, %v1806, %v1807
      %v1809 = vrot.slane %v1771, 1
      %v1810 = vrot.slane %v1531, 1
      %v1811 = vsel %vm1295, %v1809, %v1810
      %v1812 = vrot.slane %v1772, 1
      %v1813 = vrot.slane %v1532, 1
      %v1814 = vsel %vm1295, %v1812, %v1813
      %v1815 = vrot.slane %v1773, 1
      %v1816 = vrot.slane %v1533, 1
      %v1817 = vsel %vm1295, %v1815, %v1816
      %v1818 = vrot.slane %v1774, 1
      %v1819 = vrot.slane %v1534, 1
      %v1820 = vsel %vm1295, %v1818, %v1819
      %v1821 = vrot.slane %v1775, 1
      %v1822 = vrot.slane %v1535, 1
      %v1823 = vsel %vm1295, %v1821, %v1822
      %1824 = vrot.lane.b32.xlu0 %v1778, 32
      %v1825 = vpop.permute.xlu0 %1824
      %1826 = vrot.lane.b32.xlu0 %v1781, 32
      %v1827 = vpop.permute.xlu0 %1826
      %1828 = vrot.lane.b32.xlu0 %v1784, 32
      %v1829 = vpop.permute.xlu0 %1828
      %1830 = vrot.lane.b32.xlu0 %v1787, 32
      %v1831 = vpop.permute.xlu0 %1830
      %1832 = vrot.lane.b32.xlu0 %v1790, 32
      %v1833 = vpop.permute.xlu0 %1832
      %1834 = vrot.lane.b32.xlu0 %v1793, 32
      %v1835 = vpop.permute.xlu0 %1834
      %1836 = vrot.lane.b32.xlu0 %v1796, 32
      %v1837 = vpop.permute.xlu0 %1836
      %1838 = vrot.lane.b32.xlu0 %v1799, 32
      %v1839 = vpop.permute.xlu0 %1838
      %1840 = vrot.lane.b32.xlu0 %v1802, 32
      %v1841 = vpop.permute.xlu0 %1840
      %1842 = vrot.lane.b32.xlu0 %v1805, 32
      %v1843 = vpop.permute.xlu0 %1842
      %1844 = vrot.lane.b32.xlu0 %v1808, 32
      %v1845 = vpop.permute.xlu0 %1844
      %1846 = vrot.lane.b32.xlu0 %v1811, 32
      %v1847 = vpop.permute.xlu0 %1846
      %1848 = vrot.lane.b32.xlu0 %v1814, 32
      %v1849 = vpop.permute.xlu0 %1848
      %1850 = vrot.lane.b32.xlu0 %v1817, 32
      %v1851 = vpop.permute.xlu0 %1850
      %1852 = vrot.lane.b32.xlu0 %v1820, 32
      %v1853 = vpop.permute.xlu0 %1852
      %1854 = vrot.lane.b32.xlu0 %v1823, 32
      %v1855 = vpop.permute.xlu0 %1854
      %v1888 = vunpack.c.l.b16 %v830
      %v1889 = vunpack.c.l.b16 %v831
      %v1890 = vunpack.c.l.b16 %v832
      %v1891 = vunpack.c.l.b16 %v833
      %v1892 = vunpack.c.l.b16 %v834
      %v1893 = vunpack.c.l.b16 %v835
      %v1894 = vunpack.c.l.b16 %v836
      %v1895 = vunpack.c.l.b16 %v837
      %v1896 = vunpack.c.l.b16 %v838
      %v1897 = vunpack.c.l.b16 %v839
      %v1898 = vunpack.c.l.b16 %v840
      %v1899 = vunpack.c.l.b16 %v841
      %v1900 = vunpack.c.l.b16 %v842
      %v1901 = vunpack.c.l.b16 %v843
      %v1902 = vunpack.c.l.b16 %v844
      %v1903 = vunpack.c.l.b16 %v845
      %v1904 = vunpack.c.l.b16 %v846
      %v1905 = vunpack.c.l.b16 %v847
      %v1906 = vunpack.c.l.b16 %v848
      %v1907 = vunpack.c.l.b16 %v849
      %v1908 = vunpack.c.l.b16 %v850
      %v1909 = vunpack.c.l.b16 %v851
      %v1910 = vunpack.c.l.b16 %v852
      %v1911 = vunpack.c.l.b16 %v853
      %v1912 = vunpack.c.l.b16 %v854
      %v1913 = vunpack.c.l.b16 %v855
      %v1914 = vunpack.c.l.b16 %v856
      %v1915 = vunpack.c.l.b16 %v857
      %v1916 = vunpack.c.l.b16 %v858
      %v1917 = vunpack.c.l.b16 %v859
      %v1918 = vunpack.c.l.b16 %v860
      %v1919 = vunpack.c.l.b16 %v861
      %v1920 = vpack.c.b16 %v1889, %v1888
      %v1921 = vpack.c.b16 %v1891, %v1890
      %v1922 = vpack.c.b16 %v1893, %v1892
      %v1923 = vpack.c.b16 %v1895, %v1894
      %v1924 = vpack.c.b16 %v1897, %v1896
      %v1925 = vpack.c.b16 %v1899, %v1898
      %v1926 = vpack.c.b16 %v1901, %v1900
      %v1927 = vpack.c.b16 %v1903, %v1902
      %v1928 = vpack.c.b16 %v1905, %v1904
      %v1929 = vpack.c.b16 %v1907, %v1906
      %v1930 = vpack.c.b16 %v1909, %v1908
      %v1931 = vpack.c.b16 %v1911, %v1910
      %v1932 = vpack.c.b16 %v1913, %v1912
      %v1933 = vpack.c.b16 %v1915, %v1914
      %v1934 = vpack.c.b16 %v1917, %v1916
      %v1935 = vpack.c.b16 %v1919, %v1918
      %1936 = vrot.lane.b32.xlu0 %v1920, 64
      %v1937 = vpop.permute.xlu0 %1936
      %1938 = vrot.lane.b32.xlu0 %v1921, 64
      %v1939 = vpop.permute.xlu0 %1938
      %1940 = vrot.lane.b32.xlu0 %v1922, 64
      %v1941 = vpop.permute.xlu0 %1940
      %1942 = vrot.lane.b32.xlu0 %v1923, 64
      %v1943 = vpop.permute.xlu0 %1942
      %1944 = vrot.lane.b32.xlu0 %v1924, 64
      %v1945 = vpop.permute.xlu0 %1944
      %1946 = vrot.lane.b32.xlu0 %v1925, 64
      %v1947 = vpop.permute.xlu0 %1946
      %1948 = vrot.lane.b32.xlu0 %v1926, 64
      %v1949 = vpop.permute.xlu0 %1948
      %1950 = vrot.lane.b32.xlu0 %v1927, 64
      %v1951 = vpop.permute.xlu0 %1950
      %1952 = vrot.lane.b32.xlu0 %v1928, 64
      %v1953 = vpop.permute.xlu0 %1952
      %1954 = vrot.lane.b32.xlu0 %v1929, 64
      %v1955 = vpop.permute.xlu0 %1954
      %1956 = vrot.lane.b32.xlu0 %v1930, 64
      %v1957 = vpop.permute.xlu0 %1956
      %1958 = vrot.lane.b32.xlu0 %v1931, 64
      %v1959 = vpop.permute.xlu0 %1958
      %1960 = vrot.lane.b32.xlu0 %v1932, 64
      %v1961 = vpop.permute.xlu0 %1960
      %1962 = vrot.lane.b32.xlu0 %v1933, 64
      %v1963 = vpop.permute.xlu0 %1962
      %1964 = vrot.lane.b32.xlu0 %v1934, 64
      %v1965 = vpop.permute.xlu0 %1964
      %1966 = vrot.lane.b32.xlu0 %v1935, 64
      %v1967 = vpop.permute.xlu0 %1966
      %v1984 = vunpack.c.l.b16 %v862
      %v1985 = vunpack.c.l.b16 %v863
      %v1986 = vunpack.c.l.b16 %v864
      %v1987 = vunpack.c.l.b16 %v865
      %v1988 = vunpack.c.l.b16 %v866
      %v1989 = vunpack.c.l.b16 %v867
      %v1990 = vunpack.c.l.b16 %v868
      %v1991 = vunpack.c.l.b16 %v869
      %v1992 = vunpack.c.l.b16 %v870
      %v1993 = vunpack.c.l.b16 %v871
      %v1994 = vunpack.c.l.b16 %v872
      %v1995 = vunpack.c.l.b16 %v873
      %v1996 = vunpack.c.l.b16 %v874
      %v1997 = vunpack.c.l.b16 %v875
      %v1998 = vunpack.c.l.b16 %v876
      %v1999 = vunpack.c.l.b16 %v877
      %v2000 = vpack.c.b16 %v1984, %v1984
      %v2001 = vpack.c.b16 %v1985, %v1985
      %v2002 = vpack.c.b16 %v1986, %v1986
      %v2003 = vpack.c.b16 %v1987, %v1987
      %v2004 = vpack.c.b16 %v1988, %v1988
      %v2005 = vpack.c.b16 %v1989, %v1989
      %v2006 = vpack.c.b16 %v1990, %v1990
      %v2007 = vpack.c.b16 %v1991, %v1991
      %v2008 = vpack.c.b16 %v1992, %v1992
      %v2009 = vpack.c.b16 %v1993, %v1993
      %v2010 = vpack.c.b16 %v1994, %v1994
      %v2011 = vpack.c.b16 %v1995, %v1995
      %v2012 = vpack.c.b16 %v1996, %v1996
      %v2013 = vpack.c.b16 %v1997, %v1997
      %v2014 = vpack.c.b16 %v1998, %v1998
      %v2015 = vpack.c.b16 %v1999, %v1999
      %v2017 = vshrl.u32 %v1920, 16
      %v2019 = vshll.u32 %v1920, 16
      %v2021 = vrot.slane %v2019, 1
      %v2022 = vor.u32 %v2017, %v2021
      %v2024 = vshll.u32 %v2000, 16
      %v2026 = vrot.slane %v2024, 1
      %v2027 = vsel %vm1022, %v2022, %v2026
      %v2029 = vshrl.u32 %v1921, 16
      %v2031 = vshll.u32 %v1921, 16
      %v2033 = vrot.slane %v2031, 1
      %v2034 = vor.u32 %v2029, %v2033
      %v2036 = vshll.u32 %v2001, 16
      %v2038 = vrot.slane %v2036, 1
      %v2039 = vsel %vm1022, %v2034, %v2038
      %v2041 = vshrl.u32 %v1922, 16
      %v2043 = vshll.u32 %v1922, 16
      %v2045 = vrot.slane %v2043, 1
      %v2046 = vor.u32 %v2041, %v2045
      %v2048 = vshll.u32 %v2002, 16
      %v2050 = vrot.slane %v2048, 1
      %v2051 = vsel %vm1022, %v2046, %v2050
      %v2053 = vshrl.u32 %v1923, 16
      %v2055 = vshll.u32 %v1923, 16
      %v2057 = vrot.slane %v2055, 1
      %v2058 = vor.u32 %v2053, %v2057
      %v2060 = vshll.u32 %v2003, 16
      %v2062 = vrot.slane %v2060, 1
      %v2063 = vsel %vm1022, %v2058, %v2062
      %v2065 = vshrl.u32 %v1924, 16
      %v2067 = vshll.u32 %v1924, 16
      %v2069 = vrot.slane %v2067, 1
      %v2070 = vor.u32 %v2065, %v2069
      %v2072 = vshll.u32 %v2004, 16
      %v2074 = vrot.slane %v2072, 1
      %v2075 = vsel %vm1022, %v2070, %v2074
      %v2077 = vshrl.u32 %v1925, 16
      %v2079 = vshll.u32 %v1925, 16
      %v2081 = vrot.slane %v2079, 1
      %v2082 = vor.u32 %v2077, %v2081
      %v2084 = vshll.u32 %v2005, 16
      %v2086 = vrot.slane %v2084, 1
      %v2087 = vsel %vm1022, %v2082, %v2086
      %v2089 = vshrl.u32 %v1926, 16
      %v2091 = vshll.u32 %v1926, 16
      %v2093 = vrot.slane %v2091, 1
      %v2094 = vor.u32 %v2089, %v2093
      %v2096 = vshll.u32 %v2006, 16
      %v2098 = vrot.slane %v2096, 1
      %v2099 = vsel %vm1022, %v2094, %v2098
      %v2101 = vshrl.u32 %v1927, 16
      %v2103 = vshll.u32 %v1927, 16
      %v2105 = vrot.slane %v2103, 1
      %v2106 = vor.u32 %v2101, %v2105
      %v2108 = vshll.u32 %v2007, 16
      %v2110 = vrot.slane %v2108, 1
      %v2111 = vsel %vm1022, %v2106, %v2110
      %v2113 = vshrl.u32 %v1928, 16
      %v2115 = vshll.u32 %v1928, 16
      %v2117 = vrot.slane %v2115, 1
      %v2118 = vor.u32 %v2113, %v2117
      %v2120 = vshll.u32 %v2008, 16
      %v2122 = vrot.slane %v2120, 1
      %v2123 = vsel %vm1022, %v2118, %v2122
      %v2125 = vshrl.u32 %v1929, 16
      %v2127 = vshll.u32 %v1929, 16
      %v2129 = vrot.slane %v2127, 1
      %v2130 = vor.u32 %v2125, %v2129
      %v2132 = vshll.u32 %v2009, 16
      %v2134 = vrot.slane %v2132, 1
      %v2135 = vsel %vm1022, %v2130, %v2134
      %v2137 = vshrl.u32 %v1930, 16
      %v2139 = vshll.u32 %v1930, 16
      %v2141 = vrot.slane %v2139, 1
      %v2142 = vor.u32 %v2137, %v2141
      %v2144 = vshll.u32 %v2010, 16
      %v2146 = vrot.slane %v2144, 1
      %v2147 = vsel %vm1022, %v2142, %v2146
      %v2149 = vshrl.u32 %v1931, 16
      %v2151 = vshll.u32 %v1931, 16
      %v2153 = vrot.slane %v2151, 1
      %v2154 = vor.u32 %v2149, %v2153
      %v2156 = vshll.u32 %v2011, 16
      %v2158 = vrot.slane %v2156, 1
      %v2159 = vsel %vm1022, %v2154, %v2158
      %v2161 = vshrl.u32 %v1932, 16
      %v2163 = vshll.u32 %v1932, 16
      %v2165 = vrot.slane %v2163, 1
      %v2166 = vor.u32 %v2161, %v2165
      %v2168 = vshll.u32 %v2012, 16
      %v2170 = vrot.slane %v2168, 1
      %v2171 = vsel %vm1022, %v2166, %v2170
      %v2173 = vshrl.u32 %v1933, 16
      %v2175 = vshll.u32 %v1933, 16
      %v2177 = vrot.slane %v2175, 1
      %v2178 = vor.u32 %v2173, %v2177
      %v2180 = vshll.u32 %v2013, 16
      %v2182 = vrot.slane %v2180, 1
      %v2183 = vsel %vm1022, %v2178, %v2182
      %v2185 = vshrl.u32 %v1934, 16
      %v2187 = vshll.u32 %v1934, 16
      %v2189 = vrot.slane %v2187, 1
      %v2190 = vor.u32 %v2185, %v2189
      %v2192 = vshll.u32 %v2014, 16
      %v2194 = vrot.slane %v2192, 1
      %v2195 = vsel %vm1022, %v2190, %v2194
      %v2197 = vshrl.u32 %v1935, 16
      %v2199 = vshll.u32 %v1935, 16
      %v2201 = vrot.slane %v2199, 1
      %v2202 = vor.u32 %v2197, %v2201
      %v2204 = vshll.u32 %v2015, 16
      %v2206 = vrot.slane %v2204, 1
      %v2207 = vsel %vm1022, %v2202, %v2206
      %2208 = vrot.lane.b32.xlu0 %v2027, 96
      %v2209 = vpop.permute.xlu0 %2208
      %2210 = vrot.lane.b32.xlu0 %v2039, 96
      %v2211 = vpop.permute.xlu0 %2210
      %2212 = vrot.lane.b32.xlu0 %v2051, 96
      %v2213 = vpop.permute.xlu0 %2212
      %2214 = vrot.lane.b32.xlu0 %v2063, 96
      %v2215 = vpop.permute.xlu0 %2214
      %2216 = vrot.lane.b32.xlu0 %v2075, 96
      %v2217 = vpop.permute.xlu0 %2216
      %2218 = vrot.lane.b32.xlu0 %v2087, 96
      %v2219 = vpop.permute.xlu0 %2218
      %2220 = vrot.lane.b32.xlu0 %v2099, 96
      %v2221 = vpop.permute.xlu0 %2220
      %2222 = vrot.lane.b32.xlu0 %v2111, 96
      %v2223 = vpop.permute.xlu0 %2222
      %2224 = vrot.lane.b32.xlu0 %v2123, 96
      %v2225 = vpop.permute.xlu0 %2224
      %2226 = vrot.lane.b32.xlu0 %v2135, 96
      %v2227 = vpop.permute.xlu0 %2226
      %2228 = vrot.lane.b32.xlu0 %v2147, 96
      %v2229 = vpop.permute.xlu0 %2228
      %2230 = vrot.lane.b32.xlu0 %v2159, 96
      %v2231 = vpop.permute.xlu0 %2230
      %2232 = vrot.lane.b32.xlu0 %v2171, 96
      %v2233 = vpop.permute.xlu0 %2232
      %2234 = vrot.lane.b32.xlu0 %v2183, 96
      %v2235 = vpop.permute.xlu0 %2234
      %2236 = vrot.lane.b32.xlu0 %v2195, 96
      %v2237 = vpop.permute.xlu0 %2236
      %2238 = vrot.lane.b32.xlu0 %v2207, 96
      %v2239 = vpop.permute.xlu0 %2238
      %v2256 = vunpack.c.l.b16 %v878
      %v2257 = vunpack.c.l.b16 %v879
      %v2258 = vunpack.c.l.b16 %v880
      %v2259 = vunpack.c.l.b16 %v881
      %v2260 = vunpack.c.l.b16 %v882
      %v2261 = vunpack.c.l.b16 %v883
      %v2262 = vunpack.c.l.b16 %v884
      %v2263 = vunpack.c.l.b16 %v885
      %v2264 = vunpack.c.l.b16 %v886
      %v2265 = vunpack.c.l.b16 %v887
      %v2266 = vunpack.c.l.b16 %v888
      %v2267 = vunpack.c.l.b16 %v889
      %v2268 = vunpack.c.l.b16 %v890
      %v2269 = vunpack.c.l.b16 %v891
      %v2270 = vunpack.c.l.b16 %v892
      %v2271 = vunpack.c.l.b16 %v893
      %v2272 = vpack.c.b16 %v1889, %v2256
      %v2273 = vpack.c.b16 %v1891, %v2257
      %v2274 = vpack.c.b16 %v1893, %v2258
      %v2275 = vpack.c.b16 %v1895, %v2259
      %v2276 = vpack.c.b16 %v1897, %v2260
      %v2277 = vpack.c.b16 %v1899, %v2261
      %v2278 = vpack.c.b16 %v1901, %v2262
      %v2279 = vpack.c.b16 %v1903, %v2263
      %v2280 = vpack.c.b16 %v1905, %v2264
      %v2281 = vpack.c.b16 %v1907, %v2265
      %v2282 = vpack.c.b16 %v1909, %v2266
      %v2283 = vpack.c.b16 %v1911, %v2267
      %v2284 = vpack.c.b16 %v1913, %v2268
      %v2285 = vpack.c.b16 %v1915, %v2269
      %v2286 = vpack.c.b16 %v1917, %v2270
      %v2287 = vpack.c.b16 %v1919, %v2271
      %v2288 = vrot.slane %v2272, 1
      %v2289 = vrot.slane %v2000, 1
      %v2290 = vsel %vm1295, %v2288, %v2289
      %v2291 = vrot.slane %v2273, 1
      %v2292 = vrot.slane %v2001, 1
      %v2293 = vsel %vm1295, %v2291, %v2292
      %v2294 = vrot.slane %v2274, 1
      %v2295 = vrot.slane %v2002, 1
      %v2296 = vsel %vm1295, %v2294, %v2295
      %v2297 = vrot.slane %v2275, 1
      %v2298 = vrot.slane %v2003, 1
      %v2299 = vsel %vm1295, %v2297, %v2298
      %v2300 = vrot.slane %v2276, 1
      %v2301 = vrot.slane %v2004, 1
      %v2302 = vsel %vm1295, %v2300, %v2301
      %v2303 = vrot.slane %v2277, 1
      %v2304 = vrot.slane %v2005, 1
      %v2305 = vsel %vm1295, %v2303, %v2304
      %v2306 = vrot.slane %v2278, 1
      %v2307 = vrot.slane %v2006, 1
      %v2308 = vsel %vm1295, %v2306, %v2307
      %v2309 = vrot.slane %v2279, 1
      %v2310 = vrot.slane %v2007, 1
      %v2311 = vsel %vm1295, %v2309, %v2310
      %v2312 = vrot.slane %v2280, 1
      %v2313 = vrot.slane %v2008, 1
      %v2314 = vsel %vm1295, %v2312, %v2313
      %v2315 = vrot.slane %v2281, 1
      %v2316 = vrot.slane %v2009, 1
      %v2317 = vsel %vm1295, %v2315, %v2316
      %v2318 = vrot.slane %v2282, 1
      %v2319 = vrot.slane %v2010, 1
      %v2320 = vsel %vm1295, %v2318, %v2319
      %v2321 = vrot.slane %v2283, 1
      %v2322 = vrot.slane %v2011, 1
      %v2323 = vsel %vm1295, %v2321, %v2322
      %v2324 = vrot.slane %v2284, 1
      %v2325 = vrot.slane %v2012, 1
      %v2326 = vsel %vm1295, %v2324, %v2325
      %v2327 = vrot.slane %v2285, 1
      %v2328 = vrot.slane %v2013, 1
      %v2329 = vsel %vm1295, %v2327, %v2328
      %v2330 = vrot.slane %v2286, 1
      %v2331 = vrot.slane %v2014, 1
      %v2332 = vsel %vm1295, %v2330, %v2331
      %v2333 = vrot.slane %v2287, 1
      %v2334 = vrot.slane %v2015, 1
      %v2335 = vsel %vm1295, %v2333, %v2334
      %vm2336 = vcmask 261120
      %v2338 = vsel %vm2336, %v958, %v1216
      %v2340 = vsel %vm2336, %v959, %v1218
      %v2342 = vsel %vm2336, %v960, %v1220
      %v2344 = vsel %vm2336, %v961, %v1222
      %v2346 = vsel %vm2336, %v962, %v1224
      %v2348 = vsel %vm2336, %v963, %v1226
      %v2350 = vsel %vm2336, %v964, %v1228
      %v2352 = vsel %vm2336, %v965, %v1230
      %v2354 = vsel %vm2336, %v966, %v1232
      %v2356 = vsel %vm2336, %v967, %v1234
      %v2358 = vsel %vm2336, %v968, %v1236
      %v2360 = vsel %vm2336, %v969, %v1238
      %v2362 = vsel %vm2336, %v970, %v1240
      %v2364 = vsel %vm2336, %v971, %v1242
      %v2366 = vsel %vm2336, %v972, %v1244
      %v2368 = vsel %vm2336, %v973, %v1246
      %vm2369 = vcmask 523264
      %v2371 = vsel %vm2369, %v2338, %v1345
      %v2373 = vsel %vm2369, %v2340, %v1347
      %v2375 = vsel %vm2369, %v2342, %v1349
      %v2377 = vsel %vm2369, %v2344, %v1351
      %v2379 = vsel %vm2369, %v2346, %v1353
      %v2381 = vsel %vm2369, %v2348, %v1355
      %v2383 = vsel %vm2369, %v2350, %v1357
      %v2385 = vsel %vm2369, %v2352, %v1359
      %v2387 = vsel %vm2369, %v2354, %v1361
      %v2389 = vsel %vm2369, %v2356, %v1363
      %v2391 = vsel %vm2369, %v2358, %v1365
      %v2393 = vsel %vm2369, %v2360, %v1367
      %v2395 = vsel %vm2369, %v2362, %v1369
      %v2397 = vsel %vm2369, %v2364, %v1371
      %v2399 = vsel %vm2369, %v2366, %v1373
      %v2401 = vsel %vm2369, %v2368, %v1375
      %vm2402 = vcmask 785408
      %v2404 = vsel %vm2402, %v2371, %v1457
      %v2407 = vsel %vm2402, %v2373, %v1459
      %v2410 = vsel %vm2402, %v2375, %v1461
      %v2413 = vsel %vm2402, %v2377, %v1463
      %v2416 = vsel %vm2402, %v2379, %v1465
      %v2419 = vsel %vm2402, %v2381, %v1467
      %v2422 = vsel %vm2402, %v2383, %v1469
      %v2425 = vsel %vm2402, %v2385, %v1471
      %v2428 = vsel %vm2402, %v2387, %v1473
      %v2431 = vsel %vm2402, %v2389, %v1475
      %v2434 = vsel %vm2402, %v2391, %v1477
      %v2437 = vsel %vm2402, %v2393, %v1479
      %v2440 = vsel %vm2402, %v2395, %v1481
      %v2443 = vsel %vm2402, %v2397, %v1483
      %v2446 = vsel %vm2402, %v2399, %v1485
      %v2449 = vsel %vm2402, %v2401, %v1487
      %v2453 = vsel %vm2336, %v1547, %v1825
      %v2456 = vsel %vm2336, %v1559, %v1827
      %v2459 = vsel %vm2336, %v1571, %v1829
      %v2462 = vsel %vm2336, %v1583, %v1831
      %v2465 = vsel %vm2336, %v1595, %v1833
      %v2468 = vsel %vm2336, %v1607, %v1835
      %v2471 = vsel %vm2336, %v1619, %v1837
      %v2474 = vsel %vm2336, %v1631, %v1839
      %v2477 = vsel %vm2336, %v1643, %v1841
      %v2480 = vsel %vm2336, %v1655, %v1843
      %v2483 = vsel %vm2336, %v1667, %v1845
      %v2486 = vsel %vm2336, %v1679, %v1847
      %v2489 = vsel %vm2336, %v1691, %v1849
      %v2492 = vsel %vm2336, %v1703, %v1851
      %v2495 = vsel %vm2336, %v1715, %v1853
      %v2498 = vsel %vm2336, %v1727, %v1855
      %v2500 = vsel %vm2369, %v2453, %v1937
      %v2502 = vsel %vm2369, %v2456, %v1939
      %v2504 = vsel %vm2369, %v2459, %v1941
      %v2506 = vsel %vm2369, %v2462, %v1943
      %v2508 = vsel %vm2369, %v2465, %v1945
      %v2510 = vsel %vm2369, %v2468, %v1947
      %v2512 = vsel %vm2369, %v2471, %v1949
      %v2514 = vsel %vm2369, %v2474, %v1951
      %v2516 = vsel %vm2369, %v2477, %v1953
      %v2518 = vsel %vm2369, %v2480, %v1955
      %v2520 = vsel %vm2369, %v2483, %v1957
      %v2522 = vsel %vm2369, %v2486, %v1959
      %v2524 = vsel %vm2369, %v2489, %v1961
      %v2526 = vsel %vm2369, %v2492, %v1963
      %v2528 = vsel %vm2369, %v2495, %v1965
      %v2530 = vsel %vm2369, %v2498, %v1967
      %v2532 = vsel %vm2402, %v2500, %v2209
      %v2535 = vsel %vm2402, %v2502, %v2211
      %v2538 = vsel %vm2402, %v2504, %v2213
      %v2541 = vsel %vm2402, %v2506, %v2215
      %v2544 = vsel %vm2402, %v2508, %v2217
      %v2547 = vsel %vm2402, %v2510, %v2219
      %v2550 = vsel %vm2402, %v2512, %v2221
      %v2553 = vsel %vm2402, %v2514, %v2223
      %v2556 = vsel %vm2402, %v2516, %v2225
      %v2559 = vsel %vm2402, %v2518, %v2227
      %v2562 = vsel %vm2402, %v2520, %v2229
      %v2565 = vsel %vm2402, %v2522, %v2231
      %v2568 = vsel %vm2402, %v2524, %v2233
      %v2571 = vsel %vm2402, %v2526, %v2235
      %v2574 = vsel %vm2402, %v2528, %v2237
      %v2577 = vsel %vm2402, %v2530, %v2239
      %v2579 = vld [vmem:[%s1] sm:$0xf]
      %v2580 = vld [vmem:[%s1 + $0x4] sm:$0xf]
      %v2581 = vld [vmem:[%s1 + $0x8] sm:$0xf]
      %v2582 = vld [vmem:[%s1 + $0xc] sm:$0xf]
      %v2583 = vld [vmem:[%s1 + $0x10] sm:$0xf]
      %v2584 = vld [vmem:[%s1 + $0x14] sm:$0xf]
      %v2585 = vld [vmem:[%s1 + $0x18] sm:$0xf]
      %v2586 = vld [vmem:[%s1 + $0x1c] sm:$0xf]
      %v2587 = vld [vmem:[%s1 + $0x20] sm:$0xf]
      %v2588 = vld [vmem:[%s1 + $0x24] sm:$0xf]
      %v2589 = vld [vmem:[%s1 + $0x28] sm:$0xf]
      %v2590 = vld [vmem:[%s1 + $0x2c] sm:$0xf]
      %v2591 = vld [vmem:[%s1 + $0x30] sm:$0xf]
      %v2592 = vld [vmem:[%s1 + $0x34] sm:$0xf]
      %v2593 = vld [vmem:[%s1 + $0x38] sm:$0xf]
      %v2594 = vld [vmem:[%s1 + $0x3c] sm:$0xf]
      %v2595 = vld [vmem:[%s1 + $0x40] sm:$0xf]
      %v2596 = vld [vmem:[%s1 + $0x44] sm:$0xf]
      %v2597 = vld [vmem:[%s1 + $0x48] sm:$0xf]
      %v2598 = vld [vmem:[%s1 + $0x4c] sm:$0xf]
      %v2599 = vld [vmem:[%s1 + $0x50] sm:$0xf]
      %v2600 = vld [vmem:[%s1 + $0x54] sm:$0xf]
      %v2601 = vld [vmem:[%s1 + $0x58] sm:$0xf]
      %v2602 = vld [vmem:[%s1 + $0x5c] sm:$0xf]
      %v2603 = vld [vmem:[%s1 + $0x60] sm:$0xf]
      %v2604 = vld [vmem:[%s1 + $0x64] sm:$0xf]
      %v2605 = vld [vmem:[%s1 + $0x68] sm:$0xf]
      %v2606 = vld [vmem:[%s1 + $0x6c] sm:$0xf]
      %v2607 = vld [vmem:[%s1 + $0x70] sm:$0xf]
      %v2608 = vld [vmem:[%s1 + $0x74] sm:$0xf]
      %v2609 = vld [vmem:[%s1 + $0x78] sm:$0xf]
      %v2610 = vld [vmem:[%s1 + $0x7c] sm:$0xf]
      %v2611 = vld [vmem:[%s1 + $0x80] sm:$0xf]
      %v2612 = vld [vmem:[%s1 + $0x84] sm:$0xf]
      %v2613 = vld [vmem:[%s1 + $0x88] sm:$0xf]
      %v2614 = vld [vmem:[%s1 + $0x8c] sm:$0xf]
      %v2615 = vld [vmem:[%s2] sm:$0x1]
      %v2617 = vlaneseq
      %v2618 = vshrl.u32 %v2617, 7
      %v2619 = vsub.s32 0, %v2618
      %v2620 = vrot.slane %v2615, %v2619
      %v2658 = vunpack.c.l.b16 %v2579
      %v2659 = vunpack.c.l.b16 %v2580
      %v2660 = vunpack.c.l.b16 %v2581
      %v2661 = vunpack.c.l.b16 %v2582
      %v2662 = vunpack.c.l.b16 %v2583
      %v2663 = vunpack.c.l.b16 %v2584
      %v2664 = vunpack.c.l.b16 %v2585
      %v2665 = vunpack.c.l.b16 %v2586
      %v2666 = vunpack.c.l.b16 %v2587
      %v2667 = vunpack.c.l.b16 %v2588
      %v2668 = vunpack.c.l.b16 %v2589
      %v2669 = vunpack.c.l.b16 %v2590
      %v2670 = vunpack.c.l.b16 %v2591
      %v2671 = vunpack.c.l.b16 %v2592
      %v2672 = vunpack.c.l.b16 %v2593
      %v2673 = vunpack.c.l.b16 %v2594
      %v2674 = vunpack.c.l.b16 %v2595
      %v2675 = vunpack.c.l.b16 %v2596
      %v2676 = vunpack.c.l.b16 %v2597
      %v2677 = vunpack.c.l.b16 %v2598
      %v2678 = vunpack.c.l.b16 %v2599
      %v2679 = vunpack.c.l.b16 %v2600
      %v2680 = vunpack.c.l.b16 %v2601
      %v2681 = vunpack.c.l.b16 %v2602
      %v2682 = vunpack.c.l.b16 %v2603
      %v2683 = vunpack.c.l.b16 %v2604
      %v2684 = vunpack.c.l.b16 %v2605
      %v2685 = vunpack.c.l.b16 %v2606
      %v2686 = vunpack.c.l.b16 %v2607
      %v2687 = vunpack.c.l.b16 %v2608
      %v2688 = vunpack.c.l.b16 %v2609
      %v2689 = vunpack.c.l.b16 %v2610
      %v2690 = vunpack.c.l.b16 %v2611
      %v2691 = vunpack.c.l.b16 %v2612
      %v2692 = vunpack.c.l.b16 %v2613
      %v2693 = vunpack.c.l.b16 %v2614
      %v2694 = vpack.c.b16 %v2659, %v2658
      %v2695 = vpack.c.b16 %v2661, %v2660
      %v2696 = vpack.c.b16 %v2663, %v2662
      %v2697 = vpack.c.b16 %v2665, %v2664
      %v2698 = vpack.c.b16 %v2667, %v2666
      %v2699 = vpack.c.b16 %v2669, %v2668
      %v2700 = vpack.c.b16 %v2671, %v2670
      %v2701 = vpack.c.b16 %v2673, %v2672
      %v2702 = vpack.c.b16 %v2675, %v2674
      %v2703 = vpack.c.b16 %v2677, %v2676
      %v2704 = vpack.c.b16 %v2679, %v2678
      %v2705 = vpack.c.b16 %v2681, %v2680
      %v2706 = vpack.c.b16 %v2683, %v2682
      %v2707 = vpack.c.b16 %v2685, %v2684
      %v2708 = vpack.c.b16 %v2687, %v2686
      %v2709 = vpack.c.b16 %v2689, %v2688
      %v2710 = vpack.c.b16 %v2691, %v2690
      %v2711 = vpack.c.b16 %v2693, %v2692
      %v2731 = vsel %vm2336, %v2290, 0
      %v2734 = vsel %vm2336, %v2293, 0
      %v2737 = vsel %vm2336, %v2296, 0
      %v2740 = vsel %vm2336, %v2299, 0
      %v2743 = vsel %vm2336, %v2302, 0
      %v2746 = vsel %vm2336, %v2305, 0
      %v2749 = vsel %vm2336, %v2308, 0
      %v2752 = vsel %vm2336, %v2311, 0
      %v2755 = vsel %vm2336, %v2314, 0
      %v2758 = vsel %vm2336, %v2317, 0
      %v2761 = vsel %vm2336, %v2320, 0
      %v2764 = vsel %vm2336, %v2323, 0
      %v2767 = vsel %vm2336, %v2326, 0
      %v2770 = vsel %vm2336, %v2329, 0
      %v2773 = vsel %vm2336, %v2332, 0
      %v2776 = vsel %vm2336, %v2335, 0
      %2778 = vmatprep.subr.bf16.mxu0 0
      %2779 = vmatpush1.bf16.msra.mxu0 %v2701
      %2780 = vmatprep.subr.bf16.mxu0 0
      %2781 = vmatpush1.bf16.msra.mxu0 %v2700
      %2782 = vmatprep.subr.bf16.mxu0 0
      %2783 = vmatpush1.bf16.msra.mxu0 %v2699
      %2784 = vmatprep.subr.bf16.mxu0 0
      %2785 = vmatpush1.bf16.msra.mxu0 %v2698
      %2786 = vmatprep.subr.bf16.mxu0 0
      %2787 = vmatpush1.bf16.msra.mxu0 %v2697
      %2788 = vmatprep.subr.bf16.mxu0 0
      %2789 = vmatpush1.bf16.msra.mxu0 %v2696
      %2790 = vmatprep.subr.bf16.mxu0 0
      %2791 = vmatpush1.bf16.msra.mxu0 %v2695
      %2792 = vmatprep.subr.bf16.mxu0 0
      %2793 = vmatpush1.bf16.msra.mxu0 %v2694
      %2794 = vmatprep.subr.bf16.mxu0 0
      %2795 = vmatpush2.bf16.msra.mxu0 %v2709
      %2796 = vmatprep.subr.bf16.mxu0 0
      %2797 = vmatpush2.bf16.msra.mxu0 %v2708
      %2798 = vmatprep.subr.bf16.mxu0 0
      %2799 = vmatpush2.bf16.msra.mxu0 %v2707
      %2800 = vmatprep.subr.bf16.mxu0 0
      %2801 = vmatpush2.bf16.msra.mxu0 %v2706
      %2802 = vmatprep.subr.bf16.mxu0 0
      %2803 = vmatpush2.bf16.msra.mxu0 %v2705
      %2804 = vmatprep.subr.bf16.mxu0 0
      %2805 = vmatpush2.bf16.msra.mxu0 %v2704
      %2806 = vmatprep.subr.bf16.mxu0 0
      %2807 = vmatpush2.bf16.msra.mxu0 %v2703
      %2808 = vmatprep.subr.bf16.mxu0 0
      %2809 = vmatpush2.bf16.msra.mxu0 %v2702
      %2810 = vmatprep.mubr.bf16.mxu0 %v2532
      %2811 = vmatmul.mubr.bf16.gmra.mxu0 %v2404
      %v2812 = vpop.f32.mrf.mxu0
      %v2813 = vadd.f32 %v2620, %v2812
      %v2814 = vpop.f32.mrf.mxu0
      %v2815 = vpop.f32.mrf.mxu0
      %v2816 = vadd.f32 %v2620, %v2815
      %v2817 = vpop.f32.mrf.mxu0
      %2818 = vmatprep.mubr.bf16.mxu0 %v2535
      %2819 = vmatmul.mubr.bf16.gmra.mxu0 %v2407
      %v2820 = vpop.f32.mrf.mxu0
      %v2821 = vadd.f32 %v2620, %v2820
      %v2822 = vpop.f32.mrf.mxu0
      %v2823 = vpop.f32.mrf.mxu0
      %v2824 = vadd.f32 %v2620, %v2823
      %v2825 = vpop.f32.mrf.mxu0
      %2826 = vmatprep.mubr.bf16.mxu0 %v2538
      %2827 = vmatmul.mubr.bf16.gmra.mxu0 %v2410
      %v2828 = vpop.f32.mrf.mxu0
      %v2829 = vadd.f32 %v2620, %v2828
      %v2830 = vpop.f32.mrf.mxu0
      %v2831 = vpop.f32.mrf.mxu0
      %v2832 = vadd.f32 %v2620, %v2831
      %v2833 = vpop.f32.mrf.mxu0
      %2834 = vmatprep.mubr.bf16.mxu0 %v2541
      %2835 = vmatmul.mubr.bf16.gmra.mxu0 %v2413
      %v2836 = vpop.f32.mrf.mxu0
      %v2837 = vadd.f32 %v2620, %v2836
      %v2838 = vpop.f32.mrf.mxu0
      %v2839 = vpop.f32.mrf.mxu0
      %v2840 = vadd.f32 %v2620, %v2839
      %v2841 = vpop.f32.mrf.mxu0
      %2842 = vmatprep.mubr.bf16.mxu0 %v2544
      %2843 = vmatmul.mubr.bf16.gmra.mxu0 %v2416
      %v2844 = vpop.f32.mrf.mxu0
      %v2845 = vadd.f32 %v2620, %v2844
      %v2846 = vpop.f32.mrf.mxu0
      %v2847 = vpop.f32.mrf.mxu0
      %v2848 = vadd.f32 %v2620, %v2847
      %v2849 = vpop.f32.mrf.mxu0
      %2850 = vmatprep.mubr.bf16.mxu0 %v2547
      %2851 = vmatmul.mubr.bf16.gmra.mxu0 %v2419
      %v2852 = vpop.f32.mrf.mxu0
      %v2853 = vadd.f32 %v2620, %v2852
      %v2854 = vpop.f32.mrf.mxu0
      %v2855 = vpop.f32.mrf.mxu0
      %v2856 = vadd.f32 %v2620, %v2855
      %v2857 = vpop.f32.mrf.mxu0
      %2858 = vmatprep.mubr.bf16.mxu0 %v2550
      %2859 = vmatmul.mubr.bf16.gmra.mxu0 %v2422
      %v2860 = vpop.f32.mrf.mxu0
      %v2861 = vadd.f32 %v2620, %v2860
      %v2862 = vpop.f32.mrf.mxu0
      %v2863 = vpop.f32.mrf.mxu0
      %v2864 = vadd.f32 %v2620, %v2863
      %v2865 = vpop.f32.mrf.mxu0
      %2866 = vmatprep.mubr.bf16.mxu0 %v2553
      %2867 = vmatmul.mubr.bf16.gmra.mxu0 %v2425
      %v2868 = vpop.f32.mrf.mxu0
      %v2869 = vadd.f32 %v2620, %v2868
      %v2870 = vpop.f32.mrf.mxu0
      %v2871 = vpop.f32.mrf.mxu0
      %v2872 = vadd.f32 %v2620, %v2871
      %v2873 = vpop.f32.mrf.mxu0
      %2874 = vmatprep.mubr.bf16.mxu0 %v2556
      %2875 = vmatmul.mubr.bf16.gmra.mxu0 %v2428
      %v2876 = vpop.f32.mrf.mxu0
      %v2877 = vadd.f32 %v2620, %v2876
      %v2878 = vpop.f32.mrf.mxu0
      %v2879 = vpop.f32.mrf.mxu0
      %v2880 = vadd.f32 %v2620, %v2879
      %v2881 = vpop.f32.mrf.mxu0
      %2882 = vmatprep.mubr.bf16.mxu0 %v2559
      %2883 = vmatmul.mubr.bf16.gmra.mxu0 %v2431
      %v2884 = vpop.f32.mrf.mxu0
      %v2885 = vadd.f32 %v2620, %v2884
      %v2886 = vpop.f32.mrf.mxu0
      %v2887 = vpop.f32.mrf.mxu0
      %v2888 = vadd.f32 %v2620, %v2887
      %v2889 = vpop.f32.mrf.mxu0
      %2890 = vmatprep.mubr.bf16.mxu0 %v2562
      %2891 = vmatmul.mubr.bf16.gmra.mxu0 %v2434
      %v2892 = vpop.f32.mrf.mxu0
      %v2893 = vadd.f32 %v2620, %v2892
      %v2894 = vpop.f32.mrf.mxu0
      %v2895 = vpop.f32.mrf.mxu0
      %v2896 = vadd.f32 %v2620, %v2895
      %v2897 = vpop.f32.mrf.mxu0
      %2898 = vmatprep.mubr.bf16.mxu0 %v2565
      %2899 = vmatmul.mubr.bf16.gmra.mxu0 %v2437
      %v2900 = vpop.f32.mrf.mxu0
      %v2901 = vadd.f32 %v2620, %v2900
      %v2902 = vpop.f32.mrf.mxu0
      %v2903 = vpop.f32.mrf.mxu0
      %v2904 = vadd.f32 %v2620, %v2903
      %v2905 = vpop.f32.mrf.mxu0
      %2906 = vmatprep.mubr.bf16.mxu0 %v2568
      %2907 = vmatmul.mubr.bf16.gmra.mxu0 %v2440
      %v2908 = vpop.f32.mrf.mxu0
      %v2909 = vadd.f32 %v2620, %v2908
      %v2910 = vpop.f32.mrf.mxu0
      %v2911 = vpop.f32.mrf.mxu0
      %v2912 = vadd.f32 %v2620, %v2911
      %v2913 = vpop.f32.mrf.mxu0
      %2914 = vmatprep.mubr.bf16.mxu0 %v2571
      %2915 = vmatmul.mubr.bf16.gmra.mxu0 %v2443
      %v2916 = vpop.f32.mrf.mxu0
      %v2917 = vadd.f32 %v2620, %v2916
      %v2918 = vpop.f32.mrf.mxu0
      %v2919 = vpop.f32.mrf.mxu0
      %v2920 = vadd.f32 %v2620, %v2919
      %v2921 = vpop.f32.mrf.mxu0
      %2922 = vmatprep.mubr.bf16.mxu0 %v2574
      %2923 = vmatmul.mubr.bf16.gmra.mxu0 %v2446
      %v2924 = vpop.f32.mrf.mxu0
      %v2925 = vadd.f32 %v2620, %v2924
      %v2926 = vpop.f32.mrf.mxu0
      %v2927 = vpop.f32.mrf.mxu0
      %v2928 = vadd.f32 %v2620, %v2927
      %v2929 = vpop.f32.mrf.mxu0
      %2930 = vmatprep.mubr.bf16.mxu0 %v2577
      %2931 = vmatmul.mubr.bf16.gmra.mxu0 %v2449
      %v2932 = vpop.f32.mrf.mxu0
      %v2933 = vadd.f32 %v2620, %v2932
      %v2934 = vpop.f32.mrf.mxu0
      %v2935 = vpop.f32.mrf.mxu0
      %v2936 = vadd.f32 %v2620, %v2935
      %v2937 = vpop.f32.mrf.mxu0
      %2938 = vdwg.mxu0
      %2939 = vmatprep.subr.bf16.mxu0 0
      %2940 = vmatpush1.bf16.msra.mxu0 0
      %2941 = vmatprep.subr.bf16.mxu0 0
      %2942 = vmatpush1.bf16.msra.mxu0 0
      %2943 = vmatprep.subr.bf16.mxu0 0
      %2944 = vmatpush1.bf16.msra.mxu0 0
      %2945 = vmatprep.subr.bf16.mxu0 0
      %2946 = vmatpush1.bf16.msra.mxu0 0
      %2947 = vmatprep.subr.bf16.mxu0 0
      %2948 = vmatpush1.bf16.msra.mxu0 0
      %2949 = vmatprep.subr.bf16.mxu0 0
      %2950 = vmatpush1.bf16.msra.mxu0 0
      %2951 = vmatprep.subr.bf16.mxu0 0
      %2952 = vmatpush1.bf16.msra.mxu0 %v2711
      %2953 = vmatprep.subr.bf16.mxu0 0
      %2954 = vmatpush1.bf16.msra.mxu0 %v2710
      %2955 = vmatprep.subr.bf16.mxu0 0
      %2956 = vmatpush2.bf16.msra.mxu0 0
      %2957 = vmatprep.subr.bf16.mxu0 0
      %2958 = vmatpush2.bf16.msra.mxu0 0
      %2959 = vmatprep.subr.bf16.mxu0 0
      %2960 = vmatpush2.bf16.msra.mxu0 0
      %2961 = vmatprep.subr.bf16.mxu0 0
      %2962 = vmatpush2.bf16.msra.mxu0 0
      %2963 = vmatprep.subr.bf16.mxu0 0
      %2964 = vmatpush2.bf16.msra.mxu0 0
      %2965 = vmatprep.subr.bf16.mxu0 0
      %2966 = vmatpush2.bf16.msra.mxu0 0
      %2967 = vmatprep.subr.bf16.mxu0 0
      %2968 = vmatpush2.bf16.msra.mxu0 0
      %2969 = vmatprep.subr.bf16.mxu0 0
      %2970 = vmatpush2.bf16.msra.mxu0 0
      %2971 = vmatprep.mubr.bf16.mxu0 0
      %2972 = vmatmul.mubr.bf16.gmra.mxu0 %v2731
      %v2973 = vpop.f32.mrf.mxu0
      %v2974 = vadd.f32 %v2813, %v2973
      %v2975 = vpop.f32.mrf.mxu0
      %v2976 = vpop.f32.mrf.mxu0
      %v2977 = vadd.f32 %v2816, %v2976
      %v2978 = vpop.f32.mrf.mxu0
      %2979 = vmatprep.mubr.bf16.mxu0 0
      %2980 = vmatmul.mubr.bf16.gmra.mxu0 %v2734
      %v2981 = vpop.f32.mrf.mxu0
      %v2982 = vadd.f32 %v2821, %v2981
      %v2983 = vpop.f32.mrf.mxu0
      %v2984 = vpop.f32.mrf.mxu0
      %v2985 = vadd.f32 %v2824, %v2984
      %v2986 = vpop.f32.mrf.mxu0
      %2987 = vmatprep.mubr.bf16.mxu0 0
      %2988 = vmatmul.mubr.bf16.gmra.mxu0 %v2737
      %v2989 = vpop.f32.mrf.mxu0
      %v2990 = vadd.f32 %v2829, %v2989
      %v2991 = vpop.f32.mrf.mxu0
      %v2992 = vpop.f32.mrf.mxu0
      %v2993 = vadd.f32 %v2832, %v2992
      %v2994 = vpop.f32.mrf.mxu0
      %2995 = vmatprep.mubr.bf16.mxu0 0
      %2996 = vmatmul.mubr.bf16.gmra.mxu0 %v2740
      %v2997 = vpop.f32.mrf.mxu0
      %v2998 = vadd.f32 %v2837, %v2997
      %v2999 = vpop.f32.mrf.mxu0
      %v3000 = vpop.f32.mrf.mxu0
      %v3001 = vadd.f32 %v2840, %v3000
      %v3002 = vpop.f32.mrf.mxu0
      %3003 = vmatprep.mubr.bf16.mxu0 0
      %3004 = vmatmul.mubr.bf16.gmra.mxu0 %v2743
      %v3005 = vpop.f32.mrf.mxu0
      %v3006 = vadd.f32 %v2845, %v3005
      %v3007 = vpop.f32.mrf.mxu0
      %v3008 = vpop.f32.mrf.mxu0
      %v3009 = vadd.f32 %v2848, %v3008
      %v3010 = vpop.f32.mrf.mxu0
      %3011 = vmatprep.mubr.bf16.mxu0 0
      %3012 = vmatmul.mubr.bf16.gmra.mxu0 %v2746
      %v3013 = vpop.f32.mrf.mxu0
      %v3014 = vadd.f32 %v2853, %v3013
      %v3015 = vpop.f32.mrf.mxu0
      %v3016 = vpop.f32.mrf.mxu0
      %v3017 = vadd.f32 %v2856, %v3016
      %v3018 = vpop.f32.mrf.mxu0
      %3019 = vmatprep.mubr.bf16.mxu0 0
      %3020 = vmatmul.mubr.bf16.gmra.mxu0 %v2749
      %v3021 = vpop.f32.mrf.mxu0
      %v3022 = vadd.f32 %v2861, %v3021
      %v3023 = vpop.f32.mrf.mxu0
      %v3024 = vpop.f32.mrf.mxu0
      %v3025 = vadd.f32 %v2864, %v3024
      %v3026 = vpop.f32.mrf.mxu0
      %3027 = vmatprep.mubr.bf16.mxu0 0
      %3028 = vmatmul.mubr.bf16.gmra.mxu0 %v2752
      %v3029 = vpop.f32.mrf.mxu0
      %v3030 = vadd.f32 %v2869, %v3029
      %v3031 = vpop.f32.mrf.mxu0
      %v3032 = vpop.f32.mrf.mxu0
      %v3033 = vadd.f32 %v2872, %v3032
      %v3034 = vpop.f32.mrf.mxu0
      %3035 = vmatprep.mubr.bf16.mxu0 0
      %3036 = vmatmul.mubr.bf16.gmra.mxu0 %v2755
      %v3037 = vpop.f32.mrf.mxu0
      %v3038 = vadd.f32 %v2877, %v3037
      %v3039 = vpop.f32.mrf.mxu0
      %v3040 = vpop.f32.mrf.mxu0
      %v3041 = vadd.f32 %v2880, %v3040
      %v3042 = vpop.f32.mrf.mxu0
      %3043 = vmatprep.mubr.bf16.mxu0 0
      %3044 = vmatmul.mubr.bf16.gmra.mxu0 %v2758
      %v3045 = vpop.f32.mrf.mxu0
      %v3046 = vadd.f32 %v2885, %v3045
      %v3047 = vpop.f32.mrf.mxu0
      %v3048 = vpop.f32.mrf.mxu0
      %v3049 = vadd.f32 %v2888, %v3048
      %v3050 = vpop.f32.mrf.mxu0
      %3051 = vmatprep.mubr.bf16.mxu0 0
      %3052 = vmatmul.mubr.bf16.gmra.mxu0 %v2761
      %v3053 = vpop.f32.mrf.mxu0
      %v3054 = vadd.f32 %v2893, %v3053
      %v3055 = vpop.f32.mrf.mxu0
      %v3056 = vpop.f32.mrf.mxu0
      %v3057 = vadd.f32 %v2896, %v3056
      %v3058 = vpop.f32.mrf.mxu0
      %3059 = vmatprep.mubr.bf16.mxu0 0
      %3060 = vmatmul.mubr.bf16.gmra.mxu0 %v2764
      %v3061 = vpop.f32.mrf.mxu0
      %v3062 = vadd.f32 %v2901, %v3061
      %v3063 = vpop.f32.mrf.mxu0
      %v3064 = vpop.f32.mrf.mxu0
      %v3065 = vadd.f32 %v2904, %v3064
      %v3066 = vpop.f32.mrf.mxu0
      %3067 = vmatprep.mubr.bf16.mxu0 0
      %3068 = vmatmul.mubr.bf16.gmra.mxu0 %v2767
      %v3069 = vpop.f32.mrf.mxu0
      %v3070 = vadd.f32 %v2909, %v3069
      %v3071 = vpop.f32.mrf.mxu0
      %v3072 = vpop.f32.mrf.mxu0
      %v3073 = vadd.f32 %v2912, %v3072
      %v3074 = vpop.f32.mrf.mxu0
      %3075 = vmatprep.mubr.bf16.mxu0 0
      %3076 = vmatmul.mubr.bf16.gmra.mxu0 %v2770
      %v3077 = vpop.f32.mrf.mxu0
      %v3078 = vadd.f32 %v2917, %v3077
      %v3079 = vpop.f32.mrf.mxu0
      %v3080 = vpop.f32.mrf.mxu0
      %v3081 = vadd.f32 %v2920, %v3080
      %v3082 = vpop.f32.mrf.mxu0
      %3083 = vmatprep.mubr.bf16.mxu0 0
      %3084 = vmatmul.mubr.bf16.gmra.mxu0 %v2773
      %v3085 = vpop.f32.mrf.mxu0
      %v3086 = vadd.f32 %v2925, %v3085
      %v3087 = vpop.f32.mrf.mxu0
      %v3088 = vpop.f32.mrf.mxu0
      %v3089 = vadd.f32 %v2928, %v3088
      %v3090 = vpop.f32.mrf.mxu0
      %3091 = vmatprep.mubr.bf16.mxu0 0
      %3092 = vmatmul.mubr.bf16.gmra.mxu0 %v2776
      %v3093 = vpop.f32.mrf.mxu0
      %v3094 = vadd.f32 %v2933, %v3093
      %v3095 = vpop.f32.mrf.mxu0
      %v3096 = vpop.f32.mrf.mxu0
      %v3097 = vadd.f32 %v2936, %v3096
      %v3098 = vpop.f32.mrf.mxu0
      %3099 = vdwg.mxu0
      %v3100 = vmax.f32 %v2974, 0.0
      %v3101 = vmax.f32 %v2977, 0.0
      %v3102 = vmax.f32 %v2982, 0.0
      %v3103 = vmax.f32 %v2985, 0.0
      %v3104 = vmax.f32 %v2990, 0.0
      %v3105 = vmax.f32 %v2993, 0.0
      %v3106 = vmax.f32 %v2998, 0.0
      %v3107 = vmax.f32 %v3001, 0.0
      %v3108 = vmax.f32 %v3006, 0.0
      %v3109 = vmax.f32 %v3009, 0.0
      %v3110 = vmax.f32 %v3014, 0.0
      %v3111 = vmax.f32 %v3017, 0.0
      %v3112 = vmax.f32 %v3022, 0.0
      %v3113 = vmax.f32 %v3025, 0.0
      %v3114 = vmax.f32 %v3030, 0.0
      %v3115 = vmax.f32 %v3033, 0.0
      %v3116 = vmax.f32 %v3038, 0.0
      %v3117 = vmax.f32 %v3041, 0.0
      %v3118 = vmax.f32 %v3046, 0.0
      %v3119 = vmax.f32 %v3049, 0.0
      %v3120 = vmax.f32 %v3054, 0.0
      %v3121 = vmax.f32 %v3057, 0.0
      %v3122 = vmax.f32 %v3062, 0.0
      %v3123 = vmax.f32 %v3065, 0.0
      %v3124 = vmax.f32 %v3070, 0.0
      %v3125 = vmax.f32 %v3073, 0.0
      %v3126 = vmax.f32 %v3078, 0.0
      %v3127 = vmax.f32 %v3081, 0.0
      %v3128 = vmax.f32 %v3086, 0.0
      %v3129 = vmax.f32 %v3089, 0.0
      %v3130 = vmax.f32 %v3094, 0.0
      %v3131 = vmax.f32 %v3097, 0.0
      %v3132 = vpack.c.bf16 %v3101, %v3100
      %v3133 = vpack.c.bf16 %v3103, %v3102
      %v3134 = vpack.c.bf16 %v3105, %v3104
      %v3135 = vpack.c.bf16 %v3107, %v3106
      %v3136 = vpack.c.bf16 %v3109, %v3108
      %v3137 = vpack.c.bf16 %v3111, %v3110
      %v3138 = vpack.c.bf16 %v3113, %v3112
      %v3139 = vpack.c.bf16 %v3115, %v3114
      %v3140 = vpack.c.bf16 %v3117, %v3116
      %v3141 = vpack.c.bf16 %v3119, %v3118
      %v3142 = vpack.c.bf16 %v3121, %v3120
      %v3143 = vpack.c.bf16 %v3123, %v3122
      %v3144 = vpack.c.bf16 %v3125, %v3124
      %v3145 = vpack.c.bf16 %v3127, %v3126
      %v3146 = vpack.c.bf16 %v3129, %v3128
      %v3147 = vpack.c.bf16 %v3131, %v3130
      %v3164 = vunpack.c.l.b16 %v3132
      %v3165 = vunpack.c.h.b16 %v3132
      %v3166 = vunpack.c.l.b16 %v3133
      %v3167 = vunpack.c.h.b16 %v3133
      %v3168 = vunpack.c.l.b16 %v3134
      %v3169 = vunpack.c.h.b16 %v3134
      %v3170 = vunpack.c.l.b16 %v3135
      %v3171 = vunpack.c.h.b16 %v3135
      %v3172 = vunpack.c.l.b16 %v3136
      %v3173 = vunpack.c.h.b16 %v3136
      %v3174 = vunpack.c.l.b16 %v3137
      %v3175 = vunpack.c.h.b16 %v3137
      %v3176 = vunpack.c.l.b16 %v3138
      %v3177 = vunpack.c.h.b16 %v3138
      %v3178 = vunpack.c.l.b16 %v3139
      %v3179 = vunpack.c.h.b16 %v3139
      %v3180 = vunpack.c.l.b16 %v3140
      %v3181 = vunpack.c.h.b16 %v3140
      %v3182 = vunpack.c.l.b16 %v3141
      %v3183 = vunpack.c.h.b16 %v3141
      %v3184 = vunpack.c.l.b16 %v3142
      %v3185 = vunpack.c.h.b16 %v3142
      %v3186 = vunpack.c.l.b16 %v3143
      %v3187 = vunpack.c.h.b16 %v3143
      %v3188 = vunpack.c.l.b16 %v3144
      %v3189 = vunpack.c.h.b16 %v3144
      %v3190 = vunpack.c.l.b16 %v3145
      %v3191 = vunpack.c.h.b16 %v3145
      %v3192 = vunpack.c.l.b16 %v3146
      %v3193 = vunpack.c.h.b16 %v3146
      %v3194 = vunpack.c.l.b16 %v3147
      %v3195 = vunpack.c.h.b16 %v3147
      %v3196 = vpack.c.b16 %v3164, %v3164
      %v3197 = vpack.c.b16 %v3165, %v3165
      %v3198 = vpack.c.b16 %v3166, %v3166
      %v3199 = vpack.c.b16 %v3167, %v3167
      %v3200 = vpack.c.b16 %v3168, %v3168
      %v3201 = vpack.c.b16 %v3169, %v3169
      %v3202 = vpack.c.b16 %v3170, %v3170
      %v3203 = vpack.c.b16 %v3171, %v3171
      %v3204 = vpack.c.b16 %v3172, %v3172
      %v3205 = vpack.c.b16 %v3173, %v3173
      %v3206 = vpack.c.b16 %v3174, %v3174
      %v3207 = vpack.c.b16 %v3175, %v3175
      %v3208 = vpack.c.b16 %v3176, %v3176
      %v3209 = vpack.c.b16 %v3177, %v3177
      %v3210 = vpack.c.b16 %v3178, %v3178
      %v3211 = vpack.c.b16 %v3179, %v3179
      %v3212 = vpack.c.b16 %v3180, %v3180
      %v3213 = vpack.c.b16 %v3181, %v3181
      %v3214 = vpack.c.b16 %v3182, %v3182
      %v3215 = vpack.c.b16 %v3183, %v3183
      %v3216 = vpack.c.b16 %v3184, %v3184
      %v3217 = vpack.c.b16 %v3185, %v3185
      %v3218 = vpack.c.b16 %v3186, %v3186
      %v3219 = vpack.c.b16 %v3187, %v3187
      %v3220 = vpack.c.b16 %v3188, %v3188
      %v3221 = vpack.c.b16 %v3189, %v3189
      %v3222 = vpack.c.b16 %v3190, %v3190
      %v3223 = vpack.c.b16 %v3191, %v3191
      %v3224 = vpack.c.b16 %v3192, %v3192
      %v3225 = vpack.c.b16 %v3193, %v3193
      %v3226 = vpack.c.b16 %v3194, %v3194
      %v3227 = vpack.c.b16 %v3195, %v3195
      %v3229 = vshrl.u32 %v3196, 16
      %v3231 = vrot.slane %v3229, 7
      %v3232 = vshll.u32 %v3196, 16
      %v3234 = vor.u32 %v3231, %v3232
      %v3235 = vrot.slane %v3231, 4
      %v3237 = vshrl.u32 %v3197, 16
      %v3239 = vrot.slane %v3237, 7
      %v3240 = vshll.u32 %v3197, 16
      %v3242 = vor.u32 %v3239, %v3240
      %v3243 = vsel %vm262, %v3235, %v3242
      %v3244 = vrot.slane %v3239, 4
      %v3246 = vshrl.u32 %v3198, 16
      %v3248 = vrot.slane %v3246, 7
      %v3249 = vshll.u32 %v3198, 16
      %v3251 = vor.u32 %v3248, %v3249
      %v3252 = vrot.slane %v3248, 4
      %v3254 = vshrl.u32 %v3199, 16
      %v3256 = vrot.slane %v3254, 7
      %v3257 = vshll.u32 %v3199, 16
      %v3259 = vor.u32 %v3256, %v3257
      %v3260 = vsel %vm262, %v3252, %v3259
      %v3261 = vrot.slane %v3256, 4
      %v3263 = vshrl.u32 %v3200, 16
      %v3265 = vrot.slane %v3263, 7
      %v3266 = vshll.u32 %v3200, 16
      %v3268 = vor.u32 %v3265, %v3266
      %v3269 = vrot.slane %v3265, 4
      %v3271 = vshrl.u32 %v3201, 16
      %v3273 = vrot.slane %v3271, 7
      %v3274 = vshll.u32 %v3201, 16
      %v3276 = vor.u32 %v3273, %v3274
      %v3277 = vsel %vm262, %v3269, %v3276
      %v3278 = vrot.slane %v3273, 4
      %v3280 = vshrl.u32 %v3202, 16
      %v3282 = vrot.slane %v3280, 7
      %v3283 = vshll.u32 %v3202, 16
      %v3285 = vor.u32 %v3282, %v3283
      %v3286 = vrot.slane %v3282, 4
      %v3288 = vshrl.u32 %v3203, 16
      %v3290 = vrot.slane %v3288, 7
      %v3291 = vshll.u32 %v3203, 16
      %v3293 = vor.u32 %v3290, %v3291
      %v3294 = vsel %vm262, %v3286, %v3293
      %v3295 = vrot.slane %v3290, 4
      %v3297 = vshrl.u32 %v3204, 16
      %v3299 = vrot.slane %v3297, 7
      %v3300 = vshll.u32 %v3204, 16
      %v3302 = vor.u32 %v3299, %v3300
      %v3303 = vrot.slane %v3299, 4
      %v3305 = vshrl.u32 %v3205, 16
      %v3307 = vrot.slane %v3305, 7
      %v3308 = vshll.u32 %v3205, 16
      %v3310 = vor.u32 %v3307, %v3308
      %v3311 = vsel %vm262, %v3303, %v3310
      %v3312 = vrot.slane %v3307, 4
      %v3314 = vshrl.u32 %v3206, 16
      %v3316 = vrot.slane %v3314, 7
      %v3317 = vshll.u32 %v3206, 16
      %v3319 = vor.u32 %v3316, %v3317
      %v3320 = vrot.slane %v3316, 4
      %v3322 = vshrl.u32 %v3207, 16
      %v3324 = vrot.slane %v3322, 7
      %v3325 = vshll.u32 %v3207, 16
      %v3327 = vor.u32 %v3324, %v3325
      %v3328 = vsel %vm262, %v3320, %v3327
      %v3329 = vrot.slane %v3324, 4
      %v3331 = vshrl.u32 %v3208, 16
      %v3333 = vrot.slane %v3331, 7
      %v3334 = vshll.u32 %v3208, 16
      %v3336 = vor.u32 %v3333, %v3334
      %v3337 = vrot.slane %v3333, 4
      %v3339 = vshrl.u32 %v3209, 16
      %v3341 = vrot.slane %v3339, 7
      %v3342 = vshll.u32 %v3209, 16
      %v3344 = vor.u32 %v3341, %v3342
      %v3345 = vsel %vm262, %v3337, %v3344
      %v3346 = vrot.slane %v3341, 4
      %v3348 = vshrl.u32 %v3210, 16
      %v3350 = vrot.slane %v3348, 7
      %v3351 = vshll.u32 %v3210, 16
      %v3353 = vor.u32 %v3350, %v3351
      %v3354 = vrot.slane %v3350, 4
      %v3356 = vshrl.u32 %v3211, 16
      %v3358 = vrot.slane %v3356, 7
      %v3359 = vshll.u32 %v3211, 16
      %v3361 = vor.u32 %v3358, %v3359
      %v3362 = vsel %vm262, %v3354, %v3361
      %v3363 = vrot.slane %v3358, 4
      %v3365 = vshrl.u32 %v3212, 16
      %v3367 = vrot.slane %v3365, 7
      %v3368 = vshll.u32 %v3212, 16
      %v3370 = vor.u32 %v3367, %v3368
      %v3371 = vrot.slane %v3367, 4
      %v3373 = vshrl.u32 %v3213, 16
      %v3375 = vrot.slane %v3373, 7
      %v3376 = vshll.u32 %v3213, 16
      %v3378 = vor.u32 %v3375, %v3376
      %v3379 = vsel %vm262, %v3371, %v3378
      %v3380 = vrot.slane %v3375, 4
      %v3382 = vshrl.u32 %v3214, 16
      %v3384 = vrot.slane %v3382, 7
      %v3385 = vshll.u32 %v3214, 16
      %v3387 = vor.u32 %v3384, %v3385
      %v3388 = vrot.slane %v3384, 4
      %v3390 = vshrl.u32 %v3215, 16
      %v3392 = vrot.slane %v3390, 7
      %v3393 = vshll.u32 %v3215, 16
      %v3395 = vor.u32 %v3392, %v3393
      %v3396 = vsel %vm262, %v3388, %v3395
      %v3397 = vrot.slane %v3392, 4
      %v3399 = vshrl.u32 %v3216, 16
      %v3401 = vrot.slane %v3399, 7
      %v3402 = vshll.u32 %v3216, 16
      %v3404 = vor.u32 %v3401, %v3402
      %v3405 = vrot.slane %v3401, 4
      %v3407 = vshrl.u32 %v3217, 16
      %v3409 = vrot.slane %v3407, 7
      %v3410 = vshll.u32 %v3217, 16
      %v3412 = vor.u32 %v3409, %v3410
      %v3413 = vsel %vm262, %v3405, %v3412
      %v3414 = vrot.slane %v3409, 4
      %v3416 = vshrl.u32 %v3218, 16
      %v3418 = vrot.slane %v3416, 7
      %v3419 = vshll.u32 %v3218, 16
      %v3421 = vor.u32 %v3418, %v3419
      %v3422 = vrot.slane %v3418, 4
      %v3424 = vshrl.u32 %v3219, 16
      %v3426 = vrot.slane %v3424, 7
      %v3427 = vshll.u32 %v3219, 16
      %v3429 = vor.u32 %v3426, %v3427
      %v3430 = vsel %vm262, %v3422, %v3429
      %v3431 = vrot.slane %v3426, 4
      %v3433 = vshrl.u32 %v3220, 16
      %v3435 = vrot.slane %v3433, 7
      %v3436 = vshll.u32 %v3220, 16
      %v3438 = vor.u32 %v3435, %v3436
      %v3439 = vrot.slane %v3435, 4
      %v3441 = vshrl.u32 %v3221, 16
      %v3443 = vrot.slane %v3441, 7
      %v3444 = vshll.u32 %v3221, 16
      %v3446 = vor.u32 %v3443, %v3444
      %v3447 = vsel %vm262, %v3439, %v3446
      %v3448 = vrot.slane %v3443, 4
      %v3450 = vshrl.u32 %v3222, 16
      %v3452 = vrot.slane %v3450, 7
      %v3453 = vshll.u32 %v3222, 16
      %v3455 = vor.u32 %v3452, %v3453
      %v3456 = vrot.slane %v3452, 4
      %v3458 = vshrl.u32 %v3223, 16
      %v3460 = vrot.slane %v3458, 7
      %v3461 = vshll.u32 %v3223, 16
      %v3463 = vor.u32 %v3460, %v3461
      %v3464 = vsel %vm262, %v3456, %v3463
      %v3465 = vrot.slane %v3460, 4
      %v3467 = vshrl.u32 %v3224, 16
      %v3469 = vrot.slane %v3467, 7
      %v3470 = vshll.u32 %v3224, 16
      %v3472 = vor.u32 %v3469, %v3470
      %v3473 = vrot.slane %v3469, 4
      %v3475 = vshrl.u32 %v3225, 16
      %v3477 = vrot.slane %v3475, 7
      %v3478 = vshll.u32 %v3225, 16
      %v3480 = vor.u32 %v3477, %v3478
      %v3481 = vsel %vm262, %v3473, %v3480
      %v3482 = vrot.slane %v3477, 4
      %v3484 = vshrl.u32 %v3226, 16
      %v3486 = vrot.slane %v3484, 7
      %v3487 = vshll.u32 %v3226, 16
      %v3489 = vor.u32 %v3486, %v3487
      %v3490 = vrot.slane %v3486, 4
      %v3492 = vshrl.u32 %v3227, 16
      %v3494 = vrot.slane %v3492, 7
      %v3495 = vshll.u32 %v3227, 16
      %v3497 = vor.u32 %v3494, %v3495
      %v3498 = vsel %vm262, %v3490, %v3497
      %v3499 = vrot.slane %v3494, 4
      %v3548 = vsel %vm586, %v3234, %v765
      %3549 = vst [vmem:[%s583] sm:$0xf] %v3548
      %3550 = vst.msk [vmem:[%s583 + $0x4] sm:$0xf] %vm172, %v3243
      %v3551 = vld [vmem:[%s583 + $0x8] sm:$0x1]
      %v3552 = vsel %vm592, %v3244, %v3551
      %3553 = vst [vmem:[%s583 + $0x8] sm:$0x1] %v3552
      %v3554 = vld [vmem:[%s583 + $0xc] sm:$0xf]
      %v3555 = vsel %vm586, %v3251, %v3554
      %3556 = vst [vmem:[%s583 + $0xc] sm:$0xf] %v3555
      %3557 = vst.msk [vmem:[%s583 + $0x10] sm:$0xf] %vm172, %v3260
      %v3558 = vld [vmem:[%s583 + $0x14] sm:$0x1]
      %v3559 = vsel %vm592, %v3261, %v3558
      %3560 = vst [vmem:[%s583 + $0x14] sm:$0x1] %v3559
      %v3561 = vld [vmem:[%s583 + $0x18] sm:$0xf]
      %v3562 = vsel %vm586, %v3268, %v3561
      %3563 = vst [vmem:[%s583 + $0x18] sm:$0xf] %v3562
      %3564 = vst.msk [vmem:[%s583 + $0x1c] sm:$0xf] %vm172, %v3277
      %v3565 = vld [vmem:[%s583 + $0x20] sm:$0x1]
      %v3566 = vsel %vm592, %v3278, %v3565
      %3567 = vst [vmem:[%s583 + $0x20] sm:$0x1] %v3566
      %v3568 = vld [vmem:[%s583 + $0x24] sm:$0xf]
      %v3569 = vsel %vm586, %v3285, %v3568
      %3570 = vst [vmem:[%s583 + $0x24] sm:$0xf] %v3569
      %3571 = vst.msk [vmem:[%s583 + $0x28] sm:$0xf] %vm172, %v3294
      %v3572 = vld [vmem:[%s583 + $0x2c] sm:$0x1]
      %v3573 = vsel %vm592, %v3295, %v3572
      %3574 = vst [vmem:[%s583 + $0x2c] sm:$0x1] %v3573
      %v3575 = vld [vmem:[%s583 + $0x30] sm:$0xf]
      %v3576 = vsel %vm586, %v3302, %v3575
      %3577 = vst [vmem:[%s583 + $0x30] sm:$0xf] %v3576
      %3578 = vst.msk [vmem:[%s583 + $0x34] sm:$0xf] %vm172, %v3311
      %v3579 = vld [vmem:[%s583 + $0x38] sm:$0x1]
      %v3580 = vsel %vm592, %v3312, %v3579
      %3581 = vst [vmem:[%s583 + $0x38] sm:$0x1] %v3580
      %v3582 = vld [vmem:[%s583 + $0x3c] sm:$0xf]
      %v3583 = vsel %vm586, %v3319, %v3582
      %3584 = vst [vmem:[%s583 + $0x3c] sm:$0xf] %v3583
      %3585 = vst.msk [vmem:[%s583 + $0x40] sm:$0xf] %vm172, %v3328
      %v3586 = vld [vmem:[%s583 + $0x44] sm:$0x1]
      %v3587 = vsel %vm592, %v3329, %v3586
      %3588 = vst [vmem:[%s583 + $0x44] sm:$0x1] %v3587
      %v3589 = vld [vmem:[%s583 + $0x48] sm:$0xf]
      %v3590 = vsel %vm586, %v3336, %v3589
      %3591 = vst [vmem:[%s583 + $0x48] sm:$0xf] %v3590
      %3592 = vst.msk [vmem:[%s583 + $0x4c] sm:$0xf] %vm172, %v3345
      %v3593 = vld [vmem:[%s583 + $0x50] sm:$0x1]
      %v3594 = vsel %vm592, %v3346, %v3593
      %3595 = vst [vmem:[%s583 + $0x50] sm:$0x1] %v3594
      %v3596 = vld [vmem:[%s583 + $0x54] sm:$0xf]
      %v3597 = vsel %vm586, %v3353, %v3596
      %3598 = vst [vmem:[%s583 + $0x54] sm:$0xf] %v3597
      %3599 = vst.msk [vmem:[%s583 + $0x58] sm:$0xf] %vm172, %v3362
      %v3600 = vld [vmem:[%s583 + $0x5c] sm:$0x1]
      %v3601 = vsel %vm592, %v3363, %v3600
      %3602 = vst [vmem:[%s583 + $0x5c] sm:$0x1] %v3601
      %v3603 = vld [vmem:[%s583 + $0x60] sm:$0xf]
      %v3604 = vsel %vm586, %v3370, %v3603
      %3605 = vst [vmem:[%s583 + $0x60] sm:$0xf] %v3604
      %3606 = vst.msk [vmem:[%s583 + $0x64] sm:$0xf] %vm172, %v3379
      %v3607 = vld [vmem:[%s583 + $0x68] sm:$0x1]
      %v3608 = vsel %vm592, %v3380, %v3607
      %3609 = vst [vmem:[%s583 + $0x68] sm:$0x1] %v3608
      %v3610 = vld [vmem:[%s583 + $0x6c] sm:$0xf]
      %v3611 = vsel %vm586, %v3387, %v3610
      %3612 = vst [vmem:[%s583 + $0x6c] sm:$0xf] %v3611
      %3613 = vst.msk [vmem:[%s583 + $0x70] sm:$0xf] %vm172, %v3396
      %v3614 = vld [vmem:[%s583 + $0x74] sm:$0x1]
      %v3615 = vsel %vm592, %v3397, %v3614
      %3616 = vst [vmem:[%s583 + $0x74] sm:$0x1] %v3615
      %v3617 = vld [vmem:[%s583 + $0x78] sm:$0xf]
      %v3618 = vsel %vm586, %v3404, %v3617
      %3619 = vst [vmem:[%s583 + $0x78] sm:$0xf] %v3618
      %3620 = vst.msk [vmem:[%s583 + $0x7c] sm:$0xf] %vm172, %v3413
      %v3621 = vld [vmem:[%s583 + $0x80] sm:$0x1]
      %v3622 = vsel %vm592, %v3414, %v3621
      %3623 = vst [vmem:[%s583 + $0x80] sm:$0x1] %v3622
      %v3624 = vld [vmem:[%s583 + $0x84] sm:$0xf]
      %v3625 = vsel %vm586, %v3421, %v3624
      %3626 = vst [vmem:[%s583 + $0x84] sm:$0xf] %v3625
      %3627 = vst.msk [vmem:[%s583 + $0x88] sm:$0xf] %vm172, %v3430
      %v3628 = vld [vmem:[%s583 + $0x8c] sm:$0x1]
      %v3629 = vsel %vm592, %v3431, %v3628
      %3630 = vst [vmem:[%s583 + $0x8c] sm:$0x1] %v3629
      %v3631 = vld [vmem:[%s583 + $0x90] sm:$0xf]
      %v3632 = vsel %vm586, %v3438, %v3631
      %3633 = vst [vmem:[%s583 + $0x90] sm:$0xf] %v3632
      %3634 = vst.msk [vmem:[%s583 + $0x94] sm:$0xf] %vm172, %v3447
      %v3635 = vld [vmem:[%s583 + $0x98] sm:$0x1]
      %v3636 = vsel %vm592, %v3448, %v3635
      %3637 = vst [vmem:[%s583 + $0x98] sm:$0x1] %v3636
      %v3638 = vld [vmem:[%s583 + $0x9c] sm:$0xf]
      %v3639 = vsel %vm586, %v3455, %v3638
      %3640 = vst [vmem:[%s583 + $0x9c] sm:$0xf] %v3639
      %3641 = vst.msk [vmem:[%s583 + $0xa0] sm:$0xf] %vm172, %v3464
      %v3642 = vld [vmem:[%s583 + $0xa4] sm:$0x1]
      %v3643 = vsel %vm592, %v3465, %v3642
      %3644 = vst [vmem:[%s583 + $0xa4] sm:$0x1] %v3643
      %v3645 = vld [vmem:[%s583 + $0xa8] sm:$0xf]
      %v3646 = vsel %vm586, %v3472, %v3645
      %3647 = vst [vmem:[%s583 + $0xa8] sm:$0xf] %v3646
      %3648 = vst.msk [vmem:[%s583 + $0xac] sm:$0xf] %vm172, %v3481
      %v3649 = vld [vmem:[%s583 + $0xb0] sm:$0x1]
      %v3650 = vsel %vm592, %v3482, %v3649
      %3651 = vst [vmem:[%s583 + $0xb0] sm:$0x1] %v3650
      %v3652 = vld [vmem:[%s583 + $0xb4] sm:$0xf]
      %v3653 = vsel %vm586, %v3489, %v3652
      %3654 = vst [vmem:[%s583 + $0xb4] sm:$0xf] %v3653
      %3655 = vst.msk [vmem:[%s583 + $0xb8] sm:$0xf] %vm172, %v3498
      %v3656 = vld [vmem:[%s583 + $0xbc] sm:$0x1]
      %v3657 = vsel %vm592, %v3499, %v3656
      %3658 = vst [vmem:[%s583 + $0xbc] sm:$0x1] %v3657
      %v3659 = vld [vmem:[#allocation2] sm:$0xf]
      %v3660 = vld [vmem:[#allocation2 + $0x4] sm:$0xf]
      %v3661 = vld [vmem:[#allocation2 + $0xc] sm:$0xf]
      %v3662 = vld [vmem:[#allocation2 + $0x10] sm:$0xf]
      %v3663 = vld [vmem:[#allocation2 + $0x18] sm:$0xf]
      %v3664 = vld [vmem:[#allocation2 + $0x1c] sm:$0xf]
      %v3665 = vld [vmem:[#allocation2 + $0x24] sm:$0xf]
      %v3666 = vld [vmem:[#allocation2 + $0x28] sm:$0xf]
      %v3667 = vld [vmem:[#allocation2 + $0x30] sm:$0xf]
      %v3668 = vld [vmem:[#allocation2 + $0x34] sm:$0xf]
      %v3669 = vld [vmem:[#allocation2 + $0x3c] sm:$0xf]
      %v3670 = vld [vmem:[#allocation2 + $0x40] sm:$0xf]
      %v3671 = vld [vmem:[#allocation2 + $0x48] sm:$0xf]
      %v3672 = vld [vmem:[#allocation2 + $0x4c] sm:$0xf]
      %v3673 = vld [vmem:[#allocation2 + $0x54] sm:$0xf]
      %v3674 = vld [vmem:[#allocation2 + $0x58] sm:$0xf]
      %v3675 = vld [vmem:[#allocation2 + $0x60] sm:$0xf]
      %v3676 = vld [vmem:[#allocation2 + $0x64] sm:$0xf]
      %v3677 = vld [vmem:[#allocation2 + $0x6c] sm:$0xf]
      %v3678 = vld [vmem:[#allocation2 + $0x70] sm:$0xf]
      %v3679 = vld [vmem:[#allocation2 + $0x78] sm:$0xf]
      %v3680 = vld [vmem:[#allocation2 + $0x7c] sm:$0xf]
      %v3681 = vld [vmem:[#allocation2 + $0x84] sm:$0xf]
      %v3682 = vld [vmem:[#allocation2 + $0x88] sm:$0xf]
      %v3683 = vld [vmem:[#allocation2 + $0x90] sm:$0xf]
      %v3684 = vld [vmem:[#allocation2 + $0x94] sm:$0xf]
      %v3685 = vld [vmem:[#allocation2 + $0x9c] sm:$0xf]
      %v3686 = vld [vmem:[#allocation2 + $0xa0] sm:$0xf]
      %v3687 = vld [vmem:[#allocation2 + $0xa8] sm:$0xf]
      %v3688 = vld [vmem:[#allocation2 + $0xac] sm:$0xf]
      %v3689 = vld [vmem:[#allocation2 + $0xb4] sm:$0xf]
      %v3690 = vld [vmem:[#allocation2 + $0xb8] sm:$0xf]
      %v3691 = vld [vmem:[#allocation2 + $0x8] sm:$0x1]
      %v3692 = vld [vmem:[#allocation2 + $0x14] sm:$0x1]
      %v3693 = vld [vmem:[#allocation2 + $0x20] sm:$0x1]
      %v3694 = vld [vmem:[#allocation2 + $0x2c] sm:$0x1]
      %v3695 = vld [vmem:[#allocation2 + $0x38] sm:$0x1]
      %v3696 = vld [vmem:[#allocation2 + $0x44] sm:$0x1]
      %v3697 = vld [vmem:[#allocation2 + $0x50] sm:$0x1]
      %v3698 = vld [vmem:[#allocation2 + $0x5c] sm:$0x1]
      %v3699 = vld [vmem:[#allocation2 + $0x68] sm:$0x1]
      %v3700 = vld [vmem:[#allocation2 + $0x74] sm:$0x1]
      %v3701 = vld [vmem:[#allocation2 + $0x80] sm:$0x1]
      %v3702 = vld [vmem:[#allocation2 + $0x8c] sm:$0x1]
      %v3703 = vld [vmem:[#allocation2 + $0x98] sm:$0x1]
      %v3704 = vld [vmem:[#allocation2 + $0xa4] sm:$0x1]
      %v3705 = vld [vmem:[#allocation2 + $0xb0] sm:$0x1]
      %v3706 = vld [vmem:[#allocation2 + $0xbc] sm:$0x1]
      %v3707 = vld [vmem:[#allocation2] sm:$0xe]
      %v3708 = vld [vmem:[#allocation2 + $0xc] sm:$0xe]
      %v3709 = vld [vmem:[#allocation2 + $0x18] sm:$0xe]
      %v3710 = vld [vmem:[#allocation2 + $0x24] sm:$0xe]
      %v3711 = vld [vmem:[#allocation2 + $0x30] sm:$0xe]
      %v3712 = vld [vmem:[#allocation2 + $0x3c] sm:$0xe]
      %v3713 = vld [vmem:[#allocation2 + $0x48] sm:$0xe]
      %v3714 = vld [vmem:[#allocation2 + $0x54] sm:$0xe]
      %v3715 = vld [vmem:[#allocation2 + $0x60] sm:$0xe]
      %v3716 = vld [vmem:[#allocation2 + $0x6c] sm:$0xe]
      %v3717 = vld [vmem:[#allocation2 + $0x78] sm:$0xe]
      %v3718 = vld [vmem:[#allocation2 + $0x84] sm:$0xe]
      %v3719 = vld [vmem:[#allocation2 + $0x90] sm:$0xe]
      %v3720 = vld [vmem:[#allocation2 + $0x9c] sm:$0xe]
      %v3721 = vld [vmem:[#allocation2 + $0xa8] sm:$0xe]
      %v3722 = vld [vmem:[#allocation2 + $0xb4] sm:$0xe]
      %v3723 = vld [vmem:[%s583] sm:$0xf]
      %v3724 = vld [vmem:[%s583 + $0x4] sm:$0xf]
      %v3725 = vld [vmem:[%s583 + $0xc] sm:$0xf]
      %v3726 = vld [vmem:[%s583 + $0x10] sm:$0xf]
      %v3727 = vld [vmem:[%s583 + $0x18] sm:$0xf]
      %v3728 = vld [vmem:[%s583 + $0x1c] sm:$0xf]
      %v3729 = vld [vmem:[%s583 + $0x24] sm:$0xf]
      %v3730 = vld [vmem:[%s583 + $0x28] sm:$0xf]
      %v3731 = vld [vmem:[%s583 + $0x30] sm:$0xf]
      %v3732 = vld [vmem:[%s583 + $0x34] sm:$0xf]
      %v3733 = vld [vmem:[%s583 + $0x3c] sm:$0xf]
      %v3734 = vld [vmem:[%s583 + $0x40] sm:$0xf]
      %v3735 = vld [vmem:[%s583 + $0x48] sm:$0xf]
      %v3736 = vld [vmem:[%s583 + $0x4c] sm:$0xf]
      %v3737 = vld [vmem:[%s583 + $0x54] sm:$0xf]
      %v3738 = vld [vmem:[%s583 + $0x58] sm:$0xf]
      %v3739 = vld [vmem:[%s583 + $0x60] sm:$0xf]
      %v3740 = vld [vmem:[%s583 + $0x64] sm:$0xf]
      %v3741 = vld [vmem:[%s583 + $0x6c] sm:$0xf]
      %v3742 = vld [vmem:[%s583 + $0x70] sm:$0xf]
      %v3743 = vld [vmem:[%s583 + $0x78] sm:$0xf]
      %v3744 = vld [vmem:[%s583 + $0x7c] sm:$0xf]
      %v3745 = vld [vmem:[%s583 + $0x84] sm:$0xf]
      %v3746 = vld [vmem:[%s583 + $0x88] sm:$0xf]
      %v3747 = vld [vmem:[%s583 + $0x90] sm:$0xf]
      %v3748 = vld [vmem:[%s583 + $0x94] sm:$0xf]
      %v3749 = vld [vmem:[%s583 + $0x9c] sm:$0xf]
      %v3750 = vld [vmem:[%s583 + $0xa0] sm:$0xf]
      %v3751 = vld [vmem:[%s583 + $0xa8] sm:$0xf]
      %v3752 = vld [vmem:[%s583 + $0xac] sm:$0xf]
      %v3753 = vld [vmem:[%s583 + $0xb4] sm:$0xf]
      %v3754 = vld [vmem:[%s583 + $0xb8] sm:$0xf]
      %v3755 = vld [vmem:[%s583 + $0x8] sm:$0x1]
      %v3756 = vld [vmem:[%s583 + $0x14] sm:$0x1]
      %v3757 = vld [vmem:[%s583 + $0x20] sm:$0x1]
      %v3758 = vld [vmem:[%s583 + $0x2c] sm:$0x1]
      %v3759 = vld [vmem:[%s583 + $0x38] sm:$0x1]
      %v3760 = vld [vmem:[%s583 + $0x44] sm:$0x1]
      %v3761 = vld [vmem:[%s583 + $0x50] sm:$0x1]
      %v3762 = vld [vmem:[%s583 + $0x5c] sm:$0x1]
      %v3763 = vld [vmem:[%s583 + $0x68] sm:$0x1]
      %v3764 = vld [vmem:[%s583 + $0x74] sm:$0x1]
      %v3765 = vld [vmem:[%s583 + $0x80] sm:$0x1]
      %v3766 = vld [vmem:[%s583 + $0x8c] sm:$0x1]
      %v3767 = vld [vmem:[%s583 + $0x98] sm:$0x1]
      %v3768 = vld [vmem:[%s583 + $0xa4] sm:$0x1]
      %v3769 = vld [vmem:[%s583 + $0xb0] sm:$0x1]
      %v3770 = vld [vmem:[%s583 + $0xbc] sm:$0x1]
      %v3771 = vld [vmem:[%s583] sm:$0xe]
      %v3772 = vld [vmem:[%s583 + $0xc] sm:$0xe]
      %v3773 = vld [vmem:[%s583 + $0x18] sm:$0xe]
      %v3774 = vld [vmem:[%s583 + $0x24] sm:$0xe]
      %v3775 = vld [vmem:[%s583 + $0x30] sm:$0xe]
      %v3776 = vld [vmem:[%s583 + $0x3c] sm:$0xe]
      %v3777 = vld [vmem:[%s583 + $0x48] sm:$0xe]
      %v3778 = vld [vmem:[%s583 + $0x54] sm:$0xe]
      %v3779 = vld [vmem:[%s583 + $0x60] sm:$0xe]
      %v3780 = vld [vmem:[%s583 + $0x6c] sm:$0xe]
      %v3781 = vld [vmem:[%s583 + $0x78] sm:$0xe]
      %v3782 = vld [vmem:[%s583 + $0x84] sm:$0xe]
      %v3783 = vld [vmem:[%s583 + $0x90] sm:$0xe]
      %v3784 = vld [vmem:[%s583 + $0x9c] sm:$0xe]
      %v3785 = vld [vmem:[%s583 + $0xa8] sm:$0xe]
      %v3786 = vld [vmem:[%s583 + $0xb4] sm:$0xe]
      %v3787 = vld [vmem:[%s829] sm:$0xf]
      %v3788 = vld [vmem:[%s829 + $0x4] sm:$0xf]
      %v3789 = vld [vmem:[%s829 + $0xc] sm:$0xf]
      %v3790 = vld [vmem:[%s829 + $0x10] sm:$0xf]
      %v3791 = vld [vmem:[%s829 + $0x18] sm:$0xf]
      %v3792 = vld [vmem:[%s829 + $0x1c] sm:$0xf]
      %v3793 = vld [vmem:[%s829 + $0x24] sm:$0xf]
      %v3794 = vld [vmem:[%s829 + $0x28] sm:$0xf]
      %v3795 = vld [vmem:[%s829 + $0x30] sm:$0xf]
      %v3796 = vld [vmem:[%s829 + $0x34] sm:$0xf]
      %v3797 = vld [vmem:[%s829 + $0x3c] sm:$0xf]
      %v3798 = vld [vmem:[%s829 + $0x40] sm:$0xf]
      %v3799 = vld [vmem:[%s829 + $0x48] sm:$0xf]
      %v3800 = vld [vmem:[%s829 + $0x4c] sm:$0xf]
      %v3801 = vld [vmem:[%s829 + $0x54] sm:$0xf]
      %v3802 = vld [vmem:[%s829 + $0x58] sm:$0xf]
      %v3803 = vld [vmem:[%s829 + $0x60] sm:$0xf]
      %v3804 = vld [vmem:[%s829 + $0x64] sm:$0xf]
      %v3805 = vld [vmem:[%s829 + $0x6c] sm:$0xf]
      %v3806 = vld [vmem:[%s829 + $0x70] sm:$0xf]
      %v3807 = vld [vmem:[%s829 + $0x78] sm:$0xf]
      %v3808 = vld [vmem:[%s829 + $0x7c] sm:$0xf]
      %v3809 = vld [vmem:[%s829 + $0x84] sm:$0xf]
      %v3810 = vld [vmem:[%s829 + $0x88] sm:$0xf]
      %v3811 = vld [vmem:[%s829 + $0x90] sm:$0xf]
      %v3812 = vld [vmem:[%s829 + $0x94] sm:$0xf]
      %v3813 = vld [vmem:[%s829 + $0x9c] sm:$0xf]
      %v3814 = vld [vmem:[%s829 + $0xa0] sm:$0xf]
      %v3815 = vld [vmem:[%s829 + $0xa8] sm:$0xf]
      %v3816 = vld [vmem:[%s829 + $0xac] sm:$0xf]
      %v3817 = vld [vmem:[%s829 + $0xb4] sm:$0xf]
      %v3818 = vld [vmem:[%s829 + $0xb8] sm:$0xf]
      %v3819 = vld [vmem:[%s829 + $0x8] sm:$0x1]
      %v3820 = vld [vmem:[%s829 + $0x14] sm:$0x1]
      %v3821 = vld [vmem:[%s829 + $0x20] sm:$0x1]
      %v3822 = vld [vmem:[%s829 + $0x2c] sm:$0x1]
      %v3823 = vld [vmem:[%s829 + $0x38] sm:$0x1]
      %v3824 = vld [vmem:[%s829 + $0x44] sm:$0x1]
      %v3825 = vld [vmem:[%s829 + $0x50] sm:$0x1]
      %v3826 = vld [vmem:[%s829 + $0x5c] sm:$0x1]
      %v3827 = vld [vmem:[%s829 + $0x68] sm:$0x1]
      %v3828 = vld [vmem:[%s829 + $0x74] sm:$0x1]
      %v3829 = vld [vmem:[%s829 + $0x80] sm:$0x1]
      %v3830 = vld [vmem:[%s829 + $0x8c] sm:$0x1]
      %v3831 = vld [vmem:[%s829 + $0x98] sm:$0x1]
      %v3832 = vld [vmem:[%s829 + $0xa4] sm:$0x1]
      %v3833 = vld [vmem:[%s829 + $0xb0] sm:$0x1]
      %v3834 = vld [vmem:[%s829 + $0xbc] sm:$0x1]
      %v3835 = vld [vmem:[%s829] sm:$0xe]
      %v3836 = vld [vmem:[%s829 + $0xc] sm:$0xe]
      %v3837 = vld [vmem:[%s829 + $0x18] sm:$0xe]
      %v3838 = vld [vmem:[%s829 + $0x24] sm:$0xe]
      %v3839 = vld [vmem:[%s829 + $0x30] sm:$0xe]
      %v3840 = vld [vmem:[%s829 + $0x3c] sm:$0xe]
      %v3841 = vld [vmem:[%s829 + $0x48] sm:$0xe]
      %v3842 = vld [vmem:[%s829 + $0x54] sm:$0xe]
      %v3843 = vld [vmem:[%s829 + $0x60] sm:$0xe]
      %v3844 = vld [vmem:[%s829 + $0x6c] sm:$0xe]
      %v3845 = vld [vmem:[%s829 + $0x78] sm:$0xe]
      %v3846 = vld [vmem:[%s829 + $0x84] sm:$0xe]
      %v3847 = vld [vmem:[%s829 + $0x90] sm:$0xe]
      %v3848 = vld [vmem:[%s829 + $0x9c] sm:$0xe]
      %v3849 = vld [vmem:[%s829 + $0xa8] sm:$0xe]
      %v3850 = vld [vmem:[%s829 + $0xb4] sm:$0xe]
      %v3883 = vunpack.c.l.b16 %v3659
      %v3884 = vunpack.c.l.b16 %v3660
      %v3885 = vunpack.c.l.b16 %v3661
      %v3886 = vunpack.c.l.b16 %v3662
      %v3887 = vunpack.c.l.b16 %v3663
      %v3888 = vunpack.c.l.b16 %v3664
      %v3889 = vunpack.c.l.b16 %v3665
      %v3890 = vunpack.c.l.b16 %v3666
      %v3891 = vunpack.c.l.b16 %v3667
      %v3892 = vunpack.c.l.b16 %v3668
      %v3893 = vunpack.c.l.b16 %v3669
      %v3894 = vunpack.c.l.b16 %v3670
      %v3895 = vunpack.c.l.b16 %v3671
      %v3896 = vunpack.c.l.b16 %v3672
      %v3897 = vunpack.c.l.b16 %v3673
      %v3898 = vunpack.c.l.b16 %v3674
      %v3899 = vunpack.c.l.b16 %v3675
      %v3900 = vunpack.c.l.b16 %v3676
      %v3901 = vunpack.c.l.b16 %v3677
      %v3902 = vunpack.c.l.b16 %v3678
      %v3903 = vunpack.c.l.b16 %v3679
      %v3904 = vunpack.c.l.b16 %v3680
      %v3905 = vunpack.c.l.b16 %v3681
      %v3906 = vunpack.c.l.b16 %v3682
      %v3907 = vunpack.c.l.b16 %v3683
      %v3908 = vunpack.c.l.b16 %v3684
      %v3909 = vunpack.c.l.b16 %v3685
      %v3910 = vunpack.c.l.b16 %v3686
      %v3911 = vunpack.c.l.b16 %v3687
      %v3912 = vunpack.c.l.b16 %v3688
      %v3913 = vunpack.c.l.b16 %v3689
      %v3914 = vunpack.c.l.b16 %v3690
      %v3915 = vpack.c.b16 %v3884, %v3883
      %v3916 = vpack.c.b16 %v3886, %v3885
      %v3917 = vpack.c.b16 %v3888, %v3887
      %v3918 = vpack.c.b16 %v3890, %v3889
      %v3919 = vpack.c.b16 %v3892, %v3891
      %v3920 = vpack.c.b16 %v3894, %v3893
      %v3921 = vpack.c.b16 %v3896, %v3895
      %v3922 = vpack.c.b16 %v3898, %v3897
      %v3923 = vpack.c.b16 %v3900, %v3899
      %v3924 = vpack.c.b16 %v3902, %v3901
      %v3925 = vpack.c.b16 %v3904, %v3903
      %v3926 = vpack.c.b16 %v3906, %v3905
      %v3927 = vpack.c.b16 %v3908, %v3907
      %v3928 = vpack.c.b16 %v3910, %v3909
      %v3929 = vpack.c.b16 %v3912, %v3911
      %v3930 = vpack.c.b16 %v3914, %v3913
      %v3947 = vunpack.c.l.b16 %v3691
      %v3948 = vunpack.c.l.b16 %v3692
      %v3949 = vunpack.c.l.b16 %v3693
      %v3950 = vunpack.c.l.b16 %v3694
      %v3951 = vunpack.c.l.b16 %v3695
      %v3952 = vunpack.c.l.b16 %v3696
      %v3953 = vunpack.c.l.b16 %v3697
      %v3954 = vunpack.c.l.b16 %v3698
      %v3955 = vunpack.c.l.b16 %v3699
      %v3956 = vunpack.c.l.b16 %v3700
      %v3957 = vunpack.c.l.b16 %v3701
      %v3958 = vunpack.c.l.b16 %v3702
      %v3959 = vunpack.c.l.b16 %v3703
      %v3960 = vunpack.c.l.b16 %v3704
      %v3961 = vunpack.c.l.b16 %v3705
      %v3962 = vunpack.c.l.b16 %v3706
      %v3963 = vpack.c.b16 %v3947, %v3947
      %v3964 = vpack.c.b16 %v3948, %v3948
      %v3965 = vpack.c.b16 %v3949, %v3949
      %v3966 = vpack.c.b16 %v3950, %v3950
      %v3967 = vpack.c.b16 %v3951, %v3951
      %v3968 = vpack.c.b16 %v3952, %v3952
      %v3969 = vpack.c.b16 %v3953, %v3953
      %v3970 = vpack.c.b16 %v3954, %v3954
      %v3971 = vpack.c.b16 %v3955, %v3955
      %v3972 = vpack.c.b16 %v3956, %v3956
      %v3973 = vpack.c.b16 %v3957, %v3957
      %v3974 = vpack.c.b16 %v3958, %v3958
      %v3975 = vpack.c.b16 %v3959, %v3959
      %v3976 = vpack.c.b16 %v3960, %v3960
      %v3977 = vpack.c.b16 %v3961, %v3961
      %v3978 = vpack.c.b16 %v3962, %v3962
      %v3980 = vshrl.u32 %v3915, 16
      %v3982 = vshll.u32 %v3915, 16
      %v3984 = vrot.slane %v3982, 1
      %v3985 = vor.u32 %v3980, %v3984
      %v3987 = vshll.u32 %v3963, 16
      %v3989 = vrot.slane %v3987, 1
      %v3990 = vsel %vm1022, %v3985, %v3989
      %v3992 = vshrl.u32 %v3916, 16
      %v3994 = vshll.u32 %v3916, 16
      %v3996 = vrot.slane %v3994, 1
      %v3997 = vor.u32 %v3992, %v3996
      %v3999 = vshll.u32 %v3964, 16
      %v4001 = vrot.slane %v3999, 1
      %v4002 = vsel %vm1022, %v3997, %v4001
      %v4004 = vshrl.u32 %v3917, 16
      %v4006 = vshll.u32 %v3917, 16
      %v4008 = vrot.slane %v4006, 1
      %v4009 = vor.u32 %v4004, %v4008
      %v4011 = vshll.u32 %v3965, 16
      %v4013 = vrot.slane %v4011, 1
      %v4014 = vsel %vm1022, %v4009, %v4013
      %v4016 = vshrl.u32 %v3918, 16
      %v4018 = vshll.u32 %v3918, 16
      %v4020 = vrot.slane %v4018, 1
      %v4021 = vor.u32 %v4016, %v4020
      %v4023 = vshll.u32 %v3966, 16
      %v4025 = vrot.slane %v4023, 1
      %v4026 = vsel %vm1022, %v4021, %v4025
      %v4028 = vshrl.u32 %v3919, 16
      %v4030 = vshll.u32 %v3919, 16
      %v4032 = vrot.slane %v4030, 1
      %v4033 = vor.u32 %v4028, %v4032
      %v4035 = vshll.u32 %v3967, 16
      %v4037 = vrot.slane %v4035, 1
      %v4038 = vsel %vm1022, %v4033, %v4037
      %v4040 = vshrl.u32 %v3920, 16
      %v4042 = vshll.u32 %v3920, 16
      %v4044 = vrot.slane %v4042, 1
      %v4045 = vor.u32 %v4040, %v4044
      %v4047 = vshll.u32 %v3968, 16
      %v4049 = vrot.slane %v4047, 1
      %v4050 = vsel %vm1022, %v4045, %v4049
      %v4052 = vshrl.u32 %v3921, 16
      %v4054 = vshll.u32 %v3921, 16
      %v4056 = vrot.slane %v4054, 1
      %v4057 = vor.u32 %v4052, %v4056
      %v4059 = vshll.u32 %v3969, 16
      %v4061 = vrot.slane %v4059, 1
      %v4062 = vsel %vm1022, %v4057, %v4061
      %v4064 = vshrl.u32 %v3922, 16
      %v4066 = vshll.u32 %v3922, 16
      %v4068 = vrot.slane %v4066, 1
      %v4069 = vor.u32 %v4064, %v4068
      %v4071 = vshll.u32 %v3970, 16
      %v4073 = vrot.slane %v4071, 1
      %v4074 = vsel %vm1022, %v4069, %v4073
      %v4076 = vshrl.u32 %v3923, 16
      %v4078 = vshll.u32 %v3923, 16
      %v4080 = vrot.slane %v4078, 1
      %v4081 = vor.u32 %v4076, %v4080
      %v4083 = vshll.u32 %v3971, 16
      %v4085 = vrot.slane %v4083, 1
      %v4086 = vsel %vm1022, %v4081, %v4085
      %v4088 = vshrl.u32 %v3924, 16
      %v4090 = vshll.u32 %v3924, 16
      %v4092 = vrot.slane %v4090, 1
      %v4093 = vor.u32 %v4088, %v4092
      %v4095 = vshll.u32 %v3972, 16
      %v4097 = vrot.slane %v4095, 1
      %v4098 = vsel %vm1022, %v4093, %v4097
      %v4100 = vshrl.u32 %v3925, 16
      %v4102 = vshll.u32 %v3925, 16
      %v4104 = vrot.slane %v4102, 1
      %v4105 = vor.u32 %v4100, %v4104
      %v4107 = vshll.u32 %v3973, 16
      %v4109 = vrot.slane %v4107, 1
      %v4110 = vsel %vm1022, %v4105, %v4109
      %v4112 = vshrl.u32 %v3926, 16
      %v4114 = vshll.u32 %v3926, 16
      %v4116 = vrot.slane %v4114, 1
      %v4117 = vor.u32 %v4112, %v4116
      %v4119 = vshll.u32 %v3974, 16
      %v4121 = vrot.slane %v4119, 1
      %v4122 = vsel %vm1022, %v4117, %v4121
      %v4124 = vshrl.u32 %v3927, 16
      %v4126 = vshll.u32 %v3927, 16
      %v4128 = vrot.slane %v4126, 1
      %v4129 = vor.u32 %v4124, %v4128
      %v4131 = vshll.u32 %v3975, 16
      %v4133 = vrot.slane %v4131, 1
      %v4134 = vsel %vm1022, %v4129, %v4133
      %v4136 = vshrl.u32 %v3928, 16
      %v4138 = vshll.u32 %v3928, 16
      %v4140 = vrot.slane %v4138, 1
      %v4141 = vor.u32 %v4136, %v4140
      %v4143 = vshll.u32 %v3976, 16
      %v4145 = vrot.slane %v4143, 1
      %v4146 = vsel %vm1022, %v4141, %v4145
      %v4148 = vshrl.u32 %v3929, 16
      %v4150 = vshll.u32 %v3929, 16
      %v4152 = vrot.slane %v4150, 1
      %v4153 = vor.u32 %v4148, %v4152
      %v4155 = vshll.u32 %v3977, 16
      %v4157 = vrot.slane %v4155, 1
      %v4158 = vsel %vm1022, %v4153, %v4157
      %v4160 = vshrl.u32 %v3930, 16
      %v4162 = vshll.u32 %v3930, 16
      %v4164 = vrot.slane %v4162, 1
      %v4165 = vor.u32 %v4160, %v4164
      %v4167 = vshll.u32 %v3978, 16
      %v4169 = vrot.slane %v4167, 1
      %v4170 = vsel %vm1022, %v4165, %v4169
      %4171 = vrot.lane.b32.xlu0 %v3990, 32
      %v4172 = vpop.permute.xlu0 %4171
      %4173 = vrot.lane.b32.xlu0 %v4002, 32
      %v4174 = vpop.permute.xlu0 %4173
      %4175 = vrot.lane.b32.xlu0 %v4014, 32
      %v4176 = vpop.permute.xlu0 %4175
      %4177 = vrot.lane.b32.xlu0 %v4026, 32
      %v4178 = vpop.permute.xlu0 %4177
      %4179 = vrot.lane.b32.xlu0 %v4038, 32
      %v4180 = vpop.permute.xlu0 %4179
      %4181 = vrot.lane.b32.xlu0 %v4050, 32
      %v4182 = vpop.permute.xlu0 %4181
      %4183 = vrot.lane.b32.xlu0 %v4062, 32
      %v4184 = vpop.permute.xlu0 %4183
      %4185 = vrot.lane.b32.xlu0 %v4074, 32
      %v4186 = vpop.permute.xlu0 %4185
      %4187 = vrot.lane.b32.xlu0 %v4086, 32
      %v4188 = vpop.permute.xlu0 %4187
      %4189 = vrot.lane.b32.xlu0 %v4098, 32
      %v4190 = vpop.permute.xlu0 %4189
      %4191 = vrot.lane.b32.xlu0 %v4110, 32
      %v4192 = vpop.permute.xlu0 %4191
      %4193 = vrot.lane.b32.xlu0 %v4122, 32
      %v4194 = vpop.permute.xlu0 %4193
      %4195 = vrot.lane.b32.xlu0 %v4134, 32
      %v4196 = vpop.permute.xlu0 %4195
      %4197 = vrot.lane.b32.xlu0 %v4146, 32
      %v4198 = vpop.permute.xlu0 %4197
      %4199 = vrot.lane.b32.xlu0 %v4158, 32
      %v4200 = vpop.permute.xlu0 %4199
      %4201 = vrot.lane.b32.xlu0 %v4170, 32
      %v4202 = vpop.permute.xlu0 %4201
      %v4219 = vunpack.c.l.b16 %v3707
      %v4220 = vunpack.c.l.b16 %v3708
      %v4221 = vunpack.c.l.b16 %v3709
      %v4222 = vunpack.c.l.b16 %v3710
      %v4223 = vunpack.c.l.b16 %v3711
      %v4224 = vunpack.c.l.b16 %v3712
      %v4225 = vunpack.c.l.b16 %v3713
      %v4226 = vunpack.c.l.b16 %v3714
      %v4227 = vunpack.c.l.b16 %v3715
      %v4228 = vunpack.c.l.b16 %v3716
      %v4229 = vunpack.c.l.b16 %v3717
      %v4230 = vunpack.c.l.b16 %v3718
      %v4231 = vunpack.c.l.b16 %v3719
      %v4232 = vunpack.c.l.b16 %v3720
      %v4233 = vunpack.c.l.b16 %v3721
      %v4234 = vunpack.c.l.b16 %v3722
      %v4235 = vpack.c.b16 %v3884, %v4219
      %v4236 = vpack.c.b16 %v3886, %v4220
      %v4237 = vpack.c.b16 %v3888, %v4221
      %v4238 = vpack.c.b16 %v3890, %v4222
      %v4239 = vpack.c.b16 %v3892, %v4223
      %v4240 = vpack.c.b16 %v3894, %v4224
      %v4241 = vpack.c.b16 %v3896, %v4225
      %v4242 = vpack.c.b16 %v3898, %v4226
      %v4243 = vpack.c.b16 %v3900, %v4227
      %v4244 = vpack.c.b16 %v3902, %v4228
      %v4245 = vpack.c.b16 %v3904, %v4229
      %v4246 = vpack.c.b16 %v3906, %v4230
      %v4247 = vpack.c.b16 %v3908, %v4231
      %v4248 = vpack.c.b16 %v3910, %v4232
      %v4249 = vpack.c.b16 %v3912, %v4233
      %v4250 = vpack.c.b16 %v3914, %v4234
      %v4251 = vrot.slane %v4235, 1
      %v4252 = vrot.slane %v3963, 1
      %v4253 = vsel %vm1295, %v4251, %v4252
      %v4254 = vrot.slane %v4236, 1
      %v4255 = vrot.slane %v3964, 1
      %v4256 = vsel %vm1295, %v4254, %v4255
      %v4257 = vrot.slane %v4237, 1
      %v4258 = vrot.slane %v3965, 1
      %v4259 = vsel %vm1295, %v4257, %v4258
      %v4260 = vrot.slane %v4238, 1
      %v4261 = vrot.slane %v3966, 1
      %v4262 = vsel %vm1295, %v4260, %v4261
      %v4263 = vrot.slane %v4239, 1
      %v4264 = vrot.slane %v3967, 1
      %v4265 = vsel %vm1295, %v4263, %v4264
      %v4266 = vrot.slane %v4240, 1
      %v4267 = vrot.slane %v3968, 1
      %v4268 = vsel %vm1295, %v4266, %v4267
      %v4269 = vrot.slane %v4241, 1
      %v4270 = vrot.slane %v3969, 1
      %v4271 = vsel %vm1295, %v4269, %v4270
      %v4272 = vrot.slane %v4242, 1
      %v4273 = vrot.slane %v3970, 1
      %v4274 = vsel %vm1295, %v4272, %v4273
      %v4275 = vrot.slane %v4243, 1
      %v4276 = vrot.slane %v3971, 1
      %v4277 = vsel %vm1295, %v4275, %v4276
      %v4278 = vrot.slane %v4244, 1
      %v4279 = vrot.slane %v3972, 1
      %v4280 = vsel %vm1295, %v4278, %v4279
      %v4281 = vrot.slane %v4245, 1
      %v4282 = vrot.slane %v3973, 1
      %v4283 = vsel %vm1295, %v4281, %v4282
      %v4284 = vrot.slane %v4246, 1
      %v4285 = vrot.slane %v3974, 1
      %v4286 = vsel %vm1295, %v4284, %v4285
      %v4287 = vrot.slane %v4247, 1
      %v4288 = vrot.slane %v3975, 1
      %v4289 = vsel %vm1295, %v4287, %v4288
      %v4290 = vrot.slane %v4248, 1
      %v4291 = vrot.slane %v3976, 1
      %v4292 = vsel %vm1295, %v4290, %v4291
      %v4293 = vrot.slane %v4249, 1
      %v4294 = vrot.slane %v3977, 1
      %v4295 = vsel %vm1295, %v4293, %v4294
      %v4296 = vrot.slane %v4250, 1
      %v4297 = vrot.slane %v3978, 1
      %v4298 = vsel %vm1295, %v4296, %v4297
      %4299 = vrot.lane.b32.xlu0 %v4253, 64
      %v4300 = vpop.permute.xlu0 %4299
      %4301 = vrot.lane.b32.xlu0 %v4256, 64
      %v4302 = vpop.permute.xlu0 %4301
      %4303 = vrot.lane.b32.xlu0 %v4259, 64
      %v4304 = vpop.permute.xlu0 %4303
      %4305 = vrot.lane.b32.xlu0 %v4262, 64
      %v4306 = vpop.permute.xlu0 %4305
      %4307 = vrot.lane.b32.xlu0 %v4265, 64
      %v4308 = vpop.permute.xlu0 %4307
      %4309 = vrot.lane.b32.xlu0 %v4268, 64
      %v4310 = vpop.permute.xlu0 %4309
      %4311 = vrot.lane.b32.xlu0 %v4271, 64
      %v4312 = vpop.permute.xlu0 %4311
      %4313 = vrot.lane.b32.xlu0 %v4274, 64
      %v4314 = vpop.permute.xlu0 %4313
      %4315 = vrot.lane.b32.xlu0 %v4277, 64
      %v4316 = vpop.permute.xlu0 %4315
      %4317 = vrot.lane.b32.xlu0 %v4280, 64
      %v4318 = vpop.permute.xlu0 %4317
      %4319 = vrot.lane.b32.xlu0 %v4283, 64
      %v4320 = vpop.permute.xlu0 %4319
      %4321 = vrot.lane.b32.xlu0 %v4286, 64
      %v4322 = vpop.permute.xlu0 %4321
      %4323 = vrot.lane.b32.xlu0 %v4289, 64
      %v4324 = vpop.permute.xlu0 %4323
      %4325 = vrot.lane.b32.xlu0 %v4292, 64
      %v4326 = vpop.permute.xlu0 %4325
      %4327 = vrot.lane.b32.xlu0 %v4295, 64
      %v4328 = vpop.permute.xlu0 %4327
      %4329 = vrot.lane.b32.xlu0 %v4298, 64
      %v4330 = vpop.permute.xlu0 %4329
      %v4363 = vunpack.c.l.b16 %v3723
      %v4364 = vunpack.c.l.b16 %v3724
      %v4365 = vunpack.c.l.b16 %v3725
      %v4366 = vunpack.c.l.b16 %v3726
      %v4367 = vunpack.c.l.b16 %v3727
      %v4368 = vunpack.c.l.b16 %v3728
      %v4369 = vunpack.c.l.b16 %v3729
      %v4370 = vunpack.c.l.b16 %v3730
      %v4371 = vunpack.c.l.b16 %v3731
      %v4372 = vunpack.c.l.b16 %v3732
      %v4373 = vunpack.c.l.b16 %v3733
      %v4374 = vunpack.c.l.b16 %v3734
      %v4375 = vunpack.c.l.b16 %v3735
      %v4376 = vunpack.c.l.b16 %v3736
      %v4377 = vunpack.c.l.b16 %v3737
      %v4378 = vunpack.c.l.b16 %v3738
      %v4379 = vunpack.c.l.b16 %v3739
      %v4380 = vunpack.c.l.b16 %v3740
      %v4381 = vunpack.c.l.b16 %v3741
      %v4382 = vunpack.c.l.b16 %v3742
      %v4383 = vunpack.c.l.b16 %v3743
      %v4384 = vunpack.c.l.b16 %v3744
      %v4385 = vunpack.c.l.b16 %v3745
      %v4386 = vunpack.c.l.b16 %v3746
      %v4387 = vunpack.c.l.b16 %v3747
      %v4388 = vunpack.c.l.b16 %v3748
      %v4389 = vunpack.c.l.b16 %v3749
      %v4390 = vunpack.c.l.b16 %v3750
      %v4391 = vunpack.c.l.b16 %v3751
      %v4392 = vunpack.c.l.b16 %v3752
      %v4393 = vunpack.c.l.b16 %v3753
      %v4394 = vunpack.c.l.b16 %v3754
      %v4395 = vpack.c.b16 %v4364, %v4363
      %v4396 = vpack.c.b16 %v4366, %v4365
      %v4397 = vpack.c.b16 %v4368, %v4367
      %v4398 = vpack.c.b16 %v4370, %v4369
      %v4399 = vpack.c.b16 %v4372, %v4371
      %v4400 = vpack.c.b16 %v4374, %v4373
      %v4401 = vpack.c.b16 %v4376, %v4375
      %v4402 = vpack.c.b16 %v4378, %v4377
      %v4403 = vpack.c.b16 %v4380, %v4379
      %v4404 = vpack.c.b16 %v4382, %v4381
      %v4405 = vpack.c.b16 %v4384, %v4383
      %v4406 = vpack.c.b16 %v4386, %v4385
      %v4407 = vpack.c.b16 %v4388, %v4387
      %v4408 = vpack.c.b16 %v4390, %v4389
      %v4409 = vpack.c.b16 %v4392, %v4391
      %v4410 = vpack.c.b16 %v4394, %v4393
      %4411 = vrot.lane.b32.xlu0 %v4395, 96
      %v4412 = vpop.permute.xlu0 %4411
      %4413 = vrot.lane.b32.xlu0 %v4396, 96
      %v4414 = vpop.permute.xlu0 %4413
      %4415 = vrot.lane.b32.xlu0 %v4397, 96
      %v4416 = vpop.permute.xlu0 %4415
      %4417 = vrot.lane.b32.xlu0 %v4398, 96
      %v4418 = vpop.permute.xlu0 %4417
      %4419 = vrot.lane.b32.xlu0 %v4399, 96
      %v4420 = vpop.permute.xlu0 %4419
      %4421 = vrot.lane.b32.xlu0 %v4400, 96
      %v4422 = vpop.permute.xlu0 %4421
      %4423 = vrot.lane.b32.xlu0 %v4401, 96
      %v4424 = vpop.permute.xlu0 %4423
      %4425 = vrot.lane.b32.xlu0 %v4402, 96
      %v4426 = vpop.permute.xlu0 %4425
      %4427 = vrot.lane.b32.xlu0 %v4403, 96
      %v4428 = vpop.permute.xlu0 %4427
      %4429 = vrot.lane.b32.xlu0 %v4404, 96
      %v4430 = vpop.permute.xlu0 %4429
      %4431 = vrot.lane.b32.xlu0 %v4405, 96
      %v4432 = vpop.permute.xlu0 %4431
      %4433 = vrot.lane.b32.xlu0 %v4406, 96
      %v4434 = vpop.permute.xlu0 %4433
      %4435 = vrot.lane.b32.xlu0 %v4407, 96
      %v4436 = vpop.permute.xlu0 %4435
      %4437 = vrot.lane.b32.xlu0 %v4408, 96
      %v4438 = vpop.permute.xlu0 %4437
      %4439 = vrot.lane.b32.xlu0 %v4409, 96
      %v4440 = vpop.permute.xlu0 %4439
      %4441 = vrot.lane.b32.xlu0 %v4410, 96
      %v4442 = vpop.permute.xlu0 %4441
      %v4459 = vunpack.c.l.b16 %v3755
      %v4460 = vunpack.c.l.b16 %v3756
      %v4461 = vunpack.c.l.b16 %v3757
      %v4462 = vunpack.c.l.b16 %v3758
      %v4463 = vunpack.c.l.b16 %v3759
      %v4464 = vunpack.c.l.b16 %v3760
      %v4465 = vunpack.c.l.b16 %v3761
      %v4466 = vunpack.c.l.b16 %v3762
      %v4467 = vunpack.c.l.b16 %v3763
      %v4468 = vunpack.c.l.b16 %v3764
      %v4469 = vunpack.c.l.b16 %v3765
      %v4470 = vunpack.c.l.b16 %v3766
      %v4471 = vunpack.c.l.b16 %v3767
      %v4472 = vunpack.c.l.b16 %v3768
      %v4473 = vunpack.c.l.b16 %v3769
      %v4474 = vunpack.c.l.b16 %v3770
      %v4475 = vpack.c.b16 %v4459, %v4459
      %v4476 = vpack.c.b16 %v4460, %v4460
      %v4477 = vpack.c.b16 %v4461, %v4461
      %v4478 = vpack.c.b16 %v4462, %v4462
      %v4479 = vpack.c.b16 %v4463, %v4463
      %v4480 = vpack.c.b16 %v4464, %v4464
      %v4481 = vpack.c.b16 %v4465, %v4465
      %v4482 = vpack.c.b16 %v4466, %v4466
      %v4483 = vpack.c.b16 %v4467, %v4467
      %v4484 = vpack.c.b16 %v4468, %v4468
      %v4485 = vpack.c.b16 %v4469, %v4469
      %v4486 = vpack.c.b16 %v4470, %v4470
      %v4487 = vpack.c.b16 %v4471, %v4471
      %v4488 = vpack.c.b16 %v4472, %v4472
      %v4489 = vpack.c.b16 %v4473, %v4473
      %v4490 = vpack.c.b16 %v4474, %v4474
      %v4492 = vshrl.u32 %v4395, 16
      %v4494 = vshll.u32 %v4395, 16
      %v4496 = vrot.slane %v4494, 1
      %v4497 = vor.u32 %v4492, %v4496
      %v4499 = vshll.u32 %v4475, 16
      %v4501 = vrot.slane %v4499, 1
      %v4502 = vsel %vm1022, %v4497, %v4501
      %v4504 = vshrl.u32 %v4396, 16
      %v4506 = vshll.u32 %v4396, 16
      %v4508 = vrot.slane %v4506, 1
      %v4509 = vor.u32 %v4504, %v4508
      %v4511 = vshll.u32 %v4476, 16
      %v4513 = vrot.slane %v4511, 1
      %v4514 = vsel %vm1022, %v4509, %v4513
      %v4516 = vshrl.u32 %v4397, 16
      %v4518 = vshll.u32 %v4397, 16
      %v4520 = vrot.slane %v4518, 1
      %v4521 = vor.u32 %v4516, %v4520
      %v4523 = vshll.u32 %v4477, 16
      %v4525 = vrot.slane %v4523, 1
      %v4526 = vsel %vm1022, %v4521, %v4525
      %v4528 = vshrl.u32 %v4398, 16
      %v4530 = vshll.u32 %v4398, 16
      %v4532 = vrot.slane %v4530, 1
      %v4533 = vor.u32 %v4528, %v4532
      %v4535 = vshll.u32 %v4478, 16
      %v4537 = vrot.slane %v4535, 1
      %v4538 = vsel %vm1022, %v4533, %v4537
      %v4540 = vshrl.u32 %v4399, 16
      %v4542 = vshll.u32 %v4399, 16
      %v4544 = vrot.slane %v4542, 1
      %v4545 = vor.u32 %v4540, %v4544
      %v4547 = vshll.u32 %v4479, 16
      %v4549 = vrot.slane %v4547, 1
      %v4550 = vsel %vm1022, %v4545, %v4549
      %v4552 = vshrl.u32 %v4400, 16
      %v4554 = vshll.u32 %v4400, 16
      %v4556 = vrot.slane %v4554, 1
      %v4557 = vor.u32 %v4552, %v4556
      %v4559 = vshll.u32 %v4480, 16
      %v4561 = vrot.slane %v4559, 1
      %v4562 = vsel %vm1022, %v4557, %v4561
      %v4564 = vshrl.u32 %v4401, 16
      %v4566 = vshll.u32 %v4401, 16
      %v4568 = vrot.slane %v4566, 1
      %v4569 = vor.u32 %v4564, %v4568
      %v4571 = vshll.u32 %v4481, 16
      %v4573 = vrot.slane %v4571, 1
      %v4574 = vsel %vm1022, %v4569, %v4573
      %v4576 = vshrl.u32 %v4402, 16
      %v4578 = vshll.u32 %v4402, 16
      %v4580 = vrot.slane %v4578, 1
      %v4581 = vor.u32 %v4576, %v4580
      %v4583 = vshll.u32 %v4482, 16
      %v4585 = vrot.slane %v4583, 1
      %v4586 = vsel %vm1022, %v4581, %v4585
      %v4588 = vshrl.u32 %v4403, 16
      %v4590 = vshll.u32 %v4403, 16
      %v4592 = vrot.slane %v4590, 1
      %v4593 = vor.u32 %v4588, %v4592
      %v4595 = vshll.u32 %v4483, 16
      %v4597 = vrot.slane %v4595, 1
      %v4598 = vsel %vm1022, %v4593, %v4597
      %v4600 = vshrl.u32 %v4404, 16
      %v4602 = vshll.u32 %v4404, 16
      %v4604 = vrot.slane %v4602, 1
      %v4605 = vor.u32 %v4600, %v4604
      %v4607 = vshll.u32 %v4484, 16
      %v4609 = vrot.slane %v4607, 1
      %v4610 = vsel %vm1022, %v4605, %v4609
      %v4612 = vshrl.u32 %v4405, 16
      %v4614 = vshll.u32 %v4405, 16
      %v4616 = vrot.slane %v4614, 1
      %v4617 = vor.u32 %v4612, %v4616
      %v4619 = vshll.u32 %v4485, 16
      %v4621 = vrot.slane %v4619, 1
      %v4622 = vsel %vm1022, %v4617, %v4621
      %v4624 = vshrl.u32 %v4406, 16
      %v4626 = vshll.u32 %v4406, 16
      %v4628 = vrot.slane %v4626, 1
      %v4629 = vor.u32 %v4624, %v4628
      %v4631 = vshll.u32 %v4486, 16
      %v4633 = vrot.slane %v4631, 1
      %v4634 = vsel %vm1022, %v4629, %v4633
      %v4636 = vshrl.u32 %v4407, 16
      %v4638 = vshll.u32 %v4407, 16
      %v4640 = vrot.slane %v4638, 1
      %v4641 = vor.u32 %v4636, %v4640
      %v4643 = vshll.u32 %v4487, 16
      %v4645 = vrot.slane %v4643, 1
      %v4646 = vsel %vm1022, %v4641, %v4645
      %v4648 = vshrl.u32 %v4408, 16
      %v4650 = vshll.u32 %v4408, 16
      %v4652 = vrot.slane %v4650, 1
      %v4653 = vor.u32 %v4648, %v4652
      %v4655 = vshll.u32 %v4488, 16
      %v4657 = vrot.slane %v4655, 1
      %v4658 = vsel %vm1022, %v4653, %v4657
      %v4660 = vshrl.u32 %v4409, 16
      %v4662 = vshll.u32 %v4409, 16
      %v4664 = vrot.slane %v4662, 1
      %v4665 = vor.u32 %v4660, %v4664
      %v4667 = vshll.u32 %v4489, 16
      %v4669 = vrot.slane %v4667, 1
      %v4670 = vsel %vm1022, %v4665, %v4669
      %v4672 = vshrl.u32 %v4410, 16
      %v4674 = vshll.u32 %v4410, 16
      %v4676 = vrot.slane %v4674, 1
      %v4677 = vor.u32 %v4672, %v4676
      %v4679 = vshll.u32 %v4490, 16
      %v4681 = vrot.slane %v4679, 1
      %v4682 = vsel %vm1022, %v4677, %v4681
      %v4699 = vunpack.c.l.b16 %v3771
      %v4700 = vunpack.c.l.b16 %v3772
      %v4701 = vunpack.c.l.b16 %v3773
      %v4702 = vunpack.c.l.b16 %v3774
      %v4703 = vunpack.c.l.b16 %v3775
      %v4704 = vunpack.c.l.b16 %v3776
      %v4705 = vunpack.c.l.b16 %v3777
      %v4706 = vunpack.c.l.b16 %v3778
      %v4707 = vunpack.c.l.b16 %v3779
      %v4708 = vunpack.c.l.b16 %v3780
      %v4709 = vunpack.c.l.b16 %v3781
      %v4710 = vunpack.c.l.b16 %v3782
      %v4711 = vunpack.c.l.b16 %v3783
      %v4712 = vunpack.c.l.b16 %v3784
      %v4713 = vunpack.c.l.b16 %v3785
      %v4714 = vunpack.c.l.b16 %v3786
      %v4715 = vpack.c.b16 %v4364, %v4699
      %v4716 = vpack.c.b16 %v4366, %v4700
      %v4717 = vpack.c.b16 %v4368, %v4701
      %v4718 = vpack.c.b16 %v4370, %v4702
      %v4719 = vpack.c.b16 %v4372, %v4703
      %v4720 = vpack.c.b16 %v4374, %v4704
      %v4721 = vpack.c.b16 %v4376, %v4705
      %v4722 = vpack.c.b16 %v4378, %v4706
      %v4723 = vpack.c.b16 %v4380, %v4707
      %v4724 = vpack.c.b16 %v4382, %v4708
      %v4725 = vpack.c.b16 %v4384, %v4709
      %v4726 = vpack.c.b16 %v4386, %v4710
      %v4727 = vpack.c.b16 %v4388, %v4711
      %v4728 = vpack.c.b16 %v4390, %v4712
      %v4729 = vpack.c.b16 %v4392, %v4713
      %v4730 = vpack.c.b16 %v4394, %v4714
      %v4731 = vrot.slane %v4715, 1
      %v4732 = vrot.slane %v4475, 1
      %v4733 = vsel %vm1295, %v4731, %v4732
      %v4734 = vrot.slane %v4716, 1
      %v4735 = vrot.slane %v4476, 1
      %v4736 = vsel %vm1295, %v4734, %v4735
      %v4737 = vrot.slane %v4717, 1
      %v4738 = vrot.slane %v4477, 1
      %v4739 = vsel %vm1295, %v4737, %v4738
      %v4740 = vrot.slane %v4718, 1
      %v4741 = vrot.slane %v4478, 1
      %v4742 = vsel %vm1295, %v4740, %v4741
      %v4743 = vrot.slane %v4719, 1
      %v4744 = vrot.slane %v4479, 1
      %v4745 = vsel %vm1295, %v4743, %v4744
      %v4746 = vrot.slane %v4720, 1
      %v4747 = vrot.slane %v4480, 1
      %v4748 = vsel %vm1295, %v4746, %v4747
      %v4749 = vrot.slane %v4721, 1
      %v4750 = vrot.slane %v4481, 1
      %v4751 = vsel %vm1295, %v4749, %v4750
      %v4752 = vrot.slane %v4722, 1
      %v4753 = vrot.slane %v4482, 1
      %v4754 = vsel %vm1295, %v4752, %v4753
      %v4755 = vrot.slane %v4723, 1
      %v4756 = vrot.slane %v4483, 1
      %v4757 = vsel %vm1295, %v4755, %v4756
      %v4758 = vrot.slane %v4724, 1
      %v4759 = vrot.slane %v4484, 1
      %v4760 = vsel %vm1295, %v4758, %v4759
      %v4761 = vrot.slane %v4725, 1
      %v4762 = vrot.slane %v4485, 1
      %v4763 = vsel %vm1295, %v4761, %v4762
      %v4764 = vrot.slane %v4726, 1
      %v4765 = vrot.slane %v4486, 1
      %v4766 = vsel %vm1295, %v4764, %v4765
      %v4767 = vrot.slane %v4727, 1
      %v4768 = vrot.slane %v4487, 1
      %v4769 = vsel %vm1295, %v4767, %v4768
      %v4770 = vrot.slane %v4728, 1
      %v4771 = vrot.slane %v4488, 1
      %v4772 = vsel %vm1295, %v4770, %v4771
      %v4773 = vrot.slane %v4729, 1
      %v4774 = vrot.slane %v4489, 1
      %v4775 = vsel %vm1295, %v4773, %v4774
      %v4776 = vrot.slane %v4730, 1
      %v4777 = vrot.slane %v4490, 1
      %v4778 = vsel %vm1295, %v4776, %v4777
      %4779 = vrot.lane.b32.xlu0 %v4733, 32
      %v4780 = vpop.permute.xlu0 %4779
      %4781 = vrot.lane.b32.xlu0 %v4736, 32
      %v4782 = vpop.permute.xlu0 %4781
      %4783 = vrot.lane.b32.xlu0 %v4739, 32
      %v4784 = vpop.permute.xlu0 %4783
      %4785 = vrot.lane.b32.xlu0 %v4742, 32
      %v4786 = vpop.permute.xlu0 %4785
      %4787 = vrot.lane.b32.xlu0 %v4745, 32
      %v4788 = vpop.permute.xlu0 %4787
      %4789 = vrot.lane.b32.xlu0 %v4748, 32
      %v4790 = vpop.permute.xlu0 %4789
      %4791 = vrot.lane.b32.xlu0 %v4751, 32
      %v4792 = vpop.permute.xlu0 %4791
      %4793 = vrot.lane.b32.xlu0 %v4754, 32
      %v4794 = vpop.permute.xlu0 %4793
      %4795 = vrot.lane.b32.xlu0 %v4757, 32
      %v4796 = vpop.permute.xlu0 %4795
      %4797 = vrot.lane.b32.xlu0 %v4760, 32
      %v4798 = vpop.permute.xlu0 %4797
      %4799 = vrot.lane.b32.xlu0 %v4763, 32
      %v4800 = vpop.permute.xlu0 %4799
      %4801 = vrot.lane.b32.xlu0 %v4766, 32
      %v4802 = vpop.permute.xlu0 %4801
      %4803 = vrot.lane.b32.xlu0 %v4769, 32
      %v4804 = vpop.permute.xlu0 %4803
      %4805 = vrot.lane.b32.xlu0 %v4772, 32
      %v4806 = vpop.permute.xlu0 %4805
      %4807 = vrot.lane.b32.xlu0 %v4775, 32
      %v4808 = vpop.permute.xlu0 %4807
      %4809 = vrot.lane.b32.xlu0 %v4778, 32
      %v4810 = vpop.permute.xlu0 %4809
      %v4843 = vunpack.c.l.b16 %v3787
      %v4844 = vunpack.c.l.b16 %v3788
      %v4845 = vunpack.c.l.b16 %v3789
      %v4846 = vunpack.c.l.b16 %v3790
      %v4847 = vunpack.c.l.b16 %v3791
      %v4848 = vunpack.c.l.b16 %v3792
      %v4849 = vunpack.c.l.b16 %v3793
      %v4850 = vunpack.c.l.b16 %v3794
      %v4851 = vunpack.c.l.b16 %v3795
      %v4852 = vunpack.c.l.b16 %v3796
      %v4853 = vunpack.c.l.b16 %v3797
      %v4854 = vunpack.c.l.b16 %v3798
      %v4855 = vunpack.c.l.b16 %v3799
      %v4856 = vunpack.c.l.b16 %v3800
      %v4857 = vunpack.c.l.b16 %v3801
      %v4858 = vunpack.c.l.b16 %v3802
      %v4859 = vunpack.c.l.b16 %v3803
      %v4860 = vunpack.c.l.b16 %v3804
      %v4861 = vunpack.c.l.b16 %v3805
      %v4862 = vunpack.c.l.b16 %v3806
      %v4863 = vunpack.c.l.b16 %v3807
      %v4864 = vunpack.c.l.b16 %v3808
      %v4865 = vunpack.c.l.b16 %v3809
      %v4866 = vunpack.c.l.b16 %v3810
      %v4867 = vunpack.c.l.b16 %v3811
      %v4868 = vunpack.c.l.b16 %v3812
      %v4869 = vunpack.c.l.b16 %v3813
      %v4870 = vunpack.c.l.b16 %v3814
      %v4871 = vunpack.c.l.b16 %v3815
      %v4872 = vunpack.c.l.b16 %v3816
      %v4873 = vunpack.c.l.b16 %v3817
      %v4874 = vunpack.c.l.b16 %v3818
      %v4875 = vpack.c.b16 %v4844, %v4843
      %v4876 = vpack.c.b16 %v4846, %v4845
      %v4877 = vpack.c.b16 %v4848, %v4847
      %v4878 = vpack.c.b16 %v4850, %v4849
      %v4879 = vpack.c.b16 %v4852, %v4851
      %v4880 = vpack.c.b16 %v4854, %v4853
      %v4881 = vpack.c.b16 %v4856, %v4855
      %v4882 = vpack.c.b16 %v4858, %v4857
      %v4883 = vpack.c.b16 %v4860, %v4859
      %v4884 = vpack.c.b16 %v4862, %v4861
      %v4885 = vpack.c.b16 %v4864, %v4863
      %v4886 = vpack.c.b16 %v4866, %v4865
      %v4887 = vpack.c.b16 %v4868, %v4867
      %v4888 = vpack.c.b16 %v4870, %v4869
      %v4889 = vpack.c.b16 %v4872, %v4871
      %v4890 = vpack.c.b16 %v4874, %v4873
      %4891 = vrot.lane.b32.xlu0 %v4875, 64
      %v4892 = vpop.permute.xlu0 %4891
      %4893 = vrot.lane.b32.xlu0 %v4876, 64
      %v4894 = vpop.permute.xlu0 %4893
      %4895 = vrot.lane.b32.xlu0 %v4877, 64
      %v4896 = vpop.permute.xlu0 %4895
      %4897 = vrot.lane.b32.xlu0 %v4878, 64
      %v4898 = vpop.permute.xlu0 %4897
      %4899 = vrot.lane.b32.xlu0 %v4879, 64
      %v4900 = vpop.permute.xlu0 %4899
      %4901 = vrot.lane.b32.xlu0 %v4880, 64
      %v4902 = vpop.permute.xlu0 %4901
      %4903 = vrot.lane.b32.xlu0 %v4881, 64
      %v4904 = vpop.permute.xlu0 %4903
      %4905 = vrot.lane.b32.xlu0 %v4882, 64
      %v4906 = vpop.permute.xlu0 %4905
      %4907 = vrot.lane.b32.xlu0 %v4883, 64
      %v4908 = vpop.permute.xlu0 %4907
      %4909 = vrot.lane.b32.xlu0 %v4884, 64
      %v4910 = vpop.permute.xlu0 %4909
      %4911 = vrot.lane.b32.xlu0 %v4885, 64
      %v4912 = vpop.permute.xlu0 %4911
      %4913 = vrot.lane.b32.xlu0 %v4886, 64
      %v4914 = vpop.permute.xlu0 %4913
      %4915 = vrot.lane.b32.xlu0 %v4887, 64
      %v4916 = vpop.permute.xlu0 %4915
      %4917 = vrot.lane.b32.xlu0 %v4888, 64
      %v4918 = vpop.permute.xlu0 %4917
      %4919 = vrot.lane.b32.xlu0 %v4889, 64
      %v4920 = vpop.permute.xlu0 %4919
      %4921 = vrot.lane.b32.xlu0 %v4890, 64
      %v4922 = vpop.permute.xlu0 %4921
      %v4939 = vunpack.c.l.b16 %v3819
      %v4940 = vunpack.c.l.b16 %v3820
      %v4941 = vunpack.c.l.b16 %v3821
      %v4942 = vunpack.c.l.b16 %v3822
      %v4943 = vunpack.c.l.b16 %v3823
      %v4944 = vunpack.c.l.b16 %v3824
      %v4945 = vunpack.c.l.b16 %v3825
      %v4946 = vunpack.c.l.b16 %v3826
      %v4947 = vunpack.c.l.b16 %v3827
      %v4948 = vunpack.c.l.b16 %v3828
      %v4949 = vunpack.c.l.b16 %v3829
      %v4950 = vunpack.c.l.b16 %v3830
      %v4951 = vunpack.c.l.b16 %v3831
      %v4952 = vunpack.c.l.b16 %v3832
      %v4953 = vunpack.c.l.b16 %v3833
      %v4954 = vunpack.c.l.b16 %v3834
      %v4955 = vpack.c.b16 %v4939, %v4939
      %v4956 = vpack.c.b16 %v4940, %v4940
      %v4957 = vpack.c.b16 %v4941, %v4941
      %v4958 = vpack.c.b16 %v4942, %v4942
      %v4959 = vpack.c.b16 %v4943, %v4943
      %v4960 = vpack.c.b16 %v4944, %v4944
      %v4961 = vpack.c.b16 %v4945, %v4945
      %v4962 = vpack.c.b16 %v4946, %v4946
      %v4963 = vpack.c.b16 %v4947, %v4947
      %v4964 = vpack.c.b16 %v4948, %v4948
      %v4965 = vpack.c.b16 %v4949, %v4949
      %v4966 = vpack.c.b16 %v4950, %v4950
      %v4967 = vpack.c.b16 %v4951, %v4951
      %v4968 = vpack.c.b16 %v4952, %v4952
      %v4969 = vpack.c.b16 %v4953, %v4953
      %v4970 = vpack.c.b16 %v4954, %v4954
      %v4972 = vshrl.u32 %v4875, 16
      %v4974 = vshll.u32 %v4875, 16
      %v4976 = vrot.slane %v4974, 1
      %v4977 = vor.u32 %v4972, %v4976
      %v4979 = vshll.u32 %v4955, 16
      %v4981 = vrot.slane %v4979, 1
      %v4982 = vsel %vm1022, %v4977, %v4981
      %v4984 = vshrl.u32 %v4876, 16
      %v4986 = vshll.u32 %v4876, 16
      %v4988 = vrot.slane %v4986, 1
      %v4989 = vor.u32 %v4984, %v4988
      %v4991 = vshll.u32 %v4956, 16
      %v4993 = vrot.slane %v4991, 1
      %v4994 = vsel %vm1022, %v4989, %v4993
      %v4996 = vshrl.u32 %v4877, 16
      %v4998 = vshll.u32 %v4877, 16
      %v5000 = vrot.slane %v4998, 1
      %v5001 = vor.u32 %v4996, %v5000
      %v5003 = vshll.u32 %v4957, 16
      %v5005 = vrot.slane %v5003, 1
      %v5006 = vsel %vm1022, %v5001, %v5005
      %v5008 = vshrl.u32 %v4878, 16
      %v5010 = vshll.u32 %v4878, 16
      %v5012 = vrot.slane %v5010, 1
      %v5013 = vor.u32 %v5008, %v5012
      %v5015 = vshll.u32 %v4958, 16
      %v5017 = vrot.slane %v5015, 1
      %v5018 = vsel %vm1022, %v5013, %v5017
      %v5020 = vshrl.u32 %v4879, 16
      %v5022 = vshll.u32 %v4879, 16
      %v5024 = vrot.slane %v5022, 1
      %v5025 = vor.u32 %v5020, %v5024
      %v5027 = vshll.u32 %v4959, 16
      %v5029 = vrot.slane %v5027, 1
      %v5030 = vsel %vm1022, %v5025, %v5029
      %v5032 = vshrl.u32 %v4880, 16
      %v5034 = vshll.u32 %v4880, 16
      %v5036 = vrot.slane %v5034, 1
      %v5037 = vor.u32 %v5032, %v5036
      %v5039 = vshll.u32 %v4960, 16
      %v5041 = vrot.slane %v5039, 1
      %v5042 = vsel %vm1022, %v5037, %v5041
      %v5044 = vshrl.u32 %v4881, 16
      %v5046 = vshll.u32 %v4881, 16
      %v5048 = vrot.slane %v5046, 1
      %v5049 = vor.u32 %v5044, %v5048
      %v5051 = vshll.u32 %v4961, 16
      %v5053 = vrot.slane %v5051, 1
      %v5054 = vsel %vm1022, %v5049, %v5053
      %v5056 = vshrl.u32 %v4882, 16
      %v5058 = vshll.u32 %v4882, 16
      %v5060 = vrot.slane %v5058, 1
      %v5061 = vor.u32 %v5056, %v5060
      %v5063 = vshll.u32 %v4962, 16
      %v5065 = vrot.slane %v5063, 1
      %v5066 = vsel %vm1022, %v5061, %v5065
      %v5068 = vshrl.u32 %v4883, 16
      %v5070 = vshll.u32 %v4883, 16
      %v5072 = vrot.slane %v5070, 1
      %v5073 = vor.u32 %v5068, %v5072
      %v5075 = vshll.u32 %v4963, 16
      %v5077 = vrot.slane %v5075, 1
      %v5078 = vsel %vm1022, %v5073, %v5077
      %v5080 = vshrl.u32 %v4884, 16
      %v5082 = vshll.u32 %v4884, 16
      %v5084 = vrot.slane %v5082, 1
      %v5085 = vor.u32 %v5080, %v5084
      %v5087 = vshll.u32 %v4964, 16
      %v5089 = vrot.slane %v5087, 1
      %v5090 = vsel %vm1022, %v5085, %v5089
      %v5092 = vshrl.u32 %v4885, 16
      %v5094 = vshll.u32 %v4885, 16
      %v5096 = vrot.slane %v5094, 1
      %v5097 = vor.u32 %v5092, %v5096
      %v5099 = vshll.u32 %v4965, 16
      %v5101 = vrot.slane %v5099, 1
      %v5102 = vsel %vm1022, %v5097, %v5101
      %v5104 = vshrl.u32 %v4886, 16
      %v5106 = vshll.u32 %v4886, 16
      %v5108 = vrot.slane %v5106, 1
      %v5109 = vor.u32 %v5104, %v5108
      %v5111 = vshll.u32 %v4966, 16
      %v5113 = vrot.slane %v5111, 1
      %v5114 = vsel %vm1022, %v5109, %v5113
      %v5116 = vshrl.u32 %v4887, 16
      %v5118 = vshll.u32 %v4887, 16
      %v5120 = vrot.slane %v5118, 1
      %v5121 = vor.u32 %v5116, %v5120
      %v5123 = vshll.u32 %v4967, 16
      %v5125 = vrot.slane %v5123, 1
      %v5126 = vsel %vm1022, %v5121, %v5125
      %v5128 = vshrl.u32 %v4888, 16
      %v5130 = vshll.u32 %v4888, 16
      %v5132 = vrot.slane %v5130, 1
      %v5133 = vor.u32 %v5128, %v5132
      %v5135 = vshll.u32 %v4968, 16
      %v5137 = vrot.slane %v5135, 1
      %v5138 = vsel %vm1022, %v5133, %v5137
      %v5140 = vshrl.u32 %v4889, 16
      %v5142 = vshll.u32 %v4889, 16
      %v5144 = vrot.slane %v5142, 1
      %v5145 = vor.u32 %v5140, %v5144
      %v5147 = vshll.u32 %v4969, 16
      %v5149 = vrot.slane %v5147, 1
      %v5150 = vsel %vm1022, %v5145, %v5149
      %v5152 = vshrl.u32 %v4890, 16
      %v5154 = vshll.u32 %v4890, 16
      %v5156 = vrot.slane %v5154, 1
      %v5157 = vor.u32 %v5152, %v5156
      %v5159 = vshll.u32 %v4970, 16
      %v5161 = vrot.slane %v5159, 1
      %v5162 = vsel %vm1022, %v5157, %v5161
      %5163 = vrot.lane.b32.xlu0 %v4982, 96
      %v5164 = vpop.permute.xlu0 %5163
      %5165 = vrot.lane.b32.xlu0 %v4994, 96
      %v5166 = vpop.permute.xlu0 %5165
      %5167 = vrot.lane.b32.xlu0 %v5006, 96
      %v5168 = vpop.permute.xlu0 %5167
      %5169 = vrot.lane.b32.xlu0 %v5018, 96
      %v5170 = vpop.permute.xlu0 %5169
      %5171 = vrot.lane.b32.xlu0 %v5030, 96
      %v5172 = vpop.permute.xlu0 %5171
      %5173 = vrot.lane.b32.xlu0 %v5042, 96
      %v5174 = vpop.permute.xlu0 %5173
      %5175 = vrot.lane.b32.xlu0 %v5054, 96
      %v5176 = vpop.permute.xlu0 %5175
      %5177 = vrot.lane.b32.xlu0 %v5066, 96
      %v5178 = vpop.permute.xlu0 %5177
      %5179 = vrot.lane.b32.xlu0 %v5078, 96
      %v5180 = vpop.permute.xlu0 %5179
      %5181 = vrot.lane.b32.xlu0 %v5090, 96
      %v5182 = vpop.permute.xlu0 %5181
      %5183 = vrot.lane.b32.xlu0 %v5102, 96
      %v5184 = vpop.permute.xlu0 %5183
      %5185 = vrot.lane.b32.xlu0 %v5114, 96
      %v5186 = vpop.permute.xlu0 %5185
      %5187 = vrot.lane.b32.xlu0 %v5126, 96
      %v5188 = vpop.permute.xlu0 %5187
      %5189 = vrot.lane.b32.xlu0 %v5138, 96
      %v5190 = vpop.permute.xlu0 %5189
      %5191 = vrot.lane.b32.xlu0 %v5150, 96
      %v5192 = vpop.permute.xlu0 %5191
      %5193 = vrot.lane.b32.xlu0 %v5162, 96
      %v5194 = vpop.permute.xlu0 %5193
      %v5211 = vunpack.c.l.b16 %v3835
      %v5212 = vunpack.c.l.b16 %v3836
      %v5213 = vunpack.c.l.b16 %v3837
      %v5214 = vunpack.c.l.b16 %v3838
      %v5215 = vunpack.c.l.b16 %v3839
      %v5216 = vunpack.c.l.b16 %v3840
      %v5217 = vunpack.c.l.b16 %v3841
      %v5218 = vunpack.c.l.b16 %v3842
      %v5219 = vunpack.c.l.b16 %v3843
      %v5220 = vunpack.c.l.b16 %v3844
      %v5221 = vunpack.c.l.b16 %v3845
      %v5222 = vunpack.c.l.b16 %v3846
      %v5223 = vunpack.c.l.b16 %v3847
      %v5224 = vunpack.c.l.b16 %v3848
      %v5225 = vunpack.c.l.b16 %v3849
      %v5226 = vunpack.c.l.b16 %v3850
      %v5227 = vpack.c.b16 %v4844, %v5211
      %v5228 = vpack.c.b16 %v4846, %v5212
      %v5229 = vpack.c.b16 %v4848, %v5213
      %v5230 = vpack.c.b16 %v4850, %v5214
      %v5231 = vpack.c.b16 %v4852, %v5215
      %v5232 = vpack.c.b16 %v4854, %v5216
      %v5233 = vpack.c.b16 %v4856, %v5217
      %v5234 = vpack.c.b16 %v4858, %v5218
      %v5235 = vpack.c.b16 %v4860, %v5219
      %v5236 = vpack.c.b16 %v4862, %v5220
      %v5237 = vpack.c.b16 %v4864, %v5221
      %v5238 = vpack.c.b16 %v4866, %v5222
      %v5239 = vpack.c.b16 %v4868, %v5223
      %v5240 = vpack.c.b16 %v4870, %v5224
      %v5241 = vpack.c.b16 %v4872, %v5225
      %v5242 = vpack.c.b16 %v4874, %v5226
      %v5243 = vrot.slane %v5227, 1
      %v5244 = vrot.slane %v4955, 1
      %v5245 = vsel %vm1295, %v5243, %v5244
      %v5246 = vrot.slane %v5228, 1
      %v5247 = vrot.slane %v4956, 1
      %v5248 = vsel %vm1295, %v5246, %v5247
      %v5249 = vrot.slane %v5229, 1
      %v5250 = vrot.slane %v4957, 1
      %v5251 = vsel %vm1295, %v5249, %v5250
      %v5252 = vrot.slane %v5230, 1
      %v5253 = vrot.slane %v4958, 1
      %v5254 = vsel %vm1295, %v5252, %v5253
      %v5255 = vrot.slane %v5231, 1
      %v5256 = vrot.slane %v4959, 1
      %v5257 = vsel %vm1295, %v5255, %v5256
      %v5258 = vrot.slane %v5232, 1
      %v5259 = vrot.slane %v4960, 1
      %v5260 = vsel %vm1295, %v5258, %v5259
      %v5261 = vrot.slane %v5233, 1
      %v5262 = vrot.slane %v4961, 1
      %v5263 = vsel %vm1295, %v5261, %v5262
      %v5264 = vrot.slane %v5234, 1
      %v5265 = vrot.slane %v4962, 1
      %v5266 = vsel %vm1295, %v5264, %v5265
      %v5267 = vrot.slane %v5235, 1
      %v5268 = vrot.slane %v4963, 1
      %v5269 = vsel %vm1295, %v5267, %v5268
      %v5270 = vrot.slane %v5236, 1
      %v5271 = vrot.slane %v4964, 1
      %v5272 = vsel %vm1295, %v5270, %v5271
      %v5273 = vrot.slane %v5237, 1
      %v5274 = vrot.slane %v4965, 1
      %v5275 = vsel %vm1295, %v5273, %v5274
      %v5276 = vrot.slane %v5238, 1
      %v5277 = vrot.slane %v4966, 1
      %v5278 = vsel %vm1295, %v5276, %v5277
      %v5279 = vrot.slane %v5239, 1
      %v5280 = vrot.slane %v4967, 1
      %v5281 = vsel %vm1295, %v5279, %v5280
      %v5282 = vrot.slane %v5240, 1
      %v5283 = vrot.slane %v4968, 1
      %v5284 = vsel %vm1295, %v5282, %v5283
      %v5285 = vrot.slane %v5241, 1
      %v5286 = vrot.slane %v4969, 1
      %v5287 = vsel %vm1295, %v5285, %v5286
      %v5288 = vrot.slane %v5242, 1
      %v5289 = vrot.slane %v4970, 1
      %v5290 = vsel %vm1295, %v5288, %v5289
      %v5292 = vsel %vm2336, %v3915, %v4172
      %v5294 = vsel %vm2336, %v3916, %v4174
      %v5296 = vsel %vm2336, %v3917, %v4176
      %v5298 = vsel %vm2336, %v3918, %v4178
      %v5300 = vsel %vm2336, %v3919, %v4180
      %v5302 = vsel %vm2336, %v3920, %v4182
      %v5304 = vsel %vm2336, %v3921, %v4184
      %v5306 = vsel %vm2336, %v3922, %v4186
      %v5308 = vsel %vm2336, %v3923, %v4188
      %v5310 = vsel %vm2336, %v3924, %v4190
      %v5312 = vsel %vm2336, %v3925, %v4192
      %v5314 = vsel %vm2336, %v3926, %v4194
      %v5316 = vsel %vm2336, %v3927, %v4196
      %v5318 = vsel %vm2336, %v3928, %v4198
      %v5320 = vsel %vm2336, %v3929, %v4200
      %v5322 = vsel %vm2336, %v3930, %v4202
      %v5324 = vsel %vm2369, %v5292, %v4300
      %v5326 = vsel %vm2369, %v5294, %v4302
      %v5328 = vsel %vm2369, %v5296, %v4304
      %v5330 = vsel %vm2369, %v5298, %v4306
      %v5332 = vsel %vm2369, %v5300, %v4308
      %v5334 = vsel %vm2369, %v5302, %v4310
      %v5336 = vsel %vm2369, %v5304, %v4312
      %v5338 = vsel %vm2369, %v5306, %v4314
      %v5340 = vsel %vm2369, %v5308, %v4316
      %v5342 = vsel %vm2369, %v5310, %v4318
      %v5344 = vsel %vm2369, %v5312, %v4320
      %v5346 = vsel %vm2369, %v5314, %v4322
      %v5348 = vsel %vm2369, %v5316, %v4324
      %v5350 = vsel %vm2369, %v5318, %v4326
      %v5352 = vsel %vm2369, %v5320, %v4328
      %v5354 = vsel %vm2369, %v5322, %v4330
      %v5356 = vsel %vm2402, %v5324, %v4412
      %v5359 = vsel %vm2402, %v5326, %v4414
      %v5362 = vsel %vm2402, %v5328, %v4416
      %v5365 = vsel %vm2402, %v5330, %v4418
      %v5368 = vsel %vm2402, %v5332, %v4420
      %v5371 = vsel %vm2402, %v5334, %v4422
      %v5374 = vsel %vm2402, %v5336, %v4424
      %v5377 = vsel %vm2402, %v5338, %v4426
      %v5380 = vsel %vm2402, %v5340, %v4428
      %v5383 = vsel %vm2402, %v5342, %v4430
      %v5386 = vsel %vm2402, %v5344, %v4432
      %v5389 = vsel %vm2402, %v5346, %v4434
      %v5392 = vsel %vm2402, %v5348, %v4436
      %v5395 = vsel %vm2402, %v5350, %v4438
      %v5398 = vsel %vm2402, %v5352, %v4440
      %v5401 = vsel %vm2402, %v5354, %v4442
      %v5405 = vsel %vm2336, %v4502, %v4780
      %v5408 = vsel %vm2336, %v4514, %v4782
      %v5411 = vsel %vm2336, %v4526, %v4784
      %v5414 = vsel %vm2336, %v4538, %v4786
      %v5417 = vsel %vm2336, %v4550, %v4788
      %v5420 = vsel %vm2336, %v4562, %v4790
      %v5423 = vsel %vm2336, %v4574, %v4792
      %v5426 = vsel %vm2336, %v4586, %v4794
      %v5429 = vsel %vm2336, %v4598, %v4796
      %v5432 = vsel %vm2336, %v4610, %v4798
      %v5435 = vsel %vm2336, %v4622, %v4800
      %v5438 = vsel %vm2336, %v4634, %v4802
      %v5441 = vsel %vm2336, %v4646, %v4804
      %v5444 = vsel %vm2336, %v4658, %v4806
      %v5447 = vsel %vm2336, %v4670, %v4808
      %v5450 = vsel %vm2336, %v4682, %v4810
      %v5452 = vsel %vm2369, %v5405, %v4892
      %v5454 = vsel %vm2369, %v5408, %v4894
      %v5456 = vsel %vm2369, %v5411, %v4896
      %v5458 = vsel %vm2369, %v5414, %v4898
      %v5460 = vsel %vm2369, %v5417, %v4900
      %v5462 = vsel %vm2369, %v5420, %v4902
      %v5464 = vsel %vm2369, %v5423, %v4904
      %v5466 = vsel %vm2369, %v5426, %v4906
      %v5468 = vsel %vm2369, %v5429, %v4908
      %v5470 = vsel %vm2369, %v5432, %v4910
      %v5472 = vsel %vm2369, %v5435, %v4912
      %v5474 = vsel %vm2369, %v5438, %v4914
      %v5476 = vsel %vm2369, %v5441, %v4916
      %v5478 = vsel %vm2369, %v5444, %v4918
      %v5480 = vsel %vm2369, %v5447, %v4920
      %v5482 = vsel %vm2369, %v5450, %v4922
      %v5484 = vsel %vm2402, %v5452, %v5164
      %v5487 = vsel %vm2402, %v5454, %v5166
      %v5490 = vsel %vm2402, %v5456, %v5168
      %v5493 = vsel %vm2402, %v5458, %v5170
      %v5496 = vsel %vm2402, %v5460, %v5172
      %v5499 = vsel %vm2402, %v5462, %v5174
      %v5502 = vsel %vm2402, %v5464, %v5176
      %v5505 = vsel %vm2402, %v5466, %v5178
      %v5508 = vsel %vm2402, %v5468, %v5180
      %v5511 = vsel %vm2402, %v5470, %v5182
      %v5514 = vsel %vm2402, %v5472, %v5184
      %v5517 = vsel %vm2402, %v5474, %v5186
      %v5520 = vsel %vm2402, %v5476, %v5188
      %v5523 = vsel %vm2402, %v5478, %v5190
      %v5526 = vsel %vm2402, %v5480, %v5192
      %v5529 = vsel %vm2402, %v5482, %v5194
      %s5531 = scalar_lea.vmem %s1, 144
      %v5532 = vld [vmem:[%s5531] sm:$0xf]
      %v5533 = vld [vmem:[%s5531 + $0x4] sm:$0xf]
      %v5534 = vld [vmem:[%s5531 + $0x8] sm:$0xf]
      %v5535 = vld [vmem:[%s5531 + $0xc] sm:$0xf]
      %v5536 = vld [vmem:[%s5531 + $0x10] sm:$0xf]
      %v5537 = vld [vmem:[%s5531 + $0x14] sm:$0xf]
      %v5538 = vld [vmem:[%s5531 + $0x18] sm:$0xf]
      %v5539 = vld [vmem:[%s5531 + $0x1c] sm:$0xf]
      %v5540 = vld [vmem:[%s5531 + $0x20] sm:$0xf]
      %v5541 = vld [vmem:[%s5531 + $0x24] sm:$0xf]
      %v5542 = vld [vmem:[%s5531 + $0x28] sm:$0xf]
      %v5543 = vld [vmem:[%s5531 + $0x2c] sm:$0xf]
      %v5544 = vld [vmem:[%s5531 + $0x30] sm:$0xf]
      %v5545 = vld [vmem:[%s5531 + $0x34] sm:$0xf]
      %v5546 = vld [vmem:[%s5531 + $0x38] sm:$0xf]
      %v5547 = vld [vmem:[%s5531 + $0x3c] sm:$0xf]
      %v5548 = vld [vmem:[%s5531 + $0x40] sm:$0xf]
      %v5549 = vld [vmem:[%s5531 + $0x44] sm:$0xf]
      %v5550 = vld [vmem:[%s5531 + $0x48] sm:$0xf]
      %v5551 = vld [vmem:[%s5531 + $0x4c] sm:$0xf]
      %v5552 = vld [vmem:[%s5531 + $0x50] sm:$0xf]
      %v5553 = vld [vmem:[%s5531 + $0x54] sm:$0xf]
      %v5554 = vld [vmem:[%s5531 + $0x58] sm:$0xf]
      %v5555 = vld [vmem:[%s5531 + $0x5c] sm:$0xf]
      %v5556 = vld [vmem:[%s5531 + $0x60] sm:$0xf]
      %v5557 = vld [vmem:[%s5531 + $0x64] sm:$0xf]
      %v5558 = vld [vmem:[%s5531 + $0x68] sm:$0xf]
      %v5559 = vld [vmem:[%s5531 + $0x6c] sm:$0xf]
      %v5560 = vld [vmem:[%s5531 + $0x70] sm:$0xf]
      %v5561 = vld [vmem:[%s5531 + $0x74] sm:$0xf]
      %v5562 = vld [vmem:[%s5531 + $0x78] sm:$0xf]
      %v5563 = vld [vmem:[%s5531 + $0x7c] sm:$0xf]
      %v5564 = vld [vmem:[%s5531 + $0x80] sm:$0xf]
      %v5565 = vld [vmem:[%s5531 + $0x84] sm:$0xf]
      %v5566 = vld [vmem:[%s5531 + $0x88] sm:$0xf]
      %v5567 = vld [vmem:[%s5531 + $0x8c] sm:$0xf]
      %s5568 = scalar_lea.vmem %s2, 1
      %v5569 = vld [vmem:[%s5568] sm:$0x1]
      %v5571 = vlaneseq
      %v5572 = vshrl.u32 %v5571, 7
      %v5573 = vsub.s32 0, %v5572
      %v5574 = vrot.slane %v5569, %v5573
      %v5612 = vunpack.c.l.b16 %v5532
      %v5613 = vunpack.c.l.b16 %v5533
      %v5614 = vunpack.c.l.b16 %v5534
      %v5615 = vunpack.c.l.b16 %v5535
      %v5616 = vunpack.c.l.b16 %v5536
      %v5617 = vunpack.c.l.b16 %v5537
      %v5618 = vunpack.c.l.b16 %v5538
      %v5619 = vunpack.c.l.b16 %v5539
      %v5620 = vunpack.c.l.b16 %v5540
      %v5621 = vunpack.c.l.b16 %v5541
      %v5622 = vunpack.c.l.b16 %v5542
      %v5623 = vunpack.c.l.b16 %v5543
      %v5624 = vunpack.c.l.b16 %v5544
      %v5625 = vunpack.c.l.b16 %v5545
      %v5626 = vunpack.c.l.b16 %v5546
      %v5627 = vunpack.c.l.b16 %v5547
      %v5628 = vunpack.c.l.b16 %v5548
      %v5629 = vunpack.c.l.b16 %v5549
      %v5630 = vunpack.c.l.b16 %v5550
      %v5631 = vunpack.c.l.b16 %v5551
      %v5632 = vunpack.c.l.b16 %v5552
      %v5633 = vunpack.c.l.b16 %v5553
      %v5634 = vunpack.c.l.b16 %v5554
      %v5635 = vunpack.c.l.b16 %v5555
      %v5636 = vunpack.c.l.b16 %v5556
      %v5637 = vunpack.c.l.b16 %v5557
      %v5638 = vunpack.c.l.b16 %v5558
      %v5639 = vunpack.c.l.b16 %v5559
      %v5640 = vunpack.c.l.b16 %v5560
      %v5641 = vunpack.c.l.b16 %v5561
      %v5642 = vunpack.c.l.b16 %v5562
      %v5643 = vunpack.c.l.b16 %v5563
      %v5644 = vunpack.c.l.b16 %v5564
      %v5645 = vunpack.c.l.b16 %v5565
      %v5646 = vunpack.c.l.b16 %v5566
      %v5647 = vunpack.c.l.b16 %v5567
      %v5648 = vpack.c.b16 %v5613, %v5612
      %v5649 = vpack.c.b16 %v5615, %v5614
      %v5650 = vpack.c.b16 %v5617, %v5616
      %v5651 = vpack.c.b16 %v5619, %v5618
      %v5652 = vpack.c.b16 %v5621, %v5620
      %v5653 = vpack.c.b16 %v5623, %v5622
      %v5654 = vpack.c.b16 %v5625, %v5624
      %v5655 = vpack.c.b16 %v5627, %v5626
      %v5656 = vpack.c.b16 %v5629, %v5628
      %v5657 = vpack.c.b16 %v5631, %v5630
      %v5658 = vpack.c.b16 %v5633, %v5632
      %v5659 = vpack.c.b16 %v5635, %v5634
      %v5660 = vpack.c.b16 %v5637, %v5636
      %v5661 = vpack.c.b16 %v5639, %v5638
      %v5662 = vpack.c.b16 %v5641, %v5640
      %v5663 = vpack.c.b16 %v5643, %v5642
      %v5664 = vpack.c.b16 %v5645, %v5644
      %v5665 = vpack.c.b16 %v5647, %v5646
      %v5685 = vsel %vm2336, %v5245, 0
      %v5688 = vsel %vm2336, %v5248, 0
      %v5691 = vsel %vm2336, %v5251, 0
      %v5694 = vsel %vm2336, %v5254, 0
      %v5697 = vsel %vm2336, %v5257, 0
      %v5700 = vsel %vm2336, %v5260, 0
      %v5703 = vsel %vm2336, %v5263, 0
      %v5706 = vsel %vm2336, %v5266, 0
      %v5709 = vsel %vm2336, %v5269, 0
      %v5712 = vsel %vm2336, %v5272, 0
      %v5715 = vsel %vm2336, %v5275, 0
      %v5718 = vsel %vm2336, %v5278, 0
      %v5721 = vsel %vm2336, %v5281, 0
      %v5724 = vsel %vm2336, %v5284, 0
      %v5727 = vsel %vm2336, %v5287, 0
      %v5730 = vsel %vm2336, %v5290, 0
      %5732 = vmatprep.subr.bf16.mxu0 0
      %5733 = vmatpush1.bf16.msra.mxu0 %v5655
      %5734 = vmatprep.subr.bf16.mxu0 0
      %5735 = vmatpush1.bf16.msra.mxu0 %v5654
      %5736 = vmatprep.subr.bf16.mxu0 0
      %5737 = vmatpush1.bf16.msra.mxu0 %v5653
      %5738 = vmatprep.subr.bf16.mxu0 0
      %5739 = vmatpush1.bf16.msra.mxu0 %v5652
      %5740 = vmatprep.subr.bf16.mxu0 0
      %5741 = vmatpush1.bf16.msra.mxu0 %v5651
      %5742 = vmatprep.subr.bf16.mxu0 0
      %5743 = vmatpush1.bf16.msra.mxu0 %v5650
      %5744 = vmatprep.subr.bf16.mxu0 0
      %5745 = vmatpush1.bf16.msra.mxu0 %v5649
      %5746 = vmatprep.subr.bf16.mxu0 0
      %5747 = vmatpush1.bf16.msra.mxu0 %v5648
      %5748 = vmatprep.subr.bf16.mxu0 0
      %5749 = vmatpush2.bf16.msra.mxu0 %v5663
      %5750 = vmatprep.subr.bf16.mxu0 0
      %5751 = vmatpush2.bf16.msra.mxu0 %v5662
      %5752 = vmatprep.subr.bf16.mxu0 0
      %5753 = vmatpush2.bf16.msra.mxu0 %v5661
      %5754 = vmatprep.subr.bf16.mxu0 0
      %5755 = vmatpush2.bf16.msra.mxu0 %v5660
      %5756 = vmatprep.subr.bf16.mxu0 0
      %5757 = vmatpush2.bf16.msra.mxu0 %v5659
      %5758 = vmatprep.subr.bf16.mxu0 0
      %5759 = vmatpush2.bf16.msra.mxu0 %v5658
      %5760 = vmatprep.subr.bf16.mxu0 0
      %5761 = vmatpush2.bf16.msra.mxu0 %v5657
      %5762 = vmatprep.subr.bf16.mxu0 0
      %5763 = vmatpush2.bf16.msra.mxu0 %v5656
      %5764 = vmatprep.mubr.bf16.mxu0 %v5484
      %5765 = vmatmul.mubr.bf16.gmra.mxu0 %v5356
      %v5766 = vpop.f32.mrf.mxu0
      %v5767 = vadd.f32 %v5574, %v5766
      %v5768 = vpop.f32.mrf.mxu0
      %v5769 = vpop.f32.mrf.mxu0
      %v5770 = vadd.f32 %v5574, %v5769
      %v5771 = vpop.f32.mrf.mxu0
      %5772 = vmatprep.mubr.bf16.mxu0 %v5487
      %5773 = vmatmul.mubr.bf16.gmra.mxu0 %v5359
      %v5774 = vpop.f32.mrf.mxu0
      %v5775 = vadd.f32 %v5574, %v5774
      %v5776 = vpop.f32.mrf.mxu0
      %v5777 = vpop.f32.mrf.mxu0
      %v5778 = vadd.f32 %v5574, %v5777
      %v5779 = vpop.f32.mrf.mxu0
      %5780 = vmatprep.mubr.bf16.mxu0 %v5490
      %5781 = vmatmul.mubr.bf16.gmra.mxu0 %v5362
      %v5782 = vpop.f32.mrf.mxu0
      %v5783 = vadd.f32 %v5574, %v5782
      %v5784 = vpop.f32.mrf.mxu0
      %v5785 = vpop.f32.mrf.mxu0
      %v5786 = vadd.f32 %v5574, %v5785
      %v5787 = vpop.f32.mrf.mxu0
      %5788 = vmatprep.mubr.bf16.mxu0 %v5493
      %5789 = vmatmul.mubr.bf16.gmra.mxu0 %v5365
      %v5790 = vpop.f32.mrf.mxu0
      %v5791 = vadd.f32 %v5574, %v5790
      %v5792 = vpop.f32.mrf.mxu0
      %v5793 = vpop.f32.mrf.mxu0
      %v5794 = vadd.f32 %v5574, %v5793
      %v5795 = vpop.f32.mrf.mxu0
      %5796 = vmatprep.mubr.bf16.mxu0 %v5496
      %5797 = vmatmul.mubr.bf16.gmra.mxu0 %v5368
      %v5798 = vpop.f32.mrf.mxu0
      %v5799 = vadd.f32 %v5574, %v5798
      %v5800 = vpop.f32.mrf.mxu0
      %v5801 = vpop.f32.mrf.mxu0
      %v5802 = vadd.f32 %v5574, %v5801
      %v5803 = vpop.f32.mrf.mxu0
      %5804 = vmatprep.mubr.bf16.mxu0 %v5499
      %5805 = vmatmul.mubr.bf16.gmra.mxu0 %v5371
      %v5806 = vpop.f32.mrf.mxu0
      %v5807 = vadd.f32 %v5574, %v5806
      %v5808 = vpop.f32.mrf.mxu0
      %v5809 = vpop.f32.mrf.mxu0
      %v5810 = vadd.f32 %v5574, %v5809
      %v5811 = vpop.f32.mrf.mxu0
      %5812 = vmatprep.mubr.bf16.mxu0 %v5502
      %5813 = vmatmul.mubr.bf16.gmra.mxu0 %v5374
      %v5814 = vpop.f32.mrf.mxu0
      %v5815 = vadd.f32 %v5574, %v5814
      %v5816 = vpop.f32.mrf.mxu0
      %v5817 = vpop.f32.mrf.mxu0
      %v5818 = vadd.f32 %v5574, %v5817
      %v5819 = vpop.f32.mrf.mxu0
      %5820 = vmatprep.mubr.bf16.mxu0 %v5505
      %5821 = vmatmul.mubr.bf16.gmra.mxu0 %v5377
      %v5822 = vpop.f32.mrf.mxu0
      %v5823 = vadd.f32 %v5574, %v5822
      %v5824 = vpop.f32.mrf.mxu0
      %v5825 = vpop.f32.mrf.mxu0
      %v5826 = vadd.f32 %v5574, %v5825
      %v5827 = vpop.f32.mrf.mxu0
      %5828 = vmatprep.mubr.bf16.mxu0 %v5508
      %5829 = vmatmul.mubr.bf16.gmra.mxu0 %v5380
      %v5830 = vpop.f32.mrf.mxu0
      %v5831 = vadd.f32 %v5574, %v5830
      %v5832 = vpop.f32.mrf.mxu0
      %v5833 = vpop.f32.mrf.mxu0
      %v5834 = vadd.f32 %v5574, %v5833
      %v5835 = vpop.f32.mrf.mxu0
      %5836 = vmatprep.mubr.bf16.mxu0 %v5511
      %5837 = vmatmul.mubr.bf16.gmra.mxu0 %v5383
      %v5838 = vpop.f32.mrf.mxu0
      %v5839 = vadd.f32 %v5574, %v5838
      %v5840 = vpop.f32.mrf.mxu0
      %v5841 = vpop.f32.mrf.mxu0
      %v5842 = vadd.f32 %v5574, %v5841
      %v5843 = vpop.f32.mrf.mxu0
      %5844 = vmatprep.mubr.bf16.mxu0 %v5514
      %5845 = vmatmul.mubr.bf16.gmra.mxu0 %v5386
      %v5846 = vpop.f32.mrf.mxu0
      %v5847 = vadd.f32 %v5574, %v5846
      %v5848 = vpop.f32.mrf.mxu0
      %v5849 = vpop.f32.mrf.mxu0
      %v5850 = vadd.f32 %v5574, %v5849
      %v5851 = vpop.f32.mrf.mxu0
      %5852 = vmatprep.mubr.bf16.mxu0 %v5517
      %5853 = vmatmul.mubr.bf16.gmra.mxu0 %v5389
      %v5854 = vpop.f32.mrf.mxu0
      %v5855 = vadd.f32 %v5574, %v5854
      %v5856 = vpop.f32.mrf.mxu0
      %v5857 = vpop.f32.mrf.mxu0
      %v5858 = vadd.f32 %v5574, %v5857
      %v5859 = vpop.f32.mrf.mxu0
      %5860 = vmatprep.mubr.bf16.mxu0 %v5520
      %5861 = vmatmul.mubr.bf16.gmra.mxu0 %v5392
      %v5862 = vpop.f32.mrf.mxu0
      %v5863 = vadd.f32 %v5574, %v5862
      %v5864 = vpop.f32.mrf.mxu0
      %v5865 = vpop.f32.mrf.mxu0
      %v5866 = vadd.f32 %v5574, %v5865
      %v5867 = vpop.f32.mrf.mxu0
      %5868 = vmatprep.mubr.bf16.mxu0 %v5523
      %5869 = vmatmul.mubr.bf16.gmra.mxu0 %v5395
      %v5870 = vpop.f32.mrf.mxu0
      %v5871 = vadd.f32 %v5574, %v5870
      %v5872 = vpop.f32.mrf.mxu0
      %v5873 = vpop.f32.mrf.mxu0
      %v5874 = vadd.f32 %v5574, %v5873
      %v5875 = vpop.f32.mrf.mxu0
      %5876 = vmatprep.mubr.bf16.mxu0 %v5526
      %5877 = vmatmul.mubr.bf16.gmra.mxu0 %v5398
      %v5878 = vpop.f32.mrf.mxu0
      %v5879 = vadd.f32 %v5574, %v5878
      %v5880 = vpop.f32.mrf.mxu0
      %v5881 = vpop.f32.mrf.mxu0
      %v5882 = vadd.f32 %v5574, %v5881
      %v5883 = vpop.f32.mrf.mxu0
      %5884 = vmatprep.mubr.bf16.mxu0 %v5529
      %5885 = vmatmul.mubr.bf16.gmra.mxu0 %v5401
      %v5886 = vpop.f32.mrf.mxu0
      %v5887 = vadd.f32 %v5574, %v5886
      %v5888 = vpop.f32.mrf.mxu0
      %v5889 = vpop.f32.mrf.mxu0
      %v5890 = vadd.f32 %v5574, %v5889
      %v5891 = vpop.f32.mrf.mxu0
      %5892 = vdwg.mxu0
      %5893 = vmatprep.subr.bf16.mxu0 0
      %5894 = vmatpush1.bf16.msra.mxu0 0
      %5895 = vmatprep.subr.bf16.mxu0 0
      %5896 = vmatpush1.bf16.msra.mxu0 0
      %5897 = vmatprep.subr.bf16.mxu0 0
      %5898 = vmatpush1.bf16.msra.mxu0 0
      %5899 = vmatprep.subr.bf16.mxu0 0
      %5900 = vmatpush1.bf16.msra.mxu0 0
      %5901 = vmatprep.subr.bf16.mxu0 0
      %5902 = vmatpush1.bf16.msra.mxu0 0
      %5903 = vmatprep.subr.bf16.mxu0 0
      %5904 = vmatpush1.bf16.msra.mxu0 0
      %5905 = vmatprep.subr.bf16.mxu0 0
      %5906 = vmatpush1.bf16.msra.mxu0 %v5665
      %5907 = vmatprep.subr.bf16.mxu0 0
      %5908 = vmatpush1.bf16.msra.mxu0 %v5664
      %5909 = vmatprep.subr.bf16.mxu0 0
      %5910 = vmatpush2.bf16.msra.mxu0 0
      %5911 = vmatprep.subr.bf16.mxu0 0
      %5912 = vmatpush2.bf16.msra.mxu0 0
      %5913 = vmatprep.subr.bf16.mxu0 0
      %5914 = vmatpush2.bf16.msra.mxu0 0
      %5915 = vmatprep.subr.bf16.mxu0 0
      %5916 = vmatpush2.bf16.msra.mxu0 0
      %5917 = vmatprep.subr.bf16.mxu0 0
      %5918 = vmatpush2.bf16.msra.mxu0 0
      %5919 = vmatprep.subr.bf16.mxu0 0
      %5920 = vmatpush2.bf16.msra.mxu0 0
      %5921 = vmatprep.subr.bf16.mxu0 0
      %5922 = vmatpush2.bf16.msra.mxu0 0
      %5923 = vmatprep.subr.bf16.mxu0 0
      %5924 = vmatpush2.bf16.msra.mxu0 0
      %5925 = vmatprep.mubr.bf16.mxu0 0
      %5926 = vmatmul.mubr.bf16.gmra.mxu0 %v5685
      %v5927 = vpop.f32.mrf.mxu0
      %v5928 = vadd.f32 %v5767, %v5927
      %v5929 = vpop.f32.mrf.mxu0
      %v5930 = vpop.f32.mrf.mxu0
      %v5931 = vadd.f32 %v5770, %v5930
      %v5932 = vpop.f32.mrf.mxu0
      %5933 = vmatprep.mubr.bf16.mxu0 0
      %5934 = vmatmul.mubr.bf16.gmra.mxu0 %v5688
      %v5935 = vpop.f32.mrf.mxu0
      %v5936 = vadd.f32 %v5775, %v5935
      %v5937 = vpop.f32.mrf.mxu0
      %v5938 = vpop.f32.mrf.mxu0
      %v5939 = vadd.f32 %v5778, %v5938
      %v5940 = vpop.f32.mrf.mxu0
      %5941 = vmatprep.mubr.bf16.mxu0 0
      %5942 = vmatmul.mubr.bf16.gmra.mxu0 %v5691
      %v5943 = vpop.f32.mrf.mxu0
      %v5944 = vadd.f32 %v5783, %v5943
      %v5945 = vpop.f32.mrf.mxu0
      %v5946 = vpop.f32.mrf.mxu0
      %v5947 = vadd.f32 %v5786, %v5946
      %v5948 = vpop.f32.mrf.mxu0
      %5949 = vmatprep.mubr.bf16.mxu0 0
      %5950 = vmatmul.mubr.bf16.gmra.mxu0 %v5694
      %v5951 = vpop.f32.mrf.mxu0
      %v5952 = vadd.f32 %v5791, %v5951
      %v5953 = vpop.f32.mrf.mxu0
      %v5954 = vpop.f32.mrf.mxu0
      %v5955 = vadd.f32 %v5794, %v5954
      %v5956 = vpop.f32.mrf.mxu0
      %5957 = vmatprep.mubr.bf16.mxu0 0
      %5958 = vmatmul.mubr.bf16.gmra.mxu0 %v5697
      %v5959 = vpop.f32.mrf.mxu0
      %v5960 = vadd.f32 %v5799, %v5959
      %v5961 = vpop.f32.mrf.mxu0
      %v5962 = vpop.f32.mrf.mxu0
      %v5963 = vadd.f32 %v5802, %v5962
      %v5964 = vpop.f32.mrf.mxu0
      %5965 = vmatprep.mubr.bf16.mxu0 0
      %5966 = vmatmul.mubr.bf16.gmra.mxu0 %v5700
      %v5967 = vpop.f32.mrf.mxu0
      %v5968 = vadd.f32 %v5807, %v5967
      %v5969 = vpop.f32.mrf.mxu0
      %v5970 = vpop.f32.mrf.mxu0
      %v5971 = vadd.f32 %v5810, %v5970
      %v5972 = vpop.f32.mrf.mxu0
      %5973 = vmatprep.mubr.bf16.mxu0 0
      %5974 = vmatmul.mubr.bf16.gmra.mxu0 %v5703
      %v5975 = vpop.f32.mrf.mxu0
      %v5976 = vadd.f32 %v5815, %v5975
      %v5977 = vpop.f32.mrf.mxu0
      %v5978 = vpop.f32.mrf.mxu0
      %v5979 = vadd.f32 %v5818, %v5978
      %v5980 = vpop.f32.mrf.mxu0
      %5981 = vmatprep.mubr.bf16.mxu0 0
      %5982 = vmatmul.mubr.bf16.gmra.mxu0 %v5706
      %v5983 = vpop.f32.mrf.mxu0
      %v5984 = vadd.f32 %v5823, %v5983
      %v5985 = vpop.f32.mrf.mxu0
      %v5986 = vpop.f32.mrf.mxu0
      %v5987 = vadd.f32 %v5826, %v5986
      %v5988 = vpop.f32.mrf.mxu0
      %5989 = vmatprep.mubr.bf16.mxu0 0
      %5990 = vmatmul.mubr.bf16.gmra.mxu0 %v5709
      %v5991 = vpop.f32.mrf.mxu0
      %v5992 = vadd.f32 %v5831, %v5991
      %v5993 = vpop.f32.mrf.mxu0
      %v5994 = vpop.f32.mrf.mxu0
      %v5995 = vadd.f32 %v5834, %v5994
      %v5996 = vpop.f32.mrf.mxu0
      %5997 = vmatprep.mubr.bf16.mxu0 0
      %5998 = vmatmul.mubr.bf16.gmra.mxu0 %v5712
      %v5999 = vpop.f32.mrf.mxu0
      %v6000 = vadd.f32 %v5839, %v5999
      %v6001 = vpop.f32.mrf.mxu0
      %v6002 = vpop.f32.mrf.mxu0
      %v6003 = vadd.f32 %v5842, %v6002
      %v6004 = vpop.f32.mrf.mxu0
      %6005 = vmatprep.mubr.bf16.mxu0 0
      %6006 = vmatmul.mubr.bf16.gmra.mxu0 %v5715
      %v6007 = vpop.f32.mrf.mxu0
      %v6008 = vadd.f32 %v5847, %v6007
      %v6009 = vpop.f32.mrf.mxu0
      %v6010 = vpop.f32.mrf.mxu0
      %v6011 = vadd.f32 %v5850, %v6010
      %v6012 = vpop.f32.mrf.mxu0
      %6013 = vmatprep.mubr.bf16.mxu0 0
      %6014 = vmatmul.mubr.bf16.gmra.mxu0 %v5718
      %v6015 = vpop.f32.mrf.mxu0
      %v6016 = vadd.f32 %v5855, %v6015
      %v6017 = vpop.f32.mrf.mxu0
      %v6018 = vpop.f32.mrf.mxu0
      %v6019 = vadd.f32 %v5858, %v6018
      %v6020 = vpop.f32.mrf.mxu0
      %6021 = vmatprep.mubr.bf16.mxu0 0
      %6022 = vmatmul.mubr.bf16.gmra.mxu0 %v5721
      %v6023 = vpop.f32.mrf.mxu0
      %v6024 = vadd.f32 %v5863, %v6023
      %v6025 = vpop.f32.mrf.mxu0
      %v6026 = vpop.f32.mrf.mxu0
      %v6027 = vadd.f32 %v5866, %v6026
      %v6028 = vpop.f32.mrf.mxu0
      %6029 = vmatprep.mubr.bf16.mxu0 0
      %6030 = vmatmul.mubr.bf16.gmra.mxu0 %v5724
      %v6031 = vpop.f32.mrf.mxu0
      %v6032 = vadd.f32 %v5871, %v6031
      %v6033 = vpop.f32.mrf.mxu0
      %v6034 = vpop.f32.mrf.mxu0
      %v6035 = vadd.f32 %v5874, %v6034
      %v6036 = vpop.f32.mrf.mxu0
      %6037 = vmatprep.mubr.bf16.mxu0 0
      %6038 = vmatmul.mubr.bf16.gmra.mxu0 %v5727
      %v6039 = vpop.f32.mrf.mxu0
      %v6040 = vadd.f32 %v5879, %v6039
      %v6041 = vpop.f32.mrf.mxu0
      %v6042 = vpop.f32.mrf.mxu0
      %v6043 = vadd.f32 %v5882, %v6042
      %v6044 = vpop.f32.mrf.mxu0
      %6045 = vmatprep.mubr.bf16.mxu0 0
      %6046 = vmatmul.mubr.bf16.gmra.mxu0 %v5730
      %v6047 = vpop.f32.mrf.mxu0
      %v6048 = vadd.f32 %v5887, %v6047
      %v6049 = vpop.f32.mrf.mxu0
      %v6050 = vpop.f32.mrf.mxu0
      %v6051 = vadd.f32 %v5890, %v6050
      %v6052 = vpop.f32.mrf.mxu0
      %6053 = vdwg.mxu0
      %v6054 = vmax.f32 %v5928, 0.0
      %v6055 = vmax.f32 %v5931, 0.0
      %v6056 = vmax.f32 %v5936, 0.0
      %v6057 = vmax.f32 %v5939, 0.0
      %v6058 = vmax.f32 %v5944, 0.0
      %v6059 = vmax.f32 %v5947, 0.0
      %v6060 = vmax.f32 %v5952, 0.0
      %v6061 = vmax.f32 %v5955, 0.0
      %v6062 = vmax.f32 %v5960, 0.0
      %v6063 = vmax.f32 %v5963, 0.0
      %v6064 = vmax.f32 %v5968, 0.0
      %v6065 = vmax.f32 %v5971, 0.0
      %v6066 = vmax.f32 %v5976, 0.0
      %v6067 = vmax.f32 %v5979, 0.0
      %v6068 = vmax.f32 %v5984, 0.0
      %v6069 = vmax.f32 %v5987, 0.0
      %v6070 = vmax.f32 %v5992, 0.0
      %v6071 = vmax.f32 %v5995, 0.0
      %v6072 = vmax.f32 %v6000, 0.0
      %v6073 = vmax.f32 %v6003, 0.0
      %v6074 = vmax.f32 %v6008, 0.0
      %v6075 = vmax.f32 %v6011, 0.0
      %v6076 = vmax.f32 %v6016, 0.0
      %v6077 = vmax.f32 %v6019, 0.0
      %v6078 = vmax.f32 %v6024, 0.0
      %v6079 = vmax.f32 %v6027, 0.0
      %v6080 = vmax.f32 %v6032, 0.0
      %v6081 = vmax.f32 %v6035, 0.0
      %v6082 = vmax.f32 %v6040, 0.0
      %v6083 = vmax.f32 %v6043, 0.0
      %v6084 = vmax.f32 %v6048, 0.0
      %v6085 = vmax.f32 %v6051, 0.0
      %v6086 = vpack.c.bf16 %v6055, %v6054
      %v6087 = vpack.c.bf16 %v6057, %v6056
      %v6088 = vpack.c.bf16 %v6059, %v6058
      %v6089 = vpack.c.bf16 %v6061, %v6060
      %v6090 = vpack.c.bf16 %v6063, %v6062
      %v6091 = vpack.c.bf16 %v6065, %v6064
      %v6092 = vpack.c.bf16 %v6067, %v6066
      %v6093 = vpack.c.bf16 %v6069, %v6068
      %v6094 = vpack.c.bf16 %v6071, %v6070
      %v6095 = vpack.c.bf16 %v6073, %v6072
      %v6096 = vpack.c.bf16 %v6075, %v6074
      %v6097 = vpack.c.bf16 %v6077, %v6076
      %v6098 = vpack.c.bf16 %v6079, %v6078
      %v6099 = vpack.c.bf16 %v6081, %v6080
      %v6100 = vpack.c.bf16 %v6083, %v6082
      %v6101 = vpack.c.bf16 %v6085, %v6084
      %v6118 = vunpack.c.l.b16 %v6086
      %v6119 = vunpack.c.h.b16 %v6086
      %v6120 = vunpack.c.l.b16 %v6087
      %v6121 = vunpack.c.h.b16 %v6087
      %v6122 = vunpack.c.l.b16 %v6088
      %v6123 = vunpack.c.h.b16 %v6088
      %v6124 = vunpack.c.l.b16 %v6089
      %v6125 = vunpack.c.h.b16 %v6089
      %v6126 = vunpack.c.l.b16 %v6090
      %v6127 = vunpack.c.h.b16 %v6090
      %v6128 = vunpack.c.l.b16 %v6091
      %v6129 = vunpack.c.h.b16 %v6091
      %v6130 = vunpack.c.l.b16 %v6092
      %v6131 = vunpack.c.h.b16 %v6092
      %v6132 = vunpack.c.l.b16 %v6093
      %v6133 = vunpack.c.h.b16 %v6093
      %v6134 = vunpack.c.l.b16 %v6094
      %v6135 = vunpack.c.h.b16 %v6094
      %v6136 = vunpack.c.l.b16 %v6095
      %v6137 = vunpack.c.h.b16 %v6095
      %v6138 = vunpack.c.l.b16 %v6096
      %v6139 = vunpack.c.h.b16 %v6096
      %v6140 = vunpack.c.l.b16 %v6097
      %v6141 = vunpack.c.h.b16 %v6097
      %v6142 = vunpack.c.l.b16 %v6098
      %v6143 = vunpack.c.h.b16 %v6098
      %v6144 = vunpack.c.l.b16 %v6099
      %v6145 = vunpack.c.h.b16 %v6099
      %v6146 = vunpack.c.l.b16 %v6100
      %v6147 = vunpack.c.h.b16 %v6100
      %v6148 = vunpack.c.l.b16 %v6101
      %v6149 = vunpack.c.h.b16 %v6101
      %v6150 = vpack.c.b16 %v6118, %v6118
      %v6151 = vpack.c.b16 %v6119, %v6119
      %v6152 = vpack.c.b16 %v6120, %v6120
      %v6153 = vpack.c.b16 %v6121, %v6121
      %v6154 = vpack.c.b16 %v6122, %v6122
      %v6155 = vpack.c.b16 %v6123, %v6123
      %v6156 = vpack.c.b16 %v6124, %v6124
      %v6157 = vpack.c.b16 %v6125, %v6125
      %v6158 = vpack.c.b16 %v6126, %v6126
      %v6159 = vpack.c.b16 %v6127, %v6127
      %v6160 = vpack.c.b16 %v6128, %v6128
      %v6161 = vpack.c.b16 %v6129, %v6129
      %v6162 = vpack.c.b16 %v6130, %v6130
      %v6163 = vpack.c.b16 %v6131, %v6131
      %v6164 = vpack.c.b16 %v6132, %v6132
      %v6165 = vpack.c.b16 %v6133, %v6133
      %v6166 = vpack.c.b16 %v6134, %v6134
      %v6167 = vpack.c.b16 %v6135, %v6135
      %v6168 = vpack.c.b16 %v6136, %v6136
      %v6169 = vpack.c.b16 %v6137, %v6137
      %v6170 = vpack.c.b16 %v6138, %v6138
      %v6171 = vpack.c.b16 %v6139, %v6139
      %v6172 = vpack.c.b16 %v6140, %v6140
      %v6173 = vpack.c.b16 %v6141, %v6141
      %v6174 = vpack.c.b16 %v6142, %v6142
      %v6175 = vpack.c.b16 %v6143, %v6143
      %v6176 = vpack.c.b16 %v6144, %v6144
      %v6177 = vpack.c.b16 %v6145, %v6145
      %v6178 = vpack.c.b16 %v6146, %v6146
      %v6179 = vpack.c.b16 %v6147, %v6147
      %v6180 = vpack.c.b16 %v6148, %v6148
      %v6181 = vpack.c.b16 %v6149, %v6149
      %v6183 = vshrl.u32 %v6150, 16
      %v6185 = vrot.slane %v6183, 7
      %v6186 = vshll.u32 %v6150, 16
      %v6188 = vor.u32 %v6185, %v6186
      %v6189 = vrot.slane %v6185, 4
      %v6191 = vshrl.u32 %v6151, 16
      %v6193 = vrot.slane %v6191, 7
      %v6194 = vshll.u32 %v6151, 16
      %v6196 = vor.u32 %v6193, %v6194
      %v6197 = vsel %vm262, %v6189, %v6196
      %v6198 = vrot.slane %v6193, 4
      %v6200 = vshrl.u32 %v6152, 16
      %v6202 = vrot.slane %v6200, 7
      %v6203 = vshll.u32 %v6152, 16
      %v6205 = vor.u32 %v6202, %v6203
      %v6206 = vrot.slane %v6202, 4
      %v6208 = vshrl.u32 %v6153, 16
      %v6210 = vrot.slane %v6208, 7
      %v6211 = vshll.u32 %v6153, 16
      %v6213 = vor.u32 %v6210, %v6211
      %v6214 = vsel %vm262, %v6206, %v6213
      %v6215 = vrot.slane %v6210, 4
      %v6217 = vshrl.u32 %v6154, 16
      %v6219 = vrot.slane %v6217, 7
      %v6220 = vshll.u32 %v6154, 16
      %v6222 = vor.u32 %v6219, %v6220
      %v6223 = vrot.slane %v6219, 4
      %v6225 = vshrl.u32 %v6155, 16
      %v6227 = vrot.slane %v6225, 7
      %v6228 = vshll.u32 %v6155, 16
      %v6230 = vor.u32 %v6227, %v6228
      %v6231 = vsel %vm262, %v6223, %v6230
      %v6232 = vrot.slane %v6227, 4
      %v6234 = vshrl.u32 %v6156, 16
      %v6236 = vrot.slane %v6234, 7
      %v6237 = vshll.u32 %v6156, 16
      %v6239 = vor.u32 %v6236, %v6237
      %v6240 = vrot.slane %v6236, 4
      %v6242 = vshrl.u32 %v6157, 16
      %v6244 = vrot.slane %v6242, 7
      %v6245 = vshll.u32 %v6157, 16
      %v6247 = vor.u32 %v6244, %v6245
      %v6248 = vsel %vm262, %v6240, %v6247
      %v6249 = vrot.slane %v6244, 4
      %v6251 = vshrl.u32 %v6158, 16
      %v6253 = vrot.slane %v6251, 7
      %v6254 = vshll.u32 %v6158, 16
      %v6256 = vor.u32 %v6253, %v6254
      %v6257 = vrot.slane %v6253, 4
      %v6259 = vshrl.u32 %v6159, 16
      %v6261 = vrot.slane %v6259, 7
      %v6262 = vshll.u32 %v6159, 16
      %v6264 = vor.u32 %v6261, %v6262
      %v6265 = vsel %vm262, %v6257, %v6264
      %v6266 = vrot.slane %v6261, 4
      %v6268 = vshrl.u32 %v6160, 16
      %v6270 = vrot.slane %v6268, 7
      %v6271 = vshll.u32 %v6160, 16
      %v6273 = vor.u32 %v6270, %v6271
      %v6274 = vrot.slane %v6270, 4
      %v6276 = vshrl.u32 %v6161, 16
      %v6278 = vrot.slane %v6276, 7
      %v6279 = vshll.u32 %v6161, 16
      %v6281 = vor.u32 %v6278, %v6279
      %v6282 = vsel %vm262, %v6274, %v6281
      %v6283 = vrot.slane %v6278, 4
      %v6285 = vshrl.u32 %v6162, 16
      %v6287 = vrot.slane %v6285, 7
      %v6288 = vshll.u32 %v6162, 16
      %v6290 = vor.u32 %v6287, %v6288
      %v6291 = vrot.slane %v6287, 4
      %v6293 = vshrl.u32 %v6163, 16
      %v6295 = vrot.slane %v6293, 7
      %v6296 = vshll.u32 %v6163, 16
      %v6298 = vor.u32 %v6295, %v6296
      %v6299 = vsel %vm262, %v6291, %v6298
      %v6300 = vrot.slane %v6295, 4
      %v6302 = vshrl.u32 %v6164, 16
      %v6304 = vrot.slane %v6302, 7
      %v6305 = vshll.u32 %v6164, 16
      %v6307 = vor.u32 %v6304, %v6305
      %v6308 = vrot.slane %v6304, 4
      %v6310 = vshrl.u32 %v6165, 16
      %v6312 = vrot.slane %v6310, 7
      %v6313 = vshll.u32 %v6165, 16
      %v6315 = vor.u32 %v6312, %v6313
      %v6316 = vsel %vm262, %v6308, %v6315
      %v6317 = vrot.slane %v6312, 4
      %v6319 = vshrl.u32 %v6166, 16
      %v6321 = vrot.slane %v6319, 7
      %v6322 = vshll.u32 %v6166, 16
      %v6324 = vor.u32 %v6321, %v6322
      %v6325 = vrot.slane %v6321, 4
      %v6327 = vshrl.u32 %v6167, 16
      %v6329 = vrot.slane %v6327, 7
      %v6330 = vshll.u32 %v6167, 16
      %v6332 = vor.u32 %v6329, %v6330
      %v6333 = vsel %vm262, %v6325, %v6332
      %v6334 = vrot.slane %v6329, 4
      %v6336 = vshrl.u32 %v6168, 16
      %v6338 = vrot.slane %v6336, 7
      %v6339 = vshll.u32 %v6168, 16
      %v6341 = vor.u32 %v6338, %v6339
      %v6342 = vrot.slane %v6338, 4
      %v6344 = vshrl.u32 %v6169, 16
      %v6346 = vrot.slane %v6344, 7
      %v6347 = vshll.u32 %v6169, 16
      %v6349 = vor.u32 %v6346, %v6347
      %v6350 = vsel %vm262, %v6342, %v6349
      %v6351 = vrot.slane %v6346, 4
      %v6353 = vshrl.u32 %v6170, 16
      %v6355 = vrot.slane %v6353, 7
      %v6356 = vshll.u32 %v6170, 16
      %v6358 = vor.u32 %v6355, %v6356
      %v6359 = vrot.slane %v6355, 4
      %v6361 = vshrl.u32 %v6171, 16
      %v6363 = vrot.slane %v6361, 7
      %v6364 = vshll.u32 %v6171, 16
      %v6366 = vor.u32 %v6363, %v6364
      %v6367 = vsel %vm262, %v6359, %v6366
      %v6368 = vrot.slane %v6363, 4
      %v6370 = vshrl.u32 %v6172, 16
      %v6372 = vrot.slane %v6370, 7
      %v6373 = vshll.u32 %v6172, 16
      %v6375 = vor.u32 %v6372, %v6373
      %v6376 = vrot.slane %v6372, 4
      %v6378 = vshrl.u32 %v6173, 16
      %v6380 = vrot.slane %v6378, 7
      %v6381 = vshll.u32 %v6173, 16
      %v6383 = vor.u32 %v6380, %v6381
      %v6384 = vsel %vm262, %v6376, %v6383
      %v6385 = vrot.slane %v6380, 4
      %v6387 = vshrl.u32 %v6174, 16
      %v6389 = vrot.slane %v6387, 7
      %v6390 = vshll.u32 %v6174, 16
      %v6392 = vor.u32 %v6389, %v6390
      %v6393 = vrot.slane %v6389, 4
      %v6395 = vshrl.u32 %v6175, 16
      %v6397 = vrot.slane %v6395, 7
      %v6398 = vshll.u32 %v6175, 16
      %v6400 = vor.u32 %v6397, %v6398
      %v6401 = vsel %vm262, %v6393, %v6400
      %v6402 = vrot.slane %v6397, 4
      %v6404 = vshrl.u32 %v6176, 16
      %v6406 = vrot.slane %v6404, 7
      %v6407 = vshll.u32 %v6176, 16
      %v6409 = vor.u32 %v6406, %v6407
      %v6410 = vrot.slane %v6406, 4
      %v6412 = vshrl.u32 %v6177, 16
      %v6414 = vrot.slane %v6412, 7
      %v6415 = vshll.u32 %v6177, 16
      %v6417 = vor.u32 %v6414, %v6415
      %v6418 = vsel %vm262, %v6410, %v6417
      %v6419 = vrot.slane %v6414, 4
      %v6421 = vshrl.u32 %v6178, 16
      %v6423 = vrot.slane %v6421, 7
      %v6424 = vshll.u32 %v6178, 16
      %v6426 = vor.u32 %v6423, %v6424
      %v6427 = vrot.slane %v6423, 4
      %v6429 = vshrl.u32 %v6179, 16
      %v6431 = vrot.slane %v6429, 7
      %v6432 = vshll.u32 %v6179, 16
      %v6434 = vor.u32 %v6431, %v6432
      %v6435 = vsel %vm262, %v6427, %v6434
      %v6436 = vrot.slane %v6431, 4
      %v6438 = vshrl.u32 %v6180, 16
      %v6440 = vrot.slane %v6438, 7
      %v6441 = vshll.u32 %v6180, 16
      %v6443 = vor.u32 %v6440, %v6441
      %v6444 = vrot.slane %v6440, 4
      %v6446 = vshrl.u32 %v6181, 16
      %v6448 = vrot.slane %v6446, 7
      %v6449 = vshll.u32 %v6181, 16
      %v6451 = vor.u32 %v6448, %v6449
      %v6452 = vsel %vm262, %v6444, %v6451
      %v6453 = vrot.slane %v6448, 4
      %v6502 = vsel %vm586, %v6188, %v3723
      %6503 = vst [vmem:[%s583] sm:$0xf] %v6502
      %6504 = vst.msk [vmem:[%s583 + $0x4] sm:$0xf] %vm172, %v6197
      %v6505 = vld [vmem:[%s583 + $0x8] sm:$0x1]
      %v6506 = vsel %vm592, %v6198, %v6505
      %6507 = vst [vmem:[%s583 + $0x8] sm:$0x1] %v6506
      %v6508 = vld [vmem:[%s583 + $0xc] sm:$0xf]
      %v6509 = vsel %vm586, %v6205, %v6508
      %6510 = vst [vmem:[%s583 + $0xc] sm:$0xf] %v6509
      %6511 = vst.msk [vmem:[%s583 + $0x10] sm:$0xf] %vm172, %v6214
      %v6512 = vld [vmem:[%s583 + $0x14] sm:$0x1]
      %v6513 = vsel %vm592, %v6215, %v6512
      %6514 = vst [vmem:[%s583 + $0x14] sm:$0x1] %v6513
      %v6515 = vld [vmem:[%s583 + $0x18] sm:$0xf]
      %v6516 = vsel %vm586, %v6222, %v6515
      %6517 = vst [vmem:[%s583 + $0x18] sm:$0xf] %v6516
      %6518 = vst.msk [vmem:[%s583 + $0x1c] sm:$0xf] %vm172, %v6231
      %v6519 = vld [vmem:[%s583 + $0x20] sm:$0x1]
      %v6520 = vsel %vm592, %v6232, %v6519
      %6521 = vst [vmem:[%s583 + $0x20] sm:$0x1] %v6520
      %v6522 = vld [vmem:[%s583 + $0x24] sm:$0xf]
      %v6523 = vsel %vm586, %v6239, %v6522
      %6524 = vst [vmem:[%s583 + $0x24] sm:$0xf] %v6523
      %6525 = vst.msk [vmem:[%s583 + $0x28] sm:$0xf] %vm172, %v6248
      %v6526 = vld [vmem:[%s583 + $0x2c] sm:$0x1]
      %v6527 = vsel %vm592, %v6249, %v6526
      %6528 = vst [vmem:[%s583 + $0x2c] sm:$0x1] %v6527
      %v6529 = vld [vmem:[%s583 + $0x30] sm:$0xf]
      %v6530 = vsel %vm586, %v6256, %v6529
      %6531 = vst [vmem:[%s583 + $0x30] sm:$0xf] %v6530
      %6532 = vst.msk [vmem:[%s583 + $0x34] sm:$0xf] %vm172, %v6265
      %v6533 = vld [vmem:[%s583 + $0x38] sm:$0x1]
      %v6534 = vsel %vm592, %v6266, %v6533
      %6535 = vst [vmem:[%s583 + $0x38] sm:$0x1] %v6534
      %v6536 = vld [vmem:[%s583 + $0x3c] sm:$0xf]
      %v6537 = vsel %vm586, %v6273, %v6536
      %6538 = vst [vmem:[%s583 + $0x3c] sm:$0xf] %v6537
      %6539 = vst.msk [vmem:[%s583 + $0x40] sm:$0xf] %vm172, %v6282
      %v6540 = vld [vmem:[%s583 + $0x44] sm:$0x1]
      %v6541 = vsel %vm592, %v6283, %v6540
      %6542 = vst [vmem:[%s583 + $0x44] sm:$0x1] %v6541
      %v6543 = vld [vmem:[%s583 + $0x48] sm:$0xf]
      %v6544 = vsel %vm586, %v6290, %v6543
      %6545 = vst [vmem:[%s583 + $0x48] sm:$0xf] %v6544
      %6546 = vst.msk [vmem:[%s583 + $0x4c] sm:$0xf] %vm172, %v6299
      %v6547 = vld [vmem:[%s583 + $0x50] sm:$0x1]
      %v6548 = vsel %vm592, %v6300, %v6547
      %6549 = vst [vmem:[%s583 + $0x50] sm:$0x1] %v6548
      %v6550 = vld [vmem:[%s583 + $0x54] sm:$0xf]
      %v6551 = vsel %vm586, %v6307, %v6550
      %6552 = vst [vmem:[%s583 + $0x54] sm:$0xf] %v6551
      %6553 = vst.msk [vmem:[%s583 + $0x58] sm:$0xf] %vm172, %v6316
      %v6554 = vld [vmem:[%s583 + $0x5c] sm:$0x1]
      %v6555 = vsel %vm592, %v6317, %v6554
      %6556 = vst [vmem:[%s583 + $0x5c] sm:$0x1] %v6555
      %v6557 = vld [vmem:[%s583 + $0x60] sm:$0xf]
      %v6558 = vsel %vm586, %v6324, %v6557
      %6559 = vst [vmem:[%s583 + $0x60] sm:$0xf] %v6558
      %6560 = vst.msk [vmem:[%s583 + $0x64] sm:$0xf] %vm172, %v6333
      %v6561 = vld [vmem:[%s583 + $0x68] sm:$0x1]
      %v6562 = vsel %vm592, %v6334, %v6561
      %6563 = vst [vmem:[%s583 + $0x68] sm:$0x1] %v6562
      %v6564 = vld [vmem:[%s583 + $0x6c] sm:$0xf]
      %v6565 = vsel %vm586, %v6341, %v6564
      %6566 = vst [vmem:[%s583 + $0x6c] sm:$0xf] %v6565
      %6567 = vst.msk [vmem:[%s583 + $0x70] sm:$0xf] %vm172, %v6350
      %v6568 = vld [vmem:[%s583 + $0x74] sm:$0x1]
      %v6569 = vsel %vm592, %v6351, %v6568
      %6570 = vst [vmem:[%s583 + $0x74] sm:$0x1] %v6569
      %v6571 = vld [vmem:[%s583 + $0x78] sm:$0xf]
      %v6572 = vsel %vm586, %v6358, %v6571
      %6573 = vst [vmem:[%s583 + $0x78] sm:$0xf] %v6572
      %6574 = vst.msk [vmem:[%s583 + $0x7c] sm:$0xf] %vm172, %v6367
      %v6575 = vld [vmem:[%s583 + $0x80] sm:$0x1]
      %v6576 = vsel %vm592, %v6368, %v6575
      %6577 = vst [vmem:[%s583 + $0x80] sm:$0x1] %v6576
      %v6578 = vld [vmem:[%s583 + $0x84] sm:$0xf]
      %v6579 = vsel %vm586, %v6375, %v6578
      %6580 = vst [vmem:[%s583 + $0x84] sm:$0xf] %v6579
      %6581 = vst.msk [vmem:[%s583 + $0x88] sm:$0xf] %vm172, %v6384
      %v6582 = vld [vmem:[%s583 + $0x8c] sm:$0x1]
      %v6583 = vsel %vm592, %v6385, %v6582
      %6584 = vst [vmem:[%s583 + $0x8c] sm:$0x1] %v6583
      %v6585 = vld [vmem:[%s583 + $0x90] sm:$0xf]
      %v6586 = vsel %vm586, %v6392, %v6585
      %6587 = vst [vmem:[%s583 + $0x90] sm:$0xf] %v6586
      %6588 = vst.msk [vmem:[%s583 + $0x94] sm:$0xf] %vm172, %v6401
      %v6589 = vld [vmem:[%s583 + $0x98] sm:$0x1]
      %v6590 = vsel %vm592, %v6402, %v6589
      %6591 = vst [vmem:[%s583 + $0x98] sm:$0x1] %v6590
      %v6592 = vld [vmem:[%s583 + $0x9c] sm:$0xf]
      %v6593 = vsel %vm586, %v6409, %v6592
      %6594 = vst [vmem:[%s583 + $0x9c] sm:$0xf] %v6593
      %6595 = vst.msk [vmem:[%s583 + $0xa0] sm:$0xf] %vm172, %v6418
      %v6596 = vld [vmem:[%s583 + $0xa4] sm:$0x1]
      %v6597 = vsel %vm592, %v6419, %v6596
      %6598 = vst [vmem:[%s583 + $0xa4] sm:$0x1] %v6597
      %v6599 = vld [vmem:[%s583 + $0xa8] sm:$0xf]
      %v6600 = vsel %vm586, %v6426, %v6599
      %6601 = vst [vmem:[%s583 + $0xa8] sm:$0xf] %v6600
      %6602 = vst.msk [vmem:[%s583 + $0xac] sm:$0xf] %vm172, %v6435
      %v6603 = vld [vmem:[%s583 + $0xb0] sm:$0x1]
      %v6604 = vsel %vm592, %v6436, %v6603
      %6605 = vst [vmem:[%s583 + $0xb0] sm:$0x1] %v6604
      %v6606 = vld [vmem:[%s583 + $0xb4] sm:$0xf]
      %v6607 = vsel %vm586, %v6443, %v6606
      %6608 = vst [vmem:[%s583 + $0xb4] sm:$0xf] %v6607
      %6609 = vst.msk [vmem:[%s583 + $0xb8] sm:$0xf] %vm172, %v6452
      %v6610 = vld [vmem:[%s583 + $0xbc] sm:$0x1]
      %v6611 = vsel %vm592, %v6453, %v6610
      %6612 = vst [vmem:[%s583 + $0xbc] sm:$0x1] %v6611
      %v6613 = vld [vmem:[#allocation2] sm:$0xf]
      %v6614 = vld [vmem:[#allocation2 + $0x4] sm:$0xf]
      %v6615 = vld [vmem:[#allocation2 + $0xc] sm:$0xf]
      %v6616 = vld [vmem:[#allocation2 + $0x10] sm:$0xf]
      %v6617 = vld [vmem:[#allocation2 + $0x18] sm:$0xf]
      %v6618 = vld [vmem:[#allocation2 + $0x1c] sm:$0xf]
      %v6619 = vld [vmem:[#allocation2 + $0x24] sm:$0xf]
      %v6620 = vld [vmem:[#allocation2 + $0x28] sm:$0xf]
      %v6621 = vld [vmem:[#allocation2 + $0x30] sm:$0xf]
      %v6622 = vld [vmem:[#allocation2 + $0x34] sm:$0xf]
      %v6623 = vld [vmem:[#allocation2 + $0x3c] sm:$0xf]
      %v6624 = vld [vmem:[#allocation2 + $0x40] sm:$0xf]
      %v6625 = vld [vmem:[#allocation2 + $0x48] sm:$0xf]
      %v6626 = vld [vmem:[#allocation2 + $0x4c] sm:$0xf]
      %v6627 = vld [vmem:[#allocation2 + $0x54] sm:$0xf]
      %v6628 = vld [vmem:[#allocation2 + $0x58] sm:$0xf]
      %v6629 = vld [vmem:[#allocation2 + $0x60] sm:$0xf]
      %v6630 = vld [vmem:[#allocation2 + $0x64] sm:$0xf]
      %v6631 = vld [vmem:[#allocation2 + $0x6c] sm:$0xf]
      %v6632 = vld [vmem:[#allocation2 + $0x70] sm:$0xf]
      %v6633 = vld [vmem:[#allocation2 + $0x78] sm:$0xf]
      %v6634 = vld [vmem:[#allocation2 + $0x7c] sm:$0xf]
      %v6635 = vld [vmem:[#allocation2 + $0x84] sm:$0xf]
      %v6636 = vld [vmem:[#allocation2 + $0x88] sm:$0xf]
      %v6637 = vld [vmem:[#allocation2 + $0x90] sm:$0xf]
      %v6638 = vld [vmem:[#allocation2 + $0x94] sm:$0xf]
      %v6639 = vld [vmem:[#allocation2 + $0x9c] sm:$0xf]
      %v6640 = vld [vmem:[#allocation2 + $0xa0] sm:$0xf]
      %v6641 = vld [vmem:[#allocation2 + $0xa8] sm:$0xf]
      %v6642 = vld [vmem:[#allocation2 + $0xac] sm:$0xf]
      %v6643 = vld [vmem:[#allocation2 + $0xb4] sm:$0xf]
      %v6644 = vld [vmem:[#allocation2 + $0xb8] sm:$0xf]
      %v6645 = vld [vmem:[#allocation2 + $0x8] sm:$0x1]
      %v6646 = vld [vmem:[#allocation2 + $0x14] sm:$0x1]
      %v6647 = vld [vmem:[#allocation2 + $0x20] sm:$0x1]
      %v6648 = vld [vmem:[#allocation2 + $0x2c] sm:$0x1]
      %v6649 = vld [vmem:[#allocation2 + $0x38] sm:$0x1]
      %v6650 = vld [vmem:[#allocation2 + $0x44] sm:$0x1]
      %v6651 = vld [vmem:[#allocation2 + $0x50] sm:$0x1]
      %v6652 = vld [vmem:[#allocation2 + $0x5c] sm:$0x1]
      %v6653 = vld [vmem:[#allocation2 + $0x68] sm:$0x1]
      %v6654 = vld [vmem:[#allocation2 + $0x74] sm:$0x1]
      %v6655 = vld [vmem:[#allocation2 + $0x80] sm:$0x1]
      %v6656 = vld [vmem:[#allocation2 + $0x8c] sm:$0x1]
      %v6657 = vld [vmem:[#allocation2 + $0x98] sm:$0x1]
      %v6658 = vld [vmem:[#allocation2 + $0xa4] sm:$0x1]
      %v6659 = vld [vmem:[#allocation2 + $0xb0] sm:$0x1]
      %v6660 = vld [vmem:[#allocation2 + $0xbc] sm:$0x1]
      %v6661 = vld [vmem:[#allocation2] sm:$0xe]
      %v6662 = vld [vmem:[#allocation2 + $0xc] sm:$0xe]
      %v6663 = vld [vmem:[#allocation2 + $0x18] sm:$0xe]
      %v6664 = vld [vmem:[#allocation2 + $0x24] sm:$0xe]
      %v6665 = vld [vmem:[#allocation2 + $0x30] sm:$0xe]
      %v6666 = vld [vmem:[#allocation2 + $0x3c] sm:$0xe]
      %v6667 = vld [vmem:[#allocation2 + $0x48] sm:$0xe]
      %v6668 = vld [vmem:[#allocation2 + $0x54] sm:$0xe]
      %v6669 = vld [vmem:[#allocation2 + $0x60] sm:$0xe]
      %v6670 = vld [vmem:[#allocation2 + $0x6c] sm:$0xe]
      %v6671 = vld [vmem:[#allocation2 + $0x78] sm:$0xe]
      %v6672 = vld [vmem:[#allocation2 + $0x84] sm:$0xe]
      %v6673 = vld [vmem:[#allocation2 + $0x90] sm:$0xe]
      %v6674 = vld [vmem:[#allocation2 + $0x9c] sm:$0xe]
      %v6675 = vld [vmem:[#allocation2 + $0xa8] sm:$0xe]
      %v6676 = vld [vmem:[#allocation2 + $0xb4] sm:$0xe]
      %v6677 = vld [vmem:[%s583] sm:$0xf]
      %v6678 = vld [vmem:[%s583 + $0x4] sm:$0xf]
      %v6679 = vld [vmem:[%s583 + $0xc] sm:$0xf]
      %v6680 = vld [vmem:[%s583 + $0x10] sm:$0xf]
      %v6681 = vld [vmem:[%s583 + $0x18] sm:$0xf]
      %v6682 = vld [vmem:[%s583 + $0x1c] sm:$0xf]
      %v6683 = vld [vmem:[%s583 + $0x24] sm:$0xf]
      %v6684 = vld [vmem:[%s583 + $0x28] sm:$0xf]
      %v6685 = vld [vmem:[%s583 + $0x30] sm:$0xf]
      %v6686 = vld [vmem:[%s583 + $0x34] sm:$0xf]
      %v6687 = vld [vmem:[%s583 + $0x3c] sm:$0xf]
      %v6688 = vld [vmem:[%s583 + $0x40] sm:$0xf]
      %v6689 = vld [vmem:[%s583 + $0x48] sm:$0xf]
      %v6690 = vld [vmem:[%s583 + $0x4c] sm:$0xf]
      %v6691 = vld [vmem:[%s583 + $0x54] sm:$0xf]
      %v6692 = vld [vmem:[%s583 + $0x58] sm:$0xf]
      %v6693 = vld [vmem:[%s583 + $0x60] sm:$0xf]
      %v6694 = vld [vmem:[%s583 + $0x64] sm:$0xf]
      %v6695 = vld [vmem:[%s583 + $0x6c] sm:$0xf]
      %v6696 = vld [vmem:[%s583 + $0x70] sm:$0xf]
      %v6697 = vld [vmem:[%s583 + $0x78] sm:$0xf]
      %v6698 = vld [vmem:[%s583 + $0x7c] sm:$0xf]
      %v6699 = vld [vmem:[%s583 + $0x84] sm:$0xf]
      %v6700 = vld [vmem:[%s583 + $0x88] sm:$0xf]
      %v6701 = vld [vmem:[%s583 + $0x90] sm:$0xf]
      %v6702 = vld [vmem:[%s583 + $0x94] sm:$0xf]
      %v6703 = vld [vmem:[%s583 + $0x9c] sm:$0xf]
      %v6704 = vld [vmem:[%s583 + $0xa0] sm:$0xf]
      %v6705 = vld [vmem:[%s583 + $0xa8] sm:$0xf]
      %v6706 = vld [vmem:[%s583 + $0xac] sm:$0xf]
      %v6707 = vld [vmem:[%s583 + $0xb4] sm:$0xf]
      %v6708 = vld [vmem:[%s583 + $0xb8] sm:$0xf]
      %v6709 = vld [vmem:[%s583 + $0x8] sm:$0x1]
      %v6710 = vld [vmem:[%s583 + $0x14] sm:$0x1]
      %v6711 = vld [vmem:[%s583 + $0x20] sm:$0x1]
      %v6712 = vld [vmem:[%s583 + $0x2c] sm:$0x1]
      %v6713 = vld [vmem:[%s583 + $0x38] sm:$0x1]
      %v6714 = vld [vmem:[%s583 + $0x44] sm:$0x1]
      %v6715 = vld [vmem:[%s583 + $0x50] sm:$0x1]
      %v6716 = vld [vmem:[%s583 + $0x5c] sm:$0x1]
      %v6717 = vld [vmem:[%s583 + $0x68] sm:$0x1]
      %v6718 = vld [vmem:[%s583 + $0x74] sm:$0x1]
      %v6719 = vld [vmem:[%s583 + $0x80] sm:$0x1]
      %v6720 = vld [vmem:[%s583 + $0x8c] sm:$0x1]
      %v6721 = vld [vmem:[%s583 + $0x98] sm:$0x1]
      %v6722 = vld [vmem:[%s583 + $0xa4] sm:$0x1]
      %v6723 = vld [vmem:[%s583 + $0xb0] sm:$0x1]
      %v6724 = vld [vmem:[%s583 + $0xbc] sm:$0x1]
      %v6725 = vld [vmem:[%s583] sm:$0xe]
      %v6726 = vld [vmem:[%s583 + $0xc] sm:$0xe]
      %v6727 = vld [vmem:[%s583 + $0x18] sm:$0xe]
      %v6728 = vld [vmem:[%s583 + $0x24] sm:$0xe]
      %v6729 = vld [vmem:[%s583 + $0x30] sm:$0xe]
      %v6730 = vld [vmem:[%s583 + $0x3c] sm:$0xe]
      %v6731 = vld [vmem:[%s583 + $0x48] sm:$0xe]
      %v6732 = vld [vmem:[%s583 + $0x54] sm:$0xe]
      %v6733 = vld [vmem:[%s583 + $0x60] sm:$0xe]
      %v6734 = vld [vmem:[%s583 + $0x6c] sm:$0xe]
      %v6735 = vld [vmem:[%s583 + $0x78] sm:$0xe]
      %v6736 = vld [vmem:[%s583 + $0x84] sm:$0xe]
      %v6737 = vld [vmem:[%s583 + $0x90] sm:$0xe]
      %v6738 = vld [vmem:[%s583 + $0x9c] sm:$0xe]
      %v6739 = vld [vmem:[%s583 + $0xa8] sm:$0xe]
      %v6740 = vld [vmem:[%s583 + $0xb4] sm:$0xe]
      %v6741 = vld [vmem:[%s829] sm:$0xf]
      %v6742 = vld [vmem:[%s829 + $0x4] sm:$0xf]
      %v6743 = vld [vmem:[%s829 + $0xc] sm:$0xf]
      %v6744 = vld [vmem:[%s829 + $0x10] sm:$0xf]
      %v6745 = vld [vmem:[%s829 + $0x18] sm:$0xf]
      %v6746 = vld [vmem:[%s829 + $0x1c] sm:$0xf]
      %v6747 = vld [vmem:[%s829 + $0x24] sm:$0xf]
      %v6748 = vld [vmem:[%s829 + $0x28] sm:$0xf]
      %v6749 = vld [vmem:[%s829 + $0x30] sm:$0xf]
      %v6750 = vld [vmem:[%s829 + $0x34] sm:$0xf]
      %v6751 = vld [vmem:[%s829 + $0x3c] sm:$0xf]
      %v6752 = vld [vmem:[%s829 + $0x40] sm:$0xf]
      %v6753 = vld [vmem:[%s829 + $0x48] sm:$0xf]
      %v6754 = vld [vmem:[%s829 + $0x4c] sm:$0xf]
      %v6755 = vld [vmem:[%s829 + $0x54] sm:$0xf]
      %v6756 = vld [vmem:[%s829 + $0x58] sm:$0xf]
      %v6757 = vld [vmem:[%s829 + $0x60] sm:$0xf]
      %v6758 = vld [vmem:[%s829 + $0x64] sm:$0xf]
      %v6759 = vld [vmem:[%s829 + $0x6c] sm:$0xf]
      %v6760 = vld [vmem:[%s829 + $0x70] sm:$0xf]
      %v6761 = vld [vmem:[%s829 + $0x78] sm:$0xf]
      %v6762 = vld [vmem:[%s829 + $0x7c] sm:$0xf]
      %v6763 = vld [vmem:[%s829 + $0x84] sm:$0xf]
      %v6764 = vld [vmem:[%s829 + $0x88] sm:$0xf]
      %v6765 = vld [vmem:[%s829 + $0x90] sm:$0xf]
      %v6766 = vld [vmem:[%s829 + $0x94] sm:$0xf]
      %v6767 = vld [vmem:[%s829 + $0x9c] sm:$0xf]
      %v6768 = vld [vmem:[%s829 + $0xa0] sm:$0xf]
      %v6769 = vld [vmem:[%s829 + $0xa8] sm:$0xf]
      %v6770 = vld [vmem:[%s829 + $0xac] sm:$0xf]
      %v6771 = vld [vmem:[%s829 + $0xb4] sm:$0xf]
      %v6772 = vld [vmem:[%s829 + $0xb8] sm:$0xf]
      %v6773 = vld [vmem:[%s829 + $0x8] sm:$0x1]
      %v6774 = vld [vmem:[%s829 + $0x14] sm:$0x1]
      %v6775 = vld [vmem:[%s829 + $0x20] sm:$0x1]
      %v6776 = vld [vmem:[%s829 + $0x2c] sm:$0x1]
      %v6777 = vld [vmem:[%s829 + $0x38] sm:$0x1]
      %v6778 = vld [vmem:[%s829 + $0x44] sm:$0x1]
      %v6779 = vld [vmem:[%s829 + $0x50] sm:$0x1]
      %v6780 = vld [vmem:[%s829 + $0x5c] sm:$0x1]
      %v6781 = vld [vmem:[%s829 + $0x68] sm:$0x1]
      %v6782 = vld [vmem:[%s829 + $0x74] sm:$0x1]
      %v6783 = vld [vmem:[%s829 + $0x80] sm:$0x1]
      %v6784 = vld [vmem:[%s829 + $0x8c] sm:$0x1]
      %v6785 = vld [vmem:[%s829 + $0x98] sm:$0x1]
      %v6786 = vld [vmem:[%s829 + $0xa4] sm:$0x1]
      %v6787 = vld [vmem:[%s829 + $0xb0] sm:$0x1]
      %v6788 = vld [vmem:[%s829 + $0xbc] sm:$0x1]
      %v6789 = vld [vmem:[%s829] sm:$0xe]
      %v6790 = vld [vmem:[%s829 + $0xc] sm:$0xe]
      %v6791 = vld [vmem:[%s829 + $0x18] sm:$0xe]
      %v6792 = vld [vmem:[%s829 + $0x24] sm:$0xe]
      %v6793 = vld [vmem:[%s829 + $0x30] sm:$0xe]
      %v6794 = vld [vmem:[%s829 + $0x3c] sm:$0xe]
      %v6795 = vld [vmem:[%s829 + $0x48] sm:$0xe]
      %v6796 = vld [vmem:[%s829 + $0x54] sm:$0xe]
      %v6797 = vld [vmem:[%s829 + $0x60] sm:$0xe]
      %v6798 = vld [vmem:[%s829 + $0x6c] sm:$0xe]
      %v6799 = vld [vmem:[%s829 + $0x78] sm:$0xe]
      %v6800 = vld [vmem:[%s829 + $0x84] sm:$0xe]
      %v6801 = vld [vmem:[%s829 + $0x90] sm:$0xe]
      %v6802 = vld [vmem:[%s829 + $0x9c] sm:$0xe]
      %v6803 = vld [vmem:[%s829 + $0xa8] sm:$0xe]
      %v6804 = vld [vmem:[%s829 + $0xb4] sm:$0xe]
      %v6837 = vunpack.c.l.b16 %v6613
      %v6838 = vunpack.c.l.b16 %v6614
      %v6839 = vunpack.c.l.b16 %v6615
      %v6840 = vunpack.c.l.b16 %v6616
      %v6841 = vunpack.c.l.b16 %v6617
      %v6842 = vunpack.c.l.b16 %v6618
      %v6843 = vunpack.c.l.b16 %v6619
      %v6844 = vunpack.c.l.b16 %v6620
      %v6845 = vunpack.c.l.b16 %v6621
      %v6846 = vunpack.c.l.b16 %v6622
      %v6847 = vunpack.c.l.b16 %v6623
      %v6848 = vunpack.c.l.b16 %v6624
      %v6849 = vunpack.c.l.b16 %v6625
      %v6850 = vunpack.c.l.b16 %v6626
      %v6851 = vunpack.c.l.b16 %v6627
      %v6852 = vunpack.c.l.b16 %v6628
      %v6853 = vunpack.c.l.b16 %v6629
      %v6854 = vunpack.c.l.b16 %v6630
      %v6855 = vunpack.c.l.b16 %v6631
      %v6856 = vunpack.c.l.b16 %v6632
      %v6857 = vunpack.c.l.b16 %v6633
      %v6858 = vunpack.c.l.b16 %v6634
      %v6859 = vunpack.c.l.b16 %v6635
      %v6860 = vunpack.c.l.b16 %v6636
      %v6861 = vunpack.c.l.b16 %v6637
      %v6862 = vunpack.c.l.b16 %v6638
      %v6863 = vunpack.c.l.b16 %v6639
      %v6864 = vunpack.c.l.b16 %v6640
      %v6865 = vunpack.c.l.b16 %v6641
      %v6866 = vunpack.c.l.b16 %v6642
      %v6867 = vunpack.c.l.b16 %v6643
      %v6868 = vunpack.c.l.b16 %v6644
      %v6869 = vpack.c.b16 %v6838, %v6837
      %v6870 = vpack.c.b16 %v6840, %v6839
      %v6871 = vpack.c.b16 %v6842, %v6841
      %v6872 = vpack.c.b16 %v6844, %v6843
      %v6873 = vpack.c.b16 %v6846, %v6845
      %v6874 = vpack.c.b16 %v6848, %v6847
      %v6875 = vpack.c.b16 %v6850, %v6849
      %v6876 = vpack.c.b16 %v6852, %v6851
      %v6877 = vpack.c.b16 %v6854, %v6853
      %v6878 = vpack.c.b16 %v6856, %v6855
      %v6879 = vpack.c.b16 %v6858, %v6857
      %v6880 = vpack.c.b16 %v6860, %v6859
      %v6881 = vpack.c.b16 %v6862, %v6861
      %v6882 = vpack.c.b16 %v6864, %v6863
      %v6883 = vpack.c.b16 %v6866, %v6865
      %v6884 = vpack.c.b16 %v6868, %v6867
      %v6901 = vunpack.c.l.b16 %v6645
      %v6902 = vunpack.c.l.b16 %v6646
      %v6903 = vunpack.c.l.b16 %v6647
      %v6904 = vunpack.c.l.b16 %v6648
      %v6905 = vunpack.c.l.b16 %v6649
      %v6906 = vunpack.c.l.b16 %v6650
      %v6907 = vunpack.c.l.b16 %v6651
      %v6908 = vunpack.c.l.b16 %v6652
      %v6909 = vunpack.c.l.b16 %v6653
      %v6910 = vunpack.c.l.b16 %v6654
      %v6911 = vunpack.c.l.b16 %v6655
      %v6912 = vunpack.c.l.b16 %v6656
      %v6913 = vunpack.c.l.b16 %v6657
      %v6914 = vunpack.c.l.b16 %v6658
      %v6915 = vunpack.c.l.b16 %v6659
      %v6916 = vunpack.c.l.b16 %v6660
      %v6917 = vpack.c.b16 %v6901, %v6901
      %v6918 = vpack.c.b16 %v6902, %v6902
      %v6919 = vpack.c.b16 %v6903, %v6903
      %v6920 = vpack.c.b16 %v6904, %v6904
      %v6921 = vpack.c.b16 %v6905, %v6905
      %v6922 = vpack.c.b16 %v6906, %v6906
      %v6923 = vpack.c.b16 %v6907, %v6907
      %v6924 = vpack.c.b16 %v6908, %v6908
      %v6925 = vpack.c.b16 %v6909, %v6909
      %v6926 = vpack.c.b16 %v6910, %v6910
      %v6927 = vpack.c.b16 %v6911, %v6911
      %v6928 = vpack.c.b16 %v6912, %v6912
      %v6929 = vpack.c.b16 %v6913, %v6913
      %v6930 = vpack.c.b16 %v6914, %v6914
      %v6931 = vpack.c.b16 %v6915, %v6915
      %v6932 = vpack.c.b16 %v6916, %v6916
      %v6934 = vshrl.u32 %v6869, 16
      %v6936 = vshll.u32 %v6869, 16
      %v6938 = vrot.slane %v6936, 1
      %v6939 = vor.u32 %v6934, %v6938
      %v6941 = vshll.u32 %v6917, 16
      %v6943 = vrot.slane %v6941, 1
      %v6944 = vsel %vm1022, %v6939, %v6943
      %v6946 = vshrl.u32 %v6870, 16
      %v6948 = vshll.u32 %v6870, 16
      %v6950 = vrot.slane %v6948, 1
      %v6951 = vor.u32 %v6946, %v6950
      %v6953 = vshll.u32 %v6918, 16
      %v6955 = vrot.slane %v6953, 1
      %v6956 = vsel %vm1022, %v6951, %v6955
      %v6958 = vshrl.u32 %v6871, 16
      %v6960 = vshll.u32 %v6871, 16
      %v6962 = vrot.slane %v6960, 1
      %v6963 = vor.u32 %v6958, %v6962
      %v6965 = vshll.u32 %v6919, 16
      %v6967 = vrot.slane %v6965, 1
      %v6968 = vsel %vm1022, %v6963, %v6967
      %v6970 = vshrl.u32 %v6872, 16
      %v6972 = vshll.u32 %v6872, 16
      %v6974 = vrot.slane %v6972, 1
      %v6975 = vor.u32 %v6970, %v6974
      %v6977 = vshll.u32 %v6920, 16
      %v6979 = vrot.slane %v6977, 1
      %v6980 = vsel %vm1022, %v6975, %v6979
      %v6982 = vshrl.u32 %v6873, 16
      %v6984 = vshll.u32 %v6873, 16
      %v6986 = vrot.slane %v6984, 1
      %v6987 = vor.u32 %v6982, %v6986
      %v6989 = vshll.u32 %v6921, 16
      %v6991 = vrot.slane %v6989, 1
      %v6992 = vsel %vm1022, %v6987, %v6991
      %v6994 = vshrl.u32 %v6874, 16
      %v6996 = vshll.u32 %v6874, 16
      %v6998 = vrot.slane %v6996, 1
      %v6999 = vor.u32 %v6994, %v6998
      %v7001 = vshll.u32 %v6922, 16
      %v7003 = vrot.slane %v7001, 1
      %v7004 = vsel %vm1022, %v6999, %v7003
      %v7006 = vshrl.u32 %v6875, 16
      %v7008 = vshll.u32 %v6875, 16
      %v7010 = vrot.slane %v7008, 1
      %v7011 = vor.u32 %v7006, %v7010
      %v7013 = vshll.u32 %v6923, 16
      %v7015 = vrot.slane %v7013, 1
      %v7016 = vsel %vm1022, %v7011, %v7015
      %v7018 = vshrl.u32 %v6876, 16
      %v7020 = vshll.u32 %v6876, 16
      %v7022 = vrot.slane %v7020, 1
      %v7023 = vor.u32 %v7018, %v7022
      %v7025 = vshll.u32 %v6924, 16
      %v7027 = vrot.slane %v7025, 1
      %v7028 = vsel %vm1022, %v7023, %v7027
      %v7030 = vshrl.u32 %v6877, 16
      %v7032 = vshll.u32 %v6877, 16
      %v7034 = vrot.slane %v7032, 1
      %v7035 = vor.u32 %v7030, %v7034
      %v7037 = vshll.u32 %v6925, 16
      %v7039 = vrot.slane %v7037, 1
      %v7040 = vsel %vm1022, %v7035, %v7039
      %v7042 = vshrl.u32 %v6878, 16
      %v7044 = vshll.u32 %v6878, 16
      %v7046 = vrot.slane %v7044, 1
      %v7047 = vor.u32 %v7042, %v7046
      %v7049 = vshll.u32 %v6926, 16
      %v7051 = vrot.slane %v7049, 1
      %v7052 = vsel %vm1022, %v7047, %v7051
      %v7054 = vshrl.u32 %v6879, 16
      %v7056 = vshll.u32 %v6879, 16
      %v7058 = vrot.slane %v7056, 1
      %v7059 = vor.u32 %v7054, %v7058
      %v7061 = vshll.u32 %v6927, 16
      %v7063 = vrot.slane %v7061, 1
      %v7064 = vsel %vm1022, %v7059, %v7063
      %v7066 = vshrl.u32 %v6880, 16
      %v7068 = vshll.u32 %v6880, 16
      %v7070 = vrot.slane %v7068, 1
      %v7071 = vor.u32 %v7066, %v7070
      %v7073 = vshll.u32 %v6928, 16
      %v7075 = vrot.slane %v7073, 1
      %v7076 = vsel %vm1022, %v7071, %v7075
      %v7078 = vshrl.u32 %v6881, 16
      %v7080 = vshll.u32 %v6881, 16
      %v7082 = vrot.slane %v7080, 1
      %v7083 = vor.u32 %v7078, %v7082
      %v7085 = vshll.u32 %v6929, 16
      %v7087 = vrot.slane %v7085, 1
      %v7088 = vsel %vm1022, %v7083, %v7087
      %v7090 = vshrl.u32 %v6882, 16
      %v7092 = vshll.u32 %v6882, 16
      %v7094 = vrot.slane %v7092, 1
      %v7095 = vor.u32 %v7090, %v7094
      %v7097 = vshll.u32 %v6930, 16
      %v7099 = vrot.slane %v7097, 1
      %v7100 = vsel %vm1022, %v7095, %v7099
      %v7102 = vshrl.u32 %v6883, 16
      %v7104 = vshll.u32 %v6883, 16
      %v7106 = vrot.slane %v7104, 1
      %v7107 = vor.u32 %v7102, %v7106
      %v7109 = vshll.u32 %v6931, 16
      %v7111 = vrot.slane %v7109, 1
      %v7112 = vsel %vm1022, %v7107, %v7111
      %v7114 = vshrl.u32 %v6884, 16
      %v7116 = vshll.u32 %v6884, 16
      %v7118 = vrot.slane %v7116, 1
      %v7119 = vor.u32 %v7114, %v7118
      %v7121 = vshll.u32 %v6932, 16
      %v7123 = vrot.slane %v7121, 1
      %v7124 = vsel %vm1022, %v7119, %v7123
      %7125 = vrot.lane.b32.xlu0 %v6944, 32
      %v7126 = vpop.permute.xlu0 %7125
      %7127 = vrot.lane.b32.xlu0 %v6956, 32
      %v7128 = vpop.permute.xlu0 %7127
      %7129 = vrot.lane.b32.xlu0 %v6968, 32
      %v7130 = vpop.permute.xlu0 %7129
      %7131 = vrot.lane.b32.xlu0 %v6980, 32
      %v7132 = vpop.permute.xlu0 %7131
      %7133 = vrot.lane.b32.xlu0 %v6992, 32
      %v7134 = vpop.permute.xlu0 %7133
      %7135 = vrot.lane.b32.xlu0 %v7004, 32
      %v7136 = vpop.permute.xlu0 %7135
      %7137 = vrot.lane.b32.xlu0 %v7016, 32
      %v7138 = vpop.permute.xlu0 %7137
      %7139 = vrot.lane.b32.xlu0 %v7028, 32
      %v7140 = vpop.permute.xlu0 %7139
      %7141 = vrot.lane.b32.xlu0 %v7040, 32
      %v7142 = vpop.permute.xlu0 %7141
      %7143 = vrot.lane.b32.xlu0 %v7052, 32
      %v7144 = vpop.permute.xlu0 %7143
      %7145 = vrot.lane.b32.xlu0 %v7064, 32
      %v7146 = vpop.permute.xlu0 %7145
      %7147 = vrot.lane.b32.xlu0 %v7076, 32
      %v7148 = vpop.permute.xlu0 %7147
      %7149 = vrot.lane.b32.xlu0 %v7088, 32
      %v7150 = vpop.permute.xlu0 %7149
      %7151 = vrot.lane.b32.xlu0 %v7100, 32
      %v7152 = vpop.permute.xlu0 %7151
      %7153 = vrot.lane.b32.xlu0 %v7112, 32
      %v7154 = vpop.permute.xlu0 %7153
      %7155 = vrot.lane.b32.xlu0 %v7124, 32
      %v7156 = vpop.permute.xlu0 %7155
      %v7173 = vunpack.c.l.b16 %v6661
      %v7174 = vunpack.c.l.b16 %v6662
      %v7175 = vunpack.c.l.b16 %v6663
      %v7176 = vunpack.c.l.b16 %v6664
      %v7177 = vunpack.c.l.b16 %v6665
      %v7178 = vunpack.c.l.b16 %v6666
      %v7179 = vunpack.c.l.b16 %v6667
      %v7180 = vunpack.c.l.b16 %v6668
      %v7181 = vunpack.c.l.b16 %v6669
      %v7182 = vunpack.c.l.b16 %v6670
      %v7183 = vunpack.c.l.b16 %v6671
      %v7184 = vunpack.c.l.b16 %v6672
      %v7185 = vunpack.c.l.b16 %v6673
      %v7186 = vunpack.c.l.b16 %v6674
      %v7187 = vunpack.c.l.b16 %v6675
      %v7188 = vunpack.c.l.b16 %v6676
      %v7189 = vpack.c.b16 %v6838, %v7173
      %v7190 = vpack.c.b16 %v6840, %v7174
      %v7191 = vpack.c.b16 %v6842, %v7175
      %v7192 = vpack.c.b16 %v6844, %v7176
      %v7193 = vpack.c.b16 %v6846, %v7177
      %v7194 = vpack.c.b16 %v6848, %v7178
      %v7195 = vpack.c.b16 %v6850, %v7179
      %v7196 = vpack.c.b16 %v6852, %v7180
      %v7197 = vpack.c.b16 %v6854, %v7181
      %v7198 = vpack.c.b16 %v6856, %v7182
      %v7199 = vpack.c.b16 %v6858, %v7183
      %v7200 = vpack.c.b16 %v6860, %v7184
      %v7201 = vpack.c.b16 %v6862, %v7185
      %v7202 = vpack.c.b16 %v6864, %v7186
      %v7203 = vpack.c.b16 %v6866, %v7187
      %v7204 = vpack.c.b16 %v6868, %v7188
      %v7205 = vrot.slane %v7189, 1
      %v7206 = vrot.slane %v6917, 1
      %v7207 = vsel %vm1295, %v7205, %v7206
      %v7208 = vrot.slane %v7190, 1
      %v7209 = vrot.slane %v6918, 1
      %v7210 = vsel %vm1295, %v7208, %v7209
      %v7211 = vrot.slane %v7191, 1
      %v7212 = vrot.slane %v6919, 1
      %v7213 = vsel %vm1295, %v7211, %v7212
      %v7214 = vrot.slane %v7192, 1
      %v7215 = vrot.slane %v6920, 1
      %v7216 = vsel %vm1295, %v7214, %v7215
      %v7217 = vrot.slane %v7193, 1
      %v7218 = vrot.slane %v6921, 1
      %v7219 = vsel %vm1295, %v7217, %v7218
      %v7220 = vrot.slane %v7194, 1
      %v7221 = vrot.slane %v6922, 1
      %v7222 = vsel %vm1295, %v7220, %v7221
      %v7223 = vrot.slane %v7195, 1
      %v7224 = vrot.slane %v6923, 1
      %v7225 = vsel %vm1295, %v7223, %v7224
      %v7226 = vrot.slane %v7196, 1
      %v7227 = vrot.slane %v6924, 1
      %v7228 = vsel %vm1295, %v7226, %v7227
      %v7229 = vrot.slane %v7197, 1
      %v7230 = vrot.slane %v6925, 1
      %v7231 = vsel %vm1295, %v7229, %v7230
      %v7232 = vrot.slane %v7198, 1
      %v7233 = vrot.slane %v6926, 1
      %v7234 = vsel %vm1295, %v7232, %v7233
      %v7235 = vrot.slane %v7199, 1
      %v7236 = vrot.slane %v6927, 1
      %v7237 = vsel %vm1295, %v7235, %v7236
      %v7238 = vrot.slane %v7200, 1
      %v7239 = vrot.slane %v6928, 1
      %v7240 = vsel %vm1295, %v7238, %v7239
      %v7241 = vrot.slane %v7201, 1
      %v7242 = vrot.slane %v6929, 1
      %v7243 = vsel %vm1295, %v7241, %v7242
      %v7244 = vrot.slane %v7202, 1
      %v7245 = vrot.slane %v6930, 1
      %v7246 = vsel %vm1295, %v7244, %v7245
      %v7247 = vrot.slane %v7203, 1
      %v7248 = vrot.slane %v6931, 1
      %v7249 = vsel %vm1295, %v7247, %v7248
      %v7250 = vrot.slane %v7204, 1
      %v7251 = vrot.slane %v6932, 1
      %v7252 = vsel %vm1295, %v7250, %v7251
      %7253 = vrot.lane.b32.xlu0 %v7207, 64
      %v7254 = vpop.permute.xlu0 %7253
      %7255 = vrot.lane.b32.xlu0 %v7210, 64
      %v7256 = vpop.permute.xlu0 %7255
      %7257 = vrot.lane.b32.xlu0 %v7213, 64
      %v7258 = vpop.permute.xlu0 %7257
      %7259 = vrot.lane.b32.xlu0 %v7216, 64
      %v7260 = vpop.permute.xlu0 %7259
      %7261 = vrot.lane.b32.xlu0 %v7219, 64
      %v7262 = vpop.permute.xlu0 %7261
      %7263 = vrot.lane.b32.xlu0 %v7222, 64
      %v7264 = vpop.permute.xlu0 %7263
      %7265 = vrot.lane.b32.xlu0 %v7225, 64
      %v7266 = vpop.permute.xlu0 %7265
      %7267 = vrot.lane.b32.xlu0 %v7228, 64
      %v7268 = vpop.permute.xlu0 %7267
      %7269 = vrot.lane.b32.xlu0 %v7231, 64
      %v7270 = vpop.permute.xlu0 %7269
      %7271 = vrot.lane.b32.xlu0 %v7234, 64
      %v7272 = vpop.permute.xlu0 %7271
      %7273 = vrot.lane.b32.xlu0 %v7237, 64
      %v7274 = vpop.permute.xlu0 %7273
      %7275 = vrot.lane.b32.xlu0 %v7240, 64
      %v7276 = vpop.permute.xlu0 %7275
      %7277 = vrot.lane.b32.xlu0 %v7243, 64
      %v7278 = vpop.permute.xlu0 %7277
      %7279 = vrot.lane.b32.xlu0 %v7246, 64
      %v7280 = vpop.permute.xlu0 %7279
      %7281 = vrot.lane.b32.xlu0 %v7249, 64
      %v7282 = vpop.permute.xlu0 %7281
      %7283 = vrot.lane.b32.xlu0 %v7252, 64
      %v7284 = vpop.permute.xlu0 %7283
      %v7317 = vunpack.c.l.b16 %v6677
      %v7318 = vunpack.c.l.b16 %v6678
      %v7319 = vunpack.c.l.b16 %v6679
      %v7320 = vunpack.c.l.b16 %v6680
      %v7321 = vunpack.c.l.b16 %v6681
      %v7322 = vunpack.c.l.b16 %v6682
      %v7323 = vunpack.c.l.b16 %v6683
      %v7324 = vunpack.c.l.b16 %v6684
      %v7325 = vunpack.c.l.b16 %v6685
      %v7326 = vunpack.c.l.b16 %v6686
      %v7327 = vunpack.c.l.b16 %v6687
      %v7328 = vunpack.c.l.b16 %v6688
      %v7329 = vunpack.c.l.b16 %v6689
      %v7330 = vunpack.c.l.b16 %v6690
      %v7331 = vunpack.c.l.b16 %v6691
      %v7332 = vunpack.c.l.b16 %v6692
      %v7333 = vunpack.c.l.b16 %v6693
      %v7334 = vunpack.c.l.b16 %v6694
      %v7335 = vunpack.c.l.b16 %v6695
      %v7336 = vunpack.c.l.b16 %v6696
      %v7337 = vunpack.c.l.b16 %v6697
      %v7338 = vunpack.c.l.b16 %v6698
      %v7339 = vunpack.c.l.b16 %v6699
      %v7340 = vunpack.c.l.b16 %v6700
      %v7341 = vunpack.c.l.b16 %v6701
      %v7342 = vunpack.c.l.b16 %v6702
      %v7343 = vunpack.c.l.b16 %v6703
      %v7344 = vunpack.c.l.b16 %v6704
      %v7345 = vunpack.c.l.b16 %v6705
      %v7346 = vunpack.c.l.b16 %v6706
      %v7347 = vunpack.c.l.b16 %v6707
      %v7348 = vunpack.c.l.b16 %v6708
      %v7349 = vpack.c.b16 %v7318, %v7317
      %v7350 = vpack.c.b16 %v7320, %v7319
      %v7351 = vpack.c.b16 %v7322, %v7321
      %v7352 = vpack.c.b16 %v7324, %v7323
      %v7353 = vpack.c.b16 %v7326, %v7325
      %v7354 = vpack.c.b16 %v7328, %v7327
      %v7355 = vpack.c.b16 %v7330, %v7329
      %v7356 = vpack.c.b16 %v7332, %v7331
      %v7357 = vpack.c.b16 %v7334, %v7333
      %v7358 = vpack.c.b16 %v7336, %v7335
      %v7359 = vpack.c.b16 %v7338, %v7337
      %v7360 = vpack.c.b16 %v7340, %v7339
      %v7361 = vpack.c.b16 %v7342, %v7341
      %v7362 = vpack.c.b16 %v7344, %v7343
      %v7363 = vpack.c.b16 %v7346, %v7345
      %v7364 = vpack.c.b16 %v7348, %v7347
      %7365 = vrot.lane.b32.xlu0 %v7349, 96
      %v7366 = vpop.permute.xlu0 %7365
      %7367 = vrot.lane.b32.xlu0 %v7350, 96
      %v7368 = vpop.permute.xlu0 %7367
      %7369 = vrot.lane.b32.xlu0 %v7351, 96
      %v7370 = vpop.permute.xlu0 %7369
      %7371 = vrot.lane.b32.xlu0 %v7352, 96
      %v7372 = vpop.permute.xlu0 %7371
      %7373 = vrot.lane.b32.xlu0 %v7353, 96
      %v7374 = vpop.permute.xlu0 %7373
      %7375 = vrot.lane.b32.xlu0 %v7354, 96
      %v7376 = vpop.permute.xlu0 %7375
      %7377 = vrot.lane.b32.xlu0 %v7355, 96
      %v7378 = vpop.permute.xlu0 %7377
      %7379 = vrot.lane.b32.xlu0 %v7356, 96
      %v7380 = vpop.permute.xlu0 %7379
      %7381 = vrot.lane.b32.xlu0 %v7357, 96
      %v7382 = vpop.permute.xlu0 %7381
      %7383 = vrot.lane.b32.xlu0 %v7358, 96
      %v7384 = vpop.permute.xlu0 %7383
      %7385 = vrot.lane.b32.xlu0 %v7359, 96
      %v7386 = vpop.permute.xlu0 %7385
      %7387 = vrot.lane.b32.xlu0 %v7360, 96
      %v7388 = vpop.permute.xlu0 %7387
      %7389 = vrot.lane.b32.xlu0 %v7361, 96
      %v7390 = vpop.permute.xlu0 %7389
      %7391 = vrot.lane.b32.xlu0 %v7362, 96
      %v7392 = vpop.permute.xlu0 %7391
      %7393 = vrot.lane.b32.xlu0 %v7363, 96
      %v7394 = vpop.permute.xlu0 %7393
      %7395 = vrot.lane.b32.xlu0 %v7364, 96
      %v7396 = vpop.permute.xlu0 %7395
      %v7413 = vunpack.c.l.b16 %v6709
      %v7414 = vunpack.c.l.b16 %v6710
      %v7415 = vunpack.c.l.b16 %v6711
      %v7416 = vunpack.c.l.b16 %v6712
      %v7417 = vunpack.c.l.b16 %v6713
      %v7418 = vunpack.c.l.b16 %v6714
      %v7419 = vunpack.c.l.b16 %v6715
      %v7420 = vunpack.c.l.b16 %v6716
      %v7421 = vunpack.c.l.b16 %v6717
      %v7422 = vunpack.c.l.b16 %v6718
      %v7423 = vunpack.c.l.b16 %v6719
      %v7424 = vunpack.c.l.b16 %v6720
      %v7425 = vunpack.c.l.b16 %v6721
      %v7426 = vunpack.c.l.b16 %v6722
      %v7427 = vunpack.c.l.b16 %v6723
      %v7428 = vunpack.c.l.b16 %v6724
      %v7429 = vpack.c.b16 %v7413, %v7413
      %v7430 = vpack.c.b16 %v7414, %v7414
      %v7431 = vpack.c.b16 %v7415, %v7415
      %v7432 = vpack.c.b16 %v7416, %v7416
      %v7433 = vpack.c.b16 %v7417, %v7417
      %v7434 = vpack.c.b16 %v7418, %v7418
      %v7435 = vpack.c.b16 %v7419, %v7419
      %v7436 = vpack.c.b16 %v7420, %v7420
      %v7437 = vpack.c.b16 %v7421, %v7421
      %v7438 = vpack.c.b16 %v7422, %v7422
      %v7439 = vpack.c.b16 %v7423, %v7423
      %v7440 = vpack.c.b16 %v7424, %v7424
      %v7441 = vpack.c.b16 %v7425, %v7425
      %v7442 = vpack.c.b16 %v7426, %v7426
      %v7443 = vpack.c.b16 %v7427, %v7427
      %v7444 = vpack.c.b16 %v7428, %v7428
      %v7446 = vshrl.u32 %v7349, 16
      %v7448 = vshll.u32 %v7349, 16
      %v7450 = vrot.slane %v7448, 1
      %v7451 = vor.u32 %v7446, %v7450
      %v7453 = vshll.u32 %v7429, 16
      %v7455 = vrot.slane %v7453, 1
      %v7456 = vsel %vm1022, %v7451, %v7455
      %v7458 = vshrl.u32 %v7350, 16
      %v7460 = vshll.u32 %v7350, 16
      %v7462 = vrot.slane %v7460, 1
      %v7463 = vor.u32 %v7458, %v7462
      %v7465 = vshll.u32 %v7430, 16
      %v7467 = vrot.slane %v7465, 1
      %v7468 = vsel %vm1022, %v7463, %v7467
      %v7470 = vshrl.u32 %v7351, 16
      %v7472 = vshll.u32 %v7351, 16
      %v7474 = vrot.slane %v7472, 1
      %v7475 = vor.u32 %v7470, %v7474
      %v7477 = vshll.u32 %v7431, 16
      %v7479 = vrot.slane %v7477, 1
      %v7480 = vsel %vm1022, %v7475, %v7479
      %v7482 = vshrl.u32 %v7352, 16
      %v7484 = vshll.u32 %v7352, 16
      %v7486 = vrot.slane %v7484, 1
      %v7487 = vor.u32 %v7482, %v7486
      %v7489 = vshll.u32 %v7432, 16
      %v7491 = vrot.slane %v7489, 1
      %v7492 = vsel %vm1022, %v7487, %v7491
      %v7494 = vshrl.u32 %v7353, 16
      %v7496 = vshll.u32 %v7353, 16
      %v7498 = vrot.slane %v7496, 1
      %v7499 = vor.u32 %v7494, %v7498
      %v7501 = vshll.u32 %v7433, 16
      %v7503 = vrot.slane %v7501, 1
      %v7504 = vsel %vm1022, %v7499, %v7503
      %v7506 = vshrl.u32 %v7354, 16
      %v7508 = vshll.u32 %v7354, 16
      %v7510 = vrot.slane %v7508, 1
      %v7511 = vor.u32 %v7506, %v7510
      %v7513 = vshll.u32 %v7434, 16
      %v7515 = vrot.slane %v7513, 1
      %v7516 = vsel %vm1022, %v7511, %v7515
      %v7518 = vshrl.u32 %v7355, 16
      %v7520 = vshll.u32 %v7355, 16
      %v7522 = vrot.slane %v7520, 1
      %v7523 = vor.u32 %v7518, %v7522
      %v7525 = vshll.u32 %v7435, 16
      %v7527 = vrot.slane %v7525, 1
      %v7528 = vsel %vm1022, %v7523, %v7527
      %v7530 = vshrl.u32 %v7356, 16
      %v7532 = vshll.u32 %v7356, 16
      %v7534 = vrot.slane %v7532, 1
      %v7535 = vor.u32 %v7530, %v7534
      %v7537 = vshll.u32 %v7436, 16
      %v7539 = vrot.slane %v7537, 1
      %v7540 = vsel %vm1022, %v7535, %v7539
      %v7542 = vshrl.u32 %v7357, 16
      %v7544 = vshll.u32 %v7357, 16
      %v7546 = vrot.slane %v7544, 1
      %v7547 = vor.u32 %v7542, %v7546
      %v7549 = vshll.u32 %v7437, 16
      %v7551 = vrot.slane %v7549, 1
      %v7552 = vsel %vm1022, %v7547, %v7551
      %v7554 = vshrl.u32 %v7358, 16
      %v7556 = vshll.u32 %v7358, 16
      %v7558 = vrot.slane %v7556, 1
      %v7559 = vor.u32 %v7554, %v7558
      %v7561 = vshll.u32 %v7438, 16
      %v7563 = vrot.slane %v7561, 1
      %v7564 = vsel %vm1022, %v7559, %v7563
      %v7566 = vshrl.u32 %v7359, 16
      %v7568 = vshll.u32 %v7359, 16
      %v7570 = vrot.slane %v7568, 1
      %v7571 = vor.u32 %v7566, %v7570
      %v7573 = vshll.u32 %v7439, 16
      %v7575 = vrot.slane %v7573, 1
      %v7576 = vsel %vm1022, %v7571, %v7575
      %v7578 = vshrl.u32 %v7360, 16
      %v7580 = vshll.u32 %v7360, 16
      %v7582 = vrot.slane %v7580, 1
      %v7583 = vor.u32 %v7578, %v7582
      %v7585 = vshll.u32 %v7440, 16
      %v7587 = vrot.slane %v7585, 1
      %v7588 = vsel %vm1022, %v7583, %v7587
      %v7590 = vshrl.u32 %v7361, 16
      %v7592 = vshll.u32 %v7361, 16
      %v7594 = vrot.slane %v7592, 1
      %v7595 = vor.u32 %v7590, %v7594
      %v7597 = vshll.u32 %v7441, 16
      %v7599 = vrot.slane %v7597, 1
      %v7600 = vsel %vm1022, %v7595, %v7599
      %v7602 = vshrl.u32 %v7362, 16
      %v7604 = vshll.u32 %v7362, 16
      %v7606 = vrot.slane %v7604, 1
      %v7607 = vor.u32 %v7602, %v7606
      %v7609 = vshll.u32 %v7442, 16
      %v7611 = vrot.slane %v7609, 1
      %v7612 = vsel %vm1022, %v7607, %v7611
      %v7614 = vshrl.u32 %v7363, 16
      %v7616 = vshll.u32 %v7363, 16
      %v7618 = vrot.slane %v7616, 1
      %v7619 = vor.u32 %v7614, %v7618
      %v7621 = vshll.u32 %v7443, 16
      %v7623 = vrot.slane %v7621, 1
      %v7624 = vsel %vm1022, %v7619, %v7623
      %v7626 = vshrl.u32 %v7364, 16
      %v7628 = vshll.u32 %v7364, 16
      %v7630 = vrot.slane %v7628, 1
      %v7631 = vor.u32 %v7626, %v7630
      %v7633 = vshll.u32 %v7444, 16
      %v7635 = vrot.slane %v7633, 1
      %v7636 = vsel %vm1022, %v7631, %v7635
      %v7653 = vunpack.c.l.b16 %v6725
      %v7654 = vunpack.c.l.b16 %v6726
      %v7655 = vunpack.c.l.b16 %v6727
      %v7656 = vunpack.c.l.b16 %v6728
      %v7657 = vunpack.c.l.b16 %v6729
      %v7658 = vunpack.c.l.b16 %v6730
      %v7659 = vunpack.c.l.b16 %v6731
      %v7660 = vunpack.c.l.b16 %v6732
      %v7661 = vunpack.c.l.b16 %v6733
      %v7662 = vunpack.c.l.b16 %v6734
      %v7663 = vunpack.c.l.b16 %v6735
      %v7664 = vunpack.c.l.b16 %v6736
      %v7665 = vunpack.c.l.b16 %v6737
      %v7666 = vunpack.c.l.b16 %v6738
      %v7667 = vunpack.c.l.b16 %v6739
      %v7668 = vunpack.c.l.b16 %v6740
      %v7669 = vpack.c.b16 %v7318, %v7653
      %v7670 = vpack.c.b16 %v7320, %v7654
      %v7671 = vpack.c.b16 %v7322, %v7655
      %v7672 = vpack.c.b16 %v7324, %v7656
      %v7673 = vpack.c.b16 %v7326, %v7657
      %v7674 = vpack.c.b16 %v7328, %v7658
      %v7675 = vpack.c.b16 %v7330, %v7659
      %v7676 = vpack.c.b16 %v7332, %v7660
      %v7677 = vpack.c.b16 %v7334, %v7661
      %v7678 = vpack.c.b16 %v7336, %v7662
      %v7679 = vpack.c.b16 %v7338, %v7663
      %v7680 = vpack.c.b16 %v7340, %v7664
      %v7681 = vpack.c.b16 %v7342, %v7665
      %v7682 = vpack.c.b16 %v7344, %v7666
      %v7683 = vpack.c.b16 %v7346, %v7667
      %v7684 = vpack.c.b16 %v7348, %v7668
      %v7685 = vrot.slane %v7669, 1
      %v7686 = vrot.slane %v7429, 1
      %v7687 = vsel %vm1295, %v7685, %v7686
      %v7688 = vrot.slane %v7670, 1
      %v7689 = vrot.slane %v7430, 1
      %v7690 = vsel %vm1295, %v7688, %v7689
      %v7691 = vrot.slane %v7671, 1
      %v7692 = vrot.slane %v7431, 1
      %v7693 = vsel %vm1295, %v7691, %v7692
      %v7694 = vrot.slane %v7672, 1
      %v7695 = vrot.slane %v7432, 1
      %v7696 = vsel %vm1295, %v7694, %v7695
      %v7697 = vrot.slane %v7673, 1
      %v7698 = vrot.slane %v7433, 1
      %v7699 = vsel %vm1295, %v7697, %v7698
      %v7700 = vrot.slane %v7674, 1
      %v7701 = vrot.slane %v7434, 1
      %v7702 = vsel %vm1295, %v7700, %v7701
      %v7703 = vrot.slane %v7675, 1
      %v7704 = vrot.slane %v7435, 1
      %v7705 = vsel %vm1295, %v7703, %v7704
      %v7706 = vrot.slane %v7676, 1
      %v7707 = vrot.slane %v7436, 1
      %v7708 = vsel %vm1295, %v7706, %v7707
      %v7709 = vrot.slane %v7677, 1
      %v7710 = vrot.slane %v7437, 1
      %v7711 = vsel %vm1295, %v7709, %v7710
      %v7712 = vrot.slane %v7678, 1
      %v7713 = vrot.slane %v7438, 1
      %v7714 = vsel %vm1295, %v7712, %v7713
      %v7715 = vrot.slane %v7679, 1
      %v7716 = vrot.slane %v7439, 1
      %v7717 = vsel %vm1295, %v7715, %v7716
      %v7718 = vrot.slane %v7680, 1
      %v7719 = vrot.slane %v7440, 1
      %v7720 = vsel %vm1295, %v7718, %v7719
      %v7721 = vrot.slane %v7681, 1
      %v7722 = vrot.slane %v7441, 1
      %v7723 = vsel %vm1295, %v7721, %v7722
      %v7724 = vrot.slane %v7682, 1
      %v7725 = vrot.slane %v7442, 1
      %v7726 = vsel %vm1295, %v7724, %v7725
      %v7727 = vrot.slane %v7683, 1
      %v7728 = vrot.slane %v7443, 1
      %v7729 = vsel %vm1295, %v7727, %v7728
      %v7730 = vrot.slane %v7684, 1
      %v7731 = vrot.slane %v7444, 1
      %v7732 = vsel %vm1295, %v7730, %v7731
      %7733 = vrot.lane.b32.xlu0 %v7687, 32
      %v7734 = vpop.permute.xlu0 %7733
      %7735 = vrot.lane.b32.xlu0 %v7690, 32
      %v7736 = vpop.permute.xlu0 %7735
      %7737 = vrot.lane.b32.xlu0 %v7693, 32
      %v7738 = vpop.permute.xlu0 %7737
      %7739 = vrot.lane.b32.xlu0 %v7696, 32
      %v7740 = vpop.permute.xlu0 %7739
      %7741 = vrot.lane.b32.xlu0 %v7699, 32
      %v7742 = vpop.permute.xlu0 %7741
      %7743 = vrot.lane.b32.xlu0 %v7702, 32
      %v7744 = vpop.permute.xlu0 %7743
      %7745 = vrot.lane.b32.xlu0 %v7705, 32
      %v7746 = vpop.permute.xlu0 %7745
      %7747 = vrot.lane.b32.xlu0 %v7708, 32
      %v7748 = vpop.permute.xlu0 %7747
      %7749 = vrot.lane.b32.xlu0 %v7711, 32
      %v7750 = vpop.permute.xlu0 %7749
      %7751 = vrot.lane.b32.xlu0 %v7714, 32
      %v7752 = vpop.permute.xlu0 %7751
      %7753 = vrot.lane.b32.xlu0 %v7717, 32
      %v7754 = vpop.permute.xlu0 %7753
      %7755 = vrot.lane.b32.xlu0 %v7720, 32
      %v7756 = vpop.permute.xlu0 %7755
      %7757 = vrot.lane.b32.xlu0 %v7723, 32
      %v7758 = vpop.permute.xlu0 %7757
      %7759 = vrot.lane.b32.xlu0 %v7726, 32
      %v7760 = vpop.permute.xlu0 %7759
      %7761 = vrot.lane.b32.xlu0 %v7729, 32
      %v7762 = vpop.permute.xlu0 %7761
      %7763 = vrot.lane.b32.xlu0 %v7732, 32
      %v7764 = vpop.permute.xlu0 %7763
      %v7797 = vunpack.c.l.b16 %v6741
      %v7798 = vunpack.c.l.b16 %v6742
      %v7799 = vunpack.c.l.b16 %v6743
      %v7800 = vunpack.c.l.b16 %v6744
      %v7801 = vunpack.c.l.b16 %v6745
      %v7802 = vunpack.c.l.b16 %v6746
      %v7803 = vunpack.c.l.b16 %v6747
      %v7804 = vunpack.c.l.b16 %v6748
      %v7805 = vunpack.c.l.b16 %v6749
      %v7806 = vunpack.c.l.b16 %v6750
      %v7807 = vunpack.c.l.b16 %v6751
      %v7808 = vunpack.c.l.b16 %v6752
      %v7809 = vunpack.c.l.b16 %v6753
      %v7810 = vunpack.c.l.b16 %v6754
      %v7811 = vunpack.c.l.b16 %v6755
      %v7812 = vunpack.c.l.b16 %v6756
      %v7813 = vunpack.c.l.b16 %v6757
      %v7814 = vunpack.c.l.b16 %v6758
      %v7815 = vunpack.c.l.b16 %v6759
      %v7816 = vunpack.c.l.b16 %v6760
      %v7817 = vunpack.c.l.b16 %v6761
      %v7818 = vunpack.c.l.b16 %v6762
      %v7819 = vunpack.c.l.b16 %v6763
      %v7820 = vunpack.c.l.b16 %v6764
      %v7821 = vunpack.c.l.b16 %v6765
      %v7822 = vunpack.c.l.b16 %v6766
      %v7823 = vunpack.c.l.b16 %v6767
      %v7824 = vunpack.c.l.b16 %v6768
      %v7825 = vunpack.c.l.b16 %v6769
      %v7826 = vunpack.c.l.b16 %v6770
      %v7827 = vunpack.c.l.b16 %v6771
      %v7828 = vunpack.c.l.b16 %v6772
      %v7829 = vpack.c.b16 %v7798, %v7797
      %v7830 = vpack.c.b16 %v7800, %v7799
      %v7831 = vpack.c.b16 %v7802, %v7801
      %v7832 = vpack.c.b16 %v7804, %v7803
      %v7833 = vpack.c.b16 %v7806, %v7805
      %v7834 = vpack.c.b16 %v7808, %v7807
      %v7835 = vpack.c.b16 %v7810, %v7809
      %v7836 = vpack.c.b16 %v7812, %v7811
      %v7837 = vpack.c.b16 %v7814, %v7813
      %v7838 = vpack.c.b16 %v7816, %v7815
      %v7839 = vpack.c.b16 %v7818, %v7817
      %v7840 = vpack.c.b16 %v7820, %v7819
      %v7841 = vpack.c.b16 %v7822, %v7821
      %v7842 = vpack.c.b16 %v7824, %v7823
      %v7843 = vpack.c.b16 %v7826, %v7825
      %v7844 = vpack.c.b16 %v7828, %v7827
      %7845 = vrot.lane.b32.xlu0 %v7829, 64
      %v7846 = vpop.permute.xlu0 %7845
      %7847 = vrot.lane.b32.xlu0 %v7830, 64
      %v7848 = vpop.permute.xlu0 %7847
      %7849 = vrot.lane.b32.xlu0 %v7831, 64
      %v7850 = vpop.permute.xlu0 %7849
      %7851 = vrot.lane.b32.xlu0 %v7832, 64
      %v7852 = vpop.permute.xlu0 %7851
      %7853 = vrot.lane.b32.xlu0 %v7833, 64
      %v7854 = vpop.permute.xlu0 %7853
      %7855 = vrot.lane.b32.xlu0 %v7834, 64
      %v7856 = vpop.permute.xlu0 %7855
      %7857 = vrot.lane.b32.xlu0 %v7835, 64
      %v7858 = vpop.permute.xlu0 %7857
      %7859 = vrot.lane.b32.xlu0 %v7836, 64
      %v7860 = vpop.permute.xlu0 %7859
      %7861 = vrot.lane.b32.xlu0 %v7837, 64
      %v7862 = vpop.permute.xlu0 %7861
      %7863 = vrot.lane.b32.xlu0 %v7838, 64
      %v7864 = vpop.permute.xlu0 %7863
      %7865 = vrot.lane.b32.xlu0 %v7839, 64
      %v7866 = vpop.permute.xlu0 %7865
      %7867 = vrot.lane.b32.xlu0 %v7840, 64
      %v7868 = vpop.permute.xlu0 %7867
      %7869 = vrot.lane.b32.xlu0 %v7841, 64
      %v7870 = vpop.permute.xlu0 %7869
      %7871 = vrot.lane.b32.xlu0 %v7842, 64
      %v7872 = vpop.permute.xlu0 %7871
      %7873 = vrot.lane.b32.xlu0 %v7843, 64
      %v7874 = vpop.permute.xlu0 %7873
      %7875 = vrot.lane.b32.xlu0 %v7844, 64
      %v7876 = vpop.permute.xlu0 %7875
      %v7893 = vunpack.c.l.b16 %v6773
      %v7894 = vunpack.c.l.b16 %v6774
      %v7895 = vunpack.c.l.b16 %v6775
      %v7896 = vunpack.c.l.b16 %v6776
      %v7897 = vunpack.c.l.b16 %v6777
      %v7898 = vunpack.c.l.b16 %v6778
      %v7899 = vunpack.c.l.b16 %v6779
      %v7900 = vunpack.c.l.b16 %v6780
      %v7901 = vunpack.c.l.b16 %v6781
      %v7902 = vunpack.c.l.b16 %v6782
      %v7903 = vunpack.c.l.b16 %v6783
      %v7904 = vunpack.c.l.b16 %v6784
      %v7905 = vunpack.c.l.b16 %v6785
      %v7906 = vunpack.c.l.b16 %v6786
      %v7907 = vunpack.c.l.b16 %v6787
      %v7908 = vunpack.c.l.b16 %v6788
      %v7909 = vpack.c.b16 %v7893, %v7893
      %v7910 = vpack.c.b16 %v7894, %v7894
      %v7911 = vpack.c.b16 %v7895, %v7895
      %v7912 = vpack.c.b16 %v7896, %v7896
      %v7913 = vpack.c.b16 %v7897, %v7897
      %v7914 = vpack.c.b16 %v7898, %v7898
      %v7915 = vpack.c.b16 %v7899, %v7899
      %v7916 = vpack.c.b16 %v7900, %v7900
      %v7917 = vpack.c.b16 %v7901, %v7901
      %v7918 = vpack.c.b16 %v7902, %v7902
      %v7919 = vpack.c.b16 %v7903, %v7903
      %v7920 = vpack.c.b16 %v7904, %v7904
      %v7921 = vpack.c.b16 %v7905, %v7905
      %v7922 = vpack.c.b16 %v7906, %v7906
      %v7923 = vpack.c.b16 %v7907, %v7907
      %v7924 = vpack.c.b16 %v7908, %v7908
      %v7926 = vshrl.u32 %v7829, 16
      %v7928 = vshll.u32 %v7829, 16
      %v7930 = vrot.slane %v7928, 1
      %v7931 = vor.u32 %v7926, %v7930
      %v7933 = vshll.u32 %v7909, 16
      %v7935 = vrot.slane %v7933, 1
      %v7936 = vsel %vm1022, %v7931, %v7935
      %v7938 = vshrl.u32 %v7830, 16
      %v7940 = vshll.u32 %v7830, 16
      %v7942 = vrot.slane %v7940, 1
      %v7943 = vor.u32 %v7938, %v7942
      %v7945 = vshll.u32 %v7910, 16
      %v7947 = vrot.slane %v7945, 1
      %v7948 = vsel %vm1022, %v7943, %v7947
      %v7950 = vshrl.u32 %v7831, 16
      %v7952 = vshll.u32 %v7831, 16
      %v7954 = vrot.slane %v7952, 1
      %v7955 = vor.u32 %v7950, %v7954
      %v7957 = vshll.u32 %v7911, 16
      %v7959 = vrot.slane %v7957, 1
      %v7960 = vsel %vm1022, %v7955, %v7959
      %v7962 = vshrl.u32 %v7832, 16
      %v7964 = vshll.u32 %v7832, 16
      %v7966 = vrot.slane %v7964, 1
      %v7967 = vor.u32 %v7962, %v7966
      %v7969 = vshll.u32 %v7912, 16
      %v7971 = vrot.slane %v7969, 1
      %v7972 = vsel %vm1022, %v7967, %v7971
      %v7974 = vshrl.u32 %v7833, 16
      %v7976 = vshll.u32 %v7833, 16
      %v7978 = vrot.slane %v7976, 1
      %v7979 = vor.u32 %v7974, %v7978
      %v7981 = vshll.u32 %v7913, 16
      %v7983 = vrot.slane %v7981, 1
      %v7984 = vsel %vm1022, %v7979, %v7983
      %v7986 = vshrl.u32 %v7834, 16
      %v7988 = vshll.u32 %v7834, 16
      %v7990 = vrot.slane %v7988, 1
      %v7991 = vor.u32 %v7986, %v7990
      %v7993 = vshll.u32 %v7914, 16
      %v7995 = vrot.slane %v7993, 1
      %v7996 = vsel %vm1022, %v7991, %v7995
      %v7998 = vshrl.u32 %v7835, 16
      %v8000 = vshll.u32 %v7835, 16
      %v8002 = vrot.slane %v8000, 1
      %v8003 = vor.u32 %v7998, %v8002
      %v8005 = vshll.u32 %v7915, 16
      %v8007 = vrot.slane %v8005, 1
      %v8008 = vsel %vm1022, %v8003, %v8007
      %v8010 = vshrl.u32 %v7836, 16
      %v8012 = vshll.u32 %v7836, 16
      %v8014 = vrot.slane %v8012, 1
      %v8015 = vor.u32 %v8010, %v8014
      %v8017 = vshll.u32 %v7916, 16
      %v8019 = vrot.slane %v8017, 1
      %v8020 = vsel %vm1022, %v8015, %v8019
      %v8022 = vshrl.u32 %v7837, 16
      %v8024 = vshll.u32 %v7837, 16
      %v8026 = vrot.slane %v8024, 1
      %v8027 = vor.u32 %v8022, %v8026
      %v8029 = vshll.u32 %v7917, 16
      %v8031 = vrot.slane %v8029, 1
      %v8032 = vsel %vm1022, %v8027, %v8031
      %v8034 = vshrl.u32 %v7838, 16
      %v8036 = vshll.u32 %v7838, 16
      %v8038 = vrot.slane %v8036, 1
      %v8039 = vor.u32 %v8034, %v8038
      %v8041 = vshll.u32 %v7918, 16
      %v8043 = vrot.slane %v8041, 1
      %v8044 = vsel %vm1022, %v8039, %v8043
      %v8046 = vshrl.u32 %v7839, 16
      %v8048 = vshll.u32 %v7839, 16
      %v8050 = vrot.slane %v8048, 1
      %v8051 = vor.u32 %v8046, %v8050
      %v8053 = vshll.u32 %v7919, 16
      %v8055 = vrot.slane %v8053, 1
      %v8056 = vsel %vm1022, %v8051, %v8055
      %v8058 = vshrl.u32 %v7840, 16
      %v8060 = vshll.u32 %v7840, 16
      %v8062 = vrot.slane %v8060, 1
      %v8063 = vor.u32 %v8058, %v8062
      %v8065 = vshll.u32 %v7920, 16
      %v8067 = vrot.slane %v8065, 1
      %v8068 = vsel %vm1022, %v8063, %v8067
      %v8070 = vshrl.u32 %v7841, 16
      %v8072 = vshll.u32 %v7841, 16
      %v8074 = vrot.slane %v8072, 1
      %v8075 = vor.u32 %v8070, %v8074
      %v8077 = vshll.u32 %v7921, 16
      %v8079 = vrot.slane %v8077, 1
      %v8080 = vsel %vm1022, %v8075, %v8079
      %v8082 = vshrl.u32 %v7842, 16
      %v8084 = vshll.u32 %v7842, 16
      %v8086 = vrot.slane %v8084, 1
      %v8087 = vor.u32 %v8082, %v8086
      %v8089 = vshll.u32 %v7922, 16
      %v8091 = vrot.slane %v8089, 1
      %v8092 = vsel %vm1022, %v8087, %v8091
      %v8094 = vshrl.u32 %v7843, 16
      %v8096 = vshll.u32 %v7843, 16
      %v8098 = vrot.slane %v8096, 1
      %v8099 = vor.u32 %v8094, %v8098
      %v8101 = vshll.u32 %v7923, 16
      %v8103 = vrot.slane %v8101, 1
      %v8104 = vsel %vm1022, %v8099, %v8103
      %v8106 = vshrl.u32 %v7844, 16
      %v8108 = vshll.u32 %v7844, 16
      %v8110 = vrot.slane %v8108, 1
      %v8111 = vor.u32 %v8106, %v8110
      %v8113 = vshll.u32 %v7924, 16
      %v8115 = vrot.slane %v8113, 1
      %v8116 = vsel %vm1022, %v8111, %v8115
      %8117 = vrot.lane.b32.xlu0 %v7936, 96
      %v8118 = vpop.permute.xlu0 %8117
      %8119 = vrot.lane.b32.xlu0 %v7948, 96
      %v8120 = vpop.permute.xlu0 %8119
      %8121 = vrot.lane.b32.xlu0 %v7960, 96
      %v8122 = vpop.permute.xlu0 %8121
      %8123 = vrot.lane.b32.xlu0 %v7972, 96
      %v8124 = vpop.permute.xlu0 %8123
      %8125 = vrot.lane.b32.xlu0 %v7984, 96
      %v8126 = vpop.permute.xlu0 %8125
      %8127 = vrot.lane.b32.xlu0 %v7996, 96
      %v8128 = vpop.permute.xlu0 %8127
      %8129 = vrot.lane.b32.xlu0 %v8008, 96
      %v8130 = vpop.permute.xlu0 %8129
      %8131 = vrot.lane.b32.xlu0 %v8020, 96
      %v8132 = vpop.permute.xlu0 %8131
      %8133 = vrot.lane.b32.xlu0 %v8032, 96
      %v8134 = vpop.permute.xlu0 %8133
      %8135 = vrot.lane.b32.xlu0 %v8044, 96
      %v8136 = vpop.permute.xlu0 %8135
      %8137 = vrot.lane.b32.xlu0 %v8056, 96
      %v8138 = vpop.permute.xlu0 %8137
      %8139 = vrot.lane.b32.xlu0 %v8068, 96
      %v8140 = vpop.permute.xlu0 %8139
      %8141 = vrot.lane.b32.xlu0 %v8080, 96
      %v8142 = vpop.permute.xlu0 %8141
      %8143 = vrot.lane.b32.xlu0 %v8092, 96
      %v8144 = vpop.permute.xlu0 %8143
      %8145 = vrot.lane.b32.xlu0 %v8104, 96
      %v8146 = vpop.permute.xlu0 %8145
      %8147 = vrot.lane.b32.xlu0 %v8116, 96
      %v8148 = vpop.permute.xlu0 %8147
      %v8165 = vunpack.c.l.b16 %v6789
      %v8166 = vunpack.c.l.b16 %v6790
      %v8167 = vunpack.c.l.b16 %v6791
      %v8168 = vunpack.c.l.b16 %v6792
      %v8169 = vunpack.c.l.b16 %v6793
      %v8170 = vunpack.c.l.b16 %v6794
      %v8171 = vunpack.c.l.b16 %v6795
      %v8172 = vunpack.c.l.b16 %v6796
      %v8173 = vunpack.c.l.b16 %v6797
      %v8174 = vunpack.c.l.b16 %v6798
      %v8175 = vunpack.c.l.b16 %v6799
      %v8176 = vunpack.c.l.b16 %v6800
      %v8177 = vunpack.c.l.b16 %v6801
      %v8178 = vunpack.c.l.b16 %v6802
      %v8179 = vunpack.c.l.b16 %v6803
      %v8180 = vunpack.c.l.b16 %v6804
      %v8181 = vpack.c.b16 %v7798, %v8165
      %v8182 = vpack.c.b16 %v7800, %v8166
      %v8183 = vpack.c.b16 %v7802, %v8167
      %v8184 = vpack.c.b16 %v7804, %v8168
      %v8185 = vpack.c.b16 %v7806, %v8169
      %v8186 = vpack.c.b16 %v7808, %v8170
      %v8187 = vpack.c.b16 %v7810, %v8171
      %v8188 = vpack.c.b16 %v7812, %v8172
      %v8189 = vpack.c.b16 %v7814, %v8173
      %v8190 = vpack.c.b16 %v7816, %v8174
      %v8191 = vpack.c.b16 %v7818, %v8175
      %v8192 = vpack.c.b16 %v7820, %v8176
      %v8193 = vpack.c.b16 %v7822, %v8177
      %v8194 = vpack.c.b16 %v7824, %v8178
      %v8195 = vpack.c.b16 %v7826, %v8179
      %v8196 = vpack.c.b16 %v7828, %v8180
      %v8197 = vrot.slane %v8181, 1
      %v8198 = vrot.slane %v7909, 1
      %v8199 = vsel %vm1295, %v8197, %v8198
      %v8200 = vrot.slane %v8182, 1
      %v8201 = vrot.slane %v7910, 1
      %v8202 = vsel %vm1295, %v8200, %v8201
      %v8203 = vrot.slane %v8183, 1
      %v8204 = vrot.slane %v7911, 1
      %v8205 = vsel %vm1295, %v8203, %v8204
      %v8206 = vrot.slane %v8184, 1
      %v8207 = vrot.slane %v7912, 1
      %v8208 = vsel %vm1295, %v8206, %v8207
      %v8209 = vrot.slane %v8185, 1
      %v8210 = vrot.slane %v7913, 1
      %v8211 = vsel %vm1295, %v8209, %v8210
      %v8212 = vrot.slane %v8186, 1
      %v8213 = vrot.slane %v7914, 1
      %v8214 = vsel %vm1295, %v8212, %v8213
      %v8215 = vrot.slane %v8187, 1
      %v8216 = vrot.slane %v7915, 1
      %v8217 = vsel %vm1295, %v8215, %v8216
      %v8218 = vrot.slane %v8188, 1
      %v8219 = vrot.slane %v7916, 1
      %v8220 = vsel %vm1295, %v8218, %v8219
      %v8221 = vrot.slane %v8189, 1
      %v8222 = vrot.slane %v7917, 1
      %v8223 = vsel %vm1295, %v8221, %v8222
      %v8224 = vrot.slane %v8190, 1
      %v8225 = vrot.slane %v7918, 1
      %v8226 = vsel %vm1295, %v8224, %v8225
      %v8227 = vrot.slane %v8191, 1
      %v8228 = vrot.slane %v7919, 1
      %v8229 = vsel %vm1295, %v8227, %v8228
      %v8230 = vrot.slane %v8192, 1
      %v8231 = vrot.slane %v7920, 1
      %v8232 = vsel %vm1295, %v8230, %v8231
      %v8233 = vrot.slane %v8193, 1
      %v8234 = vrot.slane %v7921, 1
      %v8235 = vsel %vm1295, %v8233, %v8234
      %v8236 = vrot.slane %v8194, 1
      %v8237 = vrot.slane %v7922, 1
      %v8238 = vsel %vm1295, %v8236, %v8237
      %v8239 = vrot.slane %v8195, 1
      %v8240 = vrot.slane %v7923, 1
      %v8241 = vsel %vm1295, %v8239, %v8240
      %v8242 = vrot.slane %v8196, 1
      %v8243 = vrot.slane %v7924, 1
      %v8244 = vsel %vm1295, %v8242, %v8243
      %v8246 = vsel %vm2336, %v6869, %v7126
      %v8248 = vsel %vm2336, %v6870, %v7128
      %v8250 = vsel %vm2336, %v6871, %v7130
      %v8252 = vsel %vm2336, %v6872, %v7132
      %v8254 = vsel %vm2336, %v6873, %v7134
      %v8256 = vsel %vm2336, %v6874, %v7136
      %v8258 = vsel %vm2336, %v6875, %v7138
      %v8260 = vsel %vm2336, %v6876, %v7140
      %v8262 = vsel %vm2336, %v6877, %v7142
      %v8264 = vsel %vm2336, %v6878, %v7144
      %v8266 = vsel %vm2336, %v6879, %v7146
      %v8268 = vsel %vm2336, %v6880, %v7148
      %v8270 = vsel %vm2336, %v6881, %v7150
      %v8272 = vsel %vm2336, %v6882, %v7152
      %v8274 = vsel %vm2336, %v6883, %v7154
      %v8276 = vsel %vm2336, %v6884, %v7156
      %v8278 = vsel %vm2369, %v8246, %v7254
      %v8280 = vsel %vm2369, %v8248, %v7256
      %v8282 = vsel %vm2369, %v8250, %v7258
      %v8284 = vsel %vm2369, %v8252, %v7260
      %v8286 = vsel %vm2369, %v8254, %v7262
      %v8288 = vsel %vm2369, %v8256, %v7264
      %v8290 = vsel %vm2369, %v8258, %v7266
      %v8292 = vsel %vm2369, %v8260, %v7268
      %v8294 = vsel %vm2369, %v8262, %v7270
      %v8296 = vsel %vm2369, %v8264, %v7272
      %v8298 = vsel %vm2369, %v8266, %v7274
      %v8300 = vsel %vm2369, %v8268, %v7276
      %v8302 = vsel %vm2369, %v8270, %v7278
      %v8304 = vsel %vm2369, %v8272, %v7280
      %v8306 = vsel %vm2369, %v8274, %v7282
      %v8308 = vsel %vm2369, %v8276, %v7284
      %v8310 = vsel %vm2402, %v8278, %v7366
      %v8313 = vsel %vm2402, %v8280, %v7368
      %v8316 = vsel %vm2402, %v8282, %v7370
      %v8319 = vsel %vm2402, %v8284, %v7372
      %v8322 = vsel %vm2402, %v8286, %v7374
      %v8325 = vsel %vm2402, %v8288, %v7376
      %v8328 = vsel %vm2402, %v8290, %v7378
      %v8331 = vsel %vm2402, %v8292, %v7380
      %v8334 = vsel %vm2402, %v8294, %v7382
      %v8337 = vsel %vm2402, %v8296, %v7384
      %v8340 = vsel %vm2402, %v8298, %v7386
      %v8343 = vsel %vm2402, %v8300, %v7388
      %v8346 = vsel %vm2402, %v8302, %v7390
      %v8349 = vsel %vm2402, %v8304, %v7392
      %v8352 = vsel %vm2402, %v8306, %v7394
      %v8355 = vsel %vm2402, %v8308, %v7396
      %v8359 = vsel %vm2336, %v7456, %v7734
      %v8362 = vsel %vm2336, %v7468, %v7736
      %v8365 = vsel %vm2336, %v7480, %v7738
      %v8368 = vsel %vm2336, %v7492, %v7740
      %v8371 = vsel %vm2336, %v7504, %v7742
      %v8374 = vsel %vm2336, %v7516, %v7744
      %v8377 = vsel %vm2336, %v7528, %v7746
      %v8380 = vsel %vm2336, %v7540, %v7748
      %v8383 = vsel %vm2336, %v7552, %v7750
      %v8386 = vsel %vm2336, %v7564, %v7752
      %v8389 = vsel %vm2336, %v7576, %v7754
      %v8392 = vsel %vm2336, %v7588, %v7756
      %v8395 = vsel %vm2336, %v7600, %v7758
      %v8398 = vsel %vm2336, %v7612, %v7760
      %v8401 = vsel %vm2336, %v7624, %v7762
      %v8404 = vsel %vm2336, %v7636, %v7764
      %v8406 = vsel %vm2369, %v8359, %v7846
      %v8408 = vsel %vm2369, %v8362, %v7848
      %v8410 = vsel %vm2369, %v8365, %v7850
      %v8412 = vsel %vm2369, %v8368, %v7852
      %v8414 = vsel %vm2369, %v8371, %v7854
      %v8416 = vsel %vm2369, %v8374, %v7856
      %v8418 = vsel %vm2369, %v8377, %v7858
      %v8420 = vsel %vm2369, %v8380, %v7860
      %v8422 = vsel %vm2369, %v8383, %v7862
      %v8424 = vsel %vm2369, %v8386, %v7864
      %v8426 = vsel %vm2369, %v8389, %v7866
      %v8428 = vsel %vm2369, %v8392, %v7868
      %v8430 = vsel %vm2369, %v8395, %v7870
      %v8432 = vsel %vm2369, %v8398, %v7872
      %v8434 = vsel %vm2369, %v8401, %v7874
      %v8436 = vsel %vm2369, %v8404, %v7876
      %v8438 = vsel %vm2402, %v8406, %v8118
      %v8441 = vsel %vm2402, %v8408, %v8120
      %v8444 = vsel %vm2402, %v8410, %v8122
      %v8447 = vsel %vm2402, %v8412, %v8124
      %v8450 = vsel %vm2402, %v8414, %v8126
      %v8453 = vsel %vm2402, %v8416, %v8128
      %v8456 = vsel %vm2402, %v8418, %v8130
      %v8459 = vsel %vm2402, %v8420, %v8132
      %v8462 = vsel %vm2402, %v8422, %v8134
      %v8465 = vsel %vm2402, %v8424, %v8136
      %v8468 = vsel %vm2402, %v8426, %v8138
      %v8471 = vsel %vm2402, %v8428, %v8140
      %v8474 = vsel %vm2402, %v8430, %v8142
      %v8477 = vsel %vm2402, %v8432, %v8144
      %v8480 = vsel %vm2402, %v8434, %v8146
      %v8483 = vsel %vm2402, %v8436, %v8148
      %s8485 = scalar_lea.vmem %s1, 288
      %v8486 = vld [vmem:[%s8485] sm:$0xf]
      %v8487 = vld [vmem:[%s8485 + $0x4] sm:$0xf]
      %v8488 = vld [vmem:[%s8485 + $0x8] sm:$0xf]
      %v8489 = vld [vmem:[%s8485 + $0xc] sm:$0xf]
      %v8490 = vld [vmem:[%s8485 + $0x10] sm:$0xf]
      %v8491 = vld [vmem:[%s8485 + $0x14] sm:$0xf]
      %v8492 = vld [vmem:[%s8485 + $0x18] sm:$0xf]
      %v8493 = vld [vmem:[%s8485 + $0x1c] sm:$0xf]
      %v8494 = vld [vmem:[%s8485 + $0x20] sm:$0xf]
      %v8495 = vld [vmem:[%s8485 + $0x24] sm:$0xf]
      %v8496 = vld [vmem:[%s8485 + $0x28] sm:$0xf]
      %v8497 = vld [vmem:[%s8485 + $0x2c] sm:$0xf]
      %v8498 = vld [vmem:[%s8485 + $0x30] sm:$0xf]
      %v8499 = vld [vmem:[%s8485 + $0x34] sm:$0xf]
      %v8500 = vld [vmem:[%s8485 + $0x38] sm:$0xf]
      %v8501 = vld [vmem:[%s8485 + $0x3c] sm:$0xf]
      %v8502 = vld [vmem:[%s8485 + $0x40] sm:$0xf]
      %v8503 = vld [vmem:[%s8485 + $0x44] sm:$0xf]
      %v8504 = vld [vmem:[%s8485 + $0x48] sm:$0xf]
      %v8505 = vld [vmem:[%s8485 + $0x4c] sm:$0xf]
      %v8506 = vld [vmem:[%s8485 + $0x50] sm:$0xf]
      %v8507 = vld [vmem:[%s8485 + $0x54] sm:$0xf]
      %v8508 = vld [vmem:[%s8485 + $0x58] sm:$0xf]
      %v8509 = vld [vmem:[%s8485 + $0x5c] sm:$0xf]
      %v8510 = vld [vmem:[%s8485 + $0x60] sm:$0xf]
      %v8511 = vld [vmem:[%s8485 + $0x64] sm:$0xf]
      %v8512 = vld [vmem:[%s8485 + $0x68] sm:$0xf]
      %v8513 = vld [vmem:[%s8485 + $0x6c] sm:$0xf]
      %v8514 = vld [vmem:[%s8485 + $0x70] sm:$0xf]
      %v8515 = vld [vmem:[%s8485 + $0x74] sm:$0xf]
      %v8516 = vld [vmem:[%s8485 + $0x78] sm:$0xf]
      %v8517 = vld [vmem:[%s8485 + $0x7c] sm:$0xf]
      %v8518 = vld [vmem:[%s8485 + $0x80] sm:$0xf]
      %v8519 = vld [vmem:[%s8485 + $0x84] sm:$0xf]
      %v8520 = vld [vmem:[%s8485 + $0x88] sm:$0xf]
      %v8521 = vld [vmem:[%s8485 + $0x8c] sm:$0xf]
      %s8522 = scalar_lea.vmem %s2, 2
      %v8523 = vld [vmem:[%s8522] sm:$0x1]
      %v8525 = vlaneseq
      %v8526 = vshrl.u32 %v8525, 7
      %v8527 = vsub.s32 0, %v8526
      %v8528 = vrot.slane %v8523, %v8527
      %v8566 = vunpack.c.l.b16 %v8486
      %v8567 = vunpack.c.l.b16 %v8487
      %v8568 = vunpack.c.l.b16 %v8488
      %v8569 = vunpack.c.l.b16 %v8489
      %v8570 = vunpack.c.l.b16 %v8490
      %v8571 = vunpack.c.l.b16 %v8491
      %v8572 = vunpack.c.l.b16 %v8492
      %v8573 = vunpack.c.l.b16 %v8493
      %v8574 = vunpack.c.l.b16 %v8494
      %v8575 = vunpack.c.l.b16 %v8495
      %v8576 = vunpack.c.l.b16 %v8496
      %v8577 = vunpack.c.l.b16 %v8497
      %v8578 = vunpack.c.l.b16 %v8498
      %v8579 = vunpack.c.l.b16 %v8499
      %v8580 = vunpack.c.l.b16 %v8500
      %v8581 = vunpack.c.l.b16 %v8501
      %v8582 = vunpack.c.l.b16 %v8502
      %v8583 = vunpack.c.l.b16 %v8503
      %v8584 = vunpack.c.l.b16 %v8504
      %v8585 = vunpack.c.l.b16 %v8505
      %v8586 = vunpack.c.l.b16 %v8506
      %v8587 = vunpack.c.l.b16 %v8507
      %v8588 = vunpack.c.l.b16 %v8508
      %v8589 = vunpack.c.l.b16 %v8509
      %v8590 = vunpack.c.l.b16 %v8510
      %v8591 = vunpack.c.l.b16 %v8511
      %v8592 = vunpack.c.l.b16 %v8512
      %v8593 = vunpack.c.l.b16 %v8513
      %v8594 = vunpack.c.l.b16 %v8514
      %v8595 = vunpack.c.l.b16 %v8515
      %v8596 = vunpack.c.l.b16 %v8516
      %v8597 = vunpack.c.l.b16 %v8517
      %v8598 = vunpack.c.l.b16 %v8518
      %v8599 = vunpack.c.l.b16 %v8519
      %v8600 = vunpack.c.l.b16 %v8520
      %v8601 = vunpack.c.l.b16 %v8521
      %v8602 = vpack.c.b16 %v8567, %v8566
      %v8603 = vpack.c.b16 %v8569, %v8568
      %v8604 = vpack.c.b16 %v8571, %v8570
      %v8605 = vpack.c.b16 %v8573, %v8572
      %v8606 = vpack.c.b16 %v8575, %v8574
      %v8607 = vpack.c.b16 %v8577, %v8576
      %v8608 = vpack.c.b16 %v8579, %v8578
      %v8609 = vpack.c.b16 %v8581, %v8580
      %v8610 = vpack.c.b16 %v8583, %v8582
      %v8611 = vpack.c.b16 %v8585, %v8584
      %v8612 = vpack.c.b16 %v8587, %v8586
      %v8613 = vpack.c.b16 %v8589, %v8588
      %v8614 = vpack.c.b16 %v8591, %v8590
      %v8615 = vpack.c.b16 %v8593, %v8592
      %v8616 = vpack.c.b16 %v8595, %v8594
      %v8617 = vpack.c.b16 %v8597, %v8596
      %v8618 = vpack.c.b16 %v8599, %v8598
      %v8619 = vpack.c.b16 %v8601, %v8600
      %v8639 = vsel %vm2336, %v8199, 0
      %v8642 = vsel %vm2336, %v8202, 0
      %v8645 = vsel %vm2336, %v8205, 0
      %v8648 = vsel %vm2336, %v8208, 0
      %v8651 = vsel %vm2336, %v8211, 0
      %v8654 = vsel %vm2336, %v8214, 0
      %v8657 = vsel %vm2336, %v8217, 0
      %v8660 = vsel %vm2336, %v8220, 0
      %v8663 = vsel %vm2336, %v8223, 0
      %v8666 = vsel %vm2336, %v8226, 0
      %v8669 = vsel %vm2336, %v8229, 0
      %v8672 = vsel %vm2336, %v8232, 0
      %v8675 = vsel %vm2336, %v8235, 0
      %v8678 = vsel %vm2336, %v8238, 0
      %v8681 = vsel %vm2336, %v8241, 0
      %v8684 = vsel %vm2336, %v8244, 0
      %8686 = vmatprep.subr.bf16.mxu0 0
      %8687 = vmatpush1.bf16.msra.mxu0 %v8609
      %8688 = vmatprep.subr.bf16.mxu0 0
      %8689 = vmatpush1.bf16.msra.mxu0 %v8608
      %8690 = vmatprep.subr.bf16.mxu0 0
      %8691 = vmatpush1.bf16.msra.mxu0 %v8607
      %8692 = vmatprep.subr.bf16.mxu0 0
      %8693 = vmatpush1.bf16.msra.mxu0 %v8606
      %8694 = vmatprep.subr.bf16.mxu0 0
      %8695 = vmatpush1.bf16.msra.mxu0 %v8605
      %8696 = vmatprep.subr.bf16.mxu0 0
      %8697 = vmatpush1.bf16.msra.mxu0 %v8604
      %8698 = vmatprep.subr.bf16.mxu0 0
      %8699 = vmatpush1.bf16.msra.mxu0 %v8603
      %8700 = vmatprep.subr.bf16.mxu0 0
      %8701 = vmatpush1.bf16.msra.mxu0 %v8602
      %8702 = vmatprep.subr.bf16.mxu0 0
      %8703 = vmatpush2.bf16.msra.mxu0 %v8617
      %8704 = vmatprep.subr.bf16.mxu0 0
      %8705 = vmatpush2.bf16.msra.mxu0 %v8616
      %8706 = vmatprep.subr.bf16.mxu0 0
      %8707 = vmatpush2.bf16.msra.mxu0 %v8615
      %8708 = vmatprep.subr.bf16.mxu0 0
      %8709 = vmatpush2.bf16.msra.mxu0 %v8614
      %8710 = vmatprep.subr.bf16.mxu0 0
      %8711 = vmatpush2.bf16.msra.mxu0 %v8613
      %8712 = vmatprep.subr.bf16.mxu0 0
      %8713 = vmatpush2.bf16.msra.mxu0 %v8612
      %8714 = vmatprep.subr.bf16.mxu0 0
      %8715 = vmatpush2.bf16.msra.mxu0 %v8611
      %8716 = vmatprep.subr.bf16.mxu0 0
      %8717 = vmatpush2.bf16.msra.mxu0 %v8610
      %8718 = vmatprep.mubr.bf16.mxu0 %v8438
      %8719 = vmatmul.mubr.bf16.gmra.mxu0 %v8310
      %v8720 = vpop.f32.mrf.mxu0
      %v8721 = vadd.f32 %v8528, %v8720
      %v8722 = vpop.f32.mrf.mxu0
      %v8723 = vpop.f32.mrf.mxu0
      %v8724 = vadd.f32 %v8528, %v8723
      %v8725 = vpop.f32.mrf.mxu0
      %8726 = vmatprep.mubr.bf16.mxu0 %v8441
      %8727 = vmatmul.mubr.bf16.gmra.mxu0 %v8313
      %v8728 = vpop.f32.mrf.mxu0
      %v8729 = vadd.f32 %v8528, %v8728
      %v8730 = vpop.f32.mrf.mxu0
      %v8731 = vpop.f32.mrf.mxu0
      %v8732 = vadd.f32 %v8528, %v8731
      %v8733 = vpop.f32.mrf.mxu0
      %8734 = vmatprep.mubr.bf16.mxu0 %v8444
      %8735 = vmatmul.mubr.bf16.gmra.mxu0 %v8316
      %v8736 = vpop.f32.mrf.mxu0
      %v8737 = vadd.f32 %v8528, %v8736
      %v8738 = vpop.f32.mrf.mxu0
      %v8739 = vpop.f32.mrf.mxu0
      %v8740 = vadd.f32 %v8528, %v8739
      %v8741 = vpop.f32.mrf.mxu0
      %8742 = vmatprep.mubr.bf16.mxu0 %v8447
      %8743 = vmatmul.mubr.bf16.gmra.mxu0 %v8319
      %v8744 = vpop.f32.mrf.mxu0
      %v8745 = vadd.f32 %v8528, %v8744
      %v8746 = vpop.f32.mrf.mxu0
      %v8747 = vpop.f32.mrf.mxu0
      %v8748 = vadd.f32 %v8528, %v8747
      %v8749 = vpop.f32.mrf.mxu0
      %8750 = vmatprep.mubr.bf16.mxu0 %v8450
      %8751 = vmatmul.mubr.bf16.gmra.mxu0 %v8322
      %v8752 = vpop.f32.mrf.mxu0
      %v8753 = vadd.f32 %v8528, %v8752
      %v8754 = vpop.f32.mrf.mxu0
      %v8755 = vpop.f32.mrf.mxu0
      %v8756 = vadd.f32 %v8528, %v8755
      %v8757 = vpop.f32.mrf.mxu0
      %8758 = vmatprep.mubr.bf16.mxu0 %v8453
      %8759 = vmatmul.mubr.bf16.gmra.mxu0 %v8325
      %v8760 = vpop.f32.mrf.mxu0
      %v8761 = vadd.f32 %v8528, %v8760
      %v8762 = vpop.f32.mrf.mxu0
      %v8763 = vpop.f32.mrf.mxu0
      %v8764 = vadd.f32 %v8528, %v8763
      %v8765 = vpop.f32.mrf.mxu0
      %8766 = vmatprep.mubr.bf16.mxu0 %v8456
      %8767 = vmatmul.mubr.bf16.gmra.mxu0 %v8328
      %v8768 = vpop.f32.mrf.mxu0
      %v8769 = vadd.f32 %v8528, %v8768
      %v8770 = vpop.f32.mrf.mxu0
      %v8771 = vpop.f32.mrf.mxu0
      %v8772 = vadd.f32 %v8528, %v8771
      %v8773 = vpop.f32.mrf.mxu0
      %8774 = vmatprep.mubr.bf16.mxu0 %v8459
      %8775 = vmatmul.mubr.bf16.gmra.mxu0 %v8331
      %v8776 = vpop.f32.mrf.mxu0
      %v8777 = vadd.f32 %v8528, %v8776
      %v8778 = vpop.f32.mrf.mxu0
      %v8779 = vpop.f32.mrf.mxu0
      %v8780 = vadd.f32 %v8528, %v8779
      %v8781 = vpop.f32.mrf.mxu0
      %8782 = vmatprep.mubr.bf16.mxu0 %v8462
      %8783 = vmatmul.mubr.bf16.gmra.mxu0 %v8334
      %v8784 = vpop.f32.mrf.mxu0
      %v8785 = vadd.f32 %v8528, %v8784
      %v8786 = vpop.f32.mrf.mxu0
      %v8787 = vpop.f32.mrf.mxu0
      %v8788 = vadd.f32 %v8528, %v8787
      %v8789 = vpop.f32.mrf.mxu0
      %8790 = vmatprep.mubr.bf16.mxu0 %v8465
      %8791 = vmatmul.mubr.bf16.gmra.mxu0 %v8337
      %v8792 = vpop.f32.mrf.mxu0
      %v8793 = vadd.f32 %v8528, %v8792
      %v8794 = vpop.f32.mrf.mxu0
      %v8795 = vpop.f32.mrf.mxu0
      %v8796 = vadd.f32 %v8528, %v8795
      %v8797 = vpop.f32.mrf.mxu0
      %8798 = vmatprep.mubr.bf16.mxu0 %v8468
      %8799 = vmatmul.mubr.bf16.gmra.mxu0 %v8340
      %v8800 = vpop.f32.mrf.mxu0
      %v8801 = vadd.f32 %v8528, %v8800
      %v8802 = vpop.f32.mrf.mxu0
      %v8803 = vpop.f32.mrf.mxu0
      %v8804 = vadd.f32 %v8528, %v8803
      %v8805 = vpop.f32.mrf.mxu0
      %8806 = vmatprep.mubr.bf16.mxu0 %v8471
      %8807 = vmatmul.mubr.bf16.gmra.mxu0 %v8343
      %v8808 = vpop.f32.mrf.mxu0
      %v8809 = vadd.f32 %v8528, %v8808
      %v8810 = vpop.f32.mrf.mxu0
      %v8811 = vpop.f32.mrf.mxu0
      %v8812 = vadd.f32 %v8528, %v8811
      %v8813 = vpop.f32.mrf.mxu0
      %8814 = vmatprep.mubr.bf16.mxu0 %v8474
      %8815 = vmatmul.mubr.bf16.gmra.mxu0 %v8346
      %v8816 = vpop.f32.mrf.mxu0
      %v8817 = vadd.f32 %v8528, %v8816
      %v8818 = vpop.f32.mrf.mxu0
      %v8819 = vpop.f32.mrf.mxu0
      %v8820 = vadd.f32 %v8528, %v8819
      %v8821 = vpop.f32.mrf.mxu0
      %8822 = vmatprep.mubr.bf16.mxu0 %v8477
      %8823 = vmatmul.mubr.bf16.gmra.mxu0 %v8349
      %v8824 = vpop.f32.mrf.mxu0
      %v8825 = vadd.f32 %v8528, %v8824
      %v8826 = vpop.f32.mrf.mxu0
      %v8827 = vpop.f32.mrf.mxu0
      %v8828 = vadd.f32 %v8528, %v8827
      %v8829 = vpop.f32.mrf.mxu0
      %8830 = vmatprep.mubr.bf16.mxu0 %v8480
      %8831 = vmatmul.mubr.bf16.gmra.mxu0 %v8352
      %v8832 = vpop.f32.mrf.mxu0
      %v8833 = vadd.f32 %v8528, %v8832
      %v8834 = vpop.f32.mrf.mxu0
      %v8835 = vpop.f32.mrf.mxu0
      %v8836 = vadd.f32 %v8528, %v8835
      %v8837 = vpop.f32.mrf.mxu0
      %8838 = vmatprep.mubr.bf16.mxu0 %v8483
      %8839 = vmatmul.mubr.bf16.gmra.mxu0 %v8355
      %v8840 = vpop.f32.mrf.mxu0
      %v8841 = vadd.f32 %v8528, %v8840
      %v8842 = vpop.f32.mrf.mxu0
      %v8843 = vpop.f32.mrf.mxu0
      %v8844 = vadd.f32 %v8528, %v8843
      %v8845 = vpop.f32.mrf.mxu0
      %8846 = vdwg.mxu0
      %8847 = vmatprep.subr.bf16.mxu0 0
      %8848 = vmatpush1.bf16.msra.mxu0 0
      %8849 = vmatprep.subr.bf16.mxu0 0
      %8850 = vmatpush1.bf16.msra.mxu0 0
      %8851 = vmatprep.subr.bf16.mxu0 0
      %8852 = vmatpush1.bf16.msra.mxu0 0
      %8853 = vmatprep.subr.bf16.mxu0 0
      %8854 = vmatpush1.bf16.msra.mxu0 0
      %8855 = vmatprep.subr.bf16.mxu0 0
      %8856 = vmatpush1.bf16.msra.mxu0 0
      %8857 = vmatprep.subr.bf16.mxu0 0
      %8858 = vmatpush1.bf16.msra.mxu0 0
      %8859 = vmatprep.subr.bf16.mxu0 0
      %8860 = vmatpush1.bf16.msra.mxu0 %v8619
      %8861 = vmatprep.subr.bf16.mxu0 0
      %8862 = vmatpush1.bf16.msra.mxu0 %v8618
      %8863 = vmatprep.subr.bf16.mxu0 0
      %8864 = vmatpush2.bf16.msra.mxu0 0
      %8865 = vmatprep.subr.bf16.mxu0 0
      %8866 = vmatpush2.bf16.msra.mxu0 0
      %8867 = vmatprep.subr.bf16.mxu0 0
      %8868 = vmatpush2.bf16.msra.mxu0 0
      %8869 = vmatprep.subr.bf16.mxu0 0
      %8870 = vmatpush2.bf16.msra.mxu0 0
      %8871 = vmatprep.subr.bf16.mxu0 0
      %8872 = vmatpush2.bf16.msra.mxu0 0
      %8873 = vmatprep.subr.bf16.mxu0 0
      %8874 = vmatpush2.bf16.msra.mxu0 0
      %8875 = vmatprep.subr.bf16.mxu0 0
      %8876 = vmatpush2.bf16.msra.mxu0 0
      %8877 = vmatprep.subr.bf16.mxu0 0
      %8878 = vmatpush2.bf16.msra.mxu0 0
      %8879 = vmatprep.mubr.bf16.mxu0 0
      %8880 = vmatmul.mubr.bf16.gmra.mxu0 %v8639
      %v8881 = vpop.f32.mrf.mxu0
      %v8882 = vadd.f32 %v8721, %v8881
      %v8883 = vpop.f32.mrf.mxu0
      %v8884 = vpop.f32.mrf.mxu0
      %v8885 = vadd.f32 %v8724, %v8884
      %v8886 = vpop.f32.mrf.mxu0
      %8887 = vmatprep.mubr.bf16.mxu0 0
      %8888 = vmatmul.mubr.bf16.gmra.mxu0 %v8642
      %v8889 = vpop.f32.mrf.mxu0
      %v8890 = vadd.f32 %v8729, %v8889
      %v8891 = vpop.f32.mrf.mxu0
      %v8892 = vpop.f32.mrf.mxu0
      %v8893 = vadd.f32 %v8732, %v8892
      %v8894 = vpop.f32.mrf.mxu0
      %8895 = vmatprep.mubr.bf16.mxu0 0
      %8896 = vmatmul.mubr.bf16.gmra.mxu0 %v8645
      %v8897 = vpop.f32.mrf.mxu0
      %v8898 = vadd.f32 %v8737, %v8897
      %v8899 = vpop.f32.mrf.mxu0
      %v8900 = vpop.f32.mrf.mxu0
      %v8901 = vadd.f32 %v8740, %v8900
      %v8902 = vpop.f32.mrf.mxu0
      %8903 = vmatprep.mubr.bf16.mxu0 0
      %8904 = vmatmul.mubr.bf16.gmra.mxu0 %v8648
      %v8905 = vpop.f32.mrf.mxu0
      %v8906 = vadd.f32 %v8745, %v8905
      %v8907 = vpop.f32.mrf.mxu0
      %v8908 = vpop.f32.mrf.mxu0
      %v8909 = vadd.f32 %v8748, %v8908
      %v8910 = vpop.f32.mrf.mxu0
      %8911 = vmatprep.mubr.bf16.mxu0 0
      %8912 = vmatmul.mubr.bf16.gmra.mxu0 %v8651
      %v8913 = vpop.f32.mrf.mxu0
      %v8914 = vadd.f32 %v8753, %v8913
      %v8915 = vpop.f32.mrf.mxu0
      %v8916 = vpop.f32.mrf.mxu0
      %v8917 = vadd.f32 %v8756, %v8916
      %v8918 = vpop.f32.mrf.mxu0
      %8919 = vmatprep.mubr.bf16.mxu0 0
      %8920 = vmatmul.mubr.bf16.gmra.mxu0 %v8654
      %v8921 = vpop.f32.mrf.mxu0
      %v8922 = vadd.f32 %v8761, %v8921
      %v8923 = vpop.f32.mrf.mxu0
      %v8924 = vpop.f32.mrf.mxu0
      %v8925 = vadd.f32 %v8764, %v8924
      %v8926 = vpop.f32.mrf.mxu0
      %8927 = vmatprep.mubr.bf16.mxu0 0
      %8928 = vmatmul.mubr.bf16.gmra.mxu0 %v8657
      %v8929 = vpop.f32.mrf.mxu0
      %v8930 = vadd.f32 %v8769, %v8929
      %v8931 = vpop.f32.mrf.mxu0
      %v8932 = vpop.f32.mrf.mxu0
      %v8933 = vadd.f32 %v8772, %v8932
      %v8934 = vpop.f32.mrf.mxu0
      %8935 = vmatprep.mubr.bf16.mxu0 0
      %8936 = vmatmul.mubr.bf16.gmra.mxu0 %v8660
      %v8937 = vpop.f32.mrf.mxu0
      %v8938 = vadd.f32 %v8777, %v8937
      %v8939 = vpop.f32.mrf.mxu0
      %v8940 = vpop.f32.mrf.mxu0
      %v8941 = vadd.f32 %v8780, %v8940
      %v8942 = vpop.f32.mrf.mxu0
      %8943 = vmatprep.mubr.bf16.mxu0 0
      %8944 = vmatmul.mubr.bf16.gmra.mxu0 %v8663
      %v8945 = vpop.f32.mrf.mxu0
      %v8946 = vadd.f32 %v8785, %v8945
      %v8947 = vpop.f32.mrf.mxu0
      %v8948 = vpop.f32.mrf.mxu0
      %v8949 = vadd.f32 %v8788, %v8948
      %v8950 = vpop.f32.mrf.mxu0
      %8951 = vmatprep.mubr.bf16.mxu0 0
      %8952 = vmatmul.mubr.bf16.gmra.mxu0 %v8666
      %v8953 = vpop.f32.mrf.mxu0
      %v8954 = vadd.f32 %v8793, %v8953
      %v8955 = vpop.f32.mrf.mxu0
      %v8956 = vpop.f32.mrf.mxu0
      %v8957 = vadd.f32 %v8796, %v8956
      %v8958 = vpop.f32.mrf.mxu0
      %8959 = vmatprep.mubr.bf16.mxu0 0
      %8960 = vmatmul.mubr.bf16.gmra.mxu0 %v8669
      %v8961 = vpop.f32.mrf.mxu0
      %v8962 = vadd.f32 %v8801, %v8961
      %v8963 = vpop.f32.mrf.mxu0
      %v8964 = vpop.f32.mrf.mxu0
      %v8965 = vadd.f32 %v8804, %v8964
      %v8966 = vpop.f32.mrf.mxu0
      %8967 = vmatprep.mubr.bf16.mxu0 0
      %8968 = vmatmul.mubr.bf16.gmra.mxu0 %v8672
      %v8969 = vpop.f32.mrf.mxu0
      %v8970 = vadd.f32 %v8809, %v8969
      %v8971 = vpop.f32.mrf.mxu0
      %v8972 = vpop.f32.mrf.mxu0
      %v8973 = vadd.f32 %v8812, %v8972
      %v8974 = vpop.f32.mrf.mxu0
      %8975 = vmatprep.mubr.bf16.mxu0 0
      %8976 = vmatmul.mubr.bf16.gmra.mxu0 %v8675
      %v8977 = vpop.f32.mrf.mxu0
      %v8978 = vadd.f32 %v8817, %v8977
      %v8979 = vpop.f32.mrf.mxu0
      %v8980 = vpop.f32.mrf.mxu0
      %v8981 = vadd.f32 %v8820, %v8980
      %v8982 = vpop.f32.mrf.mxu0
      %8983 = vmatprep.mubr.bf16.mxu0 0
      %8984 = vmatmul.mubr.bf16.gmra.mxu0 %v8678
      %v8985 = vpop.f32.mrf.mxu0
      %v8986 = vadd.f32 %v8825, %v8985
      %v8987 = vpop.f32.mrf.mxu0
      %v8988 = vpop.f32.mrf.mxu0
      %v8989 = vadd.f32 %v8828, %v8988
      %v8990 = vpop.f32.mrf.mxu0
      %8991 = vmatprep.mubr.bf16.mxu0 0
      %8992 = vmatmul.mubr.bf16.gmra.mxu0 %v8681
      %v8993 = vpop.f32.mrf.mxu0
      %v8994 = vadd.f32 %v8833, %v8993
      %v8995 = vpop.f32.mrf.mxu0
      %v8996 = vpop.f32.mrf.mxu0
      %v8997 = vadd.f32 %v8836, %v8996
      %v8998 = vpop.f32.mrf.mxu0
      %8999 = vmatprep.mubr.bf16.mxu0 0
      %9000 = vmatmul.mubr.bf16.gmra.mxu0 %v8684
      %v9001 = vpop.f32.mrf.mxu0
      %v9002 = vadd.f32 %v8841, %v9001
      %v9003 = vpop.f32.mrf.mxu0
      %v9004 = vpop.f32.mrf.mxu0
      %v9005 = vadd.f32 %v8844, %v9004
      %v9006 = vpop.f32.mrf.mxu0
      %9007 = vdwg.mxu0
      %v9008 = vmax.f32 %v8882, 0.0
      %v9009 = vmax.f32 %v8885, 0.0
      %v9010 = vmax.f32 %v8890, 0.0
      %v9011 = vmax.f32 %v8893, 0.0
      %v9012 = vmax.f32 %v8898, 0.0
      %v9013 = vmax.f32 %v8901, 0.0
      %v9014 = vmax.f32 %v8906, 0.0
      %v9015 = vmax.f32 %v8909, 0.0
      %v9016 = vmax.f32 %v8914, 0.0
      %v9017 = vmax.f32 %v8917, 0.0
      %v9018 = vmax.f32 %v8922, 0.0
      %v9019 = vmax.f32 %v8925, 0.0
      %v9020 = vmax.f32 %v8930, 0.0
      %v9021 = vmax.f32 %v8933, 0.0
      %v9022 = vmax.f32 %v8938, 0.0
      %v9023 = vmax.f32 %v8941, 0.0
      %v9024 = vmax.f32 %v8946, 0.0
      %v9025 = vmax.f32 %v8949, 0.0
      %v9026 = vmax.f32 %v8954, 0.0
      %v9027 = vmax.f32 %v8957, 0.0
      %v9028 = vmax.f32 %v8962, 0.0
      %v9029 = vmax.f32 %v8965, 0.0
      %v9030 = vmax.f32 %v8970, 0.0
      %v9031 = vmax.f32 %v8973, 0.0
      %v9032 = vmax.f32 %v8978, 0.0
      %v9033 = vmax.f32 %v8981, 0.0
      %v9034 = vmax.f32 %v8986, 0.0
      %v9035 = vmax.f32 %v8989, 0.0
      %v9036 = vmax.f32 %v8994, 0.0
      %v9037 = vmax.f32 %v8997, 0.0
      %v9038 = vmax.f32 %v9002, 0.0
      %v9039 = vmax.f32 %v9005, 0.0
      %v9040 = vpack.c.bf16 %v9009, %v9008
      %v9041 = vpack.c.bf16 %v9011, %v9010
      %v9042 = vpack.c.bf16 %v9013, %v9012
      %v9043 = vpack.c.bf16 %v9015, %v9014
      %v9044 = vpack.c.bf16 %v9017, %v9016
      %v9045 = vpack.c.bf16 %v9019, %v9018
      %v9046 = vpack.c.bf16 %v9021, %v9020
      %v9047 = vpack.c.bf16 %v9023, %v9022
      %v9048 = vpack.c.bf16 %v9025, %v9024
      %v9049 = vpack.c.bf16 %v9027, %v9026
      %v9050 = vpack.c.bf16 %v9029, %v9028
      %v9051 = vpack.c.bf16 %v9031, %v9030
      %v9052 = vpack.c.bf16 %v9033, %v9032
      %v9053 = vpack.c.bf16 %v9035, %v9034
      %v9054 = vpack.c.bf16 %v9037, %v9036
      %v9055 = vpack.c.bf16 %v9039, %v9038
      %v9072 = vunpack.c.l.b16 %v9040
      %v9073 = vunpack.c.h.b16 %v9040
      %v9074 = vunpack.c.l.b16 %v9041
      %v9075 = vunpack.c.h.b16 %v9041
      %v9076 = vunpack.c.l.b16 %v9042
      %v9077 = vunpack.c.h.b16 %v9042
      %v9078 = vunpack.c.l.b16 %v9043
      %v9079 = vunpack.c.h.b16 %v9043
      %v9080 = vunpack.c.l.b16 %v9044
      %v9081 = vunpack.c.h.b16 %v9044
      %v9082 = vunpack.c.l.b16 %v9045
      %v9083 = vunpack.c.h.b16 %v9045
      %v9084 = vunpack.c.l.b16 %v9046
      %v9085 = vunpack.c.h.b16 %v9046
      %v9086 = vunpack.c.l.b16 %v9047
      %v9087 = vunpack.c.h.b16 %v9047
      %v9088 = vunpack.c.l.b16 %v9048
      %v9089 = vunpack.c.h.b16 %v9048
      %v9090 = vunpack.c.l.b16 %v9049
      %v9091 = vunpack.c.h.b16 %v9049
      %v9092 = vunpack.c.l.b16 %v9050
      %v9093 = vunpack.c.h.b16 %v9050
      %v9094 = vunpack.c.l.b16 %v9051
      %v9095 = vunpack.c.h.b16 %v9051
      %v9096 = vunpack.c.l.b16 %v9052
      %v9097 = vunpack.c.h.b16 %v9052
      %v9098 = vunpack.c.l.b16 %v9053
      %v9099 = vunpack.c.h.b16 %v9053
      %v9100 = vunpack.c.l.b16 %v9054
      %v9101 = vunpack.c.h.b16 %v9054
      %v9102 = vunpack.c.l.b16 %v9055
      %v9103 = vunpack.c.h.b16 %v9055
      %v9104 = vpack.c.b16 %v9072, %v9072
      %v9105 = vpack.c.b16 %v9073, %v9073
      %v9106 = vpack.c.b16 %v9074, %v9074
      %v9107 = vpack.c.b16 %v9075, %v9075
      %v9108 = vpack.c.b16 %v9076, %v9076
      %v9109 = vpack.c.b16 %v9077, %v9077
      %v9110 = vpack.c.b16 %v9078, %v9078
      %v9111 = vpack.c.b16 %v9079, %v9079
      %v9112 = vpack.c.b16 %v9080, %v9080
      %v9113 = vpack.c.b16 %v9081, %v9081
      %v9114 = vpack.c.b16 %v9082, %v9082
      %v9115 = vpack.c.b16 %v9083, %v9083
      %v9116 = vpack.c.b16 %v9084, %v9084
      %v9117 = vpack.c.b16 %v9085, %v9085
      %v9118 = vpack.c.b16 %v9086, %v9086
      %v9119 = vpack.c.b16 %v9087, %v9087
      %v9120 = vpack.c.b16 %v9088, %v9088
      %v9121 = vpack.c.b16 %v9089, %v9089
      %v9122 = vpack.c.b16 %v9090, %v9090
      %v9123 = vpack.c.b16 %v9091, %v9091
      %v9124 = vpack.c.b16 %v9092, %v9092
      %v9125 = vpack.c.b16 %v9093, %v9093
      %v9126 = vpack.c.b16 %v9094, %v9094
      %v9127 = vpack.c.b16 %v9095, %v9095
      %v9128 = vpack.c.b16 %v9096, %v9096
      %v9129 = vpack.c.b16 %v9097, %v9097
      %v9130 = vpack.c.b16 %v9098, %v9098
      %v9131 = vpack.c.b16 %v9099, %v9099
      %v9132 = vpack.c.b16 %v9100, %v9100
      %v9133 = vpack.c.b16 %v9101, %v9101
      %v9134 = vpack.c.b16 %v9102, %v9102
      %v9135 = vpack.c.b16 %v9103, %v9103
      %v9137 = vshrl.u32 %v9104, 16
      %v9139 = vrot.slane %v9137, 7
      %v9140 = vshll.u32 %v9104, 16
      %v9142 = vor.u32 %v9139, %v9140
      %v9143 = vrot.slane %v9139, 4
      %v9145 = vshrl.u32 %v9105, 16
      %v9147 = vrot.slane %v9145, 7
      %v9148 = vshll.u32 %v9105, 16
      %v9150 = vor.u32 %v9147, %v9148
      %v9151 = vsel %vm262, %v9143, %v9150
      %v9152 = vrot.slane %v9147, 4
      %v9154 = vshrl.u32 %v9106, 16
      %v9156 = vrot.slane %v9154, 7
      %v9157 = vshll.u32 %v9106, 16
      %v9159 = vor.u32 %v9156, %v9157
      %v9160 = vrot.slane %v9156, 4
      %v9162 = vshrl.u32 %v9107, 16
      %v9164 = vrot.slane %v9162, 7
      %v9165 = vshll.u32 %v9107, 16
      %v9167 = vor.u32 %v9164, %v9165
      %v9168 = vsel %vm262, %v9160, %v9167
      %v9169 = vrot.slane %v9164, 4
      %v9171 = vshrl.u32 %v9108, 16
      %v9173 = vrot.slane %v9171, 7
      %v9174 = vshll.u32 %v9108, 16
      %v9176 = vor.u32 %v9173, %v9174
      %v9177 = vrot.slane %v9173, 4
      %v9179 = vshrl.u32 %v9109, 16
      %v9181 = vrot.slane %v9179, 7
      %v9182 = vshll.u32 %v9109, 16
      %v9184 = vor.u32 %v9181, %v9182
      %v9185 = vsel %vm262, %v9177, %v9184
      %v9186 = vrot.slane %v9181, 4
      %v9188 = vshrl.u32 %v9110, 16
      %v9190 = vrot.slane %v9188, 7
      %v9191 = vshll.u32 %v9110, 16
      %v9193 = vor.u32 %v9190, %v9191
      %v9194 = vrot.slane %v9190, 4
      %v9196 = vshrl.u32 %v9111, 16
      %v9198 = vrot.slane %v9196, 7
      %v9199 = vshll.u32 %v9111, 16
      %v9201 = vor.u32 %v9198, %v9199
      %v9202 = vsel %vm262, %v9194, %v9201
      %v9203 = vrot.slane %v9198, 4
      %v9205 = vshrl.u32 %v9112, 16
      %v9207 = vrot.slane %v9205, 7
      %v9208 = vshll.u32 %v9112, 16
      %v9210 = vor.u32 %v9207, %v9208
      %v9211 = vrot.slane %v9207, 4
      %v9213 = vshrl.u32 %v9113, 16
      %v9215 = vrot.slane %v9213, 7
      %v9216 = vshll.u32 %v9113, 16
      %v9218 = vor.u32 %v9215, %v9216
      %v9219 = vsel %vm262, %v9211, %v9218
      %v9220 = vrot.slane %v9215, 4
      %v9222 = vshrl.u32 %v9114, 16
      %v9224 = vrot.slane %v9222, 7
      %v9225 = vshll.u32 %v9114, 16
      %v9227 = vor.u32 %v9224, %v9225
      %v9228 = vrot.slane %v9224, 4
      %v9230 = vshrl.u32 %v9115, 16
      %v9232 = vrot.slane %v9230, 7
      %v9233 = vshll.u32 %v9115, 16
      %v9235 = vor.u32 %v9232, %v9233
      %v9236 = vsel %vm262, %v9228, %v9235
      %v9237 = vrot.slane %v9232, 4
      %v9239 = vshrl.u32 %v9116, 16
      %v9241 = vrot.slane %v9239, 7
      %v9242 = vshll.u32 %v9116, 16
      %v9244 = vor.u32 %v9241, %v9242
      %v9245 = vrot.slane %v9241, 4
      %v9247 = vshrl.u32 %v9117, 16
      %v9249 = vrot.slane %v9247, 7
      %v9250 = vshll.u32 %v9117, 16
      %v9252 = vor.u32 %v9249, %v9250
      %v9253 = vsel %vm262, %v9245, %v9252
      %v9254 = vrot.slane %v9249, 4
      %v9256 = vshrl.u32 %v9118, 16
      %v9258 = vrot.slane %v9256, 7
      %v9259 = vshll.u32 %v9118, 16
      %v9261 = vor.u32 %v9258, %v9259
      %v9262 = vrot.slane %v9258, 4
      %v9264 = vshrl.u32 %v9119, 16
      %v9266 = vrot.slane %v9264, 7
      %v9267 = vshll.u32 %v9119, 16
      %v9269 = vor.u32 %v9266, %v9267
      %v9270 = vsel %vm262, %v9262, %v9269
      %v9271 = vrot.slane %v9266, 4
      %v9273 = vshrl.u32 %v9120, 16
      %v9275 = vrot.slane %v9273, 7
      %v9276 = vshll.u32 %v9120, 16
      %v9278 = vor.u32 %v9275, %v9276
      %v9279 = vrot.slane %v9275, 4
      %v9281 = vshrl.u32 %v9121, 16
      %v9283 = vrot.slane %v9281, 7
      %v9284 = vshll.u32 %v9121, 16
      %v9286 = vor.u32 %v9283, %v9284
      %v9287 = vsel %vm262, %v9279, %v9286
      %v9288 = vrot.slane %v9283, 4
      %v9290 = vshrl.u32 %v9122, 16
      %v9292 = vrot.slane %v9290, 7
      %v9293 = vshll.u32 %v9122, 16
      %v9295 = vor.u32 %v9292, %v9293
      %v9296 = vrot.slane %v9292, 4
      %v9298 = vshrl.u32 %v9123, 16
      %v9300 = vrot.slane %v9298, 7
      %v9301 = vshll.u32 %v9123, 16
      %v9303 = vor.u32 %v9300, %v9301
      %v9304 = vsel %vm262, %v9296, %v9303
      %v9305 = vrot.slane %v9300, 4
      %v9307 = vshrl.u32 %v9124, 16
      %v9309 = vrot.slane %v9307, 7
      %v9310 = vshll.u32 %v9124, 16
      %v9312 = vor.u32 %v9309, %v9310
      %v9313 = vrot.slane %v9309, 4
      %v9315 = vshrl.u32 %v9125, 16
      %v9317 = vrot.slane %v9315, 7
      %v9318 = vshll.u32 %v9125, 16
      %v9320 = vor.u32 %v9317, %v9318
      %v9321 = vsel %vm262, %v9313, %v9320
      %v9322 = vrot.slane %v9317, 4
      %v9324 = vshrl.u32 %v9126, 16
      %v9326 = vrot.slane %v9324, 7
      %v9327 = vshll.u32 %v9126, 16
      %v9329 = vor.u32 %v9326, %v9327
      %v9330 = vrot.slane %v9326, 4
      %v9332 = vshrl.u32 %v9127, 16
      %v9334 = vrot.slane %v9332, 7
      %v9335 = vshll.u32 %v9127, 16
      %v9337 = vor.u32 %v9334, %v9335
      %v9338 = vsel %vm262, %v9330, %v9337
      %v9339 = vrot.slane %v9334, 4
      %v9341 = vshrl.u32 %v9128, 16
      %v9343 = vrot.slane %v9341, 7
      %v9344 = vshll.u32 %v9128, 16
      %v9346 = vor.u32 %v9343, %v9344
      %v9347 = vrot.slane %v9343, 4
      %v9349 = vshrl.u32 %v9129, 16
      %v9351 = vrot.slane %v9349, 7
      %v9352 = vshll.u32 %v9129, 16
      %v9354 = vor.u32 %v9351, %v9352
      %v9355 = vsel %vm262, %v9347, %v9354
      %v9356 = vrot.slane %v9351, 4
      %v9358 = vshrl.u32 %v9130, 16
      %v9360 = vrot.slane %v9358, 7
      %v9361 = vshll.u32 %v9130, 16
      %v9363 = vor.u32 %v9360, %v9361
      %v9364 = vrot.slane %v9360, 4
      %v9366 = vshrl.u32 %v9131, 16
      %v9368 = vrot.slane %v9366, 7
      %v9369 = vshll.u32 %v9131, 16
      %v9371 = vor.u32 %v9368, %v9369
      %v9372 = vsel %vm262, %v9364, %v9371
      %v9373 = vrot.slane %v9368, 4
      %v9375 = vshrl.u32 %v9132, 16
      %v9377 = vrot.slane %v9375, 7
      %v9378 = vshll.u32 %v9132, 16
      %v9380 = vor.u32 %v9377, %v9378
      %v9381 = vrot.slane %v9377, 4
      %v9383 = vshrl.u32 %v9133, 16
      %v9385 = vrot.slane %v9383, 7
      %v9386 = vshll.u32 %v9133, 16
      %v9388 = vor.u32 %v9385, %v9386
      %v9389 = vsel %vm262, %v9381, %v9388
      %v9390 = vrot.slane %v9385, 4
      %v9392 = vshrl.u32 %v9134, 16
      %v9394 = vrot.slane %v9392, 7
      %v9395 = vshll.u32 %v9134, 16
      %v9397 = vor.u32 %v9394, %v9395
      %v9398 = vrot.slane %v9394, 4
      %v9400 = vshrl.u32 %v9135, 16
      %v9402 = vrot.slane %v9400, 7
      %v9403 = vshll.u32 %v9135, 16
      %v9405 = vor.u32 %v9402, %v9403
      %v9406 = vsel %vm262, %v9398, %v9405
      %v9407 = vrot.slane %v9402, 4
      %v9456 = vsel %vm586, %v9142, %v6677
      %9457 = vst [vmem:[%s583] sm:$0xf] %v9456
      %9458 = vst.msk [vmem:[%s583 + $0x4] sm:$0xf] %vm172, %v9151
      %v9459 = vld [vmem:[%s583 + $0x8] sm:$0x1]
      %v9460 = vsel %vm592, %v9152, %v9459
      %9461 = vst [vmem:[%s583 + $0x8] sm:$0x1] %v9460
      %v9462 = vld [vmem:[%s583 + $0xc] sm:$0xf]
      %v9463 = vsel %vm586, %v9159, %v9462
      %9464 = vst [vmem:[%s583 + $0xc] sm:$0xf] %v9463
      %9465 = vst.msk [vmem:[%s583 + $0x10] sm:$0xf] %vm172, %v9168
      %v9466 = vld [vmem:[%s583 + $0x14] sm:$0x1]
      %v9467 = vsel %vm592, %v9169, %v9466
      %9468 = vst [vmem:[%s583 + $0x14] sm:$0x1] %v9467
      %v9469 = vld [vmem:[%s583 + $0x18] sm:$0xf]
      %v9470 = vsel %vm586, %v9176, %v9469
      %9471 = vst [vmem:[%s583 + $0x18] sm:$0xf] %v9470
      %9472 = vst.msk [vmem:[%s583 + $0x1c] sm:$0xf] %vm172, %v9185
      %v9473 = vld [vmem:[%s583 + $0x20] sm:$0x1]
      %v9474 = vsel %vm592, %v9186, %v9473
      %9475 = vst [vmem:[%s583 + $0x20] sm:$0x1] %v9474
      %v9476 = vld [vmem:[%s583 + $0x24] sm:$0xf]
      %v9477 = vsel %vm586, %v9193, %v9476
      %9478 = vst [vmem:[%s583 + $0x24] sm:$0xf] %v9477
      %9479 = vst.msk [vmem:[%s583 + $0x28] sm:$0xf] %vm172, %v9202
      %v9480 = vld [vmem:[%s583 + $0x2c] sm:$0x1]
      %v9481 = vsel %vm592, %v9203, %v9480
      %9482 = vst [vmem:[%s583 + $0x2c] sm:$0x1] %v9481
      %v9483 = vld [vmem:[%s583 + $0x30] sm:$0xf]
      %v9484 = vsel %vm586, %v9210, %v9483
      %9485 = vst [vmem:[%s583 + $0x30] sm:$0xf] %v9484
      %9486 = vst.msk [vmem:[%s583 + $0x34] sm:$0xf] %vm172, %v9219
      %v9487 = vld [vmem:[%s583 + $0x38] sm:$0x1]
      %v9488 = vsel %vm592, %v9220, %v9487
      %9489 = vst [vmem:[%s583 + $0x38] sm:$0x1] %v9488
      %v9490 = vld [vmem:[%s583 + $0x3c] sm:$0xf]
      %v9491 = vsel %vm586, %v9227, %v9490
      %9492 = vst [vmem:[%s583 + $0x3c] sm:$0xf] %v9491
      %9493 = vst.msk [vmem:[%s583 + $0x40] sm:$0xf] %vm172, %v9236
      %v9494 = vld [vmem:[%s583 + $0x44] sm:$0x1]
      %v9495 = vsel %vm592, %v9237, %v9494
      %9496 = vst [vmem:[%s583 + $0x44] sm:$0x1] %v9495
      %v9497 = vld [vmem:[%s583 + $0x48] sm:$0xf]
      %v9498 = vsel %vm586, %v9244, %v9497
      %9499 = vst [vmem:[%s583 + $0x48] sm:$0xf] %v9498
      %9500 = vst.msk [vmem:[%s583 + $0x4c] sm:$0xf] %vm172, %v9253
      %v9501 = vld [vmem:[%s583 + $0x50] sm:$0x1]
      %v9502 = vsel %vm592, %v9254, %v9501
      %9503 = vst [vmem:[%s583 + $0x50] sm:$0x1] %v9502
      %v9504 = vld [vmem:[%s583 + $0x54] sm:$0xf]
      %v9505 = vsel %vm586, %v9261, %v9504
      %9506 = vst [vmem:[%s583 + $0x54] sm:$0xf] %v9505
      %9507 = vst.msk [vmem:[%s583 + $0x58] sm:$0xf] %vm172, %v9270
      %v9508 = vld [vmem:[%s583 + $0x5c] sm:$0x1]
      %v9509 = vsel %vm592, %v9271, %v9508
      %9510 = vst [vmem:[%s583 + $0x5c] sm:$0x1] %v9509
      %v9511 = vld [vmem:[%s583 + $0x60] sm:$0xf]
      %v9512 = vsel %vm586, %v9278, %v9511
      %9513 = vst [vmem:[%s583 + $0x60] sm:$0xf] %v9512
      %9514 = vst.msk [vmem:[%s583 + $0x64] sm:$0xf] %vm172, %v9287
      %v9515 = vld [vmem:[%s583 + $0x68] sm:$0x1]
      %v9516 = vsel %vm592, %v9288, %v9515
      %9517 = vst [vmem:[%s583 + $0x68] sm:$0x1] %v9516
      %v9518 = vld [vmem:[%s583 + $0x6c] sm:$0xf]
      %v9519 = vsel %vm586, %v9295, %v9518
      %9520 = vst [vmem:[%s583 + $0x6c] sm:$0xf] %v9519
      %9521 = vst.msk [vmem:[%s583 + $0x70] sm:$0xf] %vm172, %v9304
      %v9522 = vld [vmem:[%s583 + $0x74] sm:$0x1]
      %v9523 = vsel %vm592, %v9305, %v9522
      %9524 = vst [vmem:[%s583 + $0x74] sm:$0x1] %v9523
      %v9525 = vld [vmem:[%s583 + $0x78] sm:$0xf]
      %v9526 = vsel %vm586, %v9312, %v9525
      %9527 = vst [vmem:[%s583 + $0x78] sm:$0xf] %v9526
      %9528 = vst.msk [vmem:[%s583 + $0x7c] sm:$0xf] %vm172, %v9321
      %v9529 = vld [vmem:[%s583 + $0x80] sm:$0x1]
      %v9530 = vsel %vm592, %v9322, %v9529
      %9531 = vst [vmem:[%s583 + $0x80] sm:$0x1] %v9530
      %v9532 = vld [vmem:[%s583 + $0x84] sm:$0xf]
      %v9533 = vsel %vm586, %v9329, %v9532
      %9534 = vst [vmem:[%s583 + $0x84] sm:$0xf] %v9533
      %9535 = vst.msk [vmem:[%s583 + $0x88] sm:$0xf] %vm172, %v9338
      %v9536 = vld [vmem:[%s583 + $0x8c] sm:$0x1]
      %v9537 = vsel %vm592, %v9339, %v9536
      %9538 = vst [vmem:[%s583 + $0x8c] sm:$0x1] %v9537
      %v9539 = vld [vmem:[%s583 + $0x90] sm:$0xf]
      %v9540 = vsel %vm586, %v9346, %v9539
      %9541 = vst [vmem:[%s583 + $0x90] sm:$0xf] %v9540
      %9542 = vst.msk [vmem:[%s583 + $0x94] sm:$0xf] %vm172, %v9355
      %v9543 = vld [vmem:[%s583 + $0x98] sm:$0x1]
      %v9544 = vsel %vm592, %v9356, %v9543
      %9545 = vst [vmem:[%s583 + $0x98] sm:$0x1] %v9544
      %v9546 = vld [vmem:[%s583 + $0x9c] sm:$0xf]
      %v9547 = vsel %vm586, %v9363, %v9546
      %9548 = vst [vmem:[%s583 + $0x9c] sm:$0xf] %v9547
      %9549 = vst.msk [vmem:[%s583 + $0xa0] sm:$0xf] %vm172, %v9372
      %v9550 = vld [vmem:[%s583 + $0xa4] sm:$0x1]
      %v9551 = vsel %vm592, %v9373, %v9550
      %9552 = vst [vmem:[%s583 + $0xa4] sm:$0x1] %v9551
      %v9553 = vld [vmem:[%s583 + $0xa8] sm:$0xf]
      %v9554 = vsel %vm586, %v9380, %v9553
      %9555 = vst [vmem:[%s583 + $0xa8] sm:$0xf] %v9554
      %9556 = vst.msk [vmem:[%s583 + $0xac] sm:$0xf] %vm172, %v9389
      %v9557 = vld [vmem:[%s583 + $0xb0] sm:$0x1]
      %v9558 = vsel %vm592, %v9390, %v9557
      %9559 = vst [vmem:[%s583 + $0xb0] sm:$0x1] %v9558
      %v9560 = vld [vmem:[%s583 + $0xb4] sm:$0xf]
      %v9561 = vsel %vm586, %v9397, %v9560
      %9562 = vst [vmem:[%s583 + $0xb4] sm:$0xf] %v9561
      %9563 = vst.msk [vmem:[%s583 + $0xb8] sm:$0xf] %vm172, %v9406
      %v9564 = vld [vmem:[%s583 + $0xbc] sm:$0x1]
      %v9565 = vsel %vm592, %v9407, %v9564
      %9566 = vst [vmem:[%s583 + $0xbc] sm:$0x1] %v9565
      %v9567 = vld [vmem:[#allocation2] sm:$0xf]
      %v9568 = vld [vmem:[#allocation2 + $0x4] sm:$0xf]
      %v9569 = vld [vmem:[#allocation2 + $0xc] sm:$0xf]
      %v9570 = vld [vmem:[#allocation2 + $0x10] sm:$0xf]
      %v9571 = vld [vmem:[#allocation2 + $0x18] sm:$0xf]
      %v9572 = vld [vmem:[#allocation2 + $0x1c] sm:$0xf]
      %v9573 = vld [vmem:[#allocation2 + $0x24] sm:$0xf]
      %v9574 = vld [vmem:[#allocation2 + $0x28] sm:$0xf]
      %v9575 = vld [vmem:[#allocation2 + $0x30] sm:$0xf]
      %v9576 = vld [vmem:[#allocation2 + $0x34] sm:$0xf]
      %v9577 = vld [vmem:[#allocation2 + $0x3c] sm:$0xf]
      %v9578 = vld [vmem:[#allocation2 + $0x40] sm:$0xf]
      %v9579 = vld [vmem:[#allocation2 + $0x48] sm:$0xf]
      %v9580 = vld [vmem:[#allocation2 + $0x4c] sm:$0xf]
      %v9581 = vld [vmem:[#allocation2 + $0x54] sm:$0xf]
      %v9582 = vld [vmem:[#allocation2 + $0x58] sm:$0xf]
      %v9583 = vld [vmem:[#allocation2 + $0x60] sm:$0xf]
      %v9584 = vld [vmem:[#allocation2 + $0x64] sm:$0xf]
      %v9585 = vld [vmem:[#allocation2 + $0x6c] sm:$0xf]
      %v9586 = vld [vmem:[#allocation2 + $0x70] sm:$0xf]
      %v9587 = vld [vmem:[#allocation2 + $0x78] sm:$0xf]
      %v9588 = vld [vmem:[#allocation2 + $0x7c] sm:$0xf]
      %v9589 = vld [vmem:[#allocation2 + $0x84] sm:$0xf]
      %v9590 = vld [vmem:[#allocation2 + $0x88] sm:$0xf]
      %v9591 = vld [vmem:[#allocation2 + $0x90] sm:$0xf]
      %v9592 = vld [vmem:[#allocation2 + $0x94] sm:$0xf]
      %v9593 = vld [vmem:[#allocation2 + $0x9c] sm:$0xf]
      %v9594 = vld [vmem:[#allocation2 + $0xa0] sm:$0xf]
      %v9595 = vld [vmem:[#allocation2 + $0xa8] sm:$0xf]
      %v9596 = vld [vmem:[#allocation2 + $0xac] sm:$0xf]
      %v9597 = vld [vmem:[#allocation2 + $0xb4] sm:$0xf]
      %v9598 = vld [vmem:[#allocation2 + $0xb8] sm:$0xf]
      %v9599 = vld [vmem:[#allocation2 + $0x8] sm:$0x1]
      %v9600 = vld [vmem:[#allocation2 + $0x14] sm:$0x1]
      %v9601 = vld [vmem:[#allocation2 + $0x20] sm:$0x1]
      %v9602 = vld [vmem:[#allocation2 + $0x2c] sm:$0x1]
      %v9603 = vld [vmem:[#allocation2 + $0x38] sm:$0x1]
      %v9604 = vld [vmem:[#allocation2 + $0x44] sm:$0x1]
      %v9605 = vld [vmem:[#allocation2 + $0x50] sm:$0x1]
      %v9606 = vld [vmem:[#allocation2 + $0x5c] sm:$0x1]
      %v9607 = vld [vmem:[#allocation2 + $0x68] sm:$0x1]
      %v9608 = vld [vmem:[#allocation2 + $0x74] sm:$0x1]
      %v9609 = vld [vmem:[#allocation2 + $0x80] sm:$0x1]
      %v9610 = vld [vmem:[#allocation2 + $0x8c] sm:$0x1]
      %v9611 = vld [vmem:[#allocation2 + $0x98] sm:$0x1]
      %v9612 = vld [vmem:[#allocation2 + $0xa4] sm:$0x1]
      %v9613 = vld [vmem:[#allocation2 + $0xb0] sm:$0x1]
      %v9614 = vld [vmem:[#allocation2 + $0xbc] sm:$0x1]
      %v9615 = vld [vmem:[#allocation2] sm:$0xe]
      %v9616 = vld [vmem:[#allocation2 + $0xc] sm:$0xe]
      %v9617 = vld [vmem:[#allocation2 + $0x18] sm:$0xe]
      %v9618 = vld [vmem:[#allocation2 + $0x24] sm:$0xe]
      %v9619 = vld [vmem:[#allocation2 + $0x30] sm:$0xe]
      %v9620 = vld [vmem:[#allocation2 + $0x3c] sm:$0xe]
      %v9621 = vld [vmem:[#allocation2 + $0x48] sm:$0xe]
      %v9622 = vld [vmem:[#allocation2 + $0x54] sm:$0xe]
      %v9623 = vld [vmem:[#allocation2 + $0x60] sm:$0xe]
      %v9624 = vld [vmem:[#allocation2 + $0x6c] sm:$0xe]
      %v9625 = vld [vmem:[#allocation2 + $0x78] sm:$0xe]
      %v9626 = vld [vmem:[#allocation2 + $0x84] sm:$0xe]
      %v9627 = vld [vmem:[#allocation2 + $0x90] sm:$0xe]
      %v9628 = vld [vmem:[#allocation2 + $0x9c] sm:$0xe]
      %v9629 = vld [vmem:[#allocation2 + $0xa8] sm:$0xe]
      %v9630 = vld [vmem:[#allocation2 + $0xb4] sm:$0xe]
      %v9631 = vld [vmem:[%s583] sm:$0xf]
      %v9632 = vld [vmem:[%s583 + $0x4] sm:$0xf]
      %v9633 = vld [vmem:[%s583 + $0xc] sm:$0xf]
      %v9634 = vld [vmem:[%s583 + $0x10] sm:$0xf]
      %v9635 = vld [vmem:[%s583 + $0x18] sm:$0xf]
      %v9636 = vld [vmem:[%s583 + $0x1c] sm:$0xf]
      %v9637 = vld [vmem:[%s583 + $0x24] sm:$0xf]
      %v9638 = vld [vmem:[%s583 + $0x28] sm:$0xf]
      %v9639 = vld [vmem:[%s583 + $0x30] sm:$0xf]
      %v9640 = vld [vmem:[%s583 + $0x34] sm:$0xf]
      %v9641 = vld [vmem:[%s583 + $0x3c] sm:$0xf]
      %v9642 = vld [vmem:[%s583 + $0x40] sm:$0xf]
      %v9643 = vld [vmem:[%s583 + $0x48] sm:$0xf]
      %v9644 = vld [vmem:[%s583 + $0x4c] sm:$0xf]
      %v9645 = vld [vmem:[%s583 + $0x54] sm:$0xf]
      %v9646 = vld [vmem:[%s583 + $0x58] sm:$0xf]
      %v9647 = vld [vmem:[%s583 + $0x60] sm:$0xf]
      %v9648 = vld [vmem:[%s583 + $0x64] sm:$0xf]
      %v9649 = vld [vmem:[%s583 + $0x6c] sm:$0xf]
      %v9650 = vld [vmem:[%s583 + $0x70] sm:$0xf]
      %v9651 = vld [vmem:[%s583 + $0x78] sm:$0xf]
      %v9652 = vld [vmem:[%s583 + $0x7c] sm:$0xf]
      %v9653 = vld [vmem:[%s583 + $0x84] sm:$0xf]
      %v9654 = vld [vmem:[%s583 + $0x88] sm:$0xf]
      %v9655 = vld [vmem:[%s583 + $0x90] sm:$0xf]
      %v9656 = vld [vmem:[%s583 + $0x94] sm:$0xf]
      %v9657 = vld [vmem:[%s583 + $0x9c] sm:$0xf]
      %v9658 = vld [vmem:[%s583 + $0xa0] sm:$0xf]
      %v9659 = vld [vmem:[%s583 + $0xa8] sm:$0xf]
      %v9660 = vld [vmem:[%s583 + $0xac] sm:$0xf]
      %v9661 = vld [vmem:[%s583 + $0xb4] sm:$0xf]
      %v9662 = vld [vmem:[%s583 + $0xb8] sm:$0xf]
      %v9663 = vld [vmem:[%s583 + $0x8] sm:$0x1]
      %v9664 = vld [vmem:[%s583 + $0x14] sm:$0x1]
      %v9665 = vld [vmem:[%s583 + $0x20] sm:$0x1]
      %v9666 = vld [vmem:[%s583 + $0x2c] sm:$0x1]
      %v9667 = vld [vmem:[%s583 + $0x38] sm:$0x1]
      %v9668 = vld [vmem:[%s583 + $0x44] sm:$0x1]
      %v9669 = vld [vmem:[%s583 + $0x50] sm:$0x1]
      %v9670 = vld [vmem:[%s583 + $0x5c] sm:$0x1]
      %v9671 = vld [vmem:[%s583 + $0x68] sm:$0x1]
      %v9672 = vld [vmem:[%s583 + $0x74] sm:$0x1]
      %v9673 = vld [vmem:[%s583 + $0x80] sm:$0x1]
      %v9674 = vld [vmem:[%s583 + $0x8c] sm:$0x1]
      %v9675 = vld [vmem:[%s583 + $0x98] sm:$0x1]
      %v9676 = vld [vmem:[%s583 + $0xa4] sm:$0x1]
      %v9677 = vld [vmem:[%s583 + $0xb0] sm:$0x1]
      %v9678 = vld [vmem:[%s583 + $0xbc] sm:$0x1]
      %v9679 = vld [vmem:[%s583] sm:$0xe]
      %v9680 = vld [vmem:[%s583 + $0xc] sm:$0xe]
      %v9681 = vld [vmem:[%s583 + $0x18] sm:$0xe]
      %v9682 = vld [vmem:[%s583 + $0x24] sm:$0xe]
      %v9683 = vld [vmem:[%s583 + $0x30] sm:$0xe]
      %v9684 = vld [vmem:[%s583 + $0x3c] sm:$0xe]
      %v9685 = vld [vmem:[%s583 + $0x48] sm:$0xe]
      %v9686 = vld [vmem:[%s583 + $0x54] sm:$0xe]
      %v9687 = vld [vmem:[%s583 + $0x60] sm:$0xe]
      %v9688 = vld [vmem:[%s583 + $0x6c] sm:$0xe]
      %v9689 = vld [vmem:[%s583 + $0x78] sm:$0xe]
      %v9690 = vld [vmem:[%s583 + $0x84] sm:$0xe]
      %v9691 = vld [vmem:[%s583 + $0x90] sm:$0xe]
      %v9692 = vld [vmem:[%s583 + $0x9c] sm:$0xe]
      %v9693 = vld [vmem:[%s583 + $0xa8] sm:$0xe]
      %v9694 = vld [vmem:[%s583 + $0xb4] sm:$0xe]
      %v9695 = vld [vmem:[%s829] sm:$0xf]
      %v9696 = vld [vmem:[%s829 + $0x4] sm:$0xf]
      %v9697 = vld [vmem:[%s829 + $0xc] sm:$0xf]
      %v9698 = vld [vmem:[%s829 + $0x10] sm:$0xf]
      %v9699 = vld [vmem:[%s829 + $0x18] sm:$0xf]
      %v9700 = vld [vmem:[%s829 + $0x1c] sm:$0xf]
      %v9701 = vld [vmem:[%s829 + $0x24] sm:$0xf]
      %v9702 = vld [vmem:[%s829 + $0x28] sm:$0xf]
      %v9703 = vld [vmem:[%s829 + $0x30] sm:$0xf]
      %v9704 = vld [vmem:[%s829 + $0x34] sm:$0xf]
      %v9705 = vld [vmem:[%s829 + $0x3c] sm:$0xf]
      %v9706 = vld [vmem:[%s829 + $0x40] sm:$0xf]
      %v9707 = vld [vmem:[%s829 + $0x48] sm:$0xf]
      %v9708 = vld [vmem:[%s829 + $0x4c] sm:$0xf]
      %v9709 = vld [vmem:[%s829 + $0x54] sm:$0xf]
      %v9710 = vld [vmem:[%s829 + $0x58] sm:$0xf]
      %v9711 = vld [vmem:[%s829 + $0x60] sm:$0xf]
      %v9712 = vld [vmem:[%s829 + $0x64] sm:$0xf]
      %v9713 = vld [vmem:[%s829 + $0x6c] sm:$0xf]
      %v9714 = vld [vmem:[%s829 + $0x70] sm:$0xf]
      %v9715 = vld [vmem:[%s829 + $0x78] sm:$0xf]
      %v9716 = vld [vmem:[%s829 + $0x7c] sm:$0xf]
      %v9717 = vld [vmem:[%s829 + $0x84] sm:$0xf]
      %v9718 = vld [vmem:[%s829 + $0x88] sm:$0xf]
      %v9719 = vld [vmem:[%s829 + $0x90] sm:$0xf]
      %v9720 = vld [vmem:[%s829 + $0x94] sm:$0xf]
      %v9721 = vld [vmem:[%s829 + $0x9c] sm:$0xf]
      %v9722 = vld [vmem:[%s829 + $0xa0] sm:$0xf]
      %v9723 = vld [vmem:[%s829 + $0xa8] sm:$0xf]
      %v9724 = vld [vmem:[%s829 + $0xac] sm:$0xf]
      %v9725 = vld [vmem:[%s829 + $0xb4] sm:$0xf]
      %v9726 = vld [vmem:[%s829 + $0xb8] sm:$0xf]
      %v9727 = vld [vmem:[%s829 + $0x8] sm:$0x1]
      %v9728 = vld [vmem:[%s829 + $0x14] sm:$0x1]
      %v9729 = vld [vmem:[%s829 + $0x20] sm:$0x1]
      %v9730 = vld [vmem:[%s829 + $0x2c] sm:$0x1]
      %v9731 = vld [vmem:[%s829 + $0x38] sm:$0x1]
      %v9732 = vld [vmem:[%s829 + $0x44] sm:$0x1]
      %v9733 = vld [vmem:[%s829 + $0x50] sm:$0x1]
      %v9734 = vld [vmem:[%s829 + $0x5c] sm:$0x1]
      %v9735 = vld [vmem:[%s829 + $0x68] sm:$0x1]
      %v9736 = vld [vmem:[%s829 + $0x74] sm:$0x1]
      %v9737 = vld [vmem:[%s829 + $0x80] sm:$0x1]
      %v9738 = vld [vmem:[%s829 + $0x8c] sm:$0x1]
      %v9739 = vld [vmem:[%s829 + $0x98] sm:$0x1]
      %v9740 = vld [vmem:[%s829 + $0xa4] sm:$0x1]
      %v9741 = vld [vmem:[%s829 + $0xb0] sm:$0x1]
      %v9742 = vld [vmem:[%s829 + $0xbc] sm:$0x1]
      %v9743 = vld [vmem:[%s829] sm:$0xe]
      %v9744 = vld [vmem:[%s829 + $0xc] sm:$0xe]
      %v9745 = vld [vmem:[%s829 + $0x18] sm:$0xe]
      %v9746 = vld [vmem:[%s829 + $0x24] sm:$0xe]
      %v9747 = vld [vmem:[%s829 + $0x30] sm:$0xe]
      %v9748 = vld [vmem:[%s829 + $0x3c] sm:$0xe]
      %v9749 = vld [vmem:[%s829 + $0x48] sm:$0xe]
      %v9750 = vld [vmem:[%s829 + $0x54] sm:$0xe]
      %v9751 = vld [vmem:[%s829 + $0x60] sm:$0xe]
      %v9752 = vld [vmem:[%s829 + $0x6c] sm:$0xe]
      %v9753 = vld [vmem:[%s829 + $0x78] sm:$0xe]
      %v9754 = vld [vmem:[%s829 + $0x84] sm:$0xe]
      %v9755 = vld [vmem:[%s829 + $0x90] sm:$0xe]
      %v9756 = vld [vmem:[%s829 + $0x9c] sm:$0xe]
      %v9757 = vld [vmem:[%s829 + $0xa8] sm:$0xe]
      %v9758 = vld [vmem:[%s829 + $0xb4] sm:$0xe]
      %v9791 = vunpack.c.l.b16 %v9567
      %v9792 = vunpack.c.l.b16 %v9568
      %v9793 = vunpack.c.l.b16 %v9569
      %v9794 = vunpack.c.l.b16 %v9570
      %v9795 = vunpack.c.l.b16 %v9571
      %v9796 = vunpack.c.l.b16 %v9572
      %v9797 = vunpack.c.l.b16 %v9573
      %v9798 = vunpack.c.l.b16 %v9574
      %v9799 = vunpack.c.l.b16 %v9575
      %v9800 = vunpack.c.l.b16 %v9576
      %v9801 = vunpack.c.l.b16 %v9577
      %v9802 = vunpack.c.l.b16 %v9578
      %v9803 = vunpack.c.l.b16 %v9579
      %v9804 = vunpack.c.l.b16 %v9580
      %v9805 = vunpack.c.l.b16 %v9581
      %v9806 = vunpack.c.l.b16 %v9582
      %v9807 = vunpack.c.l.b16 %v9583
      %v9808 = vunpack.c.l.b16 %v9584
      %v9809 = vunpack.c.l.b16 %v9585
      %v9810 = vunpack.c.l.b16 %v9586
      %v9811 = vunpack.c.l.b16 %v9587
      %v9812 = vunpack.c.l.b16 %v9588
      %v9813 = vunpack.c.l.b16 %v9589
      %v9814 = vunpack.c.l.b16 %v9590
      %v9815 = vunpack.c.l.b16 %v9591
      %v9816 = vunpack.c.l.b16 %v9592
      %v9817 = vunpack.c.l.b16 %v9593
      %v9818 = vunpack.c.l.b16 %v9594
      %v9819 = vunpack.c.l.b16 %v9595
      %v9820 = vunpack.c.l.b16 %v9596
      %v9821 = vunpack.c.l.b16 %v9597
      %v9822 = vunpack.c.l.b16 %v9598
      %v9823 = vpack.c.b16 %v9792, %v9791
      %v9824 = vpack.c.b16 %v9794, %v9793
      %v9825 = vpack.c.b16 %v9796, %v9795
      %v9826 = vpack.c.b16 %v9798, %v9797
      %v9827 = vpack.c.b16 %v9800, %v9799
      %v9828 = vpack.c.b16 %v9802, %v9801
      %v9829 = vpack.c.b16 %v9804, %v9803
      %v9830 = vpack.c.b16 %v9806, %v9805
      %v9831 = vpack.c.b16 %v9808, %v9807
      %v9832 = vpack.c.b16 %v9810, %v9809
      %v9833 = vpack.c.b16 %v9812, %v9811
      %v9834 = vpack.c.b16 %v9814, %v9813
      %v9835 = vpack.c.b16 %v9816, %v9815
      %v9836 = vpack.c.b16 %v9818, %v9817
      %v9837 = vpack.c.b16 %v9820, %v9819
      %v9838 = vpack.c.b16 %v9822, %v9821
      %v9855 = vunpack.c.l.b16 %v9599
      %v9856 = vunpack.c.l.b16 %v9600
      %v9857 = vunpack.c.l.b16 %v9601
      %v9858 = vunpack.c.l.b16 %v9602
      %v9859 = vunpack.c.l.b16 %v9603
      %v9860 = vunpack.c.l.b16 %v9604
      %v9861 = vunpack.c.l.b16 %v9605
      %v9862 = vunpack.c.l.b16 %v9606
      %v9863 = vunpack.c.l.b16 %v9607
      %v9864 = vunpack.c.l.b16 %v9608
      %v9865 = vunpack.c.l.b16 %v9609
      %v9866 = vunpack.c.l.b16 %v9610
      %v9867 = vunpack.c.l.b16 %v9611
      %v9868 = vunpack.c.l.b16 %v9612
      %v9869 = vunpack.c.l.b16 %v9613
      %v9870 = vunpack.c.l.b16 %v9614
      %v9871 = vpack.c.b16 %v9855, %v9855
      %v9872 = vpack.c.b16 %v9856, %v9856
      %v9873 = vpack.c.b16 %v9857, %v9857
      %v9874 = vpack.c.b16 %v9858, %v9858
      %v9875 = vpack.c.b16 %v9859, %v9859
      %v9876 = vpack.c.b16 %v9860, %v9860
      %v9877 = vpack.c.b16 %v9861, %v9861
      %v9878 = vpack.c.b16 %v9862, %v9862
      %v9879 = vpack.c.b16 %v9863, %v9863
      %v9880 = vpack.c.b16 %v9864, %v9864
      %v9881 = vpack.c.b16 %v9865, %v9865
      %v9882 = vpack.c.b16 %v9866, %v9866
      %v9883 = vpack.c.b16 %v9867, %v9867
      %v9884 = vpack.c.b16 %v9868, %v9868
      %v9885 = vpack.c.b16 %v9869, %v9869
      %v9886 = vpack.c.b16 %v9870, %v9870
      %v9888 = vshrl.u32 %v9823, 16
      %v9890 = vshll.u32 %v9823, 16
      %v9892 = vrot.slane %v9890, 1
      %v9893 = vor.u32 %v9888, %v9892
      %v9895 = vshll.u32 %v9871, 16
      %v9897 = vrot.slane %v9895, 1
      %v9898 = vsel %vm1022, %v9893, %v9897
      %v9900 = vshrl.u32 %v9824, 16
      %v9902 = vshll.u32 %v9824, 16
      %v9904 = vrot.slane %v9902, 1
      %v9905 = vor.u32 %v9900, %v9904
      %v9907 = vshll.u32 %v9872, 16
      %v9909 = vrot.slane %v9907, 1
      %v9910 = vsel %vm1022, %v9905, %v9909
      %v9912 = vshrl.u32 %v9825, 16
      %v9914 = vshll.u32 %v9825, 16
      %v9916 = vrot.slane %v9914, 1
      %v9917 = vor.u32 %v9912, %v9916
      %v9919 = vshll.u32 %v9873, 16
      %v9921 = vrot.slane %v9919, 1
      %v9922 = vsel %vm1022, %v9917, %v9921
      %v9924 = vshrl.u32 %v9826, 16
      %v9926 = vshll.u32 %v9826, 16
      %v9928 = vrot.slane %v9926, 1
      %v9929 = vor.u32 %v9924, %v9928
      %v9931 = vshll.u32 %v9874, 16
      %v9933 = vrot.slane %v9931, 1
      %v9934 = vsel %vm1022, %v9929, %v9933
      %v9936 = vshrl.u32 %v9827, 16
      %v9938 = vshll.u32 %v9827, 16
      %v9940 = vrot.slane %v9938, 1
      %v9941 = vor.u32 %v9936, %v9940
      %v9943 = vshll.u32 %v9875, 16
      %v9945 = vrot.slane %v9943, 1
      %v9946 = vsel %vm1022, %v9941, %v9945
      %v9948 = vshrl.u32 %v9828, 16
      %v9950 = vshll.u32 %v9828, 16
      %v9952 = vrot.slane %v9950, 1
      %v9953 = vor.u32 %v9948, %v9952
      %v9955 = vshll.u32 %v9876, 16
      %v9957 = vrot.slane %v9955, 1
      %v9958 = vsel %vm1022, %v9953, %v9957
      %v9960 = vshrl.u32 %v9829, 16
      %v9962 = vshll.u32 %v9829, 16
      %v9964 = vrot.slane %v9962, 1
      %v9965 = vor.u32 %v9960, %v9964
      %v9967 = vshll.u32 %v9877, 16
      %v9969 = vrot.slane %v9967, 1
      %v9970 = vsel %vm1022, %v9965, %v9969
      %v9972 = vshrl.u32 %v9830, 16
      %v9974 = vshll.u32 %v9830, 16
      %v9976 = vrot.slane %v9974, 1
      %v9977 = vor.u32 %v9972, %v9976
      %v9979 = vshll.u32 %v9878, 16
      %v9981 = vrot.slane %v9979, 1
      %v9982 = vsel %vm1022, %v9977, %v9981
      %v9984 = vshrl.u32 %v9831, 16
      %v9986 = vshll.u32 %v9831, 16
      %v9988 = vrot.slane %v9986, 1
      %v9989 = vor.u32 %v9984, %v9988
      %v9991 = vshll.u32 %v9879, 16
      %v9993 = vrot.slane %v9991, 1
      %v9994 = vsel %vm1022, %v9989, %v9993
      %v9996 = vshrl.u32 %v9832, 16
      %v9998 = vshll.u32 %v9832, 16
      %v10000 = vrot.slane %v9998, 1
      %v10001 = vor.u32 %v9996, %v10000
      %v10003 = vshll.u32 %v9880, 16
      %v10005 = vrot.slane %v10003, 1
      %v10006 = vsel %vm1022, %v10001, %v10005
      %v10008 = vshrl.u32 %v9833, 16
      %v10010 = vshll.u32 %v9833, 16
      %v10012 = vrot.slane %v10010, 1
      %v10013 = vor.u32 %v10008, %v10012
      %v10015 = vshll.u32 %v9881, 16
      %v10017 = vrot.slane %v10015, 1
      %v10018 = vsel %vm1022, %v10013, %v10017
      %v10020 = vshrl.u32 %v9834, 16
      %v10022 = vshll.u32 %v9834, 16
      %v10024 = vrot.slane %v10022, 1
      %v10025 = vor.u32 %v10020, %v10024
      %v10027 = vshll.u32 %v9882, 16
      %v10029 = vrot.slane %v10027, 1
      %v10030 = vsel %vm1022, %v10025, %v10029
      %v10032 = vshrl.u32 %v9835, 16
      %v10034 = vshll.u32 %v9835, 16
      %v10036 = vrot.slane %v10034, 1
      %v10037 = vor.u32 %v10032, %v10036
      %v10039 = vshll.u32 %v9883, 16
      %v10041 = vrot.slane %v10039, 1
      %v10042 = vsel %vm1022, %v10037, %v10041
      %v10044 = vshrl.u32 %v9836, 16
      %v10046 = vshll.u32 %v9836, 16
      %v10048 = vrot.slane %v10046, 1
      %v10049 = vor.u32 %v10044, %v10048
      %v10051 = vshll.u32 %v9884, 16
      %v10053 = vrot.slane %v10051, 1
      %v10054 = vsel %vm1022, %v10049, %v10053
      %v10056 = vshrl.u32 %v9837, 16
      %v10058 = vshll.u32 %v9837, 16
      %v10060 = vrot.slane %v10058, 1
      %v10061 = vor.u32 %v10056, %v10060
      %v10063 = vshll.u32 %v9885, 16
      %v10065 = vrot.slane %v10063, 1
      %v10066 = vsel %vm1022, %v10061, %v10065
      %v10068 = vshrl.u32 %v9838, 16
      %v10070 = vshll.u32 %v9838, 16
      %v10072 = vrot.slane %v10070, 1
      %v10073 = vor.u32 %v10068, %v10072
      %v10075 = vshll.u32 %v9886, 16
      %v10077 = vrot.slane %v10075, 1
      %v10078 = vsel %vm1022, %v10073, %v10077
      %10079 = vrot.lane.b32.xlu0 %v9898, 32
      %v10080 = vpop.permute.xlu0 %10079
      %10081 = vrot.lane.b32.xlu0 %v9910, 32
      %v10082 = vpop.permute.xlu0 %10081
      %10083 = vrot.lane.b32.xlu0 %v9922, 32
      %v10084 = vpop.permute.xlu0 %10083
      %10085 = vrot.lane.b32.xlu0 %v9934, 32
      %v10086 = vpop.permute.xlu0 %10085
      %10087 = vrot.lane.b32.xlu0 %v9946, 32
      %v10088 = vpop.permute.xlu0 %10087
      %10089 = vrot.lane.b32.xlu0 %v9958, 32
      %v10090 = vpop.permute.xlu0 %10089
      %10091 = vrot.lane.b32.xlu0 %v9970, 32
      %v10092 = vpop.permute.xlu0 %10091
      %10093 = vrot.lane.b32.xlu0 %v9982, 32
      %v10094 = vpop.permute.xlu0 %10093
      %10095 = vrot.lane.b32.xlu0 %v9994, 32
      %v10096 = vpop.permute.xlu0 %10095
      %10097 = vrot.lane.b32.xlu0 %v10006, 32
      %v10098 = vpop.permute.xlu0 %10097
      %10099 = vrot.lane.b32.xlu0 %v10018, 32
      %v10100 = vpop.permute.xlu0 %10099
      %10101 = vrot.lane.b32.xlu0 %v10030, 32
      %v10102 = vpop.permute.xlu0 %10101
      %10103 = vrot.lane.b32.xlu0 %v10042, 32
      %v10104 = vpop.permute.xlu0 %10103
      %10105 = vrot.lane.b32.xlu0 %v10054, 32
      %v10106 = vpop.permute.xlu0 %10105
      %10107 = vrot.lane.b32.xlu0 %v10066, 32
      %v10108 = vpop.permute.xlu0 %10107
      %10109 = vrot.lane.b32.xlu0 %v10078, 32
      %v10110 = vpop.permute.xlu0 %10109
      %v10127 = vunpack.c.l.b16 %v9615
      %v10128 = vunpack.c.l.b16 %v9616
      %v10129 = vunpack.c.l.b16 %v9617
      %v10130 = vunpack.c.l.b16 %v9618
      %v10131 = vunpack.c.l.b16 %v9619
      %v10132 = vunpack.c.l.b16 %v9620
      %v10133 = vunpack.c.l.b16 %v9621
      %v10134 = vunpack.c.l.b16 %v9622
      %v10135 = vunpack.c.l.b16 %v9623
      %v10136 = vunpack.c.l.b16 %v9624
      %v10137 = vunpack.c.l.b16 %v9625
      %v10138 = vunpack.c.l.b16 %v9626
      %v10139 = vunpack.c.l.b16 %v9627
      %v10140 = vunpack.c.l.b16 %v9628
      %v10141 = vunpack.c.l.b16 %v9629
      %v10142 = vunpack.c.l.b16 %v9630
      %v10143 = vpack.c.b16 %v9792, %v10127
      %v10144 = vpack.c.b16 %v9794, %v10128
      %v10145 = vpack.c.b16 %v9796, %v10129
      %v10146 = vpack.c.b16 %v9798, %v10130
      %v10147 = vpack.c.b16 %v9800, %v10131
      %v10148 = vpack.c.b16 %v9802, %v10132
      %v10149 = vpack.c.b16 %v9804, %v10133
      %v10150 = vpack.c.b16 %v9806, %v10134
      %v10151 = vpack.c.b16 %v9808, %v10135
      %v10152 = vpack.c.b16 %v9810, %v10136
      %v10153 = vpack.c.b16 %v9812, %v10137
      %v10154 = vpack.c.b16 %v9814, %v10138
      %v10155 = vpack.c.b16 %v9816, %v10139
      %v10156 = vpack.c.b16 %v9818, %v10140
      %v10157 = vpack.c.b16 %v9820, %v10141
      %v10158 = vpack.c.b16 %v9822, %v10142
      %v10159 = vrot.slane %v10143, 1
      %v10160 = vrot.slane %v9871, 1
      %v10161 = vsel %vm1295, %v10159, %v10160
      %v10162 = vrot.slane %v10144, 1
      %v10163 = vrot.slane %v9872, 1
      %v10164 = vsel %vm1295, %v10162, %v10163
      %v10165 = vrot.slane %v10145, 1
      %v10166 = vrot.slane %v9873, 1
      %v10167 = vsel %vm1295, %v10165, %v10166
      %v10168 = vrot.slane %v10146, 1
      %v10169 = vrot.slane %v9874, 1
      %v10170 = vsel %vm1295, %v10168, %v10169
      %v10171 = vrot.slane %v10147, 1
      %v10172 = vrot.slane %v9875, 1
      %v10173 = vsel %vm1295, %v10171, %v10172
      %v10174 = vrot.slane %v10148, 1
      %v10175 = vrot.slane %v9876, 1
      %v10176 = vsel %vm1295, %v10174, %v10175
      %v10177 = vrot.slane %v10149, 1
      %v10178 = vrot.slane %v9877, 1
      %v10179 = vsel %vm1295, %v10177, %v10178
      %v10180 = vrot.slane %v10150, 1
      %v10181 = vrot.slane %v9878, 1
      %v10182 = vsel %vm1295, %v10180, %v10181
      %v10183 = vrot.slane %v10151, 1
      %v10184 = vrot.slane %v9879, 1
      %v10185 = vsel %vm1295, %v10183, %v10184
      %v10186 = vrot.slane %v10152, 1
      %v10187 = vrot.slane %v9880, 1
      %v10188 = vsel %vm1295, %v10186, %v10187
      %v10189 = vrot.slane %v10153, 1
      %v10190 = vrot.slane %v9881, 1
      %v10191 = vsel %vm1295, %v10189, %v10190
      %v10192 = vrot.slane %v10154, 1
      %v10193 = vrot.slane %v9882, 1
      %v10194 = vsel %vm1295, %v10192, %v10193
      %v10195 = vrot.slane %v10155, 1
      %v10196 = vrot.slane %v9883, 1
      %v10197 = vsel %vm1295, %v10195, %v10196
      %v10198 = vrot.slane %v10156, 1
      %v10199 = vrot.slane %v9884, 1
      %v10200 = vsel %vm1295, %v10198, %v10199
      %v10201 = vrot.slane %v10157, 1
      %v10202 = vrot.slane %v9885, 1
      %v10203 = vsel %vm1295, %v10201, %v10202
      %v10204 = vrot.slane %v10158, 1
      %v10205 = vrot.slane %v9886, 1
      %v10206 = vsel %vm1295, %v10204, %v10205
      %10207 = vrot.lane.b32.xlu0 %v10161, 64
      %v10208 = vpop.permute.xlu0 %10207
      %10209 = vrot.lane.b32.xlu0 %v10164, 64
      %v10210 = vpop.permute.xlu0 %10209
      %10211 = vrot.lane.b32.xlu0 %v10167, 64
      %v10212 = vpop.permute.xlu0 %10211
      %10213 = vrot.lane.b32.xlu0 %v10170, 64
      %v10214 = vpop.permute.xlu0 %10213
      %10215 = vrot.lane.b32.xlu0 %v10173, 64
      %v10216 = vpop.permute.xlu0 %10215
      %10217 = vrot.lane.b32.xlu0 %v10176, 64
      %v10218 = vpop.permute.xlu0 %10217
      %10219 = vrot.lane.b32.xlu0 %v10179, 64
      %v10220 = vpop.permute.xlu0 %10219
      %10221 = vrot.lane.b32.xlu0 %v10182, 64
      %v10222 = vpop.permute.xlu0 %10221
      %10223 = vrot.lane.b32.xlu0 %v10185, 64
      %v10224 = vpop.permute.xlu0 %10223
      %10225 = vrot.lane.b32.xlu0 %v10188, 64
      %v10226 = vpop.permute.xlu0 %10225
      %10227 = vrot.lane.b32.xlu0 %v10191, 64
      %v10228 = vpop.permute.xlu0 %10227
      %10229 = vrot.lane.b32.xlu0 %v10194, 64
      %v10230 = vpop.permute.xlu0 %10229
      %10231 = vrot.lane.b32.xlu0 %v10197, 64
      %v10232 = vpop.permute.xlu0 %10231
      %10233 = vrot.lane.b32.xlu0 %v10200, 64
      %v10234 = vpop.permute.xlu0 %10233
      %10235 = vrot.lane.b32.xlu0 %v10203, 64
      %v10236 = vpop.permute.xlu0 %10235
      %10237 = vrot.lane.b32.xlu0 %v10206, 64
      %v10238 = vpop.permute.xlu0 %10237
      %v10271 = vunpack.c.l.b16 %v9631
      %v10272 = vunpack.c.l.b16 %v9632
      %v10273 = vunpack.c.l.b16 %v9633
      %v10274 = vunpack.c.l.b16 %v9634
      %v10275 = vunpack.c.l.b16 %v9635
      %v10276 = vunpack.c.l.b16 %v9636
      %v10277 = vunpack.c.l.b16 %v9637
      %v10278 = vunpack.c.l.b16 %v9638
      %v10279 = vunpack.c.l.b16 %v9639
      %v10280 = vunpack.c.l.b16 %v9640
      %v10281 = vunpack.c.l.b16 %v9641
      %v10282 = vunpack.c.l.b16 %v9642
      %v10283 = vunpack.c.l.b16 %v9643
      %v10284 = vunpack.c.l.b16 %v9644
      %v10285 = vunpack.c.l.b16 %v9645
      %v10286 = vunpack.c.l.b16 %v9646
      %v10287 = vunpack.c.l.b16 %v9647
      %v10288 = vunpack.c.l.b16 %v9648
      %v10289 = vunpack.c.l.b16 %v9649
      %v10290 = vunpack.c.l.b16 %v9650
      %v10291 = vunpack.c.l.b16 %v9651
      %v10292 = vunpack.c.l.b16 %v9652
      %v10293 = vunpack.c.l.b16 %v9653
      %v10294 = vunpack.c.l.b16 %v9654
      %v10295 = vunpack.c.l.b16 %v9655
      %v10296 = vunpack.c.l.b16 %v9656
      %v10297 = vunpack.c.l.b16 %v9657
      %v10298 = vunpack.c.l.b16 %v9658
      %v10299 = vunpack.c.l.b16 %v9659
      %v10300 = vunpack.c.l.b16 %v9660
      %v10301 = vunpack.c.l.b16 %v9661
      %v10302 = vunpack.c.l.b16 %v9662
      %v10303 = vpack.c.b16 %v10272, %v10271
      %v10304 = vpack.c.b16 %v10274, %v10273
      %v10305 = vpack.c.b16 %v10276, %v10275
      %v10306 = vpack.c.b16 %v10278, %v10277
      %v10307 = vpack.c.b16 %v10280, %v10279
      %v10308 = vpack.c.b16 %v10282, %v10281
      %v10309 = vpack.c.b16 %v10284, %v10283
      %v10310 = vpack.c.b16 %v10286, %v10285
      %v10311 = vpack.c.b16 %v10288, %v10287
      %v10312 = vpack.c.b16 %v10290, %v10289
      %v10313 = vpack.c.b16 %v10292, %v10291
      %v10314 = vpack.c.b16 %v10294, %v10293
      %v10315 = vpack.c.b16 %v10296, %v10295
      %v10316 = vpack.c.b16 %v10298, %v10297
      %v10317 = vpack.c.b16 %v10300, %v10299
      %v10318 = vpack.c.b16 %v10302, %v10301
      %10319 = vrot.lane.b32.xlu0 %v10303, 96
      %v10320 = vpop.permute.xlu0 %10319
      %10321 = vrot.lane.b32.xlu0 %v10304, 96
      %v10322 = vpop.permute.xlu0 %10321
      %10323 = vrot.lane.b32.xlu0 %v10305, 96
      %v10324 = vpop.permute.xlu0 %10323
      %10325 = vrot.lane.b32.xlu0 %v10306, 96
      %v10326 = vpop.permute.xlu0 %10325
      %10327 = vrot.lane.b32.xlu0 %v10307, 96
      %v10328 = vpop.permute.xlu0 %10327
      %10329 = vrot.lane.b32.xlu0 %v10308, 96
      %v10330 = vpop.permute.xlu0 %10329
      %10331 = vrot.lane.b32.xlu0 %v10309, 96
      %v10332 = vpop.permute.xlu0 %10331
      %10333 = vrot.lane.b32.xlu0 %v10310, 96
      %v10334 = vpop.permute.xlu0 %10333
      %10335 = vrot.lane.b32.xlu0 %v10311, 96
      %v10336 = vpop.permute.xlu0 %10335
      %10337 = vrot.lane.b32.xlu0 %v10312, 96
      %v10338 = vpop.permute.xlu0 %10337
      %10339 = vrot.lane.b32.xlu0 %v10313, 96
      %v10340 = vpop.permute.xlu0 %10339
      %10341 = vrot.lane.b32.xlu0 %v10314, 96
      %v10342 = vpop.permute.xlu0 %10341
      %10343 = vrot.lane.b32.xlu0 %v10315, 96
      %v10344 = vpop.permute.xlu0 %10343
      %10345 = vrot.lane.b32.xlu0 %v10316, 96
      %v10346 = vpop.permute.xlu0 %10345
      %10347 = vrot.lane.b32.xlu0 %v10317, 96
      %v10348 = vpop.permute.xlu0 %10347
      %10349 = vrot.lane.b32.xlu0 %v10318, 96
      %v10350 = vpop.permute.xlu0 %10349
      %v10367 = vunpack.c.l.b16 %v9663
      %v10368 = vunpack.c.l.b16 %v9664
      %v10369 = vunpack.c.l.b16 %v9665
      %v10370 = vunpack.c.l.b16 %v9666
      %v10371 = vunpack.c.l.b16 %v9667
      %v10372 = vunpack.c.l.b16 %v9668
      %v10373 = vunpack.c.l.b16 %v9669
      %v10374 = vunpack.c.l.b16 %v9670
      %v10375 = vunpack.c.l.b16 %v9671
      %v10376 = vunpack.c.l.b16 %v9672
      %v10377 = vunpack.c.l.b16 %v9673
      %v10378 = vunpack.c.l.b16 %v9674
      %v10379 = vunpack.c.l.b16 %v9675
      %v10380 = vunpack.c.l.b16 %v9676
      %v10381 = vunpack.c.l.b16 %v9677
      %v10382 = vunpack.c.l.b16 %v9678
      %v10383 = vpack.c.b16 %v10367, %v10367
      %v10384 = vpack.c.b16 %v10368, %v10368
      %v10385 = vpack.c.b16 %v10369, %v10369
      %v10386 = vpack.c.b16 %v10370, %v10370
      %v10387 = vpack.c.b16 %v10371, %v10371
      %v10388 = vpack.c.b16 %v10372, %v10372
      %v10389 = vpack.c.b16 %v10373, %v10373
      %v10390 = vpack.c.b16 %v10374, %v10374
      %v10391 = vpack.c.b16 %v10375, %v10375
      %v10392 = vpack.c.b16 %v10376, %v10376
      %v10393 = vpack.c.b16 %v10377, %v10377
      %v10394 = vpack.c.b16 %v10378, %v10378
      %v10395 = vpack.c.b16 %v10379, %v10379
      %v10396 = vpack.c.b16 %v10380, %v10380
      %v10397 = vpack.c.b16 %v10381, %v10381
      %v10398 = vpack.c.b16 %v10382, %v10382
      %v10400 = vshrl.u32 %v10303, 16
      %v10402 = vshll.u32 %v10303, 16
      %v10404 = vrot.slane %v10402, 1
      %v10405 = vor.u32 %v10400, %v10404
      %v10407 = vshll.u32 %v10383, 16
      %v10409 = vrot.slane %v10407, 1
      %v10410 = vsel %vm1022, %v10405, %v10409
      %v10412 = vshrl.u32 %v10304, 16
      %v10414 = vshll.u32 %v10304, 16
      %v10416 = vrot.slane %v10414, 1
      %v10417 = vor.u32 %v10412, %v10416
      %v10419 = vshll.u32 %v10384, 16
      %v10421 = vrot.slane %v10419, 1
      %v10422 = vsel %vm1022, %v10417, %v10421
      %v10424 = vshrl.u32 %v10305, 16
      %v10426 = vshll.u32 %v10305, 16
      %v10428 = vrot.slane %v10426, 1
      %v10429 = vor.u32 %v10424, %v10428
      %v10431 = vshll.u32 %v10385, 16
      %v10433 = vrot.slane %v10431, 1
      %v10434 = vsel %vm1022, %v10429, %v10433
      %v10436 = vshrl.u32 %v10306, 16
      %v10438 = vshll.u32 %v10306, 16
      %v10440 = vrot.slane %v10438, 1
      %v10441 = vor.u32 %v10436, %v10440
      %v10443 = vshll.u32 %v10386, 16
      %v10445 = vrot.slane %v10443, 1
      %v10446 = vsel %vm1022, %v10441, %v10445
      %v10448 = vshrl.u32 %v10307, 16
      %v10450 = vshll.u32 %v10307, 16
      %v10452 = vrot.slane %v10450, 1
      %v10453 = vor.u32 %v10448, %v10452
      %v10455 = vshll.u32 %v10387, 16
      %v10457 = vrot.slane %v10455, 1
      %v10458 = vsel %vm1022, %v10453, %v10457
      %v10460 = vshrl.u32 %v10308, 16
      %v10462 = vshll.u32 %v10308, 16
      %v10464 = vrot.slane %v10462, 1
      %v10465 = vor.u32 %v10460, %v10464
      %v10467 = vshll.u32 %v10388, 16
      %v10469 = vrot.slane %v10467, 1
      %v10470 = vsel %vm1022, %v10465, %v10469
      %v10472 = vshrl.u32 %v10309, 16
      %v10474 = vshll.u32 %v10309, 16
      %v10476 = vrot.slane %v10474, 1
      %v10477 = vor.u32 %v10472, %v10476
      %v10479 = vshll.u32 %v10389, 16
      %v10481 = vrot.slane %v10479, 1
      %v10482 = vsel %vm1022, %v10477, %v10481
      %v10484 = vshrl.u32 %v10310, 16
      %v10486 = vshll.u32 %v10310, 16
      %v10488 = vrot.slane %v10486, 1
      %v10489 = vor.u32 %v10484, %v10488
      %v10491 = vshll.u32 %v10390, 16
      %v10493 = vrot.slane %v10491, 1
      %v10494 = vsel %vm1022, %v10489, %v10493
      %v10496 = vshrl.u32 %v10311, 16
      %v10498 = vshll.u32 %v10311, 16
      %v10500 = vrot.slane %v10498, 1
      %v10501 = vor.u32 %v10496, %v10500
      %v10503 = vshll.u32 %v10391, 16
      %v10505 = vrot.slane %v10503, 1
      %v10506 = vsel %vm1022, %v10501, %v10505
      %v10508 = vshrl.u32 %v10312, 16
      %v10510 = vshll.u32 %v10312, 16
      %v10512 = vrot.slane %v10510, 1
      %v10513 = vor.u32 %v10508, %v10512
      %v10515 = vshll.u32 %v10392, 16
      %v10517 = vrot.slane %v10515, 1
      %v10518 = vsel %vm1022, %v10513, %v10517
      %v10520 = vshrl.u32 %v10313, 16
      %v10522 = vshll.u32 %v10313, 16
      %v10524 = vrot.slane %v10522, 1
      %v10525 = vor.u32 %v10520, %v10524
      %v10527 = vshll.u32 %v10393, 16
      %v10529 = vrot.slane %v10527, 1
      %v10530 = vsel %vm1022, %v10525, %v10529
      %v10532 = vshrl.u32 %v10314, 16
      %v10534 = vshll.u32 %v10314, 16
      %v10536 = vrot.slane %v10534, 1
      %v10537 = vor.u32 %v10532, %v10536
      %v10539 = vshll.u32 %v10394, 16
      %v10541 = vrot.slane %v10539, 1
      %v10542 = vsel %vm1022, %v10537, %v10541
      %v10544 = vshrl.u32 %v10315, 16
      %v10546 = vshll.u32 %v10315, 16
      %v10548 = vrot.slane %v10546, 1
      %v10549 = vor.u32 %v10544, %v10548
      %v10551 = vshll.u32 %v10395, 16
      %v10553 = vrot.slane %v10551, 1
      %v10554 = vsel %vm1022, %v10549, %v10553
      %v10556 = vshrl.u32 %v10316, 16
      %v10558 = vshll.u32 %v10316, 16
      %v10560 = vrot.slane %v10558, 1
      %v10561 = vor.u32 %v10556, %v10560
      %v10563 = vshll.u32 %v10396, 16
      %v10565 = vrot.slane %v10563, 1
      %v10566 = vsel %vm1022, %v10561, %v10565
      %v10568 = vshrl.u32 %v10317, 16
      %v10570 = vshll.u32 %v10317, 16
      %v10572 = vrot.slane %v10570, 1
      %v10573 = vor.u32 %v10568, %v10572
      %v10575 = vshll.u32 %v10397, 16
      %v10577 = vrot.slane %v10575, 1
      %v10578 = vsel %vm1022, %v10573, %v10577
      %v10580 = vshrl.u32 %v10318, 16
      %v10582 = vshll.u32 %v10318, 16
      %v10584 = vrot.slane %v10582, 1
      %v10585 = vor.u32 %v10580, %v10584
      %v10587 = vshll.u32 %v10398, 16
      %v10589 = vrot.slane %v10587, 1
      %v10590 = vsel %vm1022, %v10585, %v10589
      %v10607 = vunpack.c.l.b16 %v9679
      %v10608 = vunpack.c.l.b16 %v9680
      %v10609 = vunpack.c.l.b16 %v9681
      %v10610 = vunpack.c.l.b16 %v9682
      %v10611 = vunpack.c.l.b16 %v9683
      %v10612 = vunpack.c.l.b16 %v9684
      %v10613 = vunpack.c.l.b16 %v9685
      %v10614 = vunpack.c.l.b16 %v9686
      %v10615 = vunpack.c.l.b16 %v9687
      %v10616 = vunpack.c.l.b16 %v9688
      %v10617 = vunpack.c.l.b16 %v9689
      %v10618 = vunpack.c.l.b16 %v9690
      %v10619 = vunpack.c.l.b16 %v9691
      %v10620 = vunpack.c.l.b16 %v9692
      %v10621 = vunpack.c.l.b16 %v9693
      %v10622 = vunpack.c.l.b16 %v9694
      %v10623 = vpack.c.b16 %v10272, %v10607
      %v10624 = vpack.c.b16 %v10274, %v10608
      %v10625 = vpack.c.b16 %v10276, %v10609
      %v10626 = vpack.c.b16 %v10278, %v10610
      %v10627 = vpack.c.b16 %v10280, %v10611
      %v10628 = vpack.c.b16 %v10282, %v10612
      %v10629 = vpack.c.b16 %v10284, %v10613
      %v10630 = vpack.c.b16 %v10286, %v10614
      %v10631 = vpack.c.b16 %v10288, %v10615
      %v10632 = vpack.c.b16 %v10290, %v10616
      %v10633 = vpack.c.b16 %v10292, %v10617
      %v10634 = vpack.c.b16 %v10294, %v10618
      %v10635 = vpack.c.b16 %v10296, %v10619
      %v10636 = vpack.c.b16 %v10298, %v10620
      %v10637 = vpack.c.b16 %v10300, %v10621
      %v10638 = vpack.c.b16 %v10302, %v10622
      %v10639 = vrot.slane %v10623, 1
      %v10640 = vrot.slane %v10383, 1
      %v10641 = vsel %vm1295, %v10639, %v10640
      %v10642 = vrot.slane %v10624, 1
      %v10643 = vrot.slane %v10384, 1
      %v10644 = vsel %vm1295, %v10642, %v10643
      %v10645 = vrot.slane %v10625, 1
      %v10646 = vrot.slane %v10385, 1
      %v10647 = vsel %vm1295, %v10645, %v10646
      %v10648 = vrot.slane %v10626, 1
      %v10649 = vrot.slane %v10386, 1
      %v10650 = vsel %vm1295, %v10648, %v10649
      %v10651 = vrot.slane %v10627, 1
      %v10652 = vrot.slane %v10387, 1
      %v10653 = vsel %vm1295, %v10651, %v10652
      %v10654 = vrot.slane %v10628, 1
      %v10655 = vrot.slane %v10388, 1
      %v10656 = vsel %vm1295, %v10654, %v10655
      %v10657 = vrot.slane %v10629, 1
      %v10658 = vrot.slane %v10389, 1
      %v10659 = vsel %vm1295, %v10657, %v10658
      %v10660 = vrot.slane %v10630, 1
      %v10661 = vrot.slane %v10390, 1
      %v10662 = vsel %vm1295, %v10660, %v10661
      %v10663 = vrot.slane %v10631, 1
      %v10664 = vrot.slane %v10391, 1
      %v10665 = vsel %vm1295, %v10663, %v10664
      %v10666 = vrot.slane %v10632, 1
      %v10667 = vrot.slane %v10392, 1
      %v10668 = vsel %vm1295, %v10666, %v10667
      %v10669 = vrot.slane %v10633, 1
      %v10670 = vrot.slane %v10393, 1
      %v10671 = vsel %vm1295, %v10669, %v10670
      %v10672 = vrot.slane %v10634, 1
      %v10673 = vrot.slane %v10394, 1
      %v10674 = vsel %vm1295, %v10672, %v10673
      %v10675 = vrot.slane %v10635, 1
      %v10676 = vrot.slane %v10395, 1
      %v10677 = vsel %vm1295, %v10675, %v10676
      %v10678 = vrot.slane %v10636, 1
      %v10679 = vrot.slane %v10396, 1
      %v10680 = vsel %vm1295, %v10678, %v10679
      %v10681 = vrot.slane %v10637, 1
      %v10682 = vrot.slane %v10397, 1
      %v10683 = vsel %vm1295, %v10681, %v10682
      %v10684 = vrot.slane %v10638, 1
      %v10685 = vrot.slane %v10398, 1
      %v10686 = vsel %vm1295, %v10684, %v10685
      %10687 = vrot.lane.b32.xlu0 %v10641, 32
      %v10688 = vpop.permute.xlu0 %10687
      %10689 = vrot.lane.b32.xlu0 %v10644, 32
      %v10690 = vpop.permute.xlu0 %10689
      %10691 = vrot.lane.b32.xlu0 %v10647, 32
      %v10692 = vpop.permute.xlu0 %10691
      %10693 = vrot.lane.b32.xlu0 %v10650, 32
      %v10694 = vpop.permute.xlu0 %10693
      %10695 = vrot.lane.b32.xlu0 %v10653, 32
      %v10696 = vpop.permute.xlu0 %10695
      %10697 = vrot.lane.b32.xlu0 %v10656, 32
      %v10698 = vpop.permute.xlu0 %10697
      %10699 = vrot.lane.b32.xlu0 %v10659, 32
      %v10700 = vpop.permute.xlu0 %10699
      %10701 = vrot.lane.b32.xlu0 %v10662, 32
      %v10702 = vpop.permute.xlu0 %10701
      %10703 = vrot.lane.b32.xlu0 %v10665, 32
      %v10704 = vpop.permute.xlu0 %10703
      %10705 = vrot.lane.b32.xlu0 %v10668, 32
      %v10706 = vpop.permute.xlu0 %10705
      %10707 = vrot.lane.b32.xlu0 %v10671, 32
      %v10708 = vpop.permute.xlu0 %10707
      %10709 = vrot.lane.b32.xlu0 %v10674, 32
      %v10710 = vpop.permute.xlu0 %10709
      %10711 = vrot.lane.b32.xlu0 %v10677, 32
      %v10712 = vpop.permute.xlu0 %10711
      %10713 = vrot.lane.b32.xlu0 %v10680, 32
      %v10714 = vpop.permute.xlu0 %10713
      %10715 = vrot.lane.b32.xlu0 %v10683, 32
      %v10716 = vpop.permute.xlu0 %10715
      %10717 = vrot.lane.b32.xlu0 %v10686, 32
      %v10718 = vpop.permute.xlu0 %10717
      %v10751 = vunpack.c.l.b16 %v9695
      %v10752 = vunpack.c.l.b16 %v9696
      %v10753 = vunpack.c.l.b16 %v9697
      %v10754 = vunpack.c.l.b16 %v9698
      %v10755 = vunpack.c.l.b16 %v9699
      %v10756 = vunpack.c.l.b16 %v9700
      %v10757 = vunpack.c.l.b16 %v9701
      %v10758 = vunpack.c.l.b16 %v9702
      %v10759 = vunpack.c.l.b16 %v9703
      %v10760 = vunpack.c.l.b16 %v9704
      %v10761 = vunpack.c.l.b16 %v9705
      %v10762 = vunpack.c.l.b16 %v9706
      %v10763 = vunpack.c.l.b16 %v9707
      %v10764 = vunpack.c.l.b16 %v9708
      %v10765 = vunpack.c.l.b16 %v9709
      %v10766 = vunpack.c.l.b16 %v9710
      %v10767 = vunpack.c.l.b16 %v9711
      %v10768 = vunpack.c.l.b16 %v9712
      %v10769 = vunpack.c.l.b16 %v9713
      %v10770 = vunpack.c.l.b16 %v9714
      %v10771 = vunpack.c.l.b16 %v9715
      %v10772 = vunpack.c.l.b16 %v9716
      %v10773 = vunpack.c.l.b16 %v9717
      %v10774 = vunpack.c.l.b16 %v9718
      %v10775 = vunpack.c.l.b16 %v9719
      %v10776 = vunpack.c.l.b16 %v9720
      %v10777 = vunpack.c.l.b16 %v9721
      %v10778 = vunpack.c.l.b16 %v9722
      %v10779 = vunpack.c.l.b16 %v9723
      %v10780 = vunpack.c.l.b16 %v9724
      %v10781 = vunpack.c.l.b16 %v9725
      %v10782 = vunpack.c.l.b16 %v9726
      %v10783 = vpack.c.b16 %v10752, %v10751
      %v10784 = vpack.c.b16 %v10754, %v10753
      %v10785 = vpack.c.b16 %v10756, %v10755
      %v10786 = vpack.c.b16 %v10758, %v10757
      %v10787 = vpack.c.b16 %v10760, %v10759
      %v10788 = vpack.c.b16 %v10762, %v10761
      %v10789 = vpack.c.b16 %v10764, %v10763
      %v10790 = vpack.c.b16 %v10766, %v10765
      %v10791 = vpack.c.b16 %v10768, %v10767
      %v10792 = vpack.c.b16 %v10770, %v10769
      %v10793 = vpack.c.b16 %v10772, %v10771
      %v10794 = vpack.c.b16 %v10774, %v10773
      %v10795 = vpack.c.b16 %v10776, %v10775
      %v10796 = vpack.c.b16 %v10778, %v10777
      %v10797 = vpack.c.b16 %v10780, %v10779
      %v10798 = vpack.c.b16 %v10782, %v10781
      %10799 = vrot.lane.b32.xlu0 %v10783, 64
      %v10800 = vpop.permute.xlu0 %10799
      %10801 = vrot.lane.b32.xlu0 %v10784, 64
      %v10802 = vpop.permute.xlu0 %10801
      %10803 = vrot.lane.b32.xlu0 %v10785, 64
      %v10804 = vpop.permute.xlu0 %10803
      %10805 = vrot.lane.b32.xlu0 %v10786, 64
      %v10806 = vpop.permute.xlu0 %10805
      %10807 = vrot.lane.b32.xlu0 %v10787, 64
      %v10808 = vpop.permute.xlu0 %10807
      %10809 = vrot.lane.b32.xlu0 %v10788, 64
      %v10810 = vpop.permute.xlu0 %10809
      %10811 = vrot.lane.b32.xlu0 %v10789, 64
      %v10812 = vpop.permute.xlu0 %10811
      %10813 = vrot.lane.b32.xlu0 %v10790, 64
      %v10814 = vpop.permute.xlu0 %10813
      %10815 = vrot.lane.b32.xlu0 %v10791, 64
      %v10816 = vpop.permute.xlu0 %10815
      %10817 = vrot.lane.b32.xlu0 %v10792, 64
      %v10818 = vpop.permute.xlu0 %10817
      %10819 = vrot.lane.b32.xlu0 %v10793, 64
      %v10820 = vpop.permute.xlu0 %10819
      %10821 = vrot.lane.b32.xlu0 %v10794, 64
      %v10822 = vpop.permute.xlu0 %10821
      %10823 = vrot.lane.b32.xlu0 %v10795, 64
      %v10824 = vpop.permute.xlu0 %10823
      %10825 = vrot.lane.b32.xlu0 %v10796, 64
      %v10826 = vpop.permute.xlu0 %10825
      %10827 = vrot.lane.b32.xlu0 %v10797, 64
      %v10828 = vpop.permute.xlu0 %10827
      %10829 = vrot.lane.b32.xlu0 %v10798, 64
      %v10830 = vpop.permute.xlu0 %10829
      %v10847 = vunpack.c.l.b16 %v9727
      %v10848 = vunpack.c.l.b16 %v9728
      %v10849 = vunpack.c.l.b16 %v9729
      %v10850 = vunpack.c.l.b16 %v9730
      %v10851 = vunpack.c.l.b16 %v9731
      %v10852 = vunpack.c.l.b16 %v9732
      %v10853 = vunpack.c.l.b16 %v9733
      %v10854 = vunpack.c.l.b16 %v9734
      %v10855 = vunpack.c.l.b16 %v9735
      %v10856 = vunpack.c.l.b16 %v9736
      %v10857 = vunpack.c.l.b16 %v9737
      %v10858 = vunpack.c.l.b16 %v9738
      %v10859 = vunpack.c.l.b16 %v9739
      %v10860 = vunpack.c.l.b16 %v9740
      %v10861 = vunpack.c.l.b16 %v9741
      %v10862 = vunpack.c.l.b16 %v9742
      %v10863 = vpack.c.b16 %v10847, %v10847
      %v10864 = vpack.c.b16 %v10848, %v10848
      %v10865 = vpack.c.b16 %v10849, %v10849
      %v10866 = vpack.c.b16 %v10850, %v10850
      %v10867 = vpack.c.b16 %v10851, %v10851
      %v10868 = vpack.c.b16 %v10852, %v10852
      %v10869 = vpack.c.b16 %v10853, %v10853
      %v10870 = vpack.c.b16 %v10854, %v10854
      %v10871 = vpack.c.b16 %v10855, %v10855
      %v10872 = vpack.c.b16 %v10856, %v10856
      %v10873 = vpack.c.b16 %v10857, %v10857
      %v10874 = vpack.c.b16 %v10858, %v10858
      %v10875 = vpack.c.b16 %v10859, %v10859
      %v10876 = vpack.c.b16 %v10860, %v10860
      %v10877 = vpack.c.b16 %v10861, %v10861
      %v10878 = vpack.c.b16 %v10862, %v10862
      %v10880 = vshrl.u32 %v10783, 16
      %v10882 = vshll.u32 %v10783, 16
      %v10884 = vrot.slane %v10882, 1
      %v10885 = vor.u32 %v10880, %v10884
      %v10887 = vshll.u32 %v10863, 16
      %v10889 = vrot.slane %v10887, 1
      %v10890 = vsel %vm1022, %v10885, %v10889
      %v10892 = vshrl.u32 %v10784, 16
      %v10894 = vshll.u32 %v10784, 16
      %v10896 = vrot.slane %v10894, 1
      %v10897 = vor.u32 %v10892, %v10896
      %v10899 = vshll.u32 %v10864, 16
      %v10901 = vrot.slane %v10899, 1
      %v10902 = vsel %vm1022, %v10897, %v10901
      %v10904 = vshrl.u32 %v10785, 16
      %v10906 = vshll.u32 %v10785, 16
      %v10908 = vrot.slane %v10906, 1
      %v10909 = vor.u32 %v10904, %v10908
      %v10911 = vshll.u32 %v10865, 16
      %v10913 = vrot.slane %v10911, 1
      %v10914 = vsel %vm1022, %v10909, %v10913
      %v10916 = vshrl.u32 %v10786, 16
      %v10918 = vshll.u32 %v10786, 16
      %v10920 = vrot.slane %v10918, 1
      %v10921 = vor.u32 %v10916, %v10920
      %v10923 = vshll.u32 %v10866, 16
      %v10925 = vrot.slane %v10923, 1
      %v10926 = vsel %vm1022, %v10921, %v10925
      %v10928 = vshrl.u32 %v10787, 16
      %v10930 = vshll.u32 %v10787, 16
      %v10932 = vrot.slane %v10930, 1
      %v10933 = vor.u32 %v10928, %v10932
      %v10935 = vshll.u32 %v10867, 16
      %v10937 = vrot.slane %v10935, 1
      %v10938 = vsel %vm1022, %v10933, %v10937
      %v10940 = vshrl.u32 %v10788, 16
      %v10942 = vshll.u32 %v10788, 16
      %v10944 = vrot.slane %v10942, 1
      %v10945 = vor.u32 %v10940, %v10944
      %v10947 = vshll.u32 %v10868, 16
      %v10949 = vrot.slane %v10947, 1
      %v10950 = vsel %vm1022, %v10945, %v10949
      %v10952 = vshrl.u32 %v10789, 16
      %v10954 = vshll.u32 %v10789, 16
      %v10956 = vrot.slane %v10954, 1
      %v10957 = vor.u32 %v10952, %v10956
      %v10959 = vshll.u32 %v10869, 16
      %v10961 = vrot.slane %v10959, 1
      %v10962 = vsel %vm1022, %v10957, %v10961
      %v10964 = vshrl.u32 %v10790, 16
      %v10966 = vshll.u32 %v10790, 16
      %v10968 = vrot.slane %v10966, 1
      %v10969 = vor.u32 %v10964, %v10968
      %v10971 = vshll.u32 %v10870, 16
      %v10973 = vrot.slane %v10971, 1
      %v10974 = vsel %vm1022, %v10969, %v10973
      %v10976 = vshrl.u32 %v10791, 16
      %v10978 = vshll.u32 %v10791, 16
      %v10980 = vrot.slane %v10978, 1
      %v10981 = vor.u32 %v10976, %v10980
      %v10983 = vshll.u32 %v10871, 16
      %v10985 = vrot.slane %v10983, 1
      %v10986 = vsel %vm1022, %v10981, %v10985
      %v10988 = vshrl.u32 %v10792, 16
      %v10990 = vshll.u32 %v10792, 16
      %v10992 = vrot.slane %v10990, 1
      %v10993 = vor.u32 %v10988, %v10992
      %v10995 = vshll.u32 %v10872, 16
      %v10997 = vrot.slane %v10995, 1
      %v10998 = vsel %vm1022, %v10993, %v10997
      %v11000 = vshrl.u32 %v10793, 16
      %v11002 = vshll.u32 %v10793, 16
      %v11004 = vrot.slane %v11002, 1
      %v11005 = vor.u32 %v11000, %v11004
      %v11007 = vshll.u32 %v10873, 16
      %v11009 = vrot.slane %v11007, 1
      %v11010 = vsel %vm1022, %v11005, %v11009
      %v11012 = vshrl.u32 %v10794, 16
      %v11014 = vshll.u32 %v10794, 16
      %v11016 = vrot.slane %v11014, 1
      %v11017 = vor.u32 %v11012, %v11016
      %v11019 = vshll.u32 %v10874, 16
      %v11021 = vrot.slane %v11019, 1
      %v11022 = vsel %vm1022, %v11017, %v11021
      %v11024 = vshrl.u32 %v10795, 16
      %v11026 = vshll.u32 %v10795, 16
      %v11028 = vrot.slane %v11026, 1
      %v11029 = vor.u32 %v11024, %v11028
      %v11031 = vshll.u32 %v10875, 16
      %v11033 = vrot.slane %v11031, 1
      %v11034 = vsel %vm1022, %v11029, %v11033
      %v11036 = vshrl.u32 %v10796, 16
      %v11038 = vshll.u32 %v10796, 16
      %v11040 = vrot.slane %v11038, 1
      %v11041 = vor.u32 %v11036, %v11040
      %v11043 = vshll.u32 %v10876, 16
      %v11045 = vrot.slane %v11043, 1
      %v11046 = vsel %vm1022, %v11041, %v11045
      %v11048 = vshrl.u32 %v10797, 16
      %v11050 = vshll.u32 %v10797, 16
      %v11052 = vrot.slane %v11050, 1
      %v11053 = vor.u32 %v11048, %v11052
      %v11055 = vshll.u32 %v10877, 16
      %v11057 = vrot.slane %v11055, 1
      %v11058 = vsel %vm1022, %v11053, %v11057
      %v11060 = vshrl.u32 %v10798, 16
      %v11062 = vshll.u32 %v10798, 16
      %v11064 = vrot.slane %v11062, 1
      %v11065 = vor.u32 %v11060, %v11064
      %v11067 = vshll.u32 %v10878, 16
      %v11069 = vrot.slane %v11067, 1
      %v11070 = vsel %vm1022, %v11065, %v11069
      %11071 = vrot.lane.b32.xlu0 %v10890, 96
      %v11072 = vpop.permute.xlu0 %11071
      %11073 = vrot.lane.b32.xlu0 %v10902, 96
      %v11074 = vpop.permute.xlu0 %11073
      %11075 = vrot.lane.b32.xlu0 %v10914, 96
      %v11076 = vpop.permute.xlu0 %11075
      %11077 = vrot.lane.b32.xlu0 %v10926, 96
      %v11078 = vpop.permute.xlu0 %11077
      %11079 = vrot.lane.b32.xlu0 %v10938, 96
      %v11080 = vpop.permute.xlu0 %11079
      %11081 = vrot.lane.b32.xlu0 %v10950, 96
      %v11082 = vpop.permute.xlu0 %11081
      %11083 = vrot.lane.b32.xlu0 %v10962, 96
      %v11084 = vpop.permute.xlu0 %11083
      %11085 = vrot.lane.b32.xlu0 %v10974, 96
      %v11086 = vpop.permute.xlu0 %11085
      %11087 = vrot.lane.b32.xlu0 %v10986, 96
      %v11088 = vpop.permute.xlu0 %11087
      %11089 = vrot.lane.b32.xlu0 %v10998, 96
      %v11090 = vpop.permute.xlu0 %11089
      %11091 = vrot.lane.b32.xlu0 %v11010, 96
      %v11092 = vpop.permute.xlu0 %11091
      %11093 = vrot.lane.b32.xlu0 %v11022, 96
      %v11094 = vpop.permute.xlu0 %11093
      %11095 = vrot.lane.b32.xlu0 %v11034, 96
      %v11096 = vpop.permute.xlu0 %11095
      %11097 = vrot.lane.b32.xlu0 %v11046, 96
      %v11098 = vpop.permute.xlu0 %11097
      %11099 = vrot.lane.b32.xlu0 %v11058, 96
      %v11100 = vpop.permute.xlu0 %11099
      %11101 = vrot.lane.b32.xlu0 %v11070, 96
      %v11102 = vpop.permute.xlu0 %11101
      %v11119 = vunpack.c.l.b16 %v9743
      %v11120 = vunpack.c.l.b16 %v9744
      %v11121 = vunpack.c.l.b16 %v9745
      %v11122 = vunpack.c.l.b16 %v9746
      %v11123 = vunpack.c.l.b16 %v9747
      %v11124 = vunpack.c.l.b16 %v9748
      %v11125 = vunpack.c.l.b16 %v9749
      %v11126 = vunpack.c.l.b16 %v9750
      %v11127 = vunpack.c.l.b16 %v9751
      %v11128 = vunpack.c.l.b16 %v9752
      %v11129 = vunpack.c.l.b16 %v9753
      %v11130 = vunpack.c.l.b16 %v9754
      %v11131 = vunpack.c.l.b16 %v9755
      %v11132 = vunpack.c.l.b16 %v9756
      %v11133 = vunpack.c.l.b16 %v9757
      %v11134 = vunpack.c.l.b16 %v9758
      %v11135 = vpack.c.b16 %v10752, %v11119
      %v11136 = vpack.c.b16 %v10754, %v11120
      %v11137 = vpack.c.b16 %v10756, %v11121
      %v11138 = vpack.c.b16 %v10758, %v11122
      %v11139 = vpack.c.b16 %v10760, %v11123
      %v11140 = vpack.c.b16 %v10762, %v11124
      %v11141 = vpack.c.b16 %v10764, %v11125
      %v11142 = vpack.c.b16 %v10766, %v11126
      %v11143 = vpack.c.b16 %v10768, %v11127
      %v11144 = vpack.c.b16 %v10770, %v11128
      %v11145 = vpack.c.b16 %v10772, %v11129
      %v11146 = vpack.c.b16 %v10774, %v11130
      %v11147 = vpack.c.b16 %v10776, %v11131
      %v11148 = vpack.c.b16 %v10778, %v11132
      %v11149 = vpack.c.b16 %v10780, %v11133
      %v11150 = vpack.c.b16 %v10782, %v11134
      %v11151 = vrot.slane %v11135, 1
      %v11152 = vrot.slane %v10863, 1
      %v11153 = vsel %vm1295, %v11151, %v11152
      %v11154 = vrot.slane %v11136, 1
      %v11155 = vrot.slane %v10864, 1
      %v11156 = vsel %vm1295, %v11154, %v11155
      %v11157 = vrot.slane %v11137, 1
      %v11158 = vrot.slane %v10865, 1
      %v11159 = vsel %vm1295, %v11157, %v11158
      %v11160 = vrot.slane %v11138, 1
      %v11161 = vrot.slane %v10866, 1
      %v11162 = vsel %vm1295, %v11160, %v11161
      %v11163 = vrot.slane %v11139, 1
      %v11164 = vrot.slane %v10867, 1
      %v11165 = vsel %vm1295, %v11163, %v11164
      %v11166 = vrot.slane %v11140, 1
      %v11167 = vrot.slane %v10868, 1
      %v11168 = vsel %vm1295, %v11166, %v11167
      %v11169 = vrot.slane %v11141, 1
      %v11170 = vrot.slane %v10869, 1
      %v11171 = vsel %vm1295, %v11169, %v11170
      %v11172 = vrot.slane %v11142, 1
      %v11173 = vrot.slane %v10870, 1
      %v11174 = vsel %vm1295, %v11172, %v11173
      %v11175 = vrot.slane %v11143, 1
      %v11176 = vrot.slane %v10871, 1
      %v11177 = vsel %vm1295, %v11175, %v11176
      %v11178 = vrot.slane %v11144, 1
      %v11179 = vrot.slane %v10872, 1
      %v11180 = vsel %vm1295, %v11178, %v11179
      %v11181 = vrot.slane %v11145, 1
      %v11182 = vrot.slane %v10873, 1
      %v11183 = vsel %vm1295, %v11181, %v11182
      %v11184 = vrot.slane %v11146, 1
      %v11185 = vrot.slane %v10874, 1
      %v11186 = vsel %vm1295, %v11184, %v11185
      %v11187 = vrot.slane %v11147, 1
      %v11188 = vrot.slane %v10875, 1
      %v11189 = vsel %vm1295, %v11187, %v11188
      %v11190 = vrot.slane %v11148, 1
      %v11191 = vrot.slane %v10876, 1
      %v11192 = vsel %vm1295, %v11190, %v11191
      %v11193 = vrot.slane %v11149, 1
      %v11194 = vrot.slane %v10877, 1
      %v11195 = vsel %vm1295, %v11193, %v11194
      %v11196 = vrot.slane %v11150, 1
      %v11197 = vrot.slane %v10878, 1
      %v11198 = vsel %vm1295, %v11196, %v11197
      %v11200 = vsel %vm2336, %v9823, %v10080
      %v11202 = vsel %vm2336, %v9824, %v10082
      %v11204 = vsel %vm2336, %v9825, %v10084
      %v11206 = vsel %vm2336, %v9826, %v10086
      %v11208 = vsel %vm2336, %v9827, %v10088
      %v11210 = vsel %vm2336, %v9828, %v10090
      %v11212 = vsel %vm2336, %v9829, %v10092
      %v11214 = vsel %vm2336, %v9830, %v10094
      %v11216 = vsel %vm2336, %v9831, %v10096
      %v11218 = vsel %vm2336, %v9832, %v10098
      %v11220 = vsel %vm2336, %v9833, %v10100
      %v11222 = vsel %vm2336, %v9834, %v10102
      %v11224 = vsel %vm2336, %v9835, %v10104
      %v11226 = vsel %vm2336, %v9836, %v10106
      %v11228 = vsel %vm2336, %v9837, %v10108
      %v11230 = vsel %vm2336, %v9838, %v10110
      %v11232 = vsel %vm2369, %v11200, %v10208
      %v11234 = vsel %vm2369, %v11202, %v10210
      %v11236 = vsel %vm2369, %v11204, %v10212
      %v11238 = vsel %vm2369, %v11206, %v10214
      %v11240 = vsel %vm2369, %v11208, %v10216
      %v11242 = vsel %vm2369, %v11210, %v10218
      %v11244 = vsel %vm2369, %v11212, %v10220
      %v11246 = vsel %vm2369, %v11214, %v10222
      %v11248 = vsel %vm2369, %v11216, %v10224
      %v11250 = vsel %vm2369, %v11218, %v10226
      %v11252 = vsel %vm2369, %v11220, %v10228
      %v11254 = vsel %vm2369, %v11222, %v10230
      %v11256 = vsel %vm2369, %v11224, %v10232
      %v11258 = vsel %vm2369, %v11226, %v10234
      %v11260 = vsel %vm2369, %v11228, %v10236
      %v11262 = vsel %vm2369, %v11230, %v10238
      %v11264 = vsel %vm2402, %v11232, %v10320
      %v11267 = vsel %vm2402, %v11234, %v10322
      %v11270 = vsel %vm2402, %v11236, %v10324
      %v11273 = vsel %vm2402, %v11238, %v10326
      %v11276 = vsel %vm2402, %v11240, %v10328
      %v11279 = vsel %vm2402, %v11242, %v10330
      %v11282 = vsel %vm2402, %v11244, %v10332
      %v11285 = vsel %vm2402, %v11246, %v10334
      %v11288 = vsel %vm2402, %v11248, %v10336
      %v11291 = vsel %vm2402, %v11250, %v10338
      %v11294 = vsel %vm2402, %v11252, %v10340
      %v11297 = vsel %vm2402, %v11254, %v10342
      %v11300 = vsel %vm2402, %v11256, %v10344
      %v11303 = vsel %vm2402, %v11258, %v10346
      %v11306 = vsel %vm2402, %v11260, %v10348
      %v11309 = vsel %vm2402, %v11262, %v10350
      %v11313 = vsel %vm2336, %v10410, %v10688
      %v11316 = vsel %vm2336, %v10422, %v10690
      %v11319 = vsel %vm2336, %v10434, %v10692
      %v11322 = vsel %vm2336, %v10446, %v10694
      %v11325 = vsel %vm2336, %v10458, %v10696
      %v11328 = vsel %vm2336, %v10470, %v10698
      %v11331 = vsel %vm2336, %v10482, %v10700
      %v11334 = vsel %vm2336, %v10494, %v10702
      %v11337 = vsel %vm2336, %v10506, %v10704
      %v11340 = vsel %vm2336, %v10518, %v10706
      %v11343 = vsel %vm2336, %v10530, %v10708
      %v11346 = vsel %vm2336, %v10542, %v10710
      %v11349 = vsel %vm2336, %v10554, %v10712
      %v11352 = vsel %vm2336, %v10566, %v10714
      %v11355 = vsel %vm2336, %v10578, %v10716
      %v11358 = vsel %vm2336, %v10590, %v10718
      %v11360 = vsel %vm2369, %v11313, %v10800
      %v11362 = vsel %vm2369, %v11316, %v10802
      %v11364 = vsel %vm2369, %v11319, %v10804
      %v11366 = vsel %vm2369, %v11322, %v10806
      %v11368 = vsel %vm2369, %v11325, %v10808
      %v11370 = vsel %vm2369, %v11328, %v10810
      %v11372 = vsel %vm2369, %v11331, %v10812
      %v11374 = vsel %vm2369, %v11334, %v10814
      %v11376 = vsel %vm2369, %v11337, %v10816
      %v11378 = vsel %vm2369, %v11340, %v10818
      %v11380 = vsel %vm2369, %v11343, %v10820
      %v11382 = vsel %vm2369, %v11346, %v10822
      %v11384 = vsel %vm2369, %v11349, %v10824
      %v11386 = vsel %vm2369, %v11352, %v10826
      %v11388 = vsel %vm2369, %v11355, %v10828
      %v11390 = vsel %vm2369, %v11358, %v10830
      %v11392 = vsel %vm2402, %v11360, %v11072
      %v11395 = vsel %vm2402, %v11362, %v11074
      %v11398 = vsel %vm2402, %v11364, %v11076
      %v11401 = vsel %vm2402, %v11366, %v11078
      %v11404 = vsel %vm2402, %v11368, %v11080
      %v11407 = vsel %vm2402, %v11370, %v11082
      %v11410 = vsel %vm2402, %v11372, %v11084
      %v11413 = vsel %vm2402, %v11374, %v11086
      %v11416 = vsel %vm2402, %v11376, %v11088
      %v11419 = vsel %vm2402, %v11378, %v11090
      %v11422 = vsel %vm2402, %v11380, %v11092
      %v11425 = vsel %vm2402, %v11382, %v11094
      %v11428 = vsel %vm2402, %v11384, %v11096
      %v11431 = vsel %vm2402, %v11386, %v11098
      %v11434 = vsel %vm2402, %v11388, %v11100
      %v11437 = vsel %vm2402, %v11390, %v11102
      %s11439 = scalar_lea.vmem %s1, 432
      %v11440 = vld [vmem:[%s11439] sm:$0xf]
      %v11441 = vld [vmem:[%s11439 + $0x4] sm:$0xf]
      %v11442 = vld [vmem:[%s11439 + $0x8] sm:$0xf]
      %v11443 = vld [vmem:[%s11439 + $0xc] sm:$0xf]
      %v11444 = vld [vmem:[%s11439 + $0x10] sm:$0xf]
      %v11445 = vld [vmem:[%s11439 + $0x14] sm:$0xf]
      %v11446 = vld [vmem:[%s11439 + $0x18] sm:$0xf]
      %v11447 = vld [vmem:[%s11439 + $0x1c] sm:$0xf]
      %v11448 = vld [vmem:[%s11439 + $0x20] sm:$0xf]
      %v11449 = vld [vmem:[%s11439 + $0x24] sm:$0xf]
      %v11450 = vld [vmem:[%s11439 + $0x28] sm:$0xf]
      %v11451 = vld [vmem:[%s11439 + $0x2c] sm:$0xf]
      %v11452 = vld [vmem:[%s11439 + $0x30] sm:$0xf]
      %v11453 = vld [vmem:[%s11439 + $0x34] sm:$0xf]
      %v11454 = vld [vmem:[%s11439 + $0x38] sm:$0xf]
      %v11455 = vld [vmem:[%s11439 + $0x3c] sm:$0xf]
      %v11456 = vld [vmem:[%s11439 + $0x40] sm:$0xf]
      %v11457 = vld [vmem:[%s11439 + $0x44] sm:$0xf]
      %v11458 = vld [vmem:[%s11439 + $0x48] sm:$0xf]
      %v11459 = vld [vmem:[%s11439 + $0x4c] sm:$0xf]
      %v11460 = vld [vmem:[%s11439 + $0x50] sm:$0xf]
      %v11461 = vld [vmem:[%s11439 + $0x54] sm:$0xf]
      %v11462 = vld [vmem:[%s11439 + $0x58] sm:$0xf]
      %v11463 = vld [vmem:[%s11439 + $0x5c] sm:$0xf]
      %v11464 = vld [vmem:[%s11439 + $0x60] sm:$0xf]
      %v11465 = vld [vmem:[%s11439 + $0x64] sm:$0xf]
      %v11466 = vld [vmem:[%s11439 + $0x68] sm:$0xf]
      %v11467 = vld [vmem:[%s11439 + $0x6c] sm:$0xf]
      %v11468 = vld [vmem:[%s11439 + $0x70] sm:$0xf]
      %v11469 = vld [vmem:[%s11439 + $0x74] sm:$0xf]
      %v11470 = vld [vmem:[%s11439 + $0x78] sm:$0xf]
      %v11471 = vld [vmem:[%s11439 + $0x7c] sm:$0xf]
      %v11472 = vld [vmem:[%s11439 + $0x80] sm:$0xf]
      %v11473 = vld [vmem:[%s11439 + $0x84] sm:$0xf]
      %v11474 = vld [vmem:[%s11439 + $0x88] sm:$0xf]
      %v11475 = vld [vmem:[%s11439 + $0x8c] sm:$0xf]
      %s11476 = scalar_lea.vmem %s2, 3
      %v11477 = vld [vmem:[%s11476] sm:$0x1]
      %v11479 = vlaneseq
      %v11480 = vshrl.u32 %v11479, 7
      %v11481 = vsub.s32 0, %v11480
      %v11482 = vrot.slane %v11477, %v11481
      %v11520 = vunpack.c.l.b16 %v11440
      %v11521 = vunpack.c.l.b16 %v11441
      %v11522 = vunpack.c.l.b16 %v11442
      %v11523 = vunpack.c.l.b16 %v11443
      %v11524 = vunpack.c.l.b16 %v11444
      %v11525 = vunpack.c.l.b16 %v11445
      %v11526 = vunpack.c.l.b16 %v11446
      %v11527 = vunpack.c.l.b16 %v11447
      %v11528 = vunpack.c.l.b16 %v11448
      %v11529 = vunpack.c.l.b16 %v11449
      %v11530 = vunpack.c.l.b16 %v11450
      %v11531 = vunpack.c.l.b16 %v11451
      %v11532 = vunpack.c.l.b16 %v11452
      %v11533 = vunpack.c.l.b16 %v11453
      %v11534 = vunpack.c.l.b16 %v11454
      %v11535 = vunpack.c.l.b16 %v11455
      %v11536 = vunpack.c.l.b16 %v11456
      %v11537 = vunpack.c.l.b16 %v11457
      %v11538 = vunpack.c.l.b16 %v11458
      %v11539 = vunpack.c.l.b16 %v11459
      %v11540 = vunpack.c.l.b16 %v11460
      %v11541 = vunpack.c.l.b16 %v11461
      %v11542 = vunpack.c.l.b16 %v11462
      %v11543 = vunpack.c.l.b16 %v11463
      %v11544 = vunpack.c.l.b16 %v11464
      %v11545 = vunpack.c.l.b16 %v11465
      %v11546 = vunpack.c.l.b16 %v11466
      %v11547 = vunpack.c.l.b16 %v11467
      %v11548 = vunpack.c.l.b16 %v11468
      %v11549 = vunpack.c.l.b16 %v11469
      %v11550 = vunpack.c.l.b16 %v11470
      %v11551 = vunpack.c.l.b16 %v11471
      %v11552 = vunpack.c.l.b16 %v11472
      %v11553 = vunpack.c.l.b16 %v11473
      %v11554 = vunpack.c.l.b16 %v11474
      %v11555 = vunpack.c.l.b16 %v11475
      %v11556 = vpack.c.b16 %v11521, %v11520
      %v11557 = vpack.c.b16 %v11523, %v11522
      %v11558 = vpack.c.b16 %v11525, %v11524
      %v11559 = vpack.c.b16 %v11527, %v11526
      %v11560 = vpack.c.b16 %v11529, %v11528
      %v11561 = vpack.c.b16 %v11531, %v11530
      %v11562 = vpack.c.b16 %v11533, %v11532
      %v11563 = vpack.c.b16 %v11535, %v11534
      %v11564 = vpack.c.b16 %v11537, %v11536
      %v11565 = vpack.c.b16 %v11539, %v11538
      %v11566 = vpack.c.b16 %v11541, %v11540
      %v11567 = vpack.c.b16 %v11543, %v11542
      %v11568 = vpack.c.b16 %v11545, %v11544
      %v11569 = vpack.c.b16 %v11547, %v11546
      %v11570 = vpack.c.b16 %v11549, %v11548
      %v11571 = vpack.c.b16 %v11551, %v11550
      %v11572 = vpack.c.b16 %v11553, %v11552
      %v11573 = vpack.c.b16 %v11555, %v11554
      %v11593 = vsel %vm2336, %v11153, 0
      %v11596 = vsel %vm2336, %v11156, 0
      %v11599 = vsel %vm2336, %v11159, 0
      %v11602 = vsel %vm2336, %v11162, 0
      %v11605 = vsel %vm2336, %v11165, 0
      %v11608 = vsel %vm2336, %v11168, 0
      %v11611 = vsel %vm2336, %v11171, 0
      %v11614 = vsel %vm2336, %v11174, 0
      %v11617 = vsel %vm2336, %v11177, 0
      %v11620 = vsel %vm2336, %v11180, 0
      %v11623 = vsel %vm2336, %v11183, 0
      %v11626 = vsel %vm2336, %v11186, 0
      %v11629 = vsel %vm2336, %v11189, 0
      %v11632 = vsel %vm2336, %v11192, 0
      %v11635 = vsel %vm2336, %v11195, 0
      %v11638 = vsel %vm2336, %v11198, 0
      %11640 = vmatprep.subr.bf16.mxu0 0
      %11641 = vmatpush1.bf16.msra.mxu0 %v11563
      %11642 = vmatprep.subr.bf16.mxu0 0
      %11643 = vmatpush1.bf16.msra.mxu0 %v11562
      %11644 = vmatprep.subr.bf16.mxu0 0
      %11645 = vmatpush1.bf16.msra.mxu0 %v11561
      %11646 = vmatprep.subr.bf16.mxu0 0
      %11647 = vmatpush1.bf16.msra.mxu0 %v11560
      %11648 = vmatprep.subr.bf16.mxu0 0
      %11649 = vmatpush1.bf16.msra.mxu0 %v11559
      %11650 = vmatprep.subr.bf16.mxu0 0
      %11651 = vmatpush1.bf16.msra.mxu0 %v11558
      %11652 = vmatprep.subr.bf16.mxu0 0
      %11653 = vmatpush1.bf16.msra.mxu0 %v11557
      %11654 = vmatprep.subr.bf16.mxu0 0
      %11655 = vmatpush1.bf16.msra.mxu0 %v11556
      %11656 = vmatprep.subr.bf16.mxu0 0
      %11657 = vmatpush2.bf16.msra.mxu0 %v11571
      %11658 = vmatprep.subr.bf16.mxu0 0
      %11659 = vmatpush2.bf16.msra.mxu0 %v11570
      %11660 = vmatprep.subr.bf16.mxu0 0
      %11661 = vmatpush2.bf16.msra.mxu0 %v11569
      %11662 = vmatprep.subr.bf16.mxu0 0
      %11663 = vmatpush2.bf16.msra.mxu0 %v11568
      %11664 = vmatprep.subr.bf16.mxu0 0
      %11665 = vmatpush2.bf16.msra.mxu0 %v11567
      %11666 = vmatprep.subr.bf16.mxu0 0
      %11667 = vmatpush2.bf16.msra.mxu0 %v11566
      %11668 = vmatprep.subr.bf16.mxu0 0
      %11669 = vmatpush2.bf16.msra.mxu0 %v11565
      %11670 = vmatprep.subr.bf16.mxu0 0
      %11671 = vmatpush2.bf16.msra.mxu0 %v11564
      %11672 = vmatprep.mubr.bf16.mxu0 %v11392
      %11673 = vmatmul.mubr.bf16.gmra.mxu0 %v11264
      %v11674 = vpop.f32.mrf.mxu0
      %v11675 = vadd.f32 %v11482, %v11674
      %v11676 = vpop.f32.mrf.mxu0
      %v11677 = vpop.f32.mrf.mxu0
      %v11678 = vadd.f32 %v11482, %v11677
      %v11679 = vpop.f32.mrf.mxu0
      %11680 = vmatprep.mubr.bf16.mxu0 %v11395
      %11681 = vmatmul.mubr.bf16.gmra.mxu0 %v11267
      %v11682 = vpop.f32.mrf.mxu0
      %v11683 = vadd.f32 %v11482, %v11682
      %v11684 = vpop.f32.mrf.mxu0
      %v11685 = vpop.f32.mrf.mxu0
      %v11686 = vadd.f32 %v11482, %v11685
      %v11687 = vpop.f32.mrf.mxu0
      %11688 = vmatprep.mubr.bf16.mxu0 %v11398
      %11689 = vmatmul.mubr.bf16.gmra.mxu0 %v11270
      %v11690 = vpop.f32.mrf.mxu0
      %v11691 = vadd.f32 %v11482, %v11690
      %v11692 = vpop.f32.mrf.mxu0
      %v11693 = vpop.f32.mrf.mxu0
      %v11694 = vadd.f32 %v11482, %v11693
      %v11695 = vpop.f32.mrf.mxu0
      %11696 = vmatprep.mubr.bf16.mxu0 %v11401
      %11697 = vmatmul.mubr.bf16.gmra.mxu0 %v11273
      %v11698 = vpop.f32.mrf.mxu0
      %v11699 = vadd.f32 %v11482, %v11698
      %v11700 = vpop.f32.mrf.mxu0
      %v11701 = vpop.f32.mrf.mxu0
      %v11702 = vadd.f32 %v11482, %v11701
      %v11703 = vpop.f32.mrf.mxu0
      %11704 = vmatprep.mubr.bf16.mxu0 %v11404
      %11705 = vmatmul.mubr.bf16.gmra.mxu0 %v11276
      %v11706 = vpop.f32.mrf.mxu0
      %v11707 = vadd.f32 %v11482, %v11706
      %v11708 = vpop.f32.mrf.mxu0
      %v11709 = vpop.f32.mrf.mxu0
      %v11710 = vadd.f32 %v11482, %v11709
      %v11711 = vpop.f32.mrf.mxu0
      %11712 = vmatprep.mubr.bf16.mxu0 %v11407
      %11713 = vmatmul.mubr.bf16.gmra.mxu0 %v11279
      %v11714 = vpop.f32.mrf.mxu0
      %v11715 = vadd.f32 %v11482, %v11714
      %v11716 = vpop.f32.mrf.mxu0
      %v11717 = vpop.f32.mrf.mxu0
      %v11718 = vadd.f32 %v11482, %v11717
      %v11719 = vpop.f32.mrf.mxu0
      %11720 = vmatprep.mubr.bf16.mxu0 %v11410
      %11721 = vmatmul.mubr.bf16.gmra.mxu0 %v11282
      %v11722 = vpop.f32.mrf.mxu0
      %v11723 = vadd.f32 %v11482, %v11722
      %v11724 = vpop.f32.mrf.mxu0
      %v11725 = vpop.f32.mrf.mxu0
      %v11726 = vadd.f32 %v11482, %v11725
      %v11727 = vpop.f32.mrf.mxu0
      %11728 = vmatprep.mubr.bf16.mxu0 %v11413
      %11729 = vmatmul.mubr.bf16.gmra.mxu0 %v11285
      %v11730 = vpop.f32.mrf.mxu0
      %v11731 = vadd.f32 %v11482, %v11730
      %v11732 = vpop.f32.mrf.mxu0
      %v11733 = vpop.f32.mrf.mxu0
      %v11734 = vadd.f32 %v11482, %v11733
      %v11735 = vpop.f32.mrf.mxu0
      %11736 = vmatprep.mubr.bf16.mxu0 %v11416
      %11737 = vmatmul.mubr.bf16.gmra.mxu0 %v11288
      %v11738 = vpop.f32.mrf.mxu0
      %v11739 = vadd.f32 %v11482, %v11738
      %v11740 = vpop.f32.mrf.mxu0
      %v11741 = vpop.f32.mrf.mxu0
      %v11742 = vadd.f32 %v11482, %v11741
      %v11743 = vpop.f32.mrf.mxu0
      %11744 = vmatprep.mubr.bf16.mxu0 %v11419
      %11745 = vmatmul.mubr.bf16.gmra.mxu0 %v11291
      %v11746 = vpop.f32.mrf.mxu0
      %v11747 = vadd.f32 %v11482, %v11746
      %v11748 = vpop.f32.mrf.mxu0
      %v11749 = vpop.f32.mrf.mxu0
      %v11750 = vadd.f32 %v11482, %v11749
      %v11751 = vpop.f32.mrf.mxu0
      %11752 = vmatprep.mubr.bf16.mxu0 %v11422
      %11753 = vmatmul.mubr.bf16.gmra.mxu0 %v11294
      %v11754 = vpop.f32.mrf.mxu0
      %v11755 = vadd.f32 %v11482, %v11754
      %v11756 = vpop.f32.mrf.mxu0
      %v11757 = vpop.f32.mrf.mxu0
      %v11758 = vadd.f32 %v11482, %v11757
      %v11759 = vpop.f32.mrf.mxu0
      %11760 = vmatprep.mubr.bf16.mxu0 %v11425
      %11761 = vmatmul.mubr.bf16.gmra.mxu0 %v11297
      %v11762 = vpop.f32.mrf.mxu0
      %v11763 = vadd.f32 %v11482, %v11762
      %v11764 = vpop.f32.mrf.mxu0
      %v11765 = vpop.f32.mrf.mxu0
      %v11766 = vadd.f32 %v11482, %v11765
      %v11767 = vpop.f32.mrf.mxu0
      %11768 = vmatprep.mubr.bf16.mxu0 %v11428
      %11769 = vmatmul.mubr.bf16.gmra.mxu0 %v11300
      %v11770 = vpop.f32.mrf.mxu0
      %v11771 = vadd.f32 %v11482, %v11770
      %v11772 = vpop.f32.mrf.mxu0
      %v11773 = vpop.f32.mrf.mxu0
      %v11774 = vadd.f32 %v11482, %v11773
      %v11775 = vpop.f32.mrf.mxu0
      %11776 = vmatprep.mubr.bf16.mxu0 %v11431
      %11777 = vmatmul.mubr.bf16.gmra.mxu0 %v11303
      %v11778 = vpop.f32.mrf.mxu0
      %v11779 = vadd.f32 %v11482, %v11778
      %v11780 = vpop.f32.mrf.mxu0
      %v11781 = vpop.f32.mrf.mxu0
      %v11782 = vadd.f32 %v11482, %v11781
      %v11783 = vpop.f32.mrf.mxu0
      %11784 = vmatprep.mubr.bf16.mxu0 %v11434
      %11785 = vmatmul.mubr.bf16.gmra.mxu0 %v11306
      %v11786 = vpop.f32.mrf.mxu0
      %v11787 = vadd.f32 %v11482, %v11786
      %v11788 = vpop.f32.mrf.mxu0
      %v11789 = vpop.f32.mrf.mxu0
      %v11790 = vadd.f32 %v11482, %v11789
      %v11791 = vpop.f32.mrf.mxu0
      %11792 = vmatprep.mubr.bf16.mxu0 %v11437
      %11793 = vmatmul.mubr.bf16.gmra.mxu0 %v11309
      %v11794 = vpop.f32.mrf.mxu0
      %v11795 = vadd.f32 %v11482, %v11794
      %v11796 = vpop.f32.mrf.mxu0
      %v11797 = vpop.f32.mrf.mxu0
      %v11798 = vadd.f32 %v11482, %v11797
      %v11799 = vpop.f32.mrf.mxu0
      %11800 = vdwg.mxu0
      %11801 = vmatprep.subr.bf16.mxu0 0
      %11802 = vmatpush1.bf16.msra.mxu0 0
      %11803 = vmatprep.subr.bf16.mxu0 0
      %11804 = vmatpush1.bf16.msra.mxu0 0
      %11805 = vmatprep.subr.bf16.mxu0 0
      %11806 = vmatpush1.bf16.msra.mxu0 0
      %11807 = vmatprep.subr.bf16.mxu0 0
      %11808 = vmatpush1.bf16.msra.mxu0 0
      %11809 = vmatprep.subr.bf16.mxu0 0
      %11810 = vmatpush1.bf16.msra.mxu0 0
      %11811 = vmatprep.subr.bf16.mxu0 0
      %11812 = vmatpush1.bf16.msra.mxu0 0
      %11813 = vmatprep.subr.bf16.mxu0 0
      %11814 = vmatpush1.bf16.msra.mxu0 %v11573
      %11815 = vmatprep.subr.bf16.mxu0 0
      %11816 = vmatpush1.bf16.msra.mxu0 %v11572
      %11817 = vmatprep.subr.bf16.mxu0 0
      %11818 = vmatpush2.bf16.msra.mxu0 0
      %11819 = vmatprep.subr.bf16.mxu0 0
      %11820 = vmatpush2.bf16.msra.mxu0 0
      %11821 = vmatprep.subr.bf16.mxu0 0
      %11822 = vmatpush2.bf16.msra.mxu0 0
      %11823 = vmatprep.subr.bf16.mxu0 0
      %11824 = vmatpush2.bf16.msra.mxu0 0
      %11825 = vmatprep.subr.bf16.mxu0 0
      %11826 = vmatpush2.bf16.msra.mxu0 0
      %11827 = vmatprep.subr.bf16.mxu0 0
      %11828 = vmatpush2.bf16.msra.mxu0 0
      %11829 = vmatprep.subr.bf16.mxu0 0
      %11830 = vmatpush2.bf16.msra.mxu0 0
      %11831 = vmatprep.subr.bf16.mxu0 0
      %11832 = vmatpush2.bf16.msra.mxu0 0
      %11833 = vmatprep.mubr.bf16.mxu0 0
      %11834 = vmatmul.mubr.bf16.gmra.mxu0 %v11593
      %v11835 = vpop.f32.mrf.mxu0
      %v11836 = vadd.f32 %v11675, %v11835
      %v11837 = vpop.f32.mrf.mxu0
      %v11838 = vpop.f32.mrf.mxu0
      %v11839 = vadd.f32 %v11678, %v11838
      %v11840 = vpop.f32.mrf.mxu0
      %11841 = vmatprep.mubr.bf16.mxu0 0
      %11842 = vmatmul.mubr.bf16.gmra.mxu0 %v11596
      %v11843 = vpop.f32.mrf.mxu0
      %v11844 = vadd.f32 %v11683, %v11843
      %v11845 = vpop.f32.mrf.mxu0
      %v11846 = vpop.f32.mrf.mxu0
      %v11847 = vadd.f32 %v11686, %v11846
      %v11848 = vpop.f32.mrf.mxu0
      %11849 = vmatprep.mubr.bf16.mxu0 0
      %11850 = vmatmul.mubr.bf16.gmra.mxu0 %v11599
      %v11851 = vpop.f32.mrf.mxu0
      %v11852 = vadd.f32 %v11691, %v11851
      %v11853 = vpop.f32.mrf.mxu0
      %v11854 = vpop.f32.mrf.mxu0
      %v11855 = vadd.f32 %v11694, %v11854
      %v11856 = vpop.f32.mrf.mxu0
      %11857 = vmatprep.mubr.bf16.mxu0 0
      %11858 = vmatmul.mubr.bf16.gmra.mxu0 %v11602
      %v11859 = vpop.f32.mrf.mxu0
      %v11860 = vadd.f32 %v11699, %v11859
      %v11861 = vpop.f32.mrf.mxu0
      %v11862 = vpop.f32.mrf.mxu0
      %v11863 = vadd.f32 %v11702, %v11862
      %v11864 = vpop.f32.mrf.mxu0
      %11865 = vmatprep.mubr.bf16.mxu0 0
      %11866 = vmatmul.mubr.bf16.gmra.mxu0 %v11605
      %v11867 = vpop.f32.mrf.mxu0
      %v11868 = vadd.f32 %v11707, %v11867
      %v11869 = vpop.f32.mrf.mxu0
      %v11870 = vpop.f32.mrf.mxu0
      %v11871 = vadd.f32 %v11710, %v11870
      %v11872 = vpop.f32.mrf.mxu0
      %11873 = vmatprep.mubr.bf16.mxu0 0
      %11874 = vmatmul.mubr.bf16.gmra.mxu0 %v11608
      %v11875 = vpop.f32.mrf.mxu0
      %v11876 = vadd.f32 %v11715, %v11875
      %v11877 = vpop.f32.mrf.mxu0
      %v11878 = vpop.f32.mrf.mxu0
      %v11879 = vadd.f32 %v11718, %v11878
      %v11880 = vpop.f32.mrf.mxu0
      %11881 = vmatprep.mubr.bf16.mxu0 0
      %11882 = vmatmul.mubr.bf16.gmra.mxu0 %v11611
      %v11883 = vpop.f32.mrf.mxu0
      %v11884 = vadd.f32 %v11723, %v11883
      %v11885 = vpop.f32.mrf.mxu0
      %v11886 = vpop.f32.mrf.mxu0
      %v11887 = vadd.f32 %v11726, %v11886
      %v11888 = vpop.f32.mrf.mxu0
      %11889 = vmatprep.mubr.bf16.mxu0 0
      %11890 = vmatmul.mubr.bf16.gmra.mxu0 %v11614
      %v11891 = vpop.f32.mrf.mxu0
      %v11892 = vadd.f32 %v11731, %v11891
      %v11893 = vpop.f32.mrf.mxu0
      %v11894 = vpop.f32.mrf.mxu0
      %v11895 = vadd.f32 %v11734, %v11894
      %v11896 = vpop.f32.mrf.mxu0
      %11897 = vmatprep.mubr.bf16.mxu0 0
      %11898 = vmatmul.mubr.bf16.gmra.mxu0 %v11617
      %v11899 = vpop.f32.mrf.mxu0
      %v11900 = vadd.f32 %v11739, %v11899
      %v11901 = vpop.f32.mrf.mxu0
      %v11902 = vpop.f32.mrf.mxu0
      %v11903 = vadd.f32 %v11742, %v11902
      %v11904 = vpop.f32.mrf.mxu0
      %11905 = vmatprep.mubr.bf16.mxu0 0
      %11906 = vmatmul.mubr.bf16.gmra.mxu0 %v11620
      %v11907 = vpop.f32.mrf.mxu0
      %v11908 = vadd.f32 %v11747, %v11907
      %v11909 = vpop.f32.mrf.mxu0
      %v11910 = vpop.f32.mrf.mxu0
      %v11911 = vadd.f32 %v11750, %v11910
      %v11912 = vpop.f32.mrf.mxu0
      %11913 = vmatprep.mubr.bf16.mxu0 0
      %11914 = vmatmul.mubr.bf16.gmra.mxu0 %v11623
      %v11915 = vpop.f32.mrf.mxu0
      %v11916 = vadd.f32 %v11755, %v11915
      %v11917 = vpop.f32.mrf.mxu0
      %v11918 = vpop.f32.mrf.mxu0
      %v11919 = vadd.f32 %v11758, %v11918
      %v11920 = vpop.f32.mrf.mxu0
      %11921 = vmatprep.mubr.bf16.mxu0 0
      %11922 = vmatmul.mubr.bf16.gmra.mxu0 %v11626
      %v11923 = vpop.f32.mrf.mxu0
      %v11924 = vadd.f32 %v11763, %v11923
      %v11925 = vpop.f32.mrf.mxu0
      %v11926 = vpop.f32.mrf.mxu0
      %v11927 = vadd.f32 %v11766, %v11926
      %v11928 = vpop.f32.mrf.mxu0
      %11929 = vmatprep.mubr.bf16.mxu0 0
      %11930 = vmatmul.mubr.bf16.gmra.mxu0 %v11629
      %v11931 = vpop.f32.mrf.mxu0
      %v11932 = vadd.f32 %v11771, %v11931
      %v11933 = vpop.f32.mrf.mxu0
      %v11934 = vpop.f32.mrf.mxu0
      %v11935 = vadd.f32 %v11774, %v11934
      %v11936 = vpop.f32.mrf.mxu0
      %11937 = vmatprep.mubr.bf16.mxu0 0
      %11938 = vmatmul.mubr.bf16.gmra.mxu0 %v11632
      %v11939 = vpop.f32.mrf.mxu0
      %v11940 = vadd.f32 %v11779, %v11939
      %v11941 = vpop.f32.mrf.mxu0
      %v11942 = vpop.f32.mrf.mxu0
      %v11943 = vadd.f32 %v11782, %v11942
      %v11944 = vpop.f32.mrf.mxu0
      %11945 = vmatprep.mubr.bf16.mxu0 0
      %11946 = vmatmul.mubr.bf16.gmra.mxu0 %v11635
      %v11947 = vpop.f32.mrf.mxu0
      %v11948 = vadd.f32 %v11787, %v11947
      %v11949 = vpop.f32.mrf.mxu0
      %v11950 = vpop.f32.mrf.mxu0
      %v11951 = vadd.f32 %v11790, %v11950
      %v11952 = vpop.f32.mrf.mxu0
      %11953 = vmatprep.mubr.bf16.mxu0 0
      %11954 = vmatmul.mubr.bf16.gmra.mxu0 %v11638
      %v11955 = vpop.f32.mrf.mxu0
      %v11956 = vadd.f32 %v11795, %v11955
      %v11957 = vpop.f32.mrf.mxu0
      %v11958 = vpop.f32.mrf.mxu0
      %v11959 = vadd.f32 %v11798, %v11958
      %v11960 = vpop.f32.mrf.mxu0
      %11961 = vdwg.mxu0
      %v11962 = vmax.f32 %v11836, 0.0
      %v11963 = vmax.f32 %v11839, 0.0
      %v11964 = vmax.f32 %v11844, 0.0
      %v11965 = vmax.f32 %v11847, 0.0
      %v11966 = vmax.f32 %v11852, 0.0
      %v11967 = vmax.f32 %v11855, 0.0
      %v11968 = vmax.f32 %v11860, 0.0
      %v11969 = vmax.f32 %v11863, 0.0
      %v11970 = vmax.f32 %v11868, 0.0
      %v11971 = vmax.f32 %v11871, 0.0
      %v11972 = vmax.f32 %v11876, 0.0
      %v11973 = vmax.f32 %v11879, 0.0
      %v11974 = vmax.f32 %v11884, 0.0
      %v11975 = vmax.f32 %v11887, 0.0
      %v11976 = vmax.f32 %v11892, 0.0
      %v11977 = vmax.f32 %v11895, 0.0
      %v11978 = vmax.f32 %v11900, 0.0
      %v11979 = vmax.f32 %v11903, 0.0
      %v11980 = vmax.f32 %v11908, 0.0
      %v11981 = vmax.f32 %v11911, 0.0
      %v11982 = vmax.f32 %v11916, 0.0
      %v11983 = vmax.f32 %v11919, 0.0
      %v11984 = vmax.f32 %v11924, 0.0
      %v11985 = vmax.f32 %v11927, 0.0
      %v11986 = vmax.f32 %v11932, 0.0
      %v11987 = vmax.f32 %v11935, 0.0
      %v11988 = vmax.f32 %v11940, 0.0
      %v11989 = vmax.f32 %v11943, 0.0
      %v11990 = vmax.f32 %v11948, 0.0
      %v11991 = vmax.f32 %v11951, 0.0
      %v11992 = vmax.f32 %v11956, 0.0
      %v11993 = vmax.f32 %v11959, 0.0
      %11994 = vst.msk [vmem:[%s170] sm:$0xff] %vm2336, %v11962
      %11995 = vst.msk [vmem:[%s170 + $0x8] sm:$0xff] %vm2336, %v11963
      %11996 = vst.msk [vmem:[%s170 + $0x10] sm:$0xff] %vm2336, %v11964
      %11997 = vst.msk [vmem:[%s170 + $0x18] sm:$0xff] %vm2336, %v11965
      %11998 = vst.msk [vmem:[%s170 + $0x20] sm:$0xff] %vm2336, %v11966
      %11999 = vst.msk [vmem:[%s170 + $0x28] sm:$0xff] %vm2336, %v11967
      %12000 = vst.msk [vmem:[%s170 + $0x30] sm:$0xff] %vm2336, %v11968
      %12001 = vst.msk [vmem:[%s170 + $0x38] sm:$0xff] %vm2336, %v11969
      %12002 = vst.msk [vmem:[%s170 + $0x40] sm:$0xff] %vm2336, %v11970
      %12003 = vst.msk [vmem:[%s170 + $0x48] sm:$0xff] %vm2336, %v11971
      %12004 = vst.msk [vmem:[%s170 + $0x50] sm:$0xff] %vm2336, %v11972
      %12005 = vst.msk [vmem:[%s170 + $0x58] sm:$0xff] %vm2336, %v11973
      %12006 = vst.msk [vmem:[%s170 + $0x60] sm:$0xff] %vm2336, %v11974
      %12007 = vst.msk [vmem:[%s170 + $0x68] sm:$0xff] %vm2336, %v11975
      %12008 = vst.msk [vmem:[%s170 + $0x70] sm:$0xff] %vm2336, %v11976
      %12009 = vst.msk [vmem:[%s170 + $0x78] sm:$0xff] %vm2336, %v11977
      %12010 = vst.msk [vmem:[%s170 + $0x80] sm:$0xff] %vm2336, %v11978
      %12011 = vst.msk [vmem:[%s170 + $0x88] sm:$0xff] %vm2336, %v11979
      %12012 = vst.msk [vmem:[%s170 + $0x90] sm:$0xff] %vm2336, %v11980
      %12013 = vst.msk [vmem:[%s170 + $0x98] sm:$0xff] %vm2336, %v11981
      %12014 = vst.msk [vmem:[%s170 + $0xa0] sm:$0xff] %vm2336, %v11982
      %12015 = vst.msk [vmem:[%s170 + $0xa8] sm:$0xff] %vm2336, %v11983
      %12016 = vst.msk [vmem:[%s170 + $0xb0] sm:$0xff] %vm2336, %v11984
      %12017 = vst.msk [vmem:[%s170 + $0xb8] sm:$0xff] %vm2336, %v11985
      %12018 = vst.msk [vmem:[%s170 + $0xc0] sm:$0xff] %vm2336, %v11986
      %12019 = vst.msk [vmem:[%s170 + $0xc8] sm:$0xff] %vm2336, %v11987
      %12020 = vst.msk [vmem:[%s170 + $0xd0] sm:$0xff] %vm2336, %v11988
      %12021 = vst.msk [vmem:[%s170 + $0xd8] sm:$0xff] %vm2336, %v11989
      %12022 = vst.msk [vmem:[%s170 + $0xe0] sm:$0xff] %vm2336, %v11990
      %12023 = vst.msk [vmem:[%s170 + $0xe8] sm:$0xff] %vm2336, %v11991
      %12024 = vst.msk [vmem:[%s170 + $0xf0] sm:$0xff] %vm2336, %v11992
      %12025 = vst.msk [vmem:[%s170 + $0xf8] sm:$0xff] %vm2336, %v11993
      %p12026 = scmp.lt.s32.totalorder %s14, 1
      %s12027 = scalar_select %p12026, %s14, 1
      %s12028 = smul.addr %s12027, 32
      %s12029 = smul.addr %s12028, 8
      %s12030 = scalar_lea.vmem %s3, %s12029
      // Predicated region
      $region33: #{coupled_head_forward.1} parent=31 // pred_check
        %p12031 = pneg %p100
      $region34: #{coupled_head_forward.1} parent=31 // pred_check_branch
        %12033 = sbr.rel (%p12031) target = $region36
      $region35: #{coupled_head_forward.1} parent=31 // pred_region
        _
      $region36: #{coupled_head_forward.1} parent=31 // pred_fallthru
        _
    $region32: #{coupled_head_forward.1} parent=5 // pred_fallthru
      _
    %p12034 = scmp.le.s32.totalorder 2, %s9
    // Predicated region
    $region37: #{coupled_head_forward.1} parent=5 // pred_check
      %p12035 = pneg %p12034
    $region38: #{coupled_head_forward.1} parent=5 // pred_check_branch
      %12037 = sbr.rel (%p12035) target = $region40
    $region39: #{coupled_head_forward.1} parent=5 // pred_region
      %s12038 = ssub.s32 %s9, 2
      // Predicated region
      $region41: #{coupled_head_forward.1} parent=39 // pred_check
        %p12039 = pneg %p106
      $region42: #{coupled_head_forward.1} parent=39 // pred_check_branch
        %12041 = sbr.rel (%p12039) target = $region44
      $region43: #{coupled_head_forward.1} parent=39 // pred_region
        %p12042 = scmp.lt.s32.totalorder %s15, 1
        %s12043 = scalar_select %p12042, %s15, 1
        %s12044 = smul.addr %s12043, 32
        %s12045 = smul.addr %s12044, 8
        %s12046 = scalar_lea.vmem %s3, %s12045
      $region44: #{coupled_head_forward.1} parent=39 // pred_fallthru
        _
    $region40: #{coupled_head_forward.1} parent=5 // pred_fallthru
      _
  $region6: #{coupled_head_forward.1} parent=0 // loop_footer
    %s13 = sadd.s32 1, %s9
  $region7: #{coupled_head_forward.1} parent=0 // loop_footer_branch
    %8 = sbr.rel target = $region3
  $region8: #{coupled_head_forward.1} parent=0 // loop_exit
    _

</llo_original>
